<compile_context>
chip_gen: v5e
topology: v5e:2x2
jax: 0.10.0
libtpu: 0.0.40
codegen_flags: <defaults>
</compile_context>

<pallas_src>
import jax
import jax.numpy as jnp
from jax import lax
from jax.experimental import pallas as pl
from jax.experimental.pallas import tpu as pltpu

EPS = 1e-5
KW = 3  # conv kernel width of (1, 3)


# ----------------------------------------------------------------------------
# Fused Pallas kernel: 3 x (conv(1,3) + BN + ReLU) + FC
# ----------------------------------------------------------------------------
def _fused_cnn_kernel(x_ref,                       # (W1, H, NB, 3*C0) bf16 (im2col'ed)
                      w1_ref, s1_ref, t1_ref,      # (3*C0, C1) bf16, (1, C1) f32 x2
                      w2_ref, s2_ref, t2_ref,      # (3, C1, C2) bf16, (1, C2) f32 x2
                      w3_ref, s3_ref, t3_ref,      # (3, C2, C3) bf16, (1, C3) f32 x2
                      wfc_ref, bfc_ref,            # (H, C3, NOUT) bf16, (1, NOUT) f32
                      x1_ref,                      # out: (H, NB, C3) f32
                      fc_ref):                     # out: (NB, NOUT)  f32
    w1_out, height, nb, k1 = x_ref.shape
    rows = height * nb                             # rows per width position

    def bn_relu(acc, s_ref, t_ref):
        # f32 accumulator * f32 scale + f32 shift, ReLU in f32 (VPU).
        return jnp.maximum(acc * s_ref[...] + t_ref[...], 0.0)

    # ---- layer1: im2col'ed -> a single MXU matmul (K = 3*C0 = 108) ---------
    # (W1, H, NB, 3*C0) -> (W1*H*NB, 3*C0): leading-dim merge, sublane aligned.
    x = x_ref[...].reshape(w1_out * rows, k1)
    a1 = bn_relu(jnp.dot(x, w1_ref[...], preferred_element_type=jnp.float32),
                 s1_ref, t1_ref)                   # (w1_out*rows, C1) f32

    def conv_bn_relu(a_f32, w_ref, s_ref, t_ref, wout):
        # bf16 MXU operands, f32 accumulation; each kw tap is a contiguous,
        # sublane-aligned slice of the (w, h, n)-ordered row slab.
        a = a_f32.astype(w_ref.dtype)
        acc = jnp.dot(a[:wout * rows], w_ref[0],
                      preferred_element_type=jnp.float32)
        for k in range(1, w_ref.shape[0]):         # static unroll, == 3
            acc = acc + jnp.dot(a[k * rows:(k + wout) * rows], w_ref[k],
                                preferred_element_type=jnp.float32)
        return bn_relu(acc, s_ref, t_ref)

    w2_out = w1_out - (KW - 1)                     # 3
    w3_out = w2_out - (KW - 1)                     # 1
    a2 = conv_bn_relu(a1, w2_ref, s2_ref, t2_ref, w2_out)   # (w2_out*rows, C2)
    a3 = conv_bn_relu(a2, w3_ref, s3_ref, t3_ref, w3_out)   # (rows, C3) f32

    # x1 output: rows ordered (h, n); lane-dense store (C3 = 256).
    a3_hnc = a3.reshape(height, nb, a3.shape[-1])  # leading-dim split (aligned)
    x1_ref[...] = a3_hnc.astype(x1_ref.dtype)

    # ---- FC epilogue: one batched contraction over h ------------------------
    # out[n, j] = b[j] + sum_h sum_c a3[h, n, c] * Wfc[h, c, j]
    part = jnp.einsum("hnc,hcj->hnj",
                      a3_hnc.astype(wfc_ref.dtype), wfc_ref[...],
                      preferred_element_type=jnp.float32)   # (H, NB, NOUT) f32
    fc_ref[...] = (bfc_ref[...] + jnp.sum(part, axis=0)).astype(fc_ref.dtype)


# ----------------------------------------------------------------------------
# One-time parameter preprocessing (hoisted out of the per-call path)
# ----------------------------------------------------------------------------
def prepare_params(params, height):
    prepped = {}
    for name in ("layer1", "layer2", "layer3"):
        p = params[name]
        scale = p["gamma"] / jnp.sqrt(p["var"] + EPS)            # f32
        shift = (p["bias"] - p["mean"]) * scale + p["beta"]      # f32
        # PyTorch conv weight (Cout, Cin, 1, KW) -> (KW, Cin, Cout), bf16.
        w_kio = jnp.transpose(p["weight"][:, :, 0, :], (2, 1, 0)).astype(jnp.bfloat16)
        prepped[name] = {"w": w_kio,
                         "scale": scale[None, :],
                         "shift": shift[None, :]}
    # layer1 is consumed pre-im2col'ed: (KW, C0, C1) -> (KW*C0, C1).
    w1 = prepped["layer1"]["w"]
    prepped["layer1"]["w"] = w1.reshape(w1.shape[0] * w1.shape[1], w1.shape[2])

    # FC weight (NOUT, C3*H); PyTorch view(N,-1) flat index is c*H + h.
    wfc = params["fc"]["weight"]
    n_out, in_feat = wfc.shape
    c3 = in_feat // height
    wperm = jnp.transpose(wfc.reshape(n_out, c3, height), (2, 1, 0))  # (H, C3, NOUT)
    prepped["fc"] = {"w": wperm.astype(jnp.bfloat16),
                     "b": params["fc"]["bias"][None, :]}
    return prepped


# ----------------------------------------------------------------------------
# Model forward (layout glue in plain JAX, everything else in one Pallas call)
# ----------------------------------------------------------------------------
def _pick_batch_block(n_padded, max_block=64):
    cands = [d for d in range(8, min(n_padded, max_block) + 1, 8)
             if n_padded % d == 0]
    return max(cands) if cands else n_padded


def cnn_forward(x_nchw, prepped, *, batch_block=None):
    n, c0, h, w = x_nchw.shape
    w1_out = w - (KW - 1)

    # Pad batch to a multiple of 8: keeps every block shape / in-kernel reshape
    # sublane-aligned (and keeps the fc output block tileable when blocking).
    n_pad = (-n) % 8
    if n_pad:
        x_nchw = jnp.pad(x_nchw, ((0, n_pad), (0, 0), (0, 0), (0, 0)))
    n_full = n + n_pad
    if batch_block is None:
        batch_block = _pick_batch_block(n_full)
    num_blocks = n_full // batch_block

    # NCHW -> (W, H, N, C); im2col over the 3 conv-1 taps; bf16 MXU operand.
    x_whnc = jnp.transpose(x_nchw, (3, 2, 0, 1))
    x_cat = jnp.concatenate([x_whnc[k:k + w1_out] for k in range(KW)],
                            axis=-1).astype(jnp.bfloat16)    # (W1, H, N, 3*C0)

    l1, l2, l3, fc = (prepped["layer1"], prepped["layer2"],
                      prepped["layer3"], prepped["fc"])
    c3 = l3["w"].shape[2]
    n_out = fc["w"].shape[2]

    def full_spec(arr):
        zeros = (0,) * arr.ndim
        return pl.BlockSpec(arr.shape, lambda i, _z=zeros: _z)

    x1_full, out_full = pl.pallas_call(
        _fused_cnn_kernel,
        out_shape=(
            jax.ShapeDtypeStruct((h, n_full, c3), jnp.float32),
            jax.ShapeDtypeStruct((n_full, n_out), jnp.float32),
        ),
        grid=(num_blocks,),
        in_specs=[
            pl.BlockSpec((w1_out, h, batch_block, x_cat.shape[-1]),
                         lambda i: (0, 0, i, 0)),
            full_spec(l1["w"]), full_spec(l1["scale"]), full_spec(l1["shift"]),
            full_spec(l2["w"]), full_spec(l2["scale"]), full_spec(l2["shift"]),
            full_spec(l3["w"]), full_spec(l3["scale"]), full_spec(l3["shift"]),
            full_spec(fc["w"]), full_spec(fc["b"]),
        ],
        out_specs=(
            pl.BlockSpec((h, batch_block, c3), lambda i: (0, i, 0)),
            pl.BlockSpec((batch_block, n_out), lambda i: (i, 0)),
        ),
        compiler_params=pltpu.CompilerParams(
            dimension_semantics=("parallel",)),
    )(x_cat, l1["w"], l1["scale"], l1["shift"],
      l2["w"], l2["scale"], l2["shift"],
      l3["w"], l3["scale"], l3["shift"],
      fc["w"], fc["b"])

    # (H, N, C3) rows -> NCHW (N, C3, H, 1); drop the batch padding.
    x1 = jnp.transpose(x1_full[:, :n, :], (1, 2, 0))[:, :, :, None]
    return x1, out_full[:n]


# ----------------------------------------------------------------------------
# Pure-JAX reference (f32, for correctness check)
# ----------------------------------------------------------------------------
def reference_forward(x, params):
    h = x
    for name in ("layer1", "layer2", "layer3"):
        p = params[name]
        h = lax.conv_general_dilated(
            h, p["weight"], window_strides=(1, 1), padding="VALID",
            dimension_numbers=("NCHW", "OIHW", "NCHW"),
            precision=lax.Precision.HIGHEST)
        h = h + p["bias"][None, :, None, None]
        scale = p["gamma"] / jnp.sqrt(p["var"] + EPS)
        h = (h - p["mean"][None, :, None, None]) * scale[None, :, None, None] \
            + p["beta"][None, :, None, None]
        h = jnp.maximum(h, 0.0)
    x1 = h
    flat = h.reshape(h.shape[0], -1)
    out = jnp.dot(flat, params["fc"]["weight"].T,
                  precision=lax.Precision.HIGHEST) + params["fc"]["bias"]
    return x1, out


# ----------------------------------------------------------------------------
# Deterministic parameter init (synthetic, no checkpoint)
# ----------------------------------------------------------------------------
def init_params(key):
    def conv_bn(key, cin, cout):
        k = jax.random.split(key, 6)
        fan_in = cin * 3
        return {
            "weight": jax.random.normal(k[0], (cout, cin, 1, 3), jnp.float32)
                      / jnp.sqrt(fan_in),
            "bias":   0.05 * jax.random.normal(k[1], (cout,), jnp.float32),
            "gamma":  1.0 + 0.1 * jax.random.normal(k[2], (cout,), jnp.float32),
            "beta":   0.05 * jax.random.normal(k[3], (cout,), jnp.float32),
            "mean":   0.05 * jax.random.normal(k[4], (cout,), jnp.float32),
            "var":    0.5 + jax.random.uniform(k[5], (cout,), jnp.float32),
        }

    k1, k2, k3, k4, k5 = jax.random.split(key, 5)
    in_features = 256 * 24 * 1
    return {
        "layer1": conv_bn(k1, 36, 64),
        "layer2": conv_bn(k2, 64, 128),
        "layer3": conv_bn(k3, 128, 256),
        "fc": {
            "weight": jax.random.normal(k4, (8, in_features), jnp.float32)
                      / jnp.sqrt(in_features),
            "bias":   0.05 * jax.random.normal(k5, (8,), jnp.float32),
        },
    }


if __name__ == "__main__":
    root = jax.random.PRNGKey(0)
    k_params, k_x = jax.random.split(root)

    params = init_params(k_params)
    # One-time preprocessing: BN fold, bf16 weight casts, im2col/FC permutation.
    prepped = prepare_params(params, height=24)

    # Input implied by fc(256*24*1): NCHW = (batch, 36, 24, 7)
    x = jax.random.normal(k_x, (2, 36, 24, 7), jnp.float32)

    fwd = jax.jit(cnn_forward)
    x1, out = fwd(x, prepped)
    jax.block_until_ready((x1, out))

    x1_ref, out_ref = reference_forward(x, params)

    assert x1.shape == (2, 256, 24, 1), x1.shape
    assert out.shape == (2, 8), out.shape
    # bf16 MXU operands (f32 accumulation) vs f32 HIGHEST reference -> use a
    # bf16-appropriate tolerance; structural bugs would produce O(1) errors.
    assert jnp.allclose(x1, x1_ref, atol=5e-2, rtol=5e-2), "x1 mismatch"
    assert jnp.allclose(out, out_ref, atol=5e-2, rtol=5e-2), "out mismatch"

    print("KERNEL_OK")
</pallas_src>

<mosaic_0001>
module attributes {stable_mosaic.version = 11 : i64} {
  func.func @_fused_cnn_kernel(%arg0: i32, %arg1: memref<5x24x8x108xbf16, #tpu.memory_space<vmem>>, %arg2: memref<108x64xbf16, #tpu.memory_space<vmem>>, %arg3: memref<1x64xf32, #tpu.memory_space<vmem>>, %arg4: memref<1x64xf32, #tpu.memory_space<vmem>>, %arg5: memref<3x64x128xbf16, #tpu.memory_space<vmem>>, %arg6: memref<1x128xf32, #tpu.memory_space<vmem>>, %arg7: memref<1x128xf32, #tpu.memory_space<vmem>>, %arg8: memref<3x128x256xbf16, #tpu.memory_space<vmem>>, %arg9: memref<1x256xf32, #tpu.memory_space<vmem>>, %arg10: memref<1x256xf32, #tpu.memory_space<vmem>>, %arg11: memref<24x256x8xbf16, #tpu.memory_space<vmem>>, %arg12: memref<1x8xf32, #tpu.memory_space<vmem>>, %arg13: memref<24x8x256xf32, #tpu.memory_space<vmem>>, %arg14: memref<8x8xf32, #tpu.memory_space<vmem>>) attributes {dimension_semantics = [#tpu.dimension_semantics<parallel>], iteration_bounds = array<i64: 1>, scalar_prefetch = 0 : i64, scratch_operands = 0 : i64, tpu.core_type = #tpu.core_type<tc>, window_params = [{transform_indices = @transform_0, window_bounds = array<i64: 5, 24, 8, 108>}, {pipeline_mode = #tpu.pipeline_mode<synchronous>, transform_indices = @transform_1, window_bounds = array<i64: 108, 64>}, {pipeline_mode = #tpu.pipeline_mode<synchronous>, transform_indices = @transform_2, window_bounds = array<i64: 1, 64>}, {pipeline_mode = #tpu.pipeline_mode<synchronous>, transform_indices = @transform_3, window_bounds = array<i64: 1, 64>}, {pipeline_mode = #tpu.pipeline_mode<synchronous>, transform_indices = @transform_4, window_bounds = array<i64: 3, 64, 128>}, {pipeline_mode = #tpu.pipeline_mode<synchronous>, transform_indices = @transform_5, window_bounds = array<i64: 1, 128>}, {pipeline_mode = #tpu.pipeline_mode<synchronous>, transform_indices = @transform_6, window_bounds = array<i64: 1, 128>}, {pipeline_mode = #tpu.pipeline_mode<synchronous>, transform_indices = @transform_7, window_bounds = array<i64: 3, 128, 256>}, {pipeline_mode = #tpu.pipeline_mode<synchronous>, transform_indices = @transform_8, window_bounds = array<i64: 1, 256>}, {pipeline_mode = #tpu.pipeline_mode<synchronous>, transform_indices = @transform_9, window_bounds = array<i64: 1, 256>}, {pipeline_mode = #tpu.pipeline_mode<synchronous>, transform_indices = @transform_10, window_bounds = array<i64: 24, 256, 8>}, {pipeline_mode = #tpu.pipeline_mode<synchronous>, transform_indices = @transform_11, window_bounds = array<i64: 1, 8>}, {transform_indices = @transform_12, window_bounds = array<i64: 24, 8, 256>}, {transform_indices = @transform_13, window_bounds = array<i64: 8, 8>}]} {
    %c0 = arith.constant 0 : index
    %c0_0 = arith.constant 0 : index
    %c0_1 = arith.constant 0 : index
    %c0_2 = arith.constant 0 : index
    %0 = vector.load %arg1[%c0, %c0_0, %c0_1, %c0_2] : memref<5x24x8x108xbf16, #tpu.memory_space<vmem>>, vector<5x24x8x108xbf16>
    %1 = vector.shape_cast %0 : vector<5x24x8x108xbf16> to vector<960x108xbf16>
    %c0_3 = arith.constant 0 : index
    %c0_4 = arith.constant 0 : index
    %2 = vector.load %arg2[%c0_3, %c0_4] : memref<108x64xbf16, #tpu.memory_space<vmem>>, vector<108x64xbf16>
    %cst = arith.constant dense<0.000000e+00> : vector<960x64xf32>
    %3 = tpu.matmul %1, %2, %cst {dimension_numbers = #tpu.dot_dimension_numbers<[1], [0], [0], [1], [0, 0, 1, 1], [], []>} : vector<960x108xbf16>, vector<108x64xbf16>, vector<960x64xf32> -> vector<960x64xf32>
    %c0_5 = arith.constant 0 : index
    %c0_6 = arith.constant 0 : index
    %4 = vector.load %arg3[%c0_5, %c0_6] : memref<1x64xf32, #tpu.memory_space<vmem>>, vector<1x64xf32>
    %5 = vector.broadcast %4 : vector<1x64xf32> to vector<960x64xf32>
    %6 = arith.mulf %3, %5 : vector<960x64xf32>
    %c0_7 = arith.constant 0 : index
    %c0_8 = arith.constant 0 : index
    %7 = vector.load %arg4[%c0_7, %c0_8] : memref<1x64xf32, #tpu.memory_space<vmem>>, vector<1x64xf32>
    %8 = vector.broadcast %7 : vector<1x64xf32> to vector<960x64xf32>
    %9 = arith.addf %6, %8 : vector<960x64xf32>
    %cst_9 = arith.constant 0.000000e+00 : f32
    %10 = vector.broadcast %cst_9 : f32 to vector<960x64xf32>
    %11 = arith.maximumf %9, %10 : vector<960x64xf32>
    %12 = arith.truncf %11 : vector<960x64xf32> to vector<960x64xbf16>
    %13 = vector.extract_strided_slice %12 {offsets = [0, 0], sizes = [576, 64], strides = [1, 1]} : vector<960x64xbf16> to vector<576x64xbf16>
    %c0_10 = arith.constant 0 : index
    %c0_11 = arith.constant 0 : index
    %c0_12 = arith.constant 0 : index
    %14 = vector.load %arg5[%c0_10, %c0_11, %c0_12] : memref<3x64x128xbf16, #tpu.memory_space<vmem>>, vector<1x64x128xbf16>
    %15 = vector.shape_cast %14 : vector<1x64x128xbf16> to vector<64x128xbf16>
    %cst_13 = arith.constant dense<0.000000e+00> : vector<576x128xf32>
    %16 = tpu.matmul %13, %15, %cst_13 {dimension_numbers = #tpu.dot_dimension_numbers<[1], [0], [0], [1], [0, 0, 1, 1], [], []>} : vector<576x64xbf16>, vector<64x128xbf16>, vector<576x128xf32> -> vector<576x128xf32>
    %17 = vector.extract_strided_slice %12 {offsets = [192, 0], sizes = [576, 64], strides = [1, 1]} : vector<960x64xbf16> to vector<576x64xbf16>
    %c1 = arith.constant 1 : index
    %c0_14 = arith.constant 0 : index
    %c0_15 = arith.constant 0 : index
    %18 = vector.load %arg5[%c1, %c0_14, %c0_15] : memref<3x64x128xbf16, #tpu.memory_space<vmem>>, vector<1x64x128xbf16>
    %19 = vector.shape_cast %18 : vector<1x64x128xbf16> to vector<64x128xbf16>
    %cst_16 = arith.constant dense<0.000000e+00> : vector<576x128xf32>
    %20 = tpu.matmul %17, %19, %cst_16 {dimension_numbers = #tpu.dot_dimension_numbers<[1], [0], [0], [1], [0, 0, 1, 1], [], []>} : vector<576x64xbf16>, vector<64x128xbf16>, vector<576x128xf32> -> vector<576x128xf32>
    %21 = arith.addf %16, %20 : vector<576x128xf32>
    %22 = vector.extract_strided_slice %12 {offsets = [384, 0], sizes = [576, 64], strides = [1, 1]} : vector<960x64xbf16> to vector<576x64xbf16>
    %c2 = arith.constant 2 : index
    %c0_17 = arith.constant 0 : index
    %c0_18 = arith.constant 0 : index
    %23 = vector.load %arg5[%c2, %c0_17, %c0_18] : memref<3x64x128xbf16, #tpu.memory_space<vmem>>, vector<1x64x128xbf16>
    %24 = vector.shape_cast %23 : vector<1x64x128xbf16> to vector<64x128xbf16>
    %cst_19 = arith.constant dense<0.000000e+00> : vector<576x128xf32>
    %25 = tpu.matmul %22, %24, %cst_19 {dimension_numbers = #tpu.dot_dimension_numbers<[1], [0], [0], [1], [0, 0, 1, 1], [], []>} : vector<576x64xbf16>, vector<64x128xbf16>, vector<576x128xf32> -> vector<576x128xf32>
    %26 = arith.addf %21, %25 : vector<576x128xf32>
    %c0_20 = arith.constant 0 : index
    %c0_21 = arith.constant 0 : index
    %27 = vector.load %arg6[%c0_20, %c0_21] : memref<1x128xf32, #tpu.memory_space<vmem>>, vector<1x128xf32>
    %28 = vector.broadcast %27 : vector<1x128xf32> to vector<576x128xf32>
    %29 = arith.mulf %26, %28 : vector<576x128xf32>
    %c0_22 = arith.constant 0 : index
    %c0_23 = arith.constant 0 : index
    %30 = vector.load %arg7[%c0_22, %c0_23] : memref<1x128xf32, #tpu.memory_space<vmem>>, vector<1x128xf32>
    %31 = vector.broadcast %30 : vector<1x128xf32> to vector<576x128xf32>
    %32 = arith.addf %29, %31 : vector<576x128xf32>
    %cst_24 = arith.constant 0.000000e+00 : f32
    %33 = vector.broadcast %cst_24 : f32 to vector<576x128xf32>
    %34 = arith.maximumf %32, %33 : vector<576x128xf32>
    %35 = arith.truncf %34 : vector<576x128xf32> to vector<576x128xbf16>
    %36 = vector.extract_strided_slice %35 {offsets = [0, 0], sizes = [192, 128], strides = [1, 1]} : vector<576x128xbf16> to vector<192x128xbf16>
    %c0_25 = arith.constant 0 : index
    %c0_26 = arith.constant 0 : index
    %c0_27 = arith.constant 0 : index
    %37 = vector.load %arg8[%c0_25, %c0_26, %c0_27] : memref<3x128x256xbf16, #tpu.memory_space<vmem>>, vector<1x128x256xbf16>
    %38 = vector.shape_cast %37 : vector<1x128x256xbf16> to vector<128x256xbf16>
    %cst_28 = arith.constant dense<0.000000e+00> : vector<192x256xf32>
    %39 = tpu.matmul %36, %38, %cst_28 {dimension_numbers = #tpu.dot_dimension_numbers<[1], [0], [0], [1], [0, 0, 1, 1], [], []>} : vector<192x128xbf16>, vector<128x256xbf16>, vector<192x256xf32> -> vector<192x256xf32>
    %40 = vector.extract_strided_slice %35 {offsets = [192, 0], sizes = [192, 128], strides = [1, 1]} : vector<576x128xbf16> to vector<192x128xbf16>
    %c1_29 = arith.constant 1 : index
    %c0_30 = arith.constant 0 : index
    %c0_31 = arith.constant 0 : index
    %41 = vector.load %arg8[%c1_29, %c0_30, %c0_31] : memref<3x128x256xbf16, #tpu.memory_space<vmem>>, vector<1x128x256xbf16>
    %42 = vector.shape_cast %41 : vector<1x128x256xbf16> to vector<128x256xbf16>
    %cst_32 = arith.constant dense<0.000000e+00> : vector<192x256xf32>
    %43 = tpu.matmul %40, %42, %cst_32 {dimension_numbers = #tpu.dot_dimension_numbers<[1], [0], [0], [1], [0, 0, 1, 1], [], []>} : vector<192x128xbf16>, vector<128x256xbf16>, vector<192x256xf32> -> vector<192x256xf32>
    %44 = arith.addf %39, %43 : vector<192x256xf32>
    %45 = vector.extract_strided_slice %35 {offsets = [384, 0], sizes = [192, 128], strides = [1, 1]} : vector<576x128xbf16> to vector<192x128xbf16>
    %c2_33 = arith.constant 2 : index
    %c0_34 = arith.constant 0 : index
    %c0_35 = arith.constant 0 : index
    %46 = vector.load %arg8[%c2_33, %c0_34, %c0_35] : memref<3x128x256xbf16, #tpu.memory_space<vmem>>, vector<1x128x256xbf16>
    %47 = vector.shape_cast %46 : vector<1x128x256xbf16> to vector<128x256xbf16>
    %cst_36 = arith.constant dense<0.000000e+00> : vector<192x256xf32>
    %48 = tpu.matmul %45, %47, %cst_36 {dimension_numbers = #tpu.dot_dimension_numbers<[1], [0], [0], [1], [0, 0, 1, 1], [], []>} : vector<192x128xbf16>, vector<128x256xbf16>, vector<192x256xf32> -> vector<192x256xf32>
    %49 = arith.addf %44, %48 : vector<192x256xf32>
    %c0_37 = arith.constant 0 : index
    %c0_38 = arith.constant 0 : index
    %50 = vector.load %arg9[%c0_37, %c0_38] : memref<1x256xf32, #tpu.memory_space<vmem>>, vector<1x256xf32>
    %51 = vector.broadcast %50 : vector<1x256xf32> to vector<192x256xf32>
    %52 = arith.mulf %49, %51 : vector<192x256xf32>
    %c0_39 = arith.constant 0 : index
    %c0_40 = arith.constant 0 : index
    %53 = vector.load %arg10[%c0_39, %c0_40] : memref<1x256xf32, #tpu.memory_space<vmem>>, vector<1x256xf32>
    %54 = vector.broadcast %53 : vector<1x256xf32> to vector<192x256xf32>
    %55 = arith.addf %52, %54 : vector<192x256xf32>
    %cst_41 = arith.constant 0.000000e+00 : f32
    %56 = vector.broadcast %cst_41 : f32 to vector<192x256xf32>
    %57 = arith.maximumf %55, %56 : vector<192x256xf32>
    %58 = vector.shape_cast %57 : vector<192x256xf32> to vector<24x8x256xf32>
    %c0_42 = arith.constant 0 : index
    %c0_43 = arith.constant 0 : index
    %c0_44 = arith.constant 0 : index
    %59 = vector.load %arg13[%c0_42, %c0_43, %c0_44] : memref<24x8x256xf32, #tpu.memory_space<vmem>>, vector<24x8x256xf32>
    tpu.vector_store %arg13[%c0_42, %c0_43, %c0_44], %58 {strides = array<i32>} : memref<24x8x256xf32, #tpu.memory_space<vmem>>, vector<24x8x256xf32>,
    %60 = arith.truncf %58 : vector<24x8x256xf32> to vector<24x8x256xbf16>
    %c0_45 = arith.constant 0 : index
    %c0_46 = arith.constant 0 : index
    %c0_47 = arith.constant 0 : index
    %61 = vector.load %arg11[%c0_45, %c0_46, %c0_47] : memref<24x256x8xbf16, #tpu.memory_space<vmem>>, vector<24x256x8xbf16>
    "tpu.trace_start"() <{level = 10 : i32, message = "hnc,hcj->hnj"}> : () -> ()
    %cst_48 = arith.constant dense<0.000000e+00> : vector<24x8x8xf32>
    %62 = tpu.matmul %60, %61, %cst_48 {dimension_numbers = #tpu.dot_dimension_numbers<[2], [1], [1], [2], [0, 0, 0, 1, 1, 2], [0], [0]>} : vector<24x8x256xbf16>, vector<24x256x8xbf16>, vector<24x8x8xf32> -> vector<24x8x8xf32>
    "tpu.trace_stop"() : () -> ()
    %c0_49 = arith.constant 0 : index
    %c0_50 = arith.constant 0 : index
    %63 = vector.load %arg12[%c0_49, %c0_50] : memref<1x8xf32, #tpu.memory_space<vmem>>, vector<1x8xf32>
    %cst_51 = arith.constant dense<0.000000e+00> : vector<8x8xf32>
    %64 = vector.multi_reduction <add>, %62, %cst_51 [0] : vector<24x8x8xf32> to vector<8x8xf32>
    %65 = vector.broadcast %63 : vector<1x8xf32> to vector<8x8xf32>
    %66 = arith.addf %65, %64 : vector<8x8xf32>
    %c0_52 = arith.constant 0 : index
    %c0_53 = arith.constant 0 : index
    %67 = vector.load %arg14[%c0_52, %c0_53] : memref<8x8xf32, #tpu.memory_space<vmem>>, vector<8x8xf32>
    tpu.vector_store %arg14[%c0_52, %c0_53], %66 {strides = array<i32>} : memref<8x8xf32, #tpu.memory_space<vmem>>, vector<8x8xf32>,
    return
  }
  func.func @transform_0(%arg0: i32) -> (i32, i32, i32, i32) {
    %c0_i32 = arith.constant 0 : i32
    %c0_i32_0 = arith.constant 0 : i32
    %c0_i32_1 = arith.constant 0 : i32
    %c0_i32_2 = arith.constant 0 : i32
    return %c0_i32, %c0_i32_0, %arg0, %c0_i32_1 : i32, i32, i32, i32
  }
  func.func @transform_1(%arg0: i32) -> (i32, i32) {
    %c0_i32 = arith.constant 0 : i32
    %c0_i32_0 = arith.constant 0 : i32
    %c0_i32_1 = arith.constant 0 : i32
    return %c0_i32, %c0_i32_0 : i32, i32
  }
  func.func @transform_2(%arg0: i32) -> (i32, i32) {
    %c0_i32 = arith.constant 0 : i32
    %c0_i32_0 = arith.constant 0 : i32
    %c0_i32_1 = arith.constant 0 : i32
    return %c0_i32, %c0_i32_0 : i32, i32
  }
  func.func @transform_3(%arg0: i32) -> (i32, i32) {
    %c0_i32 = arith.constant 0 : i32
    %c0_i32_0 = arith.constant 0 : i32
    %c0_i32_1 = arith.constant 0 : i32
    return %c0_i32, %c0_i32_0 : i32, i32
  }
  func.func @transform_4(%arg0: i32) -> (i32, i32, i32) {
    %c0_i32 = arith.constant 0 : i32
    %c0_i32_0 = arith.constant 0 : i32
    %c0_i32_1 = arith.constant 0 : i32
    %c0_i32_2 = arith.constant 0 : i32
    return %c0_i32, %c0_i32_0, %c0_i32_1 : i32, i32, i32
  }
  func.func @transform_5(%arg0: i32) -> (i32, i32) {
    %c0_i32 = arith.constant 0 : i32
    %c0_i32_0 = arith.constant 0 : i32
    %c0_i32_1 = arith.constant 0 : i32
    return %c0_i32, %c0_i32_0 : i32, i32
  }
  func.func @transform_6(%arg0: i32) -> (i32, i32) {
    %c0_i32 = arith.constant 0 : i32
    %c0_i32_0 = arith.constant 0 : i32
    %c0_i32_1 = arith.constant 0 : i32
    return %c0_i32, %c0_i32_0 : i32, i32
  }
  func.func @transform_7(%arg0: i32) -> (i32, i32, i32) {
    %c0_i32 = arith.constant 0 : i32
    %c0_i32_0 = arith.constant 0 : i32
    %c0_i32_1 = arith.constant 0 : i32
    %c0_i32_2 = arith.constant 0 : i32
    return %c0_i32, %c0_i32_0, %c0_i32_1 : i32, i32, i32
  }
  func.func @transform_8(%arg0: i32) -> (i32, i32) {
    %c0_i32 = arith.constant 0 : i32
    %c0_i32_0 = arith.constant 0 : i32
    %c0_i32_1 = arith.constant 0 : i32
    return %c0_i32, %c0_i32_0 : i32, i32
  }
  func.func @transform_9(%arg0: i32) -> (i32, i32) {
    %c0_i32 = arith.constant 0 : i32
    %c0_i32_0 = arith.constant 0 : i32
    %c0_i32_1 = arith.constant 0 : i32
    return %c0_i32, %c0_i32_0 : i32, i32
  }
  func.func @transform_10(%arg0: i32) -> (i32, i32, i32) {
    %c0_i32 = arith.constant 0 : i32
    %c0_i32_0 = arith.constant 0 : i32
    %c0_i32_1 = arith.constant 0 : i32
    %c0_i32_2 = arith.constant 0 : i32
    return %c0_i32, %c0_i32_0, %c0_i32_1 : i32, i32, i32
  }
  func.func @transform_11(%arg0: i32) -> (i32, i32) {
    %c0_i32 = arith.constant 0 : i32
    %c0_i32_0 = arith.constant 0 : i32
    %c0_i32_1 = arith.constant 0 : i32
    return %c0_i32, %c0_i32_0 : i32, i32
  }
  func.func @transform_12(%arg0: i32) -> (i32, i32, i32) {
    %c0_i32 = arith.constant 0 : i32
    %c0_i32_0 = arith.constant 0 : i32
    %c0_i32_1 = arith.constant 0 : i32
    return %c0_i32, %arg0, %c0_i32_0 : i32, i32, i32
  }
  func.func @transform_13(%arg0: i32) -> (i32, i32) {
    %c0_i32 = arith.constant 0 : i32
    %c0_i32_0 = arith.constant 0 : i32
    return %arg0, %c0_i32 : i32, i32
  }
}

</mosaic_0001>

<llo_original>
// kernel: cnn_forward.1
$region0: #{cnn_forward.1}
  #allocation0 [shape = 'u32[]', space=smem, size = 0x4, offset = 0x4, fixed_abs, tag = 'smem constant byte address 0x4 - core index']
  #allocation1 [shape = 'u32[72,128]{1,0:T(1,128)}', space=vmem, size = 0x9000, scoped, tag = 'internal scratch']
  %s0 = inlined_call_operand.vmem [shape: bf16[5,24,8,108], index: 0, kind: input, shape index: {}]
  %s1 = inlined_call_operand.vmem [shape: bf16[108,64], index: 1, kind: input, shape index: {}]
  %s2 = inlined_call_operand.vmem [shape: f32[1,64], index: 2, kind: input, shape index: {}]
  %s3 = inlined_call_operand.vmem [shape: f32[1,64], index: 3, kind: input, shape index: {}]
  %s4 = inlined_call_operand.vmem [shape: bf16[3,64,128], index: 4, kind: input, shape index: {}]
  %s5 = inlined_call_operand.vmem [shape: f32[1,128], index: 5, kind: input, shape index: {}]
  %s6 = inlined_call_operand.vmem [shape: f32[1,128], index: 6, kind: input, shape index: {}]
  %s7 = inlined_call_operand.vmem [shape: bf16[3,128,256], index: 7, kind: input, shape index: {}]
  %s8 = inlined_call_operand.vmem [shape: f32[1,256], index: 8, kind: input, shape index: {}]
  %s9 = inlined_call_operand.vmem [shape: f32[1,256], index: 9, kind: input, shape index: {}]
  %s10 = inlined_call_operand.vmem [shape: bf16[24,256,8], index: 10, kind: input, shape index: {}]
  %s11 = inlined_call_operand.vmem [shape: f32[1,8], index: 11, kind: input, shape index: {}]
  %s12 = inlined_call_operand.vmem [shape: f32[24,8,256], index: 12, kind: output, shape index: {0}]
  %s13 = inlined_call_operand.vmem [shape: f32[8,8], index: 13, kind: output, shape index: {1}]
  %14 = xla_tuple %s12, %s13
  %s15 = sld [smem:[#allocation0]]
  $region66: #{cnn_forward.1} parent=0
    _
  %s17 = ssub.s32 1, %s15
  %s18 = scalar_select 0, %s17, %s15
  // Predicated region
  $region2: #{cnn_forward.1} parent=0 // pred_check
    _
  $region3: #{cnn_forward.1} parent=0 // pred_check_branch
    %20 = sbr.rel (0) target = $region5
  $region4: #{cnn_forward.1} parent=0 // pred_region
    _
  $region5: #{cnn_forward.1} parent=0 // pred_fallthru
    _
  // Predicated region
  $region6: #{cnn_forward.1} parent=0 // pred_check
    _
  $region7: #{cnn_forward.1} parent=0 // pred_check_branch
    %22 = sbr.rel (0) target = $region9
  $region8: #{cnn_forward.1} parent=0 // pred_region
    _
  $region9: #{cnn_forward.1} parent=0 // pred_fallthru
    _
  // Predicated region
  $region10: #{cnn_forward.1} parent=0 // pred_check
    _
  $region11: #{cnn_forward.1} parent=0 // pred_check_branch
    %24 = sbr.rel (0) target = $region13
  $region12: #{cnn_forward.1} parent=0 // pred_region
    _
  $region13: #{cnn_forward.1} parent=0 // pred_fallthru
    _
  // Predicated region
  $region14: #{cnn_forward.1} parent=0 // pred_check
    _
  $region15: #{cnn_forward.1} parent=0 // pred_check_branch
    %26 = sbr.rel (0) target = $region17
  $region16: #{cnn_forward.1} parent=0 // pred_region
    _
  $region17: #{cnn_forward.1} parent=0 // pred_fallthru
    _
  // Predicated region
  $region18: #{cnn_forward.1} parent=0 // pred_check
    _
  $region19: #{cnn_forward.1} parent=0 // pred_check_branch
    %28 = sbr.rel (0) target = $region21
  $region20: #{cnn_forward.1} parent=0 // pred_region
    _
  $region21: #{cnn_forward.1} parent=0 // pred_fallthru
    _
  // Predicated region
  $region22: #{cnn_forward.1} parent=0 // pred_check
    _
  $region23: #{cnn_forward.1} parent=0 // pred_check_branch
    %30 = sbr.rel (0) target = $region25
  $region24: #{cnn_forward.1} parent=0 // pred_region
    _
  $region25: #{cnn_forward.1} parent=0 // pred_fallthru
    _
  // Predicated region
  $region26: #{cnn_forward.1} parent=0 // pred_check
    _
  $region27: #{cnn_forward.1} parent=0 // pred_check_branch
    %32 = sbr.rel (0) target = $region29
  $region28: #{cnn_forward.1} parent=0 // pred_region
    _
  $region29: #{cnn_forward.1} parent=0 // pred_fallthru
    _
  // Predicated region
  $region30: #{cnn_forward.1} parent=0 // pred_check
    _
  $region31: #{cnn_forward.1} parent=0 // pred_check_branch
    %34 = sbr.rel (0) target = $region33
  $region32: #{cnn_forward.1} parent=0 // pred_region
    _
  $region33: #{cnn_forward.1} parent=0 // pred_fallthru
    _
  // Predicated region
  $region34: #{cnn_forward.1} parent=0 // pred_check
    _
  $region35: #{cnn_forward.1} parent=0 // pred_check_branch
    %36 = sbr.rel (0) target = $region37
  $region36: #{cnn_forward.1} parent=0 // pred_region
    _
  $region37: #{cnn_forward.1} parent=0 // pred_fallthru
    _
  // Predicated region
  $region38: #{cnn_forward.1} parent=0 // pred_check
    _
  $region39: #{cnn_forward.1} parent=0 // pred_check_branch
    %38 = sbr.rel (0) target = $region41
  $region40: #{cnn_forward.1} parent=0 // pred_region
    _
  $region41: #{cnn_forward.1} parent=0 // pred_fallthru
    _
  // Predicated region
  $region42: #{cnn_forward.1} parent=0 // pred_check
    _
  $region43: #{cnn_forward.1} parent=0 // pred_check_branch
    %40 = sbr.rel (0) target = $region45
  $region44: #{cnn_forward.1} parent=0 // pred_region
    _
  $region45: #{cnn_forward.1} parent=0 // pred_fallthru
    _
  // Predicated region
  $region46: #{cnn_forward.1} parent=0 // pred_check
    _
  $region47: #{cnn_forward.1} parent=0 // pred_check_branch
    %42 = sbr.rel (0) target = $region49
  $region48: #{cnn_forward.1} parent=0 // pred_region
    _
  $region49: #{cnn_forward.1} parent=0 // pred_fallthru
    _
  %v44 = vld [vmem:[%s0] sm:$0xf]
  %v45 = vld [vmem:[%s0 + $0x4] sm:$0xf]
  %v46 = vld [vmem:[%s0 + $0x8] sm:$0xf]
  %v47 = vld [vmem:[%s0 + $0xc] sm:$0xf]
  %v48 = vld [vmem:[%s0 + $0x10] sm:$0xf]
  %v49 = vld [vmem:[%s0 + $0x14] sm:$0xf]
  %v50 = vld [vmem:[%s0 + $0x18] sm:$0xf]
  %v51 = vld [vmem:[%s0 + $0x1c] sm:$0xf]
  %v52 = vld [vmem:[%s0 + $0x20] sm:$0xf]
  %v53 = vld [vmem:[%s0 + $0x24] sm:$0xf]
  %v54 = vld [vmem:[%s0 + $0x28] sm:$0xf]
  %v55 = vld [vmem:[%s0 + $0x2c] sm:$0xf]
  %v56 = vld [vmem:[%s0 + $0x30] sm:$0xf]
  %v57 = vld [vmem:[%s0 + $0x34] sm:$0xf]
  %v58 = vld [vmem:[%s0 + $0x38] sm:$0xf]
  %v59 = vld [vmem:[%s0 + $0x3c] sm:$0xf]
  %v60 = vld [vmem:[%s0 + $0x40] sm:$0xf]
  %v61 = vld [vmem:[%s0 + $0x44] sm:$0xf]
  %v62 = vld [vmem:[%s0 + $0x48] sm:$0xf]
  %v63 = vld [vmem:[%s0 + $0x4c] sm:$0xf]
  %v64 = vld [vmem:[%s0 + $0x50] sm:$0xf]
  %v65 = vld [vmem:[%s0 + $0x54] sm:$0xf]
  %v66 = vld [vmem:[%s0 + $0x58] sm:$0xf]
  %v67 = vld [vmem:[%s0 + $0x5c] sm:$0xf]
  %v68 = vld [vmem:[%s0 + $0x60] sm:$0xf]
  %v69 = vld [vmem:[%s0 + $0x64] sm:$0xf]
  %v70 = vld [vmem:[%s0 + $0x68] sm:$0xf]
  %v71 = vld [vmem:[%s0 + $0x6c] sm:$0xf]
  %v72 = vld [vmem:[%s0 + $0x70] sm:$0xf]
  %v73 = vld [vmem:[%s0 + $0x74] sm:$0xf]
  %v74 = vld [vmem:[%s0 + $0x78] sm:$0xf]
  %v75 = vld [vmem:[%s0 + $0x7c] sm:$0xf]
  %v76 = vld [vmem:[%s0 + $0x80] sm:$0xf]
  %v77 = vld [vmem:[%s0 + $0x84] sm:$0xf]
  %v78 = vld [vmem:[%s0 + $0x88] sm:$0xf]
  %v79 = vld [vmem:[%s0 + $0x8c] sm:$0xf]
  %v80 = vld [vmem:[%s0 + $0x90] sm:$0xf]
  %v81 = vld [vmem:[%s0 + $0x94] sm:$0xf]
  %v82 = vld [vmem:[%s0 + $0x98] sm:$0xf]
  %v83 = vld [vmem:[%s0 + $0x9c] sm:$0xf]
  %v84 = vld [vmem:[%s0 + $0xa0] sm:$0xf]
  %v85 = vld [vmem:[%s0 + $0xa4] sm:$0xf]
  %v86 = vld [vmem:[%s0 + $0xa8] sm:$0xf]
  %v87 = vld [vmem:[%s0 + $0xac] sm:$0xf]
  %v88 = vld [vmem:[%s0 + $0xb0] sm:$0xf]
  %v89 = vld [vmem:[%s0 + $0xb4] sm:$0xf]
  %v90 = vld [vmem:[%s0 + $0xb8] sm:$0xf]
  %v91 = vld [vmem:[%s0 + $0xbc] sm:$0xf]
  %v92 = vld [vmem:[%s0 + $0xc0] sm:$0xf]
  %v93 = vld [vmem:[%s0 + $0xc4] sm:$0xf]
  %v94 = vld [vmem:[%s0 + $0xc8] sm:$0xf]
  %v95 = vld [vmem:[%s0 + $0xcc] sm:$0xf]
  %v96 = vld [vmem:[%s0 + $0xd0] sm:$0xf]
  %v97 = vld [vmem:[%s0 + $0xd4] sm:$0xf]
  %v98 = vld [vmem:[%s0 + $0xd8] sm:$0xf]
  %v99 = vld [vmem:[%s0 + $0xdc] sm:$0xf]
  %v100 = vld [vmem:[%s0 + $0xe0] sm:$0xf]
  %v101 = vld [vmem:[%s0 + $0xe4] sm:$0xf]
  %v102 = vld [vmem:[%s0 + $0xe8] sm:$0xf]
  %v103 = vld [vmem:[%s0 + $0xec] sm:$0xf]
  %v104 = vld [vmem:[%s0 + $0xf0] sm:$0xf]
  %v105 = vld [vmem:[%s0 + $0xf4] sm:$0xf]
  %v106 = vld [vmem:[%s0 + $0xf8] sm:$0xf]
  %v107 = vld [vmem:[%s0 + $0xfc] sm:$0xf]
  %v108 = vld [vmem:[%s0 + $0x100] sm:$0xf]
  %v109 = vld [vmem:[%s0 + $0x104] sm:$0xf]
  %v110 = vld [vmem:[%s0 + $0x108] sm:$0xf]
  %v111 = vld [vmem:[%s0 + $0x10c] sm:$0xf]
  %v112 = vld [vmem:[%s0 + $0x110] sm:$0xf]
  %v113 = vld [vmem:[%s0 + $0x114] sm:$0xf]
  %v114 = vld [vmem:[%s0 + $0x118] sm:$0xf]
  %v115 = vld [vmem:[%s0 + $0x11c] sm:$0xf]
  %v116 = vld [vmem:[%s0 + $0x120] sm:$0xf]
  %v117 = vld [vmem:[%s0 + $0x124] sm:$0xf]
  %v118 = vld [vmem:[%s0 + $0x128] sm:$0xf]
  %v119 = vld [vmem:[%s0 + $0x12c] sm:$0xf]
  %v120 = vld [vmem:[%s0 + $0x130] sm:$0xf]
  %v121 = vld [vmem:[%s0 + $0x134] sm:$0xf]
  %v122 = vld [vmem:[%s0 + $0x138] sm:$0xf]
  %v123 = vld [vmem:[%s0 + $0x13c] sm:$0xf]
  %v124 = vld [vmem:[%s0 + $0x140] sm:$0xf]
  %v125 = vld [vmem:[%s0 + $0x144] sm:$0xf]
  %v126 = vld [vmem:[%s0 + $0x148] sm:$0xf]
  %v127 = vld [vmem:[%s0 + $0x14c] sm:$0xf]
  %v128 = vld [vmem:[%s0 + $0x150] sm:$0xf]
  %v129 = vld [vmem:[%s0 + $0x154] sm:$0xf]
  %v130 = vld [vmem:[%s0 + $0x158] sm:$0xf]
  %v131 = vld [vmem:[%s0 + $0x15c] sm:$0xf]
  %v132 = vld [vmem:[%s0 + $0x160] sm:$0xf]
  %v133 = vld [vmem:[%s0 + $0x164] sm:$0xf]
  %v134 = vld [vmem:[%s0 + $0x168] sm:$0xf]
  %v135 = vld [vmem:[%s0 + $0x16c] sm:$0xf]
  %v136 = vld [vmem:[%s0 + $0x170] sm:$0xf]
  %v137 = vld [vmem:[%s0 + $0x174] sm:$0xf]
  %v138 = vld [vmem:[%s0 + $0x178] sm:$0xf]
  %v139 = vld [vmem:[%s0 + $0x17c] sm:$0xf]
  %v140 = vld [vmem:[%s0 + $0x180] sm:$0xf]
  %v141 = vld [vmem:[%s0 + $0x184] sm:$0xf]
  %v142 = vld [vmem:[%s0 + $0x188] sm:$0xf]
  %v143 = vld [vmem:[%s0 + $0x18c] sm:$0xf]
  %v144 = vld [vmem:[%s0 + $0x190] sm:$0xf]
  %v145 = vld [vmem:[%s0 + $0x194] sm:$0xf]
  %v146 = vld [vmem:[%s0 + $0x198] sm:$0xf]
  %v147 = vld [vmem:[%s0 + $0x19c] sm:$0xf]
  %v148 = vld [vmem:[%s0 + $0x1a0] sm:$0xf]
  %v149 = vld [vmem:[%s0 + $0x1a4] sm:$0xf]
  %v150 = vld [vmem:[%s0 + $0x1a8] sm:$0xf]
  %v151 = vld [vmem:[%s0 + $0x1ac] sm:$0xf]
  %v152 = vld [vmem:[%s0 + $0x1b0] sm:$0xf]
  %v153 = vld [vmem:[%s0 + $0x1b4] sm:$0xf]
  %v154 = vld [vmem:[%s0 + $0x1b8] sm:$0xf]
  %v155 = vld [vmem:[%s0 + $0x1bc] sm:$0xf]
  %v156 = vld [vmem:[%s0 + $0x1c0] sm:$0xf]
  %v157 = vld [vmem:[%s0 + $0x1c4] sm:$0xf]
  %v158 = vld [vmem:[%s0 + $0x1c8] sm:$0xf]
  %v159 = vld [vmem:[%s0 + $0x1cc] sm:$0xf]
  %v160 = vld [vmem:[%s0 + $0x1d0] sm:$0xf]
  %v161 = vld [vmem:[%s0 + $0x1d4] sm:$0xf]
  %v162 = vld [vmem:[%s0 + $0x1d8] sm:$0xf]
  %v163 = vld [vmem:[%s0 + $0x1dc] sm:$0xf]
  %v164 = vld [vmem:[%s1] sm:$0xf]
  %v165 = vld [vmem:[%s1 + $0x4] sm:$0xf]
  %v166 = vld [vmem:[%s1 + $0x8] sm:$0xf]
  %v167 = vld [vmem:[%s1 + $0xc] sm:$0xf]
  %v168 = vld [vmem:[%s1 + $0x10] sm:$0xf]
  %v169 = vld [vmem:[%s1 + $0x14] sm:$0xf]
  %v170 = vld [vmem:[%s1 + $0x18] sm:$0xf]
  %v171 = vld [vmem:[%s1 + $0x1c] sm:$0xf]
  %v172 = vld [vmem:[%s1 + $0x20] sm:$0xf]
  %v173 = vld [vmem:[%s1 + $0x24] sm:$0xf]
  %v174 = vld [vmem:[%s1 + $0x28] sm:$0xf]
  %v175 = vld [vmem:[%s1 + $0x2c] sm:$0xf]
  %v176 = vld [vmem:[%s1 + $0x30] sm:$0xf]
  %v177 = vld [vmem:[%s1 + $0x34] sm:$0x3]
  %v298 = vunpack.c.l.b16 %v44
  %v299 = vunpack.c.l.b16 %v45
  %v300 = vunpack.c.l.b16 %v46
  %v301 = vunpack.c.l.b16 %v47
  %v302 = vunpack.c.l.b16 %v48
  %v303 = vunpack.c.l.b16 %v49
  %v304 = vunpack.c.l.b16 %v50
  %v305 = vunpack.c.l.b16 %v51
  %v306 = vunpack.c.l.b16 %v52
  %v307 = vunpack.c.l.b16 %v53
  %v308 = vunpack.c.l.b16 %v54
  %v309 = vunpack.c.l.b16 %v55
  %v310 = vunpack.c.l.b16 %v56
  %v311 = vunpack.c.l.b16 %v57
  %v312 = vunpack.c.l.b16 %v58
  %v313 = vunpack.c.l.b16 %v59
  %v314 = vunpack.c.l.b16 %v60
  %v315 = vunpack.c.l.b16 %v61
  %v316 = vunpack.c.l.b16 %v62
  %v317 = vunpack.c.l.b16 %v63
  %v318 = vunpack.c.l.b16 %v64
  %v319 = vunpack.c.l.b16 %v65
  %v320 = vunpack.c.l.b16 %v66
  %v321 = vunpack.c.l.b16 %v67
  %v322 = vunpack.c.l.b16 %v68
  %v323 = vunpack.c.l.b16 %v69
  %v324 = vunpack.c.l.b16 %v70
  %v325 = vunpack.c.l.b16 %v71
  %v326 = vunpack.c.l.b16 %v72
  %v327 = vunpack.c.l.b16 %v73
  %v328 = vunpack.c.l.b16 %v74
  %v329 = vunpack.c.l.b16 %v75
  %v330 = vunpack.c.l.b16 %v76
  %v331 = vunpack.c.l.b16 %v77
  %v332 = vunpack.c.l.b16 %v78
  %v333 = vunpack.c.l.b16 %v79
  %v334 = vunpack.c.l.b16 %v80
  %v335 = vunpack.c.l.b16 %v81
  %v336 = vunpack.c.l.b16 %v82
  %v337 = vunpack.c.l.b16 %v83
  %v338 = vunpack.c.l.b16 %v84
  %v339 = vunpack.c.l.b16 %v85
  %v340 = vunpack.c.l.b16 %v86
  %v341 = vunpack.c.l.b16 %v87
  %v342 = vunpack.c.l.b16 %v88
  %v343 = vunpack.c.l.b16 %v89
  %v344 = vunpack.c.l.b16 %v90
  %v345 = vunpack.c.l.b16 %v91
  %v346 = vunpack.c.l.b16 %v92
  %v347 = vunpack.c.l.b16 %v93
  %v348 = vunpack.c.l.b16 %v94
  %v349 = vunpack.c.l.b16 %v95
  %v350 = vunpack.c.l.b16 %v96
  %v351 = vunpack.c.l.b16 %v97
  %v352 = vunpack.c.l.b16 %v98
  %v353 = vunpack.c.l.b16 %v99
  %v354 = vunpack.c.l.b16 %v100
  %v355 = vunpack.c.l.b16 %v101
  %v356 = vunpack.c.l.b16 %v102
  %v357 = vunpack.c.l.b16 %v103
  %v358 = vunpack.c.l.b16 %v104
  %v359 = vunpack.c.l.b16 %v105
  %v360 = vunpack.c.l.b16 %v106
  %v361 = vunpack.c.l.b16 %v107
  %v362 = vunpack.c.l.b16 %v108
  %v363 = vunpack.c.l.b16 %v109
  %v364 = vunpack.c.l.b16 %v110
  %v365 = vunpack.c.l.b16 %v111
  %v366 = vunpack.c.l.b16 %v112
  %v367 = vunpack.c.l.b16 %v113
  %v368 = vunpack.c.l.b16 %v114
  %v369 = vunpack.c.l.b16 %v115
  %v370 = vunpack.c.l.b16 %v116
  %v371 = vunpack.c.l.b16 %v117
  %v372 = vunpack.c.l.b16 %v118
  %v373 = vunpack.c.l.b16 %v119
  %v374 = vunpack.c.l.b16 %v120
  %v375 = vunpack.c.l.b16 %v121
  %v376 = vunpack.c.l.b16 %v122
  %v377 = vunpack.c.l.b16 %v123
  %v378 = vunpack.c.l.b16 %v124
  %v379 = vunpack.c.l.b16 %v125
  %v380 = vunpack.c.l.b16 %v126
  %v381 = vunpack.c.l.b16 %v127
  %v382 = vunpack.c.l.b16 %v128
  %v383 = vunpack.c.l.b16 %v129
  %v384 = vunpack.c.l.b16 %v130
  %v385 = vunpack.c.l.b16 %v131
  %v386 = vunpack.c.l.b16 %v132
  %v387 = vunpack.c.l.b16 %v133
  %v388 = vunpack.c.l.b16 %v134
  %v389 = vunpack.c.l.b16 %v135
  %v390 = vunpack.c.l.b16 %v136
  %v391 = vunpack.c.l.b16 %v137
  %v392 = vunpack.c.l.b16 %v138
  %v393 = vunpack.c.l.b16 %v139
  %v394 = vunpack.c.l.b16 %v140
  %v395 = vunpack.c.l.b16 %v141
  %v396 = vunpack.c.l.b16 %v142
  %v397 = vunpack.c.l.b16 %v143
  %v398 = vunpack.c.l.b16 %v144
  %v399 = vunpack.c.l.b16 %v145
  %v400 = vunpack.c.l.b16 %v146
  %v401 = vunpack.c.l.b16 %v147
  %v402 = vunpack.c.l.b16 %v148
  %v403 = vunpack.c.l.b16 %v149
  %v404 = vunpack.c.l.b16 %v150
  %v405 = vunpack.c.l.b16 %v151
  %v406 = vunpack.c.l.b16 %v152
  %v407 = vunpack.c.l.b16 %v153
  %v408 = vunpack.c.l.b16 %v154
  %v409 = vunpack.c.l.b16 %v155
  %v410 = vunpack.c.l.b16 %v156
  %v411 = vunpack.c.l.b16 %v157
  %v412 = vunpack.c.l.b16 %v158
  %v413 = vunpack.c.l.b16 %v159
  %v414 = vunpack.c.l.b16 %v160
  %v415 = vunpack.c.l.b16 %v161
  %v416 = vunpack.c.l.b16 %v162
  %v417 = vunpack.c.l.b16 %v163
  %v418 = vpack.c.b16 %v299, %v298
  %v419 = vpack.c.b16 %v301, %v300
  %v420 = vpack.c.b16 %v303, %v302
  %v421 = vpack.c.b16 %v305, %v304
  %v422 = vpack.c.b16 %v307, %v306
  %v423 = vpack.c.b16 %v309, %v308
  %v424 = vpack.c.b16 %v311, %v310
  %v425 = vpack.c.b16 %v313, %v312
  %v426 = vpack.c.b16 %v315, %v314
  %v427 = vpack.c.b16 %v317, %v316
  %v428 = vpack.c.b16 %v319, %v318
  %v429 = vpack.c.b16 %v321, %v320
  %v430 = vpack.c.b16 %v323, %v322
  %v431 = vpack.c.b16 %v325, %v324
  %v432 = vpack.c.b16 %v327, %v326
  %v433 = vpack.c.b16 %v329, %v328
  %v434 = vpack.c.b16 %v331, %v330
  %v435 = vpack.c.b16 %v333, %v332
  %v436 = vpack.c.b16 %v335, %v334
  %v437 = vpack.c.b16 %v337, %v336
  %v438 = vpack.c.b16 %v339, %v338
  %v439 = vpack.c.b16 %v341, %v340
  %v440 = vpack.c.b16 %v343, %v342
  %v441 = vpack.c.b16 %v345, %v344
  %v442 = vpack.c.b16 %v347, %v346
  %v443 = vpack.c.b16 %v349, %v348
  %v444 = vpack.c.b16 %v351, %v350
  %v445 = vpack.c.b16 %v353, %v352
  %v446 = vpack.c.b16 %v355, %v354
  %v447 = vpack.c.b16 %v357, %v356
  %v448 = vpack.c.b16 %v359, %v358
  %v449 = vpack.c.b16 %v361, %v360
  %v450 = vpack.c.b16 %v363, %v362
  %v451 = vpack.c.b16 %v365, %v364
  %v452 = vpack.c.b16 %v367, %v366
  %v453 = vpack.c.b16 %v369, %v368
  %v454 = vpack.c.b16 %v371, %v370
  %v455 = vpack.c.b16 %v373, %v372
  %v456 = vpack.c.b16 %v375, %v374
  %v457 = vpack.c.b16 %v377, %v376
  %v458 = vpack.c.b16 %v379, %v378
  %v459 = vpack.c.b16 %v381, %v380
  %v460 = vpack.c.b16 %v383, %v382
  %v461 = vpack.c.b16 %v385, %v384
  %v462 = vpack.c.b16 %v387, %v386
  %v463 = vpack.c.b16 %v389, %v388
  %v464 = vpack.c.b16 %v391, %v390
  %v465 = vpack.c.b16 %v393, %v392
  %v466 = vpack.c.b16 %v395, %v394
  %v467 = vpack.c.b16 %v397, %v396
  %v468 = vpack.c.b16 %v399, %v398
  %v469 = vpack.c.b16 %v401, %v400
  %v470 = vpack.c.b16 %v403, %v402
  %v471 = vpack.c.b16 %v405, %v404
  %v472 = vpack.c.b16 %v407, %v406
  %v473 = vpack.c.b16 %v409, %v408
  %v474 = vpack.c.b16 %v411, %v410
  %v475 = vpack.c.b16 %v413, %v412
  %v476 = vpack.c.b16 %v415, %v414
  %v477 = vpack.c.b16 %v417, %v416
  %v492 = vunpack.c.l.b16 %v164
  %v493 = vunpack.c.l.b16 %v165
  %v494 = vunpack.c.l.b16 %v166
  %v495 = vunpack.c.l.b16 %v167
  %v496 = vunpack.c.l.b16 %v168
  %v497 = vunpack.c.l.b16 %v169
  %v498 = vunpack.c.l.b16 %v170
  %v499 = vunpack.c.l.b16 %v171
  %v500 = vunpack.c.l.b16 %v172
  %v501 = vunpack.c.l.b16 %v173
  %v502 = vunpack.c.l.b16 %v174
  %v503 = vunpack.c.l.b16 %v175
  %v504 = vunpack.c.l.b16 %v176
  %v505 = vunpack.c.l.b16 %v177
  %v506 = vpack.c.b16 %v493, %v492
  %v507 = vpack.c.b16 %v495, %v494
  %v508 = vpack.c.b16 %v497, %v496
  %v509 = vpack.c.b16 %v499, %v498
  %v510 = vpack.c.b16 %v501, %v500
  %v511 = vpack.c.b16 %v503, %v502
  %v512 = vpack.c.b16 %v505, %v504
  %vm519 = vcmask 883712
  %v521 = vsel %vm519, %v418, 0
  %v524 = vsel %vm519, %v419, 0
  %v527 = vsel %vm519, %v420, 0
  %v530 = vsel %vm519, %v421, 0
  %v533 = vsel %vm519, %v422, 0
  %v536 = vsel %vm519, %v423, 0
  %v539 = vsel %vm519, %v424, 0
  %v542 = vsel %vm519, %v425, 0
  %v545 = vsel %vm519, %v426, 0
  %v548 = vsel %vm519, %v427, 0
  %v551 = vsel %vm519, %v428, 0
  %v554 = vsel %vm519, %v429, 0
  %v557 = vsel %vm519, %v430, 0
  %v560 = vsel %vm519, %v431, 0
  %v563 = vsel %vm519, %v432, 0
  %v566 = vsel %vm519, %v433, 0
  %v569 = vsel %vm519, %v434, 0
  %v572 = vsel %vm519, %v435, 0
  %v575 = vsel %vm519, %v436, 0
  %v578 = vsel %vm519, %v437, 0
  %v581 = vsel %vm519, %v438, 0
  %v584 = vsel %vm519, %v439, 0
  %v587 = vsel %vm519, %v440, 0
  %v590 = vsel %vm519, %v441, 0
  %v593 = vsel %vm519, %v442, 0
  %v596 = vsel %vm519, %v443, 0
  %v599 = vsel %vm519, %v444, 0
  %v602 = vsel %vm519, %v445, 0
  %v605 = vsel %vm519, %v446, 0
  %v608 = vsel %vm519, %v447, 0
  %v611 = vsel %vm519, %v448, 0
  %v614 = vsel %vm519, %v449, 0
  %v617 = vsel %vm519, %v450, 0
  %v620 = vsel %vm519, %v451, 0
  %v623 = vsel %vm519, %v452, 0
  %v626 = vsel %vm519, %v453, 0
  %v629 = vsel %vm519, %v454, 0
  %v632 = vsel %vm519, %v455, 0
  %v635 = vsel %vm519, %v456, 0
  %v638 = vsel %vm519, %v457, 0
  %v641 = vsel %vm519, %v458, 0
  %v644 = vsel %vm519, %v459, 0
  %v647 = vsel %vm519, %v460, 0
  %v650 = vsel %vm519, %v461, 0
  %v653 = vsel %vm519, %v462, 0
  %v656 = vsel %vm519, %v463, 0
  %v659 = vsel %vm519, %v464, 0
  %v662 = vsel %vm519, %v465, 0
  %v665 = vsel %vm519, %v466, 0
  %v668 = vsel %vm519, %v467, 0
  %v671 = vsel %vm519, %v468, 0
  %v674 = vsel %vm519, %v469, 0
  %v677 = vsel %vm519, %v470, 0
  %v680 = vsel %vm519, %v471, 0
  %v683 = vsel %vm519, %v472, 0
  %v686 = vsel %vm519, %v473, 0
  %v689 = vsel %vm519, %v474, 0
  %v692 = vsel %vm519, %v475, 0
  %v695 = vsel %vm519, %v476, 0
  %v698 = vsel %vm519, %v477, 0
  %vm700 = vcmask 1045504
  %v702 = vsel %vm700, %v512, 0
  %704 = vmatpush.bf16.msra.mxu0 0
  %705 = vmatpush.bf16.msra.mxu0 %v702
  %706 = vmatpush.bf16.msra.mxu0 %v511
  %707 = vmatpush.bf16.msra.mxu0 %v510
  %708 = vmatpush.bf16.msra.mxu0 %v509
  %709 = vmatpush.bf16.msra.mxu0 %v508
  %710 = vmatpush.bf16.msra.mxu0 %v507
  %711 = vmatpush.bf16.msra.mxu0 %v506
  %712 = vmatmul.bf16.gmra.mxu0 %v521
  %v713 = vpop.f32.mrf.mxu0
  %v714 = vadd.f32 0.0, %v713
  %v715 = vpop.f32.mrf.mxu0
  %v716 = vadd.f32 0.0, %v715
  %717 = vmatmul.bf16.gmra.mxu0 %v524
  %v718 = vpop.f32.mrf.mxu0
  %v719 = vadd.f32 0.0, %v718
  %v720 = vpop.f32.mrf.mxu0
  %v721 = vadd.f32 0.0, %v720
  %722 = vmatmul.bf16.gmra.mxu0 %v527
  %v723 = vpop.f32.mrf.mxu0
  %v724 = vadd.f32 0.0, %v723
  %v725 = vpop.f32.mrf.mxu0
  %v726 = vadd.f32 0.0, %v725
  %727 = vmatmul.bf16.gmra.mxu0 %v530
  %v728 = vpop.f32.mrf.mxu0
  %v729 = vadd.f32 0.0, %v728
  %v730 = vpop.f32.mrf.mxu0
  %v731 = vadd.f32 0.0, %v730
  %732 = vmatmul.bf16.gmra.mxu0 %v533
  %v733 = vpop.f32.mrf.mxu0
  %v734 = vadd.f32 0.0, %v733
  %v735 = vpop.f32.mrf.mxu0
  %v736 = vadd.f32 0.0, %v735
  %737 = vmatmul.bf16.gmra.mxu0 %v536
  %v738 = vpop.f32.mrf.mxu0
  %v739 = vadd.f32 0.0, %v738
  %v740 = vpop.f32.mrf.mxu0
  %v741 = vadd.f32 0.0, %v740
  %742 = vmatmul.bf16.gmra.mxu0 %v539
  %v743 = vpop.f32.mrf.mxu0
  %v744 = vadd.f32 0.0, %v743
  %v745 = vpop.f32.mrf.mxu0
  %v746 = vadd.f32 0.0, %v745
  %747 = vmatmul.bf16.gmra.mxu0 %v542
  %v748 = vpop.f32.mrf.mxu0
  %v749 = vadd.f32 0.0, %v748
  %v750 = vpop.f32.mrf.mxu0
  %v751 = vadd.f32 0.0, %v750
  %752 = vmatmul.bf16.gmra.mxu0 %v545
  %v753 = vpop.f32.mrf.mxu0
  %v754 = vadd.f32 0.0, %v753
  %v755 = vpop.f32.mrf.mxu0
  %v756 = vadd.f32 0.0, %v755
  %757 = vmatmul.bf16.gmra.mxu0 %v548
  %v758 = vpop.f32.mrf.mxu0
  %v759 = vadd.f32 0.0, %v758
  %v760 = vpop.f32.mrf.mxu0
  %v761 = vadd.f32 0.0, %v760
  %762 = vmatmul.bf16.gmra.mxu0 %v551
  %v763 = vpop.f32.mrf.mxu0
  %v764 = vadd.f32 0.0, %v763
  %v765 = vpop.f32.mrf.mxu0
  %v766 = vadd.f32 0.0, %v765
  %767 = vmatmul.bf16.gmra.mxu0 %v554
  %v768 = vpop.f32.mrf.mxu0
  %v769 = vadd.f32 0.0, %v768
  %v770 = vpop.f32.mrf.mxu0
  %v771 = vadd.f32 0.0, %v770
  %772 = vmatmul.bf16.gmra.mxu0 %v557
  %v773 = vpop.f32.mrf.mxu0
  %v774 = vadd.f32 0.0, %v773
  %v775 = vpop.f32.mrf.mxu0
  %v776 = vadd.f32 0.0, %v775
  %777 = vmatmul.bf16.gmra.mxu0 %v560
  %v778 = vpop.f32.mrf.mxu0
  %v779 = vadd.f32 0.0, %v778
  %v780 = vpop.f32.mrf.mxu0
  %v781 = vadd.f32 0.0, %v780
  %782 = vmatmul.bf16.gmra.mxu0 %v563
  %v783 = vpop.f32.mrf.mxu0
  %v784 = vadd.f32 0.0, %v783
  %v785 = vpop.f32.mrf.mxu0
  %v786 = vadd.f32 0.0, %v785
  %787 = vmatmul.bf16.gmra.mxu0 %v566
  %v788 = vpop.f32.mrf.mxu0
  %v789 = vadd.f32 0.0, %v788
  %v790 = vpop.f32.mrf.mxu0
  %v791 = vadd.f32 0.0, %v790
  %792 = vmatmul.bf16.gmra.mxu0 %v569
  %v793 = vpop.f32.mrf.mxu0
  %v794 = vadd.f32 0.0, %v793
  %v795 = vpop.f32.mrf.mxu0
  %v796 = vadd.f32 0.0, %v795
  %797 = vmatmul.bf16.gmra.mxu0 %v572
  %v798 = vpop.f32.mrf.mxu0
  %v799 = vadd.f32 0.0, %v798
  %v800 = vpop.f32.mrf.mxu0
  %v801 = vadd.f32 0.0, %v800
  %802 = vmatmul.bf16.gmra.mxu0 %v575
  %v803 = vpop.f32.mrf.mxu0
  %v804 = vadd.f32 0.0, %v803
  %v805 = vpop.f32.mrf.mxu0
  %v806 = vadd.f32 0.0, %v805
  %807 = vmatmul.bf16.gmra.mxu0 %v578
  %v808 = vpop.f32.mrf.mxu0
  %v809 = vadd.f32 0.0, %v808
  %v810 = vpop.f32.mrf.mxu0
  %v811 = vadd.f32 0.0, %v810
  %812 = vmatmul.bf16.gmra.mxu0 %v581
  %v813 = vpop.f32.mrf.mxu0
  %v814 = vadd.f32 0.0, %v813
  %v815 = vpop.f32.mrf.mxu0
  %v816 = vadd.f32 0.0, %v815
  %817 = vmatmul.bf16.gmra.mxu0 %v584
  %v818 = vpop.f32.mrf.mxu0
  %v819 = vadd.f32 0.0, %v818
  %v820 = vpop.f32.mrf.mxu0
  %v821 = vadd.f32 0.0, %v820
  %822 = vmatmul.bf16.gmra.mxu0 %v587
  %v823 = vpop.f32.mrf.mxu0
  %v824 = vadd.f32 0.0, %v823
  %v825 = vpop.f32.mrf.mxu0
  %v826 = vadd.f32 0.0, %v825
  %827 = vmatmul.bf16.gmra.mxu0 %v590
  %v828 = vpop.f32.mrf.mxu0
  %v829 = vadd.f32 0.0, %v828
  %v830 = vpop.f32.mrf.mxu0
  %v831 = vadd.f32 0.0, %v830
  %832 = vmatmul.bf16.gmra.mxu0 %v593
  %v833 = vpop.f32.mrf.mxu0
  %v834 = vadd.f32 0.0, %v833
  %v835 = vpop.f32.mrf.mxu0
  %v836 = vadd.f32 0.0, %v835
  %837 = vmatmul.bf16.gmra.mxu0 %v596
  %v838 = vpop.f32.mrf.mxu0
  %v839 = vadd.f32 0.0, %v838
  %v840 = vpop.f32.mrf.mxu0
  %v841 = vadd.f32 0.0, %v840
  %842 = vmatmul.bf16.gmra.mxu0 %v599
  %v843 = vpop.f32.mrf.mxu0
  %v844 = vadd.f32 0.0, %v843
  %v845 = vpop.f32.mrf.mxu0
  %v846 = vadd.f32 0.0, %v845
  %847 = vmatmul.bf16.gmra.mxu0 %v602
  %v848 = vpop.f32.mrf.mxu0
  %v849 = vadd.f32 0.0, %v848
  %v850 = vpop.f32.mrf.mxu0
  %v851 = vadd.f32 0.0, %v850
  %852 = vmatmul.bf16.gmra.mxu0 %v605
  %v853 = vpop.f32.mrf.mxu0
  %v854 = vadd.f32 0.0, %v853
  %v855 = vpop.f32.mrf.mxu0
  %v856 = vadd.f32 0.0, %v855
  %857 = vmatmul.bf16.gmra.mxu0 %v608
  %v858 = vpop.f32.mrf.mxu0
  %v859 = vadd.f32 0.0, %v858
  %v860 = vpop.f32.mrf.mxu0
  %v861 = vadd.f32 0.0, %v860
  %862 = vmatmul.bf16.gmra.mxu0 %v611
  %v863 = vpop.f32.mrf.mxu0
  %v864 = vadd.f32 0.0, %v863
  %v865 = vpop.f32.mrf.mxu0
  %v866 = vadd.f32 0.0, %v865
  %867 = vmatmul.bf16.gmra.mxu0 %v614
  %v868 = vpop.f32.mrf.mxu0
  %v869 = vadd.f32 0.0, %v868
  %v870 = vpop.f32.mrf.mxu0
  %v871 = vadd.f32 0.0, %v870
  %872 = vmatmul.bf16.gmra.mxu0 %v617
  %v873 = vpop.f32.mrf.mxu0
  %v874 = vadd.f32 0.0, %v873
  %v875 = vpop.f32.mrf.mxu0
  %v876 = vadd.f32 0.0, %v875
  %877 = vmatmul.bf16.gmra.mxu0 %v620
  %v878 = vpop.f32.mrf.mxu0
  %v879 = vadd.f32 0.0, %v878
  %v880 = vpop.f32.mrf.mxu0
  %v881 = vadd.f32 0.0, %v880
  %882 = vmatmul.bf16.gmra.mxu0 %v623
  %v883 = vpop.f32.mrf.mxu0
  %v884 = vadd.f32 0.0, %v883
  %v885 = vpop.f32.mrf.mxu0
  %v886 = vadd.f32 0.0, %v885
  %887 = vmatmul.bf16.gmra.mxu0 %v626
  %v888 = vpop.f32.mrf.mxu0
  %v889 = vadd.f32 0.0, %v888
  %v890 = vpop.f32.mrf.mxu0
  %v891 = vadd.f32 0.0, %v890
  %892 = vmatmul.bf16.gmra.mxu0 %v629
  %v893 = vpop.f32.mrf.mxu0
  %v894 = vadd.f32 0.0, %v893
  %v895 = vpop.f32.mrf.mxu0
  %v896 = vadd.f32 0.0, %v895
  %897 = vmatmul.bf16.gmra.mxu0 %v632
  %v898 = vpop.f32.mrf.mxu0
  %v899 = vadd.f32 0.0, %v898
  %v900 = vpop.f32.mrf.mxu0
  %v901 = vadd.f32 0.0, %v900
  %902 = vmatmul.bf16.gmra.mxu0 %v635
  %v903 = vpop.f32.mrf.mxu0
  %v904 = vadd.f32 0.0, %v903
  %v905 = vpop.f32.mrf.mxu0
  %v906 = vadd.f32 0.0, %v905
  %907 = vmatmul.bf16.gmra.mxu0 %v638
  %v908 = vpop.f32.mrf.mxu0
  %v909 = vadd.f32 0.0, %v908
  %v910 = vpop.f32.mrf.mxu0
  %v911 = vadd.f32 0.0, %v910
  %912 = vmatmul.bf16.gmra.mxu0 %v641
  %v913 = vpop.f32.mrf.mxu0
  %v914 = vadd.f32 0.0, %v913
  %v915 = vpop.f32.mrf.mxu0
  %v916 = vadd.f32 0.0, %v915
  %917 = vmatmul.bf16.gmra.mxu0 %v644
  %v918 = vpop.f32.mrf.mxu0
  %v919 = vadd.f32 0.0, %v918
  %v920 = vpop.f32.mrf.mxu0
  %v921 = vadd.f32 0.0, %v920
  %922 = vmatmul.bf16.gmra.mxu0 %v647
  %v923 = vpop.f32.mrf.mxu0
  %v924 = vadd.f32 0.0, %v923
  %v925 = vpop.f32.mrf.mxu0
  %v926 = vadd.f32 0.0, %v925
  %927 = vmatmul.bf16.gmra.mxu0 %v650
  %v928 = vpop.f32.mrf.mxu0
  %v929 = vadd.f32 0.0, %v928
  %v930 = vpop.f32.mrf.mxu0
  %v931 = vadd.f32 0.0, %v930
  %932 = vmatmul.bf16.gmra.mxu0 %v653
  %v933 = vpop.f32.mrf.mxu0
  %v934 = vadd.f32 0.0, %v933
  %v935 = vpop.f32.mrf.mxu0
  %v936 = vadd.f32 0.0, %v935
  %937 = vmatmul.bf16.gmra.mxu0 %v656
  %v938 = vpop.f32.mrf.mxu0
  %v939 = vadd.f32 0.0, %v938
  %v940 = vpop.f32.mrf.mxu0
  %v941 = vadd.f32 0.0, %v940
  %942 = vmatmul.bf16.gmra.mxu0 %v659
  %v943 = vpop.f32.mrf.mxu0
  %v944 = vadd.f32 0.0, %v943
  %v945 = vpop.f32.mrf.mxu0
  %v946 = vadd.f32 0.0, %v945
  %947 = vmatmul.bf16.gmra.mxu0 %v662
  %v948 = vpop.f32.mrf.mxu0
  %v949 = vadd.f32 0.0, %v948
  %v950 = vpop.f32.mrf.mxu0
  %v951 = vadd.f32 0.0, %v950
  %952 = vmatmul.bf16.gmra.mxu0 %v665
  %v953 = vpop.f32.mrf.mxu0
  %v954 = vadd.f32 0.0, %v953
  %v955 = vpop.f32.mrf.mxu0
  %v956 = vadd.f32 0.0, %v955
  %957 = vmatmul.bf16.gmra.mxu0 %v668
  %v958 = vpop.f32.mrf.mxu0
  %v959 = vadd.f32 0.0, %v958
  %v960 = vpop.f32.mrf.mxu0
  %v961 = vadd.f32 0.0, %v960
  %962 = vmatmul.bf16.gmra.mxu0 %v671
  %v963 = vpop.f32.mrf.mxu0
  %v964 = vadd.f32 0.0, %v963
  %v965 = vpop.f32.mrf.mxu0
  %v966 = vadd.f32 0.0, %v965
  %967 = vmatmul.bf16.gmra.mxu0 %v674
  %v968 = vpop.f32.mrf.mxu0
  %v969 = vadd.f32 0.0, %v968
  %v970 = vpop.f32.mrf.mxu0
  %v971 = vadd.f32 0.0, %v970
  %972 = vmatmul.bf16.gmra.mxu0 %v677
  %v973 = vpop.f32.mrf.mxu0
  %v974 = vadd.f32 0.0, %v973
  %v975 = vpop.f32.mrf.mxu0
  %v976 = vadd.f32 0.0, %v975
  %977 = vmatmul.bf16.gmra.mxu0 %v680
  %v978 = vpop.f32.mrf.mxu0
  %v979 = vadd.f32 0.0, %v978
  %v980 = vpop.f32.mrf.mxu0
  %v981 = vadd.f32 0.0, %v980
  %982 = vmatmul.bf16.gmra.mxu0 %v683
  %v983 = vpop.f32.mrf.mxu0
  %v984 = vadd.f32 0.0, %v983
  %v985 = vpop.f32.mrf.mxu0
  %v986 = vadd.f32 0.0, %v985
  %987 = vmatmul.bf16.gmra.mxu0 %v686
  %v988 = vpop.f32.mrf.mxu0
  %v989 = vadd.f32 0.0, %v988
  %v990 = vpop.f32.mrf.mxu0
  %v991 = vadd.f32 0.0, %v990
  %992 = vmatmul.bf16.gmra.mxu0 %v689
  %v993 = vpop.f32.mrf.mxu0
  %v994 = vadd.f32 0.0, %v993
  %v995 = vpop.f32.mrf.mxu0
  %v996 = vadd.f32 0.0, %v995
  %997 = vmatmul.bf16.gmra.mxu0 %v692
  %v998 = vpop.f32.mrf.mxu0
  %v999 = vadd.f32 0.0, %v998
  %v1000 = vpop.f32.mrf.mxu0
  %v1001 = vadd.f32 0.0, %v1000
  %1002 = vmatmul.bf16.gmra.mxu0 %v695
  %v1003 = vpop.f32.mrf.mxu0
  %v1004 = vadd.f32 0.0, %v1003
  %v1005 = vpop.f32.mrf.mxu0
  %v1006 = vadd.f32 0.0, %v1005
  %1007 = vmatmul.bf16.gmra.mxu0 %v698
  %v1008 = vpop.f32.mrf.mxu0
  %v1009 = vadd.f32 0.0, %v1008
  %v1010 = vpop.f32.mrf.mxu0
  %v1011 = vadd.f32 0.0, %v1010
  %1012 = vdwg.mxu0
  %v1013 = vld [vmem:[%s2] sm:$0x1]
  %v1015 = vperm.slane %v1013, 0
  %v1017 = vmul.f32 %v714, %v1015
  %v1018 = vmul.f32 %v716, %v1015
  %v1019 = vmul.f32 %v719, %v1015
  %v1020 = vmul.f32 %v721, %v1015
  %v1021 = vmul.f32 %v724, %v1015
  %v1022 = vmul.f32 %v726, %v1015
  %v1023 = vmul.f32 %v729, %v1015
  %v1024 = vmul.f32 %v731, %v1015
  %v1025 = vmul.f32 %v734, %v1015
  %v1026 = vmul.f32 %v736, %v1015
  %v1027 = vmul.f32 %v739, %v1015
  %v1028 = vmul.f32 %v741, %v1015
  %v1029 = vmul.f32 %v744, %v1015
  %v1030 = vmul.f32 %v746, %v1015
  %v1031 = vmul.f32 %v749, %v1015
  %v1032 = vmul.f32 %v751, %v1015
  %v1033 = vmul.f32 %v754, %v1015
  %v1034 = vmul.f32 %v756, %v1015
  %v1035 = vmul.f32 %v759, %v1015
  %v1036 = vmul.f32 %v761, %v1015
  %v1037 = vmul.f32 %v764, %v1015
  %v1038 = vmul.f32 %v766, %v1015
  %v1039 = vmul.f32 %v769, %v1015
  %v1040 = vmul.f32 %v771, %v1015
  %v1041 = vmul.f32 %v774, %v1015
  %v1042 = vmul.f32 %v776, %v1015
  %v1043 = vmul.f32 %v779, %v1015
  %v1044 = vmul.f32 %v781, %v1015
  %v1045 = vmul.f32 %v784, %v1015
  %v1046 = vmul.f32 %v786, %v1015
  %v1047 = vmul.f32 %v789, %v1015
  %v1048 = vmul.f32 %v791, %v1015
  %v1049 = vmul.f32 %v794, %v1015
  %v1050 = vmul.f32 %v796, %v1015
  %v1051 = vmul.f32 %v799, %v1015
  %v1052 = vmul.f32 %v801, %v1015
  %v1053 = vmul.f32 %v804, %v1015
  %v1054 = vmul.f32 %v806, %v1015
  %v1055 = vmul.f32 %v809, %v1015
  %v1056 = vmul.f32 %v811, %v1015
  %v1057 = vmul.f32 %v814, %v1015
  %v1058 = vmul.f32 %v816, %v1015
  %v1059 = vmul.f32 %v819, %v1015
  %v1060 = vmul.f32 %v821, %v1015
  %v1061 = vmul.f32 %v824, %v1015
  %v1062 = vmul.f32 %v826, %v1015
  %v1063 = vmul.f32 %v829, %v1015
  %v1064 = vmul.f32 %v831, %v1015
  %v1065 = vmul.f32 %v834, %v1015
  %v1066 = vmul.f32 %v836, %v1015
  %v1067 = vmul.f32 %v839, %v1015
  %v1068 = vmul.f32 %v841, %v1015
  %v1069 = vmul.f32 %v844, %v1015
  %v1070 = vmul.f32 %v846, %v1015
  %v1071 = vmul.f32 %v849, %v1015
  %v1072 = vmul.f32 %v851, %v1015
  %v1073 = vmul.f32 %v854, %v1015
  %v1074 = vmul.f32 %v856, %v1015
  %v1075 = vmul.f32 %v859, %v1015
  %v1076 = vmul.f32 %v861, %v1015
  %v1077 = vmul.f32 %v864, %v1015
  %v1078 = vmul.f32 %v866, %v1015
  %v1079 = vmul.f32 %v869, %v1015
  %v1080 = vmul.f32 %v871, %v1015
  %v1081 = vmul.f32 %v874, %v1015
  %v1082 = vmul.f32 %v876, %v1015
  %v1083 = vmul.f32 %v879, %v1015
  %v1084 = vmul.f32 %v881, %v1015
  %v1085 = vmul.f32 %v884, %v1015
  %v1086 = vmul.f32 %v886, %v1015
  %v1087 = vmul.f32 %v889, %v1015
  %v1088 = vmul.f32 %v891, %v1015
  %v1089 = vmul.f32 %v894, %v1015
  %v1090 = vmul.f32 %v896, %v1015
  %v1091 = vmul.f32 %v899, %v1015
  %v1092 = vmul.f32 %v901, %v1015
  %v1093 = vmul.f32 %v904, %v1015
  %v1094 = vmul.f32 %v906, %v1015
  %v1095 = vmul.f32 %v909, %v1015
  %v1096 = vmul.f32 %v911, %v1015
  %v1097 = vmul.f32 %v914, %v1015
  %v1098 = vmul.f32 %v916, %v1015
  %v1099 = vmul.f32 %v919, %v1015
  %v1100 = vmul.f32 %v921, %v1015
  %v1101 = vmul.f32 %v924, %v1015
  %v1102 = vmul.f32 %v926, %v1015
  %v1103 = vmul.f32 %v929, %v1015
  %v1104 = vmul.f32 %v931, %v1015
  %v1105 = vmul.f32 %v934, %v1015
  %v1106 = vmul.f32 %v936, %v1015
  %v1107 = vmul.f32 %v939, %v1015
  %v1108 = vmul.f32 %v941, %v1015
  %v1109 = vmul.f32 %v944, %v1015
  %v1110 = vmul.f32 %v946, %v1015
  %v1111 = vmul.f32 %v949, %v1015
  %v1112 = vmul.f32 %v951, %v1015
  %v1113 = vmul.f32 %v954, %v1015
  %v1114 = vmul.f32 %v956, %v1015
  %v1115 = vmul.f32 %v959, %v1015
  %v1116 = vmul.f32 %v961, %v1015
  %v1117 = vmul.f32 %v964, %v1015
  %v1118 = vmul.f32 %v966, %v1015
  %v1119 = vmul.f32 %v969, %v1015
  %v1120 = vmul.f32 %v971, %v1015
  %v1121 = vmul.f32 %v974, %v1015
  %v1122 = vmul.f32 %v976, %v1015
  %v1123 = vmul.f32 %v979, %v1015
  %v1124 = vmul.f32 %v981, %v1015
  %v1125 = vmul.f32 %v984, %v1015
  %v1126 = vmul.f32 %v986, %v1015
  %v1127 = vmul.f32 %v989, %v1015
  %v1128 = vmul.f32 %v991, %v1015
  %v1129 = vmul.f32 %v994, %v1015
  %v1130 = vmul.f32 %v996, %v1015
  %v1131 = vmul.f32 %v999, %v1015
  %v1132 = vmul.f32 %v1001, %v1015
  %v1133 = vmul.f32 %v1004, %v1015
  %v1134 = vmul.f32 %v1006, %v1015
  %v1135 = vmul.f32 %v1009, %v1015
  %v1136 = vmul.f32 %v1011, %v1015
  %v1137 = vld [vmem:[%s3] sm:$0x1]
  %v1139 = vperm.slane %v1137, 0
  %v1141 = vadd.f32 %v1017, %v1139
  %v1142 = vadd.f32 %v1018, %v1139
  %v1143 = vadd.f32 %v1019, %v1139
  %v1144 = vadd.f32 %v1020, %v1139
  %v1145 = vadd.f32 %v1021, %v1139
  %v1146 = vadd.f32 %v1022, %v1139
  %v1147 = vadd.f32 %v1023, %v1139
  %v1148 = vadd.f32 %v1024, %v1139
  %v1149 = vadd.f32 %v1025, %v1139
  %v1150 = vadd.f32 %v1026, %v1139
  %v1151 = vadd.f32 %v1027, %v1139
  %v1152 = vadd.f32 %v1028, %v1139
  %v1153 = vadd.f32 %v1029, %v1139
  %v1154 = vadd.f32 %v1030, %v1139
  %v1155 = vadd.f32 %v1031, %v1139
  %v1156 = vadd.f32 %v1032, %v1139
  %v1157 = vadd.f32 %v1033, %v1139
  %v1158 = vadd.f32 %v1034, %v1139
  %v1159 = vadd.f32 %v1035, %v1139
  %v1160 = vadd.f32 %v1036, %v1139
  %v1161 = vadd.f32 %v1037, %v1139
  %v1162 = vadd.f32 %v1038, %v1139
  %v1163 = vadd.f32 %v1039, %v1139
  %v1164 = vadd.f32 %v1040, %v1139
  %v1165 = vadd.f32 %v1041, %v1139
  %v1166 = vadd.f32 %v1042, %v1139
  %v1167 = vadd.f32 %v1043, %v1139
  %v1168 = vadd.f32 %v1044, %v1139
  %v1169 = vadd.f32 %v1045, %v1139
  %v1170 = vadd.f32 %v1046, %v1139
  %v1171 = vadd.f32 %v1047, %v1139
  %v1172 = vadd.f32 %v1048, %v1139
  %v1173 = vadd.f32 %v1049, %v1139
  %v1174 = vadd.f32 %v1050, %v1139
  %v1175 = vadd.f32 %v1051, %v1139
  %v1176 = vadd.f32 %v1052, %v1139
  %v1177 = vadd.f32 %v1053, %v1139
  %v1178 = vadd.f32 %v1054, %v1139
  %v1179 = vadd.f32 %v1055, %v1139
  %v1180 = vadd.f32 %v1056, %v1139
  %v1181 = vadd.f32 %v1057, %v1139
  %v1182 = vadd.f32 %v1058, %v1139
  %v1183 = vadd.f32 %v1059, %v1139
  %v1184 = vadd.f32 %v1060, %v1139
  %v1185 = vadd.f32 %v1061, %v1139
  %v1186 = vadd.f32 %v1062, %v1139
  %v1187 = vadd.f32 %v1063, %v1139
  %v1188 = vadd.f32 %v1064, %v1139
  %v1189 = vadd.f32 %v1065, %v1139
  %v1190 = vadd.f32 %v1066, %v1139
  %v1191 = vadd.f32 %v1067, %v1139
  %v1192 = vadd.f32 %v1068, %v1139
  %v1193 = vadd.f32 %v1069, %v1139
  %v1194 = vadd.f32 %v1070, %v1139
  %v1195 = vadd.f32 %v1071, %v1139
  %v1196 = vadd.f32 %v1072, %v1139
  %v1197 = vadd.f32 %v1073, %v1139
  %v1198 = vadd.f32 %v1074, %v1139
  %v1199 = vadd.f32 %v1075, %v1139
  %v1200 = vadd.f32 %v1076, %v1139
  %v1201 = vadd.f32 %v1077, %v1139
  %v1202 = vadd.f32 %v1078, %v1139
  %v1203 = vadd.f32 %v1079, %v1139
  %v1204 = vadd.f32 %v1080, %v1139
  %v1205 = vadd.f32 %v1081, %v1139
  %v1206 = vadd.f32 %v1082, %v1139
  %v1207 = vadd.f32 %v1083, %v1139
  %v1208 = vadd.f32 %v1084, %v1139
  %v1209 = vadd.f32 %v1085, %v1139
  %v1210 = vadd.f32 %v1086, %v1139
  %v1211 = vadd.f32 %v1087, %v1139
  %v1212 = vadd.f32 %v1088, %v1139
  %v1213 = vadd.f32 %v1089, %v1139
  %v1214 = vadd.f32 %v1090, %v1139
  %v1215 = vadd.f32 %v1091, %v1139
  %v1216 = vadd.f32 %v1092, %v1139
  %v1217 = vadd.f32 %v1093, %v1139
  %v1218 = vadd.f32 %v1094, %v1139
  %v1219 = vadd.f32 %v1095, %v1139
  %v1220 = vadd.f32 %v1096, %v1139
  %v1221 = vadd.f32 %v1097, %v1139
  %v1222 = vadd.f32 %v1098, %v1139
  %v1223 = vadd.f32 %v1099, %v1139
  %v1224 = vadd.f32 %v1100, %v1139
  %v1225 = vadd.f32 %v1101, %v1139
  %v1226 = vadd.f32 %v1102, %v1139
  %v1227 = vadd.f32 %v1103, %v1139
  %v1228 = vadd.f32 %v1104, %v1139
  %v1229 = vadd.f32 %v1105, %v1139
  %v1230 = vadd.f32 %v1106, %v1139
  %v1231 = vadd.f32 %v1107, %v1139
  %v1232 = vadd.f32 %v1108, %v1139
  %v1233 = vadd.f32 %v1109, %v1139
  %v1234 = vadd.f32 %v1110, %v1139
  %v1235 = vadd.f32 %v1111, %v1139
  %v1236 = vadd.f32 %v1112, %v1139
  %v1237 = vadd.f32 %v1113, %v1139
  %v1238 = vadd.f32 %v1114, %v1139
  %v1239 = vadd.f32 %v1115, %v1139
  %v1240 = vadd.f32 %v1116, %v1139
  %v1241 = vadd.f32 %v1117, %v1139
  %v1242 = vadd.f32 %v1118, %v1139
  %v1243 = vadd.f32 %v1119, %v1139
  %v1244 = vadd.f32 %v1120, %v1139
  %v1245 = vadd.f32 %v1121, %v1139
  %v1246 = vadd.f32 %v1122, %v1139
  %v1247 = vadd.f32 %v1123, %v1139
  %v1248 = vadd.f32 %v1124, %v1139
  %v1249 = vadd.f32 %v1125, %v1139
  %v1250 = vadd.f32 %v1126, %v1139
  %v1251 = vadd.f32 %v1127, %v1139
  %v1252 = vadd.f32 %v1128, %v1139
  %v1253 = vadd.f32 %v1129, %v1139
  %v1254 = vadd.f32 %v1130, %v1139
  %v1255 = vadd.f32 %v1131, %v1139
  %v1256 = vadd.f32 %v1132, %v1139
  %v1257 = vadd.f32 %v1133, %v1139
  %v1258 = vadd.f32 %v1134, %v1139
  %v1259 = vadd.f32 %v1135, %v1139
  %v1260 = vadd.f32 %v1136, %v1139
  %v1261 = vmax.f32 %v1141, 0.0
  %v1262 = vmax.f32 %v1142, 0.0
  %v1263 = vmax.f32 %v1143, 0.0
  %v1264 = vmax.f32 %v1144, 0.0
  %v1265 = vmax.f32 %v1145, 0.0
  %v1266 = vmax.f32 %v1146, 0.0
  %v1267 = vmax.f32 %v1147, 0.0
  %v1268 = vmax.f32 %v1148, 0.0
  %v1269 = vmax.f32 %v1149, 0.0
  %v1270 = vmax.f32 %v1150, 0.0
  %v1271 = vmax.f32 %v1151, 0.0
  %v1272 = vmax.f32 %v1152, 0.0
  %v1273 = vmax.f32 %v1153, 0.0
  %v1274 = vmax.f32 %v1154, 0.0
  %v1275 = vmax.f32 %v1155, 0.0
  %v1276 = vmax.f32 %v1156, 0.0
  %v1277 = vmax.f32 %v1157, 0.0
  %v1278 = vmax.f32 %v1158, 0.0
  %v1279 = vmax.f32 %v1159, 0.0
  %v1280 = vmax.f32 %v1160, 0.0
  %v1281 = vmax.f32 %v1161, 0.0
  %v1282 = vmax.f32 %v1162, 0.0
  %v1283 = vmax.f32 %v1163, 0.0
  %v1284 = vmax.f32 %v1164, 0.0
  %v1285 = vmax.f32 %v1165, 0.0
  %v1286 = vmax.f32 %v1166, 0.0
  %v1287 = vmax.f32 %v1167, 0.0
  %v1288 = vmax.f32 %v1168, 0.0
  %v1289 = vmax.f32 %v1169, 0.0
  %v1290 = vmax.f32 %v1170, 0.0
  %v1291 = vmax.f32 %v1171, 0.0
  %v1292 = vmax.f32 %v1172, 0.0
  %v1293 = vmax.f32 %v1173, 0.0
  %v1294 = vmax.f32 %v1174, 0.0
  %v1295 = vmax.f32 %v1175, 0.0
  %v1296 = vmax.f32 %v1176, 0.0
  %v1297 = vmax.f32 %v1177, 0.0
  %v1298 = vmax.f32 %v1178, 0.0
  %v1299 = vmax.f32 %v1179, 0.0
  %v1300 = vmax.f32 %v1180, 0.0
  %v1301 = vmax.f32 %v1181, 0.0
  %v1302 = vmax.f32 %v1182, 0.0
  %v1303 = vmax.f32 %v1183, 0.0
  %v1304 = vmax.f32 %v1184, 0.0
  %v1305 = vmax.f32 %v1185, 0.0
  %v1306 = vmax.f32 %v1186, 0.0
  %v1307 = vmax.f32 %v1187, 0.0
  %v1308 = vmax.f32 %v1188, 0.0
  %v1309 = vmax.f32 %v1189, 0.0
  %v1310 = vmax.f32 %v1190, 0.0
  %v1311 = vmax.f32 %v1191, 0.0
  %v1312 = vmax.f32 %v1192, 0.0
  %v1313 = vmax.f32 %v1193, 0.0
  %v1314 = vmax.f32 %v1194, 0.0
  %v1315 = vmax.f32 %v1195, 0.0
  %v1316 = vmax.f32 %v1196, 0.0
  %v1317 = vmax.f32 %v1197, 0.0
  %v1318 = vmax.f32 %v1198, 0.0
  %v1319 = vmax.f32 %v1199, 0.0
  %v1320 = vmax.f32 %v1200, 0.0
  %v1321 = vmax.f32 %v1201, 0.0
  %v1322 = vmax.f32 %v1202, 0.0
  %v1323 = vmax.f32 %v1203, 0.0
  %v1324 = vmax.f32 %v1204, 0.0
  %v1325 = vmax.f32 %v1205, 0.0
  %v1326 = vmax.f32 %v1206, 0.0
  %v1327 = vmax.f32 %v1207, 0.0
  %v1328 = vmax.f32 %v1208, 0.0
  %v1329 = vmax.f32 %v1209, 0.0
  %v1330 = vmax.f32 %v1210, 0.0
  %v1331 = vmax.f32 %v1211, 0.0
  %v1332 = vmax.f32 %v1212, 0.0
  %v1333 = vmax.f32 %v1213, 0.0
  %v1334 = vmax.f32 %v1214, 0.0
  %v1335 = vmax.f32 %v1215, 0.0
  %v1336 = vmax.f32 %v1216, 0.0
  %v1337 = vmax.f32 %v1217, 0.0
  %v1338 = vmax.f32 %v1218, 0.0
  %v1339 = vmax.f32 %v1219, 0.0
  %v1340 = vmax.f32 %v1220, 0.0
  %v1341 = vmax.f32 %v1221, 0.0
  %v1342 = vmax.f32 %v1222, 0.0
  %v1343 = vmax.f32 %v1223, 0.0
  %v1344 = vmax.f32 %v1224, 0.0
  %v1345 = vmax.f32 %v1225, 0.0
  %v1346 = vmax.f32 %v1226, 0.0
  %v1347 = vmax.f32 %v1227, 0.0
  %v1348 = vmax.f32 %v1228, 0.0
  %v1349 = vmax.f32 %v1229, 0.0
  %v1350 = vmax.f32 %v1230, 0.0
  %v1351 = vmax.f32 %v1231, 0.0
  %v1352 = vmax.f32 %v1232, 0.0
  %v1353 = vmax.f32 %v1233, 0.0
  %v1354 = vmax.f32 %v1234, 0.0
  %v1355 = vmax.f32 %v1235, 0.0
  %v1356 = vmax.f32 %v1236, 0.0
  %v1357 = vmax.f32 %v1237, 0.0
  %v1358 = vmax.f32 %v1238, 0.0
  %v1359 = vmax.f32 %v1239, 0.0
  %v1360 = vmax.f32 %v1240, 0.0
  %v1361 = vmax.f32 %v1241, 0.0
  %v1362 = vmax.f32 %v1242, 0.0
  %v1363 = vmax.f32 %v1243, 0.0
  %v1364 = vmax.f32 %v1244, 0.0
  %v1365 = vmax.f32 %v1245, 0.0
  %v1366 = vmax.f32 %v1246, 0.0
  %v1367 = vmax.f32 %v1247, 0.0
  %v1368 = vmax.f32 %v1248, 0.0
  %v1369 = vmax.f32 %v1249, 0.0
  %v1370 = vmax.f32 %v1250, 0.0
  %v1371 = vmax.f32 %v1251, 0.0
  %v1372 = vmax.f32 %v1252, 0.0
  %v1373 = vmax.f32 %v1253, 0.0
  %v1374 = vmax.f32 %v1254, 0.0
  %v1375 = vmax.f32 %v1255, 0.0
  %v1376 = vmax.f32 %v1256, 0.0
  %v1377 = vmax.f32 %v1257, 0.0
  %v1378 = vmax.f32 %v1258, 0.0
  %v1379 = vmax.f32 %v1259, 0.0
  %v1380 = vmax.f32 %v1260, 0.0
  %v1381 = vpack.c.bf16 %v1261, %v1261
  %v1382 = vpack.c.bf16 %v1262, %v1262
  %v1383 = vpack.c.bf16 %v1263, %v1263
  %v1384 = vpack.c.bf16 %v1264, %v1264
  %v1385 = vpack.c.bf16 %v1265, %v1265
  %v1386 = vpack.c.bf16 %v1266, %v1266
  %v1387 = vpack.c.bf16 %v1267, %v1267
  %v1388 = vpack.c.bf16 %v1268, %v1268
  %v1389 = vpack.c.bf16 %v1269, %v1269
  %v1390 = vpack.c.bf16 %v1270, %v1270
  %v1391 = vpack.c.bf16 %v1271, %v1271
  %v1392 = vpack.c.bf16 %v1272, %v1272
  %v1393 = vpack.c.bf16 %v1273, %v1273
  %v1394 = vpack.c.bf16 %v1274, %v1274
  %v1395 = vpack.c.bf16 %v1275, %v1275
  %v1396 = vpack.c.bf16 %v1276, %v1276
  %v1397 = vpack.c.bf16 %v1277, %v1277
  %v1398 = vpack.c.bf16 %v1278, %v1278
  %v1399 = vpack.c.bf16 %v1279, %v1279
  %v1400 = vpack.c.bf16 %v1280, %v1280
  %v1401 = vpack.c.bf16 %v1281, %v1281
  %v1402 = vpack.c.bf16 %v1282, %v1282
  %v1403 = vpack.c.bf16 %v1283, %v1283
  %v1404 = vpack.c.bf16 %v1284, %v1284
  %v1405 = vpack.c.bf16 %v1285, %v1285
  %v1406 = vpack.c.bf16 %v1286, %v1286
  %v1407 = vpack.c.bf16 %v1287, %v1287
  %v1408 = vpack.c.bf16 %v1288, %v1288
  %v1409 = vpack.c.bf16 %v1289, %v1289
  %v1410 = vpack.c.bf16 %v1290, %v1290
  %v1411 = vpack.c.bf16 %v1291, %v1291
  %v1412 = vpack.c.bf16 %v1292, %v1292
  %v1413 = vpack.c.bf16 %v1293, %v1293
  %v1414 = vpack.c.bf16 %v1294, %v1294
  %v1415 = vpack.c.bf16 %v1295, %v1295
  %v1416 = vpack.c.bf16 %v1296, %v1296
  %v1417 = vpack.c.bf16 %v1297, %v1297
  %v1418 = vpack.c.bf16 %v1298, %v1298
  %v1419 = vpack.c.bf16 %v1299, %v1299
  %v1420 = vpack.c.bf16 %v1300, %v1300
  %v1421 = vpack.c.bf16 %v1301, %v1301
  %v1422 = vpack.c.bf16 %v1302, %v1302
  %v1423 = vpack.c.bf16 %v1303, %v1303
  %v1424 = vpack.c.bf16 %v1304, %v1304
  %v1425 = vpack.c.bf16 %v1305, %v1305
  %v1426 = vpack.c.bf16 %v1306, %v1306
  %v1427 = vpack.c.bf16 %v1307, %v1307
  %v1428 = vpack.c.bf16 %v1308, %v1308
  %v1429 = vpack.c.bf16 %v1309, %v1309
  %v1430 = vpack.c.bf16 %v1310, %v1310
  %v1431 = vpack.c.bf16 %v1311, %v1311
  %v1432 = vpack.c.bf16 %v1312, %v1312
  %v1433 = vpack.c.bf16 %v1313, %v1313
  %v1434 = vpack.c.bf16 %v1314, %v1314
  %v1435 = vpack.c.bf16 %v1315, %v1315
  %v1436 = vpack.c.bf16 %v1316, %v1316
  %v1437 = vpack.c.bf16 %v1317, %v1317
  %v1438 = vpack.c.bf16 %v1318, %v1318
  %v1439 = vpack.c.bf16 %v1319, %v1319
  %v1440 = vpack.c.bf16 %v1320, %v1320
  %v1441 = vpack.c.bf16 %v1321, %v1321
  %v1442 = vpack.c.bf16 %v1322, %v1322
  %v1443 = vpack.c.bf16 %v1323, %v1323
  %v1444 = vpack.c.bf16 %v1324, %v1324
  %v1445 = vpack.c.bf16 %v1325, %v1325
  %v1446 = vpack.c.bf16 %v1326, %v1326
  %v1447 = vpack.c.bf16 %v1327, %v1327
  %v1448 = vpack.c.bf16 %v1328, %v1328
  %v1449 = vpack.c.bf16 %v1329, %v1329
  %v1450 = vpack.c.bf16 %v1330, %v1330
  %v1451 = vpack.c.bf16 %v1331, %v1331
  %v1452 = vpack.c.bf16 %v1332, %v1332
  %v1453 = vpack.c.bf16 %v1333, %v1333
  %v1454 = vpack.c.bf16 %v1334, %v1334
  %v1455 = vpack.c.bf16 %v1335, %v1335
  %v1456 = vpack.c.bf16 %v1336, %v1336
  %v1457 = vpack.c.bf16 %v1337, %v1337
  %v1458 = vpack.c.bf16 %v1338, %v1338
  %v1459 = vpack.c.bf16 %v1339, %v1339
  %v1460 = vpack.c.bf16 %v1340, %v1340
  %v1461 = vpack.c.bf16 %v1341, %v1341
  %v1462 = vpack.c.bf16 %v1342, %v1342
  %v1463 = vpack.c.bf16 %v1343, %v1343
  %v1464 = vpack.c.bf16 %v1344, %v1344
  %v1465 = vpack.c.bf16 %v1345, %v1345
  %v1466 = vpack.c.bf16 %v1346, %v1346
  %v1467 = vpack.c.bf16 %v1347, %v1347
  %v1468 = vpack.c.bf16 %v1348, %v1348
  %v1469 = vpack.c.bf16 %v1349, %v1349
  %v1470 = vpack.c.bf16 %v1350, %v1350
  %v1471 = vpack.c.bf16 %v1351, %v1351
  %v1472 = vpack.c.bf16 %v1352, %v1352
  %v1473 = vpack.c.bf16 %v1353, %v1353
  %v1474 = vpack.c.bf16 %v1354, %v1354
  %v1475 = vpack.c.bf16 %v1355, %v1355
  %v1476 = vpack.c.bf16 %v1356, %v1356
  %v1477 = vpack.c.bf16 %v1357, %v1357
  %v1478 = vpack.c.bf16 %v1358, %v1358
  %v1479 = vpack.c.bf16 %v1359, %v1359
  %v1480 = vpack.c.bf16 %v1360, %v1360
  %v1481 = vpack.c.bf16 %v1361, %v1361
  %v1482 = vpack.c.bf16 %v1362, %v1362
  %v1483 = vpack.c.bf16 %v1363, %v1363
  %v1484 = vpack.c.bf16 %v1364, %v1364
  %v1485 = vpack.c.bf16 %v1365, %v1365
  %v1486 = vpack.c.bf16 %v1366, %v1366
  %v1487 = vpack.c.bf16 %v1367, %v1367
  %v1488 = vpack.c.bf16 %v1368, %v1368
  %v1489 = vpack.c.bf16 %v1369, %v1369
  %v1490 = vpack.c.bf16 %v1370, %v1370
  %v1491 = vpack.c.bf16 %v1371, %v1371
  %v1492 = vpack.c.bf16 %v1372, %v1372
  %v1493 = vpack.c.bf16 %v1373, %v1373
  %v1494 = vpack.c.bf16 %v1374, %v1374
  %v1495 = vpack.c.bf16 %v1375, %v1375
  %v1496 = vpack.c.bf16 %v1376, %v1376
  %v1497 = vpack.c.bf16 %v1377, %v1377
  %v1498 = vpack.c.bf16 %v1378, %v1378
  %v1499 = vpack.c.bf16 %v1379, %v1379
  %v1500 = vpack.c.bf16 %v1380, %v1380
  %v1501 = vld [vmem:[%s4] sm:$0xf]
  %v1502 = vld [vmem:[%s4 + $0x4] sm:$0xf]
  %v1503 = vld [vmem:[%s4 + $0x8] sm:$0xf]
  %v1504 = vld [vmem:[%s4 + $0xc] sm:$0xf]
  %v1505 = vld [vmem:[%s4 + $0x10] sm:$0xf]
  %v1506 = vld [vmem:[%s4 + $0x14] sm:$0xf]
  %v1507 = vld [vmem:[%s4 + $0x18] sm:$0xf]
  %v1508 = vld [vmem:[%s4 + $0x1c] sm:$0xf]
  %s1509 = scalar_lea.vmem %s4, 32
  %v1510 = vld [vmem:[%s1509] sm:$0xf]
  %v1511 = vld [vmem:[%s1509 + $0x4] sm:$0xf]
  %v1512 = vld [vmem:[%s1509 + $0x8] sm:$0xf]
  %v1513 = vld [vmem:[%s1509 + $0xc] sm:$0xf]
  %v1514 = vld [vmem:[%s1509 + $0x10] sm:$0xf]
  %v1515 = vld [vmem:[%s1509 + $0x14] sm:$0xf]
  %v1516 = vld [vmem:[%s1509 + $0x18] sm:$0xf]
  %v1517 = vld [vmem:[%s1509 + $0x1c] sm:$0xf]
  %v1590 = vunpack.c.l.b16 %v1405
  %v1591 = vunpack.c.l.b16 %v1406
  %v1592 = vunpack.c.l.b16 %v1407
  %v1593 = vunpack.c.l.b16 %v1408
  %v1594 = vunpack.c.l.b16 %v1409
  %v1595 = vunpack.c.l.b16 %v1410
  %v1596 = vunpack.c.l.b16 %v1411
  %v1597 = vunpack.c.l.b16 %v1412
  %v1598 = vunpack.c.l.b16 %v1413
  %v1599 = vunpack.c.l.b16 %v1414
  %v1600 = vunpack.c.l.b16 %v1415
  %v1601 = vunpack.c.l.b16 %v1416
  %v1602 = vunpack.c.l.b16 %v1417
  %v1603 = vunpack.c.l.b16 %v1418
  %v1604 = vunpack.c.l.b16 %v1419
  %v1605 = vunpack.c.l.b16 %v1420
  %v1606 = vunpack.c.l.b16 %v1421
  %v1607 = vunpack.c.l.b16 %v1422
  %v1608 = vunpack.c.l.b16 %v1423
  %v1609 = vunpack.c.l.b16 %v1424
  %v1610 = vunpack.c.l.b16 %v1425
  %v1611 = vunpack.c.l.b16 %v1426
  %v1612 = vunpack.c.l.b16 %v1427
  %v1613 = vunpack.c.l.b16 %v1428
  %v1614 = vunpack.c.l.b16 %v1429
  %v1615 = vunpack.c.l.b16 %v1430
  %v1616 = vunpack.c.l.b16 %v1431
  %v1617 = vunpack.c.l.b16 %v1432
  %v1618 = vunpack.c.l.b16 %v1433
  %v1619 = vunpack.c.l.b16 %v1434
  %v1620 = vunpack.c.l.b16 %v1435
  %v1621 = vunpack.c.l.b16 %v1436
  %v1622 = vunpack.c.l.b16 %v1437
  %v1623 = vunpack.c.l.b16 %v1438
  %v1624 = vunpack.c.l.b16 %v1439
  %v1625 = vunpack.c.l.b16 %v1440
  %v1626 = vunpack.c.l.b16 %v1441
  %v1627 = vunpack.c.l.b16 %v1442
  %v1628 = vunpack.c.l.b16 %v1443
  %v1629 = vunpack.c.l.b16 %v1444
  %v1630 = vunpack.c.l.b16 %v1445
  %v1631 = vunpack.c.l.b16 %v1446
  %v1632 = vunpack.c.l.b16 %v1447
  %v1633 = vunpack.c.l.b16 %v1448
  %v1634 = vunpack.c.l.b16 %v1449
  %v1635 = vunpack.c.l.b16 %v1450
  %v1636 = vunpack.c.l.b16 %v1451
  %v1637 = vunpack.c.l.b16 %v1452
  %v1638 = vunpack.c.l.b16 %v1453
  %v1639 = vunpack.c.l.b16 %v1454
  %v1640 = vunpack.c.l.b16 %v1455
  %v1641 = vunpack.c.l.b16 %v1456
  %v1642 = vunpack.c.l.b16 %v1457
  %v1643 = vunpack.c.l.b16 %v1458
  %v1644 = vunpack.c.l.b16 %v1459
  %v1645 = vunpack.c.l.b16 %v1460
  %v1646 = vunpack.c.l.b16 %v1461
  %v1647 = vunpack.c.l.b16 %v1462
  %v1648 = vunpack.c.l.b16 %v1463
  %v1649 = vunpack.c.l.b16 %v1464
  %v1650 = vunpack.c.l.b16 %v1465
  %v1651 = vunpack.c.l.b16 %v1466
  %v1652 = vunpack.c.l.b16 %v1467
  %v1653 = vunpack.c.l.b16 %v1468
  %v1654 = vunpack.c.l.b16 %v1469
  %v1655 = vunpack.c.l.b16 %v1470
  %v1656 = vunpack.c.l.b16 %v1471
  %v1657 = vunpack.c.l.b16 %v1472
  %v1658 = vunpack.c.l.b16 %v1473
  %v1659 = vunpack.c.l.b16 %v1474
  %v1660 = vunpack.c.l.b16 %v1475
  %v1661 = vunpack.c.l.b16 %v1476
  %v1662 = vpack.c.b16 %v1591, %v1590
  %v1663 = vpack.c.b16 %v1593, %v1592
  %v1664 = vpack.c.b16 %v1595, %v1594
  %v1665 = vpack.c.b16 %v1597, %v1596
  %v1666 = vpack.c.b16 %v1599, %v1598
  %v1667 = vpack.c.b16 %v1601, %v1600
  %v1668 = vpack.c.b16 %v1603, %v1602
  %v1669 = vpack.c.b16 %v1605, %v1604
  %v1670 = vpack.c.b16 %v1607, %v1606
  %v1671 = vpack.c.b16 %v1609, %v1608
  %v1672 = vpack.c.b16 %v1611, %v1610
  %v1673 = vpack.c.b16 %v1613, %v1612
  %v1674 = vpack.c.b16 %v1615, %v1614
  %v1675 = vpack.c.b16 %v1617, %v1616
  %v1676 = vpack.c.b16 %v1619, %v1618
  %v1677 = vpack.c.b16 %v1621, %v1620
  %v1678 = vpack.c.b16 %v1623, %v1622
  %v1679 = vpack.c.b16 %v1625, %v1624
  %v1680 = vpack.c.b16 %v1627, %v1626
  %v1681 = vpack.c.b16 %v1629, %v1628
  %v1682 = vpack.c.b16 %v1631, %v1630
  %v1683 = vpack.c.b16 %v1633, %v1632
  %v1684 = vpack.c.b16 %v1635, %v1634
  %v1685 = vpack.c.b16 %v1637, %v1636
  %v1686 = vpack.c.b16 %v1639, %v1638
  %v1687 = vpack.c.b16 %v1641, %v1640
  %v1688 = vpack.c.b16 %v1643, %v1642
  %v1689 = vpack.c.b16 %v1645, %v1644
  %v1690 = vpack.c.b16 %v1647, %v1646
  %v1691 = vpack.c.b16 %v1649, %v1648
  %v1692 = vpack.c.b16 %v1651, %v1650
  %v1693 = vpack.c.b16 %v1653, %v1652
  %v1694 = vpack.c.b16 %v1655, %v1654
  %v1695 = vpack.c.b16 %v1657, %v1656
  %v1696 = vpack.c.b16 %v1659, %v1658
  %v1697 = vpack.c.b16 %v1661, %v1660
  %v1706 = vunpack.c.l.b16 %v1510
  %v1707 = vunpack.c.l.b16 %v1511
  %v1708 = vunpack.c.l.b16 %v1512
  %v1709 = vunpack.c.l.b16 %v1513
  %v1710 = vunpack.c.l.b16 %v1514
  %v1711 = vunpack.c.l.b16 %v1515
  %v1712 = vunpack.c.l.b16 %v1516
  %v1713 = vunpack.c.l.b16 %v1517
  %v1714 = vpack.c.b16 %v1707, %v1706
  %v1715 = vpack.c.b16 %v1709, %v1708
  %v1716 = vpack.c.b16 %v1711, %v1710
  %v1717 = vpack.c.b16 %v1713, %v1712
  %vm1722 = vcmask 523264
  %v1724 = vsel %vm1722, %v1662, 0
  %v1727 = vsel %vm1722, %v1663, 0
  %v1730 = vsel %vm1722, %v1664, 0
  %v1733 = vsel %vm1722, %v1665, 0
  %v1736 = vsel %vm1722, %v1666, 0
  %v1739 = vsel %vm1722, %v1667, 0
  %v1742 = vsel %vm1722, %v1668, 0
  %v1745 = vsel %vm1722, %v1669, 0
  %v1748 = vsel %vm1722, %v1670, 0
  %v1751 = vsel %vm1722, %v1671, 0
  %v1754 = vsel %vm1722, %v1672, 0
  %v1757 = vsel %vm1722, %v1673, 0
  %v1760 = vsel %vm1722, %v1674, 0
  %v1763 = vsel %vm1722, %v1675, 0
  %v1766 = vsel %vm1722, %v1676, 0
  %v1769 = vsel %vm1722, %v1677, 0
  %v1772 = vsel %vm1722, %v1678, 0
  %v1775 = vsel %vm1722, %v1679, 0
  %v1778 = vsel %vm1722, %v1680, 0
  %v1781 = vsel %vm1722, %v1681, 0
  %v1784 = vsel %vm1722, %v1682, 0
  %v1787 = vsel %vm1722, %v1683, 0
  %v1790 = vsel %vm1722, %v1684, 0
  %v1793 = vsel %vm1722, %v1685, 0
  %v1796 = vsel %vm1722, %v1686, 0
  %v1799 = vsel %vm1722, %v1687, 0
  %v1802 = vsel %vm1722, %v1688, 0
  %v1805 = vsel %vm1722, %v1689, 0
  %v1808 = vsel %vm1722, %v1690, 0
  %v1811 = vsel %vm1722, %v1691, 0
  %v1814 = vsel %vm1722, %v1692, 0
  %v1817 = vsel %vm1722, %v1693, 0
  %v1820 = vsel %vm1722, %v1694, 0
  %v1823 = vsel %vm1722, %v1695, 0
  %v1826 = vsel %vm1722, %v1696, 0
  %v1829 = vsel %vm1722, %v1697, 0
  %1831 = vmatpush.bf16.msra.mxu0 0
  %1832 = vmatpush.bf16.msra.mxu0 0
  %1833 = vmatpush.bf16.msra.mxu0 0
  %1834 = vmatpush.bf16.msra.mxu0 0
  %1835 = vmatpush.bf16.msra.mxu0 %v1717
  %1836 = vmatpush.bf16.msra.mxu0 %v1716
  %1837 = vmatpush.bf16.msra.mxu0 %v1715
  %1838 = vmatpush.bf16.msra.mxu0 %v1714
  %1839 = vmatmul.bf16.gmra.mxu0 %v1724
  %v1840 = vpop.f32.mrf.mxu0
  %v1841 = vadd.f32 0.0, %v1840
  %v1842 = vpop.f32.mrf.mxu0
  %v1843 = vadd.f32 0.0, %v1842
  %1844 = vmatmul.bf16.gmra.mxu0 %v1727
  %v1845 = vpop.f32.mrf.mxu0
  %v1846 = vadd.f32 0.0, %v1845
  %v1847 = vpop.f32.mrf.mxu0
  %v1848 = vadd.f32 0.0, %v1847
  %1849 = vmatmul.bf16.gmra.mxu0 %v1730
  %v1850 = vpop.f32.mrf.mxu0
  %v1851 = vadd.f32 0.0, %v1850
  %v1852 = vpop.f32.mrf.mxu0
  %v1853 = vadd.f32 0.0, %v1852
  %1854 = vmatmul.bf16.gmra.mxu0 %v1733
  %v1855 = vpop.f32.mrf.mxu0
  %v1856 = vadd.f32 0.0, %v1855
  %v1857 = vpop.f32.mrf.mxu0
  %v1858 = vadd.f32 0.0, %v1857
  %1859 = vmatmul.bf16.gmra.mxu0 %v1736
  %v1860 = vpop.f32.mrf.mxu0
  %v1861 = vadd.f32 0.0, %v1860
  %v1862 = vpop.f32.mrf.mxu0
  %v1863 = vadd.f32 0.0, %v1862
  %1864 = vmatmul.bf16.gmra.mxu0 %v1739
  %v1865 = vpop.f32.mrf.mxu0
  %v1866 = vadd.f32 0.0, %v1865
  %v1867 = vpop.f32.mrf.mxu0
  %v1868 = vadd.f32 0.0, %v1867
  %1869 = vmatmul.bf16.gmra.mxu0 %v1742
  %v1870 = vpop.f32.mrf.mxu0
  %v1871 = vadd.f32 0.0, %v1870
  %v1872 = vpop.f32.mrf.mxu0
  %v1873 = vadd.f32 0.0, %v1872
  %1874 = vmatmul.bf16.gmra.mxu0 %v1745
  %v1875 = vpop.f32.mrf.mxu0
  %v1876 = vadd.f32 0.0, %v1875
  %v1877 = vpop.f32.mrf.mxu0
  %v1878 = vadd.f32 0.0, %v1877
  %1879 = vmatmul.bf16.gmra.mxu0 %v1748
  %v1880 = vpop.f32.mrf.mxu0
  %v1881 = vadd.f32 0.0, %v1880
  %v1882 = vpop.f32.mrf.mxu0
  %v1883 = vadd.f32 0.0, %v1882
  %1884 = vmatmul.bf16.gmra.mxu0 %v1751
  %v1885 = vpop.f32.mrf.mxu0
  %v1886 = vadd.f32 0.0, %v1885
  %v1887 = vpop.f32.mrf.mxu0
  %v1888 = vadd.f32 0.0, %v1887
  %1889 = vmatmul.bf16.gmra.mxu0 %v1754
  %v1890 = vpop.f32.mrf.mxu0
  %v1891 = vadd.f32 0.0, %v1890
  %v1892 = vpop.f32.mrf.mxu0
  %v1893 = vadd.f32 0.0, %v1892
  %1894 = vmatmul.bf16.gmra.mxu0 %v1757
  %v1895 = vpop.f32.mrf.mxu0
  %v1896 = vadd.f32 0.0, %v1895
  %v1897 = vpop.f32.mrf.mxu0
  %v1898 = vadd.f32 0.0, %v1897
  %1899 = vmatmul.bf16.gmra.mxu0 %v1760
  %v1900 = vpop.f32.mrf.mxu0
  %v1901 = vadd.f32 0.0, %v1900
  %v1902 = vpop.f32.mrf.mxu0
  %v1903 = vadd.f32 0.0, %v1902
  %1904 = vmatmul.bf16.gmra.mxu0 %v1763
  %v1905 = vpop.f32.mrf.mxu0
  %v1906 = vadd.f32 0.0, %v1905
  %v1907 = vpop.f32.mrf.mxu0
  %v1908 = vadd.f32 0.0, %v1907
  %1909 = vmatmul.bf16.gmra.mxu0 %v1766
  %v1910 = vpop.f32.mrf.mxu0
  %v1911 = vadd.f32 0.0, %v1910
  %v1912 = vpop.f32.mrf.mxu0
  %v1913 = vadd.f32 0.0, %v1912
  %1914 = vmatmul.bf16.gmra.mxu0 %v1769
  %v1915 = vpop.f32.mrf.mxu0
  %v1916 = vadd.f32 0.0, %v1915
  %v1917 = vpop.f32.mrf.mxu0
  %v1918 = vadd.f32 0.0, %v1917
  %1919 = vmatmul.bf16.gmra.mxu0 %v1772
  %v1920 = vpop.f32.mrf.mxu0
  %v1921 = vadd.f32 0.0, %v1920
  %v1922 = vpop.f32.mrf.mxu0
  %v1923 = vadd.f32 0.0, %v1922
  %1924 = vmatmul.bf16.gmra.mxu0 %v1775
  %v1925 = vpop.f32.mrf.mxu0
  %v1926 = vadd.f32 0.0, %v1925
  %v1927 = vpop.f32.mrf.mxu0
  %v1928 = vadd.f32 0.0, %v1927
  %1929 = vmatmul.bf16.gmra.mxu0 %v1778
  %v1930 = vpop.f32.mrf.mxu0
  %v1931 = vadd.f32 0.0, %v1930
  %v1932 = vpop.f32.mrf.mxu0
  %v1933 = vadd.f32 0.0, %v1932
  %1934 = vmatmul.bf16.gmra.mxu0 %v1781
  %v1935 = vpop.f32.mrf.mxu0
  %v1936 = vadd.f32 0.0, %v1935
  %v1937 = vpop.f32.mrf.mxu0
  %v1938 = vadd.f32 0.0, %v1937
  %1939 = vmatmul.bf16.gmra.mxu0 %v1784
  %v1940 = vpop.f32.mrf.mxu0
  %v1941 = vadd.f32 0.0, %v1940
  %v1942 = vpop.f32.mrf.mxu0
  %v1943 = vadd.f32 0.0, %v1942
  %1944 = vmatmul.bf16.gmra.mxu0 %v1787
  %v1945 = vpop.f32.mrf.mxu0
  %v1946 = vadd.f32 0.0, %v1945
  %v1947 = vpop.f32.mrf.mxu0
  %v1948 = vadd.f32 0.0, %v1947
  %1949 = vmatmul.bf16.gmra.mxu0 %v1790
  %v1950 = vpop.f32.mrf.mxu0
  %v1951 = vadd.f32 0.0, %v1950
  %v1952 = vpop.f32.mrf.mxu0
  %v1953 = vadd.f32 0.0, %v1952
  %1954 = vmatmul.bf16.gmra.mxu0 %v1793
  %v1955 = vpop.f32.mrf.mxu0
  %v1956 = vadd.f32 0.0, %v1955
  %v1957 = vpop.f32.mrf.mxu0
  %v1958 = vadd.f32 0.0, %v1957
  %1959 = vmatmul.bf16.gmra.mxu0 %v1796
  %v1960 = vpop.f32.mrf.mxu0
  %v1961 = vadd.f32 0.0, %v1960
  %v1962 = vpop.f32.mrf.mxu0
  %v1963 = vadd.f32 0.0, %v1962
  %1964 = vmatmul.bf16.gmra.mxu0 %v1799
  %v1965 = vpop.f32.mrf.mxu0
  %v1966 = vadd.f32 0.0, %v1965
  %v1967 = vpop.f32.mrf.mxu0
  %v1968 = vadd.f32 0.0, %v1967
  %1969 = vmatmul.bf16.gmra.mxu0 %v1802
  %v1970 = vpop.f32.mrf.mxu0
  %v1971 = vadd.f32 0.0, %v1970
  %v1972 = vpop.f32.mrf.mxu0
  %v1973 = vadd.f32 0.0, %v1972
  %1974 = vmatmul.bf16.gmra.mxu0 %v1805
  %v1975 = vpop.f32.mrf.mxu0
  %v1976 = vadd.f32 0.0, %v1975
  %v1977 = vpop.f32.mrf.mxu0
  %v1978 = vadd.f32 0.0, %v1977
  %1979 = vmatmul.bf16.gmra.mxu0 %v1808
  %v1980 = vpop.f32.mrf.mxu0
  %v1981 = vadd.f32 0.0, %v1980
  %v1982 = vpop.f32.mrf.mxu0
  %v1983 = vadd.f32 0.0, %v1982
  %1984 = vmatmul.bf16.gmra.mxu0 %v1811
  %v1985 = vpop.f32.mrf.mxu0
  %v1986 = vadd.f32 0.0, %v1985
  %v1987 = vpop.f32.mrf.mxu0
  %v1988 = vadd.f32 0.0, %v1987
  %1989 = vmatmul.bf16.gmra.mxu0 %v1814
  %v1990 = vpop.f32.mrf.mxu0
  %v1991 = vadd.f32 0.0, %v1990
  %v1992 = vpop.f32.mrf.mxu0
  %v1993 = vadd.f32 0.0, %v1992
  %1994 = vmatmul.bf16.gmra.mxu0 %v1817
  %v1995 = vpop.f32.mrf.mxu0
  %v1996 = vadd.f32 0.0, %v1995
  %v1997 = vpop.f32.mrf.mxu0
  %v1998 = vadd.f32 0.0, %v1997
  %1999 = vmatmul.bf16.gmra.mxu0 %v1820
  %v2000 = vpop.f32.mrf.mxu0
  %v2001 = vadd.f32 0.0, %v2000
  %v2002 = vpop.f32.mrf.mxu0
  %v2003 = vadd.f32 0.0, %v2002
  %2004 = vmatmul.bf16.gmra.mxu0 %v1823
  %v2005 = vpop.f32.mrf.mxu0
  %v2006 = vadd.f32 0.0, %v2005
  %v2007 = vpop.f32.mrf.mxu0
  %v2008 = vadd.f32 0.0, %v2007
  %2009 = vmatmul.bf16.gmra.mxu0 %v1826
  %v2010 = vpop.f32.mrf.mxu0
  %v2011 = vadd.f32 0.0, %v2010
  %v2012 = vpop.f32.mrf.mxu0
  %v2013 = vadd.f32 0.0, %v2012
  %2014 = vmatmul.bf16.gmra.mxu0 %v1829
  %v2015 = vpop.f32.mrf.mxu0
  %v2016 = vadd.f32 0.0, %v2015
  %v2017 = vpop.f32.mrf.mxu0
  %v2018 = vadd.f32 0.0, %v2017
  %2019 = vdwg.mxu0
  %v2044 = vunpack.c.l.b16 %v1381
  %v2045 = vunpack.c.l.b16 %v1382
  %v2046 = vunpack.c.l.b16 %v1383
  %v2047 = vunpack.c.l.b16 %v1384
  %v2048 = vunpack.c.l.b16 %v1385
  %v2049 = vunpack.c.l.b16 %v1386
  %v2050 = vunpack.c.l.b16 %v1387
  %v2051 = vunpack.c.l.b16 %v1388
  %v2052 = vunpack.c.l.b16 %v1389
  %v2053 = vunpack.c.l.b16 %v1390
  %v2054 = vunpack.c.l.b16 %v1391
  %v2055 = vunpack.c.l.b16 %v1392
  %v2056 = vunpack.c.l.b16 %v1393
  %v2057 = vunpack.c.l.b16 %v1394
  %v2058 = vunpack.c.l.b16 %v1395
  %v2059 = vunpack.c.l.b16 %v1396
  %v2060 = vunpack.c.l.b16 %v1397
  %v2061 = vunpack.c.l.b16 %v1398
  %v2062 = vunpack.c.l.b16 %v1399
  %v2063 = vunpack.c.l.b16 %v1400
  %v2064 = vunpack.c.l.b16 %v1401
  %v2065 = vunpack.c.l.b16 %v1402
  %v2066 = vunpack.c.l.b16 %v1403
  %v2067 = vunpack.c.l.b16 %v1404
  %v2068 = vpack.c.b16 %v2045, %v2044
  %v2069 = vpack.c.b16 %v2047, %v2046
  %v2070 = vpack.c.b16 %v2049, %v2048
  %v2071 = vpack.c.b16 %v2051, %v2050
  %v2072 = vpack.c.b16 %v2053, %v2052
  %v2073 = vpack.c.b16 %v2055, %v2054
  %v2074 = vpack.c.b16 %v2057, %v2056
  %v2075 = vpack.c.b16 %v2059, %v2058
  %v2076 = vpack.c.b16 %v2061, %v2060
  %v2077 = vpack.c.b16 %v2063, %v2062
  %v2078 = vpack.c.b16 %v2065, %v2064
  %v2079 = vpack.c.b16 %v2067, %v2066
  %v2088 = vunpack.c.l.b16 %v1501
  %v2089 = vunpack.c.l.b16 %v1502
  %v2090 = vunpack.c.l.b16 %v1503
  %v2091 = vunpack.c.l.b16 %v1504
  %v2092 = vunpack.c.l.b16 %v1505
  %v2093 = vunpack.c.l.b16 %v1506
  %v2094 = vunpack.c.l.b16 %v1507
  %v2095 = vunpack.c.l.b16 %v1508
  %v2096 = vpack.c.b16 %v2089, %v2088
  %v2097 = vpack.c.b16 %v2091, %v2090
  %v2098 = vpack.c.b16 %v2093, %v2092
  %v2099 = vpack.c.b16 %v2095, %v2094
  %v2105 = vsel %vm1722, %v2068, 0
  %v2108 = vsel %vm1722, %v2069, 0
  %v2111 = vsel %vm1722, %v2070, 0
  %v2114 = vsel %vm1722, %v2071, 0
  %v2117 = vsel %vm1722, %v2072, 0
  %v2120 = vsel %vm1722, %v2073, 0
  %v2123 = vsel %vm1722, %v2074, 0
  %v2126 = vsel %vm1722, %v2075, 0
  %v2129 = vsel %vm1722, %v2076, 0
  %v2132 = vsel %vm1722, %v2077, 0
  %v2135 = vsel %vm1722, %v2078, 0
  %v2138 = vsel %vm1722, %v2079, 0
  %2140 = vmatpush.bf16.msra.mxu0 0
  %2141 = vmatpush.bf16.msra.mxu0 0
  %2142 = vmatpush.bf16.msra.mxu0 0
  %2143 = vmatpush.bf16.msra.mxu0 0
  %2144 = vmatpush.bf16.msra.mxu0 %v2099
  %2145 = vmatpush.bf16.msra.mxu0 %v2098
  %2146 = vmatpush.bf16.msra.mxu0 %v2097
  %2147 = vmatpush.bf16.msra.mxu0 %v2096
  %2148 = vmatmul.bf16.gmra.mxu0 %v2105
  %v2149 = vpop.f32.mrf.mxu0
  %v2150 = vadd.f32 %v1841, %v2149
  %v2151 = vpop.f32.mrf.mxu0
  %v2152 = vadd.f32 %v1843, %v2151
  %2153 = vmatmul.bf16.gmra.mxu0 %v2108
  %v2154 = vpop.f32.mrf.mxu0
  %v2155 = vadd.f32 %v1846, %v2154
  %v2156 = vpop.f32.mrf.mxu0
  %v2157 = vadd.f32 %v1848, %v2156
  %2158 = vmatmul.bf16.gmra.mxu0 %v2111
  %v2159 = vpop.f32.mrf.mxu0
  %v2160 = vadd.f32 %v1851, %v2159
  %v2161 = vpop.f32.mrf.mxu0
  %v2162 = vadd.f32 %v1853, %v2161
  %2163 = vmatmul.bf16.gmra.mxu0 %v2114
  %v2164 = vpop.f32.mrf.mxu0
  %v2165 = vadd.f32 %v1856, %v2164
  %v2166 = vpop.f32.mrf.mxu0
  %v2167 = vadd.f32 %v1858, %v2166
  %2168 = vmatmul.bf16.gmra.mxu0 %v2117
  %v2169 = vpop.f32.mrf.mxu0
  %v2170 = vadd.f32 %v1861, %v2169
  %v2171 = vpop.f32.mrf.mxu0
  %v2172 = vadd.f32 %v1863, %v2171
  %2173 = vmatmul.bf16.gmra.mxu0 %v2120
  %v2174 = vpop.f32.mrf.mxu0
  %v2175 = vadd.f32 %v1866, %v2174
  %v2176 = vpop.f32.mrf.mxu0
  %v2177 = vadd.f32 %v1868, %v2176
  %2178 = vmatmul.bf16.gmra.mxu0 %v2123
  %v2179 = vpop.f32.mrf.mxu0
  %v2180 = vadd.f32 %v1871, %v2179
  %v2181 = vpop.f32.mrf.mxu0
  %v2182 = vadd.f32 %v1873, %v2181
  %2183 = vmatmul.bf16.gmra.mxu0 %v2126
  %v2184 = vpop.f32.mrf.mxu0
  %v2185 = vadd.f32 %v1876, %v2184
  %v2186 = vpop.f32.mrf.mxu0
  %v2187 = vadd.f32 %v1878, %v2186
  %2188 = vmatmul.bf16.gmra.mxu0 %v2129
  %v2189 = vpop.f32.mrf.mxu0
  %v2190 = vadd.f32 %v1881, %v2189
  %v2191 = vpop.f32.mrf.mxu0
  %v2192 = vadd.f32 %v1883, %v2191
  %2193 = vmatmul.bf16.gmra.mxu0 %v2132
  %v2194 = vpop.f32.mrf.mxu0
  %v2195 = vadd.f32 %v1886, %v2194
  %v2196 = vpop.f32.mrf.mxu0
  %v2197 = vadd.f32 %v1888, %v2196
  %2198 = vmatmul.bf16.gmra.mxu0 %v2135
  %v2199 = vpop.f32.mrf.mxu0
  %v2200 = vadd.f32 %v1891, %v2199
  %v2201 = vpop.f32.mrf.mxu0
  %v2202 = vadd.f32 %v1893, %v2201
  %2203 = vmatmul.bf16.gmra.mxu0 %v2138
  %v2204 = vpop.f32.mrf.mxu0
  %v2205 = vadd.f32 %v1896, %v2204
  %v2206 = vpop.f32.mrf.mxu0
  %v2207 = vadd.f32 %v1898, %v2206
  %2208 = vmatmul.bf16.gmra.mxu0 %v1724
  %v2209 = vpop.f32.mrf.mxu0
  %v2210 = vadd.f32 %v1901, %v2209
  %v2211 = vpop.f32.mrf.mxu0
  %v2212 = vadd.f32 %v1903, %v2211
  %2213 = vmatmul.bf16.gmra.mxu0 %v1727
  %v2214 = vpop.f32.mrf.mxu0
  %v2215 = vadd.f32 %v1906, %v2214
  %v2216 = vpop.f32.mrf.mxu0
  %v2217 = vadd.f32 %v1908, %v2216
  %2218 = vmatmul.bf16.gmra.mxu0 %v1730
  %v2219 = vpop.f32.mrf.mxu0
  %v2220 = vadd.f32 %v1911, %v2219
  %v2221 = vpop.f32.mrf.mxu0
  %v2222 = vadd.f32 %v1913, %v2221
  %2223 = vmatmul.bf16.gmra.mxu0 %v1733
  %v2224 = vpop.f32.mrf.mxu0
  %v2225 = vadd.f32 %v1916, %v2224
  %v2226 = vpop.f32.mrf.mxu0
  %v2227 = vadd.f32 %v1918, %v2226
  %2228 = vmatmul.bf16.gmra.mxu0 %v1736
  %v2229 = vpop.f32.mrf.mxu0
  %v2230 = vadd.f32 %v1921, %v2229
  %v2231 = vpop.f32.mrf.mxu0
  %v2232 = vadd.f32 %v1923, %v2231
  %2233 = vmatmul.bf16.gmra.mxu0 %v1739
  %v2234 = vpop.f32.mrf.mxu0
  %v2235 = vadd.f32 %v1926, %v2234
  %v2236 = vpop.f32.mrf.mxu0
  %v2237 = vadd.f32 %v1928, %v2236
  %2238 = vmatmul.bf16.gmra.mxu0 %v1742
  %v2239 = vpop.f32.mrf.mxu0
  %v2240 = vadd.f32 %v1931, %v2239
  %v2241 = vpop.f32.mrf.mxu0
  %v2242 = vadd.f32 %v1933, %v2241
  %2243 = vmatmul.bf16.gmra.mxu0 %v1745
  %v2244 = vpop.f32.mrf.mxu0
  %v2245 = vadd.f32 %v1936, %v2244
  %v2246 = vpop.f32.mrf.mxu0
  %v2247 = vadd.f32 %v1938, %v2246
  %2248 = vmatmul.bf16.gmra.mxu0 %v1748
  %v2249 = vpop.f32.mrf.mxu0
  %v2250 = vadd.f32 %v1941, %v2249
  %v2251 = vpop.f32.mrf.mxu0
  %v2252 = vadd.f32 %v1943, %v2251
  %2253 = vmatmul.bf16.gmra.mxu0 %v1751
  %v2254 = vpop.f32.mrf.mxu0
  %v2255 = vadd.f32 %v1946, %v2254
  %v2256 = vpop.f32.mrf.mxu0
  %v2257 = vadd.f32 %v1948, %v2256
  %2258 = vmatmul.bf16.gmra.mxu0 %v1754
  %v2259 = vpop.f32.mrf.mxu0
  %v2260 = vadd.f32 %v1951, %v2259
  %v2261 = vpop.f32.mrf.mxu0
  %v2262 = vadd.f32 %v1953, %v2261
  %2263 = vmatmul.bf16.gmra.mxu0 %v1757
  %v2264 = vpop.f32.mrf.mxu0
  %v2265 = vadd.f32 %v1956, %v2264
  %v2266 = vpop.f32.mrf.mxu0
  %v2267 = vadd.f32 %v1958, %v2266
  %2268 = vmatmul.bf16.gmra.mxu0 %v1760
  %v2269 = vpop.f32.mrf.mxu0
  %v2270 = vadd.f32 %v1961, %v2269
  %v2271 = vpop.f32.mrf.mxu0
  %v2272 = vadd.f32 %v1963, %v2271
  %2273 = vmatmul.bf16.gmra.mxu0 %v1763
  %v2274 = vpop.f32.mrf.mxu0
  %v2275 = vadd.f32 %v1966, %v2274
  %v2276 = vpop.f32.mrf.mxu0
  %v2277 = vadd.f32 %v1968, %v2276
  %2278 = vmatmul.bf16.gmra.mxu0 %v1766
  %v2279 = vpop.f32.mrf.mxu0
  %v2280 = vadd.f32 %v1971, %v2279
  %v2281 = vpop.f32.mrf.mxu0
  %v2282 = vadd.f32 %v1973, %v2281
  %2283 = vmatmul.bf16.gmra.mxu0 %v1769
  %v2284 = vpop.f32.mrf.mxu0
  %v2285 = vadd.f32 %v1976, %v2284
  %v2286 = vpop.f32.mrf.mxu0
  %v2287 = vadd.f32 %v1978, %v2286
  %2288 = vmatmul.bf16.gmra.mxu0 %v1772
  %v2289 = vpop.f32.mrf.mxu0
  %v2290 = vadd.f32 %v1981, %v2289
  %v2291 = vpop.f32.mrf.mxu0
  %v2292 = vadd.f32 %v1983, %v2291
  %2293 = vmatmul.bf16.gmra.mxu0 %v1775
  %v2294 = vpop.f32.mrf.mxu0
  %v2295 = vadd.f32 %v1986, %v2294
  %v2296 = vpop.f32.mrf.mxu0
  %v2297 = vadd.f32 %v1988, %v2296
  %2298 = vmatmul.bf16.gmra.mxu0 %v1778
  %v2299 = vpop.f32.mrf.mxu0
  %v2300 = vadd.f32 %v1991, %v2299
  %v2301 = vpop.f32.mrf.mxu0
  %v2302 = vadd.f32 %v1993, %v2301
  %2303 = vmatmul.bf16.gmra.mxu0 %v1781
  %v2304 = vpop.f32.mrf.mxu0
  %v2305 = vadd.f32 %v1996, %v2304
  %v2306 = vpop.f32.mrf.mxu0
  %v2307 = vadd.f32 %v1998, %v2306
  %2308 = vmatmul.bf16.gmra.mxu0 %v1784
  %v2309 = vpop.f32.mrf.mxu0
  %v2310 = vadd.f32 %v2001, %v2309
  %v2311 = vpop.f32.mrf.mxu0
  %v2312 = vadd.f32 %v2003, %v2311
  %2313 = vmatmul.bf16.gmra.mxu0 %v1787
  %v2314 = vpop.f32.mrf.mxu0
  %v2315 = vadd.f32 %v2006, %v2314
  %v2316 = vpop.f32.mrf.mxu0
  %v2317 = vadd.f32 %v2008, %v2316
  %2318 = vmatmul.bf16.gmra.mxu0 %v1790
  %v2319 = vpop.f32.mrf.mxu0
  %v2320 = vadd.f32 %v2011, %v2319
  %v2321 = vpop.f32.mrf.mxu0
  %v2322 = vadd.f32 %v2013, %v2321
  %2323 = vmatmul.bf16.gmra.mxu0 %v1793
  %v2324 = vpop.f32.mrf.mxu0
  %v2325 = vadd.f32 %v2016, %v2324
  %v2326 = vpop.f32.mrf.mxu0
  %v2327 = vadd.f32 %v2018, %v2326
  %2328 = vdwg.mxu0
  %s2329 = scalar_lea.vmem %s4, 64
  %v2330 = vld [vmem:[%s2329] sm:$0xf]
  %v2331 = vld [vmem:[%s2329 + $0x4] sm:$0xf]
  %v2332 = vld [vmem:[%s2329 + $0x8] sm:$0xf]
  %v2333 = vld [vmem:[%s2329 + $0xc] sm:$0xf]
  %v2334 = vld [vmem:[%s2329 + $0x10] sm:$0xf]
  %v2335 = vld [vmem:[%s2329 + $0x14] sm:$0xf]
  %v2336 = vld [vmem:[%s2329 + $0x18] sm:$0xf]
  %v2337 = vld [vmem:[%s2329 + $0x1c] sm:$0xf]
  %v2362 = vunpack.c.l.b16 %v1477
  %v2363 = vunpack.c.l.b16 %v1478
  %v2364 = vunpack.c.l.b16 %v1479
  %v2365 = vunpack.c.l.b16 %v1480
  %v2366 = vunpack.c.l.b16 %v1481
  %v2367 = vunpack.c.l.b16 %v1482
  %v2368 = vunpack.c.l.b16 %v1483
  %v2369 = vunpack.c.l.b16 %v1484
  %v2370 = vunpack.c.l.b16 %v1485
  %v2371 = vunpack.c.l.b16 %v1486
  %v2372 = vunpack.c.l.b16 %v1487
  %v2373 = vunpack.c.l.b16 %v1488
  %v2374 = vunpack.c.l.b16 %v1489
  %v2375 = vunpack.c.l.b16 %v1490
  %v2376 = vunpack.c.l.b16 %v1491
  %v2377 = vunpack.c.l.b16 %v1492
  %v2378 = vunpack.c.l.b16 %v1493
  %v2379 = vunpack.c.l.b16 %v1494
  %v2380 = vunpack.c.l.b16 %v1495
  %v2381 = vunpack.c.l.b16 %v1496
  %v2382 = vunpack.c.l.b16 %v1497
  %v2383 = vunpack.c.l.b16 %v1498
  %v2384 = vunpack.c.l.b16 %v1499
  %v2385 = vunpack.c.l.b16 %v1500
  %v2386 = vpack.c.b16 %v2363, %v2362
  %v2387 = vpack.c.b16 %v2365, %v2364
  %v2388 = vpack.c.b16 %v2367, %v2366
  %v2389 = vpack.c.b16 %v2369, %v2368
  %v2390 = vpack.c.b16 %v2371, %v2370
  %v2391 = vpack.c.b16 %v2373, %v2372
  %v2392 = vpack.c.b16 %v2375, %v2374
  %v2393 = vpack.c.b16 %v2377, %v2376
  %v2394 = vpack.c.b16 %v2379, %v2378
  %v2395 = vpack.c.b16 %v2381, %v2380
  %v2396 = vpack.c.b16 %v2383, %v2382
  %v2397 = vpack.c.b16 %v2385, %v2384
  %v2406 = vunpack.c.l.b16 %v2330
  %v2407 = vunpack.c.l.b16 %v2331
  %v2408 = vunpack.c.l.b16 %v2332
  %v2409 = vunpack.c.l.b16 %v2333
  %v2410 = vunpack.c.l.b16 %v2334
  %v2411 = vunpack.c.l.b16 %v2335
  %v2412 = vunpack.c.l.b16 %v2336
  %v2413 = vunpack.c.l.b16 %v2337
  %v2414 = vpack.c.b16 %v2407, %v2406
  %v2415 = vpack.c.b16 %v2409, %v2408
  %v2416 = vpack.c.b16 %v2411, %v2410
  %v2417 = vpack.c.b16 %v2413, %v2412
  %v2423 = vsel %vm1722, %v2386, 0
  %v2426 = vsel %vm1722, %v2387, 0
  %v2429 = vsel %vm1722, %v2388, 0
  %v2432 = vsel %vm1722, %v2389, 0
  %v2435 = vsel %vm1722, %v2390, 0
  %v2438 = vsel %vm1722, %v2391, 0
  %v2441 = vsel %vm1722, %v2392, 0
  %v2444 = vsel %vm1722, %v2393, 0
  %v2447 = vsel %vm1722, %v2394, 0
  %v2450 = vsel %vm1722, %v2395, 0
  %v2453 = vsel %vm1722, %v2396, 0
  %v2456 = vsel %vm1722, %v2397, 0
  %2458 = vmatpush.bf16.msra.mxu0 0
  %2459 = vmatpush.bf16.msra.mxu0 0
  %2460 = vmatpush.bf16.msra.mxu0 0
  %2461 = vmatpush.bf16.msra.mxu0 0
  %2462 = vmatpush.bf16.msra.mxu0 %v2417
  %2463 = vmatpush.bf16.msra.mxu0 %v2416
  %2464 = vmatpush.bf16.msra.mxu0 %v2415
  %2465 = vmatpush.bf16.msra.mxu0 %v2414
  %2466 = vmatmul.bf16.gmra.mxu0 %v1760
  %v2467 = vpop.f32.mrf.mxu0
  %v2468 = vadd.f32 0.0, %v2467
  %v2469 = vpop.f32.mrf.mxu0
  %v2470 = vadd.f32 0.0, %v2469
  %2471 = vmatmul.bf16.gmra.mxu0 %v1763
  %v2472 = vpop.f32.mrf.mxu0
  %v2473 = vadd.f32 0.0, %v2472
  %v2474 = vpop.f32.mrf.mxu0
  %v2475 = vadd.f32 0.0, %v2474
  %2476 = vmatmul.bf16.gmra.mxu0 %v1766
  %v2477 = vpop.f32.mrf.mxu0
  %v2478 = vadd.f32 0.0, %v2477
  %v2479 = vpop.f32.mrf.mxu0
  %v2480 = vadd.f32 0.0, %v2479
  %2481 = vmatmul.bf16.gmra.mxu0 %v1769
  %v2482 = vpop.f32.mrf.mxu0
  %v2483 = vadd.f32 0.0, %v2482
  %v2484 = vpop.f32.mrf.mxu0
  %v2485 = vadd.f32 0.0, %v2484
  %2486 = vmatmul.bf16.gmra.mxu0 %v1772
  %v2487 = vpop.f32.mrf.mxu0
  %v2488 = vadd.f32 0.0, %v2487
  %v2489 = vpop.f32.mrf.mxu0
  %v2490 = vadd.f32 0.0, %v2489
  %2491 = vmatmul.bf16.gmra.mxu0 %v1775
  %v2492 = vpop.f32.mrf.mxu0
  %v2493 = vadd.f32 0.0, %v2492
  %v2494 = vpop.f32.mrf.mxu0
  %v2495 = vadd.f32 0.0, %v2494
  %2496 = vmatmul.bf16.gmra.mxu0 %v1778
  %v2497 = vpop.f32.mrf.mxu0
  %v2498 = vadd.f32 0.0, %v2497
  %v2499 = vpop.f32.mrf.mxu0
  %v2500 = vadd.f32 0.0, %v2499
  %2501 = vmatmul.bf16.gmra.mxu0 %v1781
  %v2502 = vpop.f32.mrf.mxu0
  %v2503 = vadd.f32 0.0, %v2502
  %v2504 = vpop.f32.mrf.mxu0
  %v2505 = vadd.f32 0.0, %v2504
  %2506 = vmatmul.bf16.gmra.mxu0 %v1784
  %v2507 = vpop.f32.mrf.mxu0
  %v2508 = vadd.f32 0.0, %v2507
  %v2509 = vpop.f32.mrf.mxu0
  %v2510 = vadd.f32 0.0, %v2509
  %2511 = vmatmul.bf16.gmra.mxu0 %v1787
  %v2512 = vpop.f32.mrf.mxu0
  %v2513 = vadd.f32 0.0, %v2512
  %v2514 = vpop.f32.mrf.mxu0
  %v2515 = vadd.f32 0.0, %v2514
  %2516 = vmatmul.bf16.gmra.mxu0 %v1790
  %v2517 = vpop.f32.mrf.mxu0
  %v2518 = vadd.f32 0.0, %v2517
  %v2519 = vpop.f32.mrf.mxu0
  %v2520 = vadd.f32 0.0, %v2519
  %2521 = vmatmul.bf16.gmra.mxu0 %v1793
  %v2522 = vpop.f32.mrf.mxu0
  %v2523 = vadd.f32 0.0, %v2522
  %v2524 = vpop.f32.mrf.mxu0
  %v2525 = vadd.f32 0.0, %v2524
  %2526 = vmatmul.bf16.gmra.mxu0 %v1796
  %v2527 = vpop.f32.mrf.mxu0
  %v2528 = vadd.f32 0.0, %v2527
  %v2529 = vpop.f32.mrf.mxu0
  %v2530 = vadd.f32 0.0, %v2529
  %2531 = vmatmul.bf16.gmra.mxu0 %v1799
  %v2532 = vpop.f32.mrf.mxu0
  %v2533 = vadd.f32 0.0, %v2532
  %v2534 = vpop.f32.mrf.mxu0
  %v2535 = vadd.f32 0.0, %v2534
  %2536 = vmatmul.bf16.gmra.mxu0 %v1802
  %v2537 = vpop.f32.mrf.mxu0
  %v2538 = vadd.f32 0.0, %v2537
  %v2539 = vpop.f32.mrf.mxu0
  %v2540 = vadd.f32 0.0, %v2539
  %2541 = vmatmul.bf16.gmra.mxu0 %v1805
  %v2542 = vpop.f32.mrf.mxu0
  %v2543 = vadd.f32 0.0, %v2542
  %v2544 = vpop.f32.mrf.mxu0
  %v2545 = vadd.f32 0.0, %v2544
  %2546 = vmatmul.bf16.gmra.mxu0 %v1808
  %v2547 = vpop.f32.mrf.mxu0
  %v2548 = vadd.f32 0.0, %v2547
  %v2549 = vpop.f32.mrf.mxu0
  %v2550 = vadd.f32 0.0, %v2549
  %2551 = vmatmul.bf16.gmra.mxu0 %v1811
  %v2552 = vpop.f32.mrf.mxu0
  %v2553 = vadd.f32 0.0, %v2552
  %v2554 = vpop.f32.mrf.mxu0
  %v2555 = vadd.f32 0.0, %v2554
  %2556 = vmatmul.bf16.gmra.mxu0 %v1814
  %v2557 = vpop.f32.mrf.mxu0
  %v2558 = vadd.f32 0.0, %v2557
  %v2559 = vpop.f32.mrf.mxu0
  %v2560 = vadd.f32 0.0, %v2559
  %2561 = vmatmul.bf16.gmra.mxu0 %v1817
  %v2562 = vpop.f32.mrf.mxu0
  %v2563 = vadd.f32 0.0, %v2562
  %v2564 = vpop.f32.mrf.mxu0
  %v2565 = vadd.f32 0.0, %v2564
  %2566 = vmatmul.bf16.gmra.mxu0 %v1820
  %v2567 = vpop.f32.mrf.mxu0
  %v2568 = vadd.f32 0.0, %v2567
  %v2569 = vpop.f32.mrf.mxu0
  %v2570 = vadd.f32 0.0, %v2569
  %2571 = vmatmul.bf16.gmra.mxu0 %v1823
  %v2572 = vpop.f32.mrf.mxu0
  %v2573 = vadd.f32 0.0, %v2572
  %v2574 = vpop.f32.mrf.mxu0
  %v2575 = vadd.f32 0.0, %v2574
  %2576 = vmatmul.bf16.gmra.mxu0 %v1826
  %v2577 = vpop.f32.mrf.mxu0
  %v2578 = vadd.f32 0.0, %v2577
  %v2579 = vpop.f32.mrf.mxu0
  %v2580 = vadd.f32 0.0, %v2579
  %2581 = vmatmul.bf16.gmra.mxu0 %v1829
  %v2582 = vpop.f32.mrf.mxu0
  %v2583 = vadd.f32 0.0, %v2582
  %v2584 = vpop.f32.mrf.mxu0
  %v2585 = vadd.f32 0.0, %v2584
  %2586 = vmatmul.bf16.gmra.mxu0 %v2423
  %v2587 = vpop.f32.mrf.mxu0
  %v2588 = vadd.f32 0.0, %v2587
  %v2589 = vpop.f32.mrf.mxu0
  %v2590 = vadd.f32 0.0, %v2589
  %2591 = vmatmul.bf16.gmra.mxu0 %v2426
  %v2592 = vpop.f32.mrf.mxu0
  %v2593 = vadd.f32 0.0, %v2592
  %v2594 = vpop.f32.mrf.mxu0
  %v2595 = vadd.f32 0.0, %v2594
  %2596 = vmatmul.bf16.gmra.mxu0 %v2429
  %v2597 = vpop.f32.mrf.mxu0
  %v2598 = vadd.f32 0.0, %v2597
  %v2599 = vpop.f32.mrf.mxu0
  %v2600 = vadd.f32 0.0, %v2599
  %2601 = vmatmul.bf16.gmra.mxu0 %v2432
  %v2602 = vpop.f32.mrf.mxu0
  %v2603 = vadd.f32 0.0, %v2602
  %v2604 = vpop.f32.mrf.mxu0
  %v2605 = vadd.f32 0.0, %v2604
  %2606 = vmatmul.bf16.gmra.mxu0 %v2435
  %v2607 = vpop.f32.mrf.mxu0
  %v2608 = vadd.f32 0.0, %v2607
  %v2609 = vpop.f32.mrf.mxu0
  %v2610 = vadd.f32 0.0, %v2609
  %2611 = vmatmul.bf16.gmra.mxu0 %v2438
  %v2612 = vpop.f32.mrf.mxu0
  %v2613 = vadd.f32 0.0, %v2612
  %v2614 = vpop.f32.mrf.mxu0
  %v2615 = vadd.f32 0.0, %v2614
  %2616 = vmatmul.bf16.gmra.mxu0 %v2441
  %v2617 = vpop.f32.mrf.mxu0
  %v2618 = vadd.f32 0.0, %v2617
  %v2619 = vpop.f32.mrf.mxu0
  %v2620 = vadd.f32 0.0, %v2619
  %2621 = vmatmul.bf16.gmra.mxu0 %v2444
  %v2622 = vpop.f32.mrf.mxu0
  %v2623 = vadd.f32 0.0, %v2622
  %v2624 = vpop.f32.mrf.mxu0
  %v2625 = vadd.f32 0.0, %v2624
  %2626 = vmatmul.bf16.gmra.mxu0 %v2447
  %v2627 = vpop.f32.mrf.mxu0
  %v2628 = vadd.f32 0.0, %v2627
  %v2629 = vpop.f32.mrf.mxu0
  %v2630 = vadd.f32 0.0, %v2629
  %2631 = vmatmul.bf16.gmra.mxu0 %v2450
  %v2632 = vpop.f32.mrf.mxu0
  %v2633 = vadd.f32 0.0, %v2632
  %v2634 = vpop.f32.mrf.mxu0
  %v2635 = vadd.f32 0.0, %v2634
  %2636 = vmatmul.bf16.gmra.mxu0 %v2453
  %v2637 = vpop.f32.mrf.mxu0
  %v2638 = vadd.f32 0.0, %v2637
  %v2639 = vpop.f32.mrf.mxu0
  %v2640 = vadd.f32 0.0, %v2639
  %2641 = vmatmul.bf16.gmra.mxu0 %v2456
  %v2642 = vpop.f32.mrf.mxu0
  %v2643 = vadd.f32 0.0, %v2642
  %v2644 = vpop.f32.mrf.mxu0
  %v2645 = vadd.f32 0.0, %v2644
  %2646 = vdwg.mxu0
  %v2647 = vadd.f32 %v2150, %v2468
  %v2648 = vadd.f32 %v2152, %v2470
  %v2649 = vadd.f32 %v2155, %v2473
  %v2650 = vadd.f32 %v2157, %v2475
  %v2651 = vadd.f32 %v2160, %v2478
  %v2652 = vadd.f32 %v2162, %v2480
  %v2653 = vadd.f32 %v2165, %v2483
  %v2654 = vadd.f32 %v2167, %v2485
  %v2655 = vadd.f32 %v2170, %v2488
  %v2656 = vadd.f32 %v2172, %v2490
  %v2657 = vadd.f32 %v2175, %v2493
  %v2658 = vadd.f32 %v2177, %v2495
  %v2659 = vadd.f32 %v2180, %v2498
  %v2660 = vadd.f32 %v2182, %v2500
  %v2661 = vadd.f32 %v2185, %v2503
  %v2662 = vadd.f32 %v2187, %v2505
  %v2663 = vadd.f32 %v2190, %v2508
  %v2664 = vadd.f32 %v2192, %v2510
  %v2665 = vadd.f32 %v2195, %v2513
  %v2666 = vadd.f32 %v2197, %v2515
  %v2667 = vadd.f32 %v2200, %v2518
  %v2668 = vadd.f32 %v2202, %v2520
  %v2669 = vadd.f32 %v2205, %v2523
  %v2670 = vadd.f32 %v2207, %v2525
  %v2671 = vadd.f32 %v2210, %v2528
  %v2672 = vadd.f32 %v2212, %v2530
  %v2673 = vadd.f32 %v2215, %v2533
  %v2674 = vadd.f32 %v2217, %v2535
  %v2675 = vadd.f32 %v2220, %v2538
  %v2676 = vadd.f32 %v2222, %v2540
  %v2677 = vadd.f32 %v2225, %v2543
  %v2678 = vadd.f32 %v2227, %v2545
  %v2679 = vadd.f32 %v2230, %v2548
  %v2680 = vadd.f32 %v2232, %v2550
  %v2681 = vadd.f32 %v2235, %v2553
  %v2682 = vadd.f32 %v2237, %v2555
  %v2683 = vadd.f32 %v2240, %v2558
  %v2684 = vadd.f32 %v2242, %v2560
  %v2685 = vadd.f32 %v2245, %v2563
  %v2686 = vadd.f32 %v2247, %v2565
  %v2687 = vadd.f32 %v2250, %v2568
  %v2688 = vadd.f32 %v2252, %v2570
  %v2689 = vadd.f32 %v2255, %v2573
  %v2690 = vadd.f32 %v2257, %v2575
  %v2691 = vadd.f32 %v2260, %v2578
  %v2692 = vadd.f32 %v2262, %v2580
  %v2693 = vadd.f32 %v2265, %v2583
  %v2694 = vadd.f32 %v2267, %v2585
  %v2695 = vadd.f32 %v2270, %v2588
  %v2696 = vadd.f32 %v2272, %v2590
  %v2697 = vadd.f32 %v2275, %v2593
  %v2698 = vadd.f32 %v2277, %v2595
  %v2699 = vadd.f32 %v2280, %v2598
  %v2700 = vadd.f32 %v2282, %v2600
  %v2701 = vadd.f32 %v2285, %v2603
  %v2702 = vadd.f32 %v2287, %v2605
  %v2703 = vadd.f32 %v2290, %v2608
  %v2704 = vadd.f32 %v2292, %v2610
  %v2705 = vadd.f32 %v2295, %v2613
  %v2706 = vadd.f32 %v2297, %v2615
  %v2707 = vadd.f32 %v2300, %v2618
  %v2708 = vadd.f32 %v2302, %v2620
  %v2709 = vadd.f32 %v2305, %v2623
  %v2710 = vadd.f32 %v2307, %v2625
  %v2711 = vadd.f32 %v2310, %v2628
  %v2712 = vadd.f32 %v2312, %v2630
  %v2713 = vadd.f32 %v2315, %v2633
  %v2714 = vadd.f32 %v2317, %v2635
  %v2715 = vadd.f32 %v2320, %v2638
  %v2716 = vadd.f32 %v2322, %v2640
  %v2717 = vadd.f32 %v2325, %v2643
  %v2718 = vadd.f32 %v2327, %v2645
  %v2719 = vld [vmem:[%s5] sm:$0x1]
  %v2721 = vperm.slane %v2719, 0
  %v2723 = vmul.f32 %v2647, %v2721
  %v2724 = vmul.f32 %v2648, %v2721
  %v2725 = vmul.f32 %v2649, %v2721
  %v2726 = vmul.f32 %v2650, %v2721
  %v2727 = vmul.f32 %v2651, %v2721
  %v2728 = vmul.f32 %v2652, %v2721
  %v2729 = vmul.f32 %v2653, %v2721
  %v2730 = vmul.f32 %v2654, %v2721
  %v2731 = vmul.f32 %v2655, %v2721
  %v2732 = vmul.f32 %v2656, %v2721
  %v2733 = vmul.f32 %v2657, %v2721
  %v2734 = vmul.f32 %v2658, %v2721
  %v2735 = vmul.f32 %v2659, %v2721
  %v2736 = vmul.f32 %v2660, %v2721
  %v2737 = vmul.f32 %v2661, %v2721
  %v2738 = vmul.f32 %v2662, %v2721
  %v2739 = vmul.f32 %v2663, %v2721
  %v2740 = vmul.f32 %v2664, %v2721
  %v2741 = vmul.f32 %v2665, %v2721
  %v2742 = vmul.f32 %v2666, %v2721
  %v2743 = vmul.f32 %v2667, %v2721
  %v2744 = vmul.f32 %v2668, %v2721
  %v2745 = vmul.f32 %v2669, %v2721
  %v2746 = vmul.f32 %v2670, %v2721
  %v2747 = vmul.f32 %v2671, %v2721
  %v2748 = vmul.f32 %v2672, %v2721
  %v2749 = vmul.f32 %v2673, %v2721
  %v2750 = vmul.f32 %v2674, %v2721
  %v2751 = vmul.f32 %v2675, %v2721
  %v2752 = vmul.f32 %v2676, %v2721
  %v2753 = vmul.f32 %v2677, %v2721
  %v2754 = vmul.f32 %v2678, %v2721
  %v2755 = vmul.f32 %v2679, %v2721
  %v2756 = vmul.f32 %v2680, %v2721
  %v2757 = vmul.f32 %v2681, %v2721
  %v2758 = vmul.f32 %v2682, %v2721
  %v2759 = vmul.f32 %v2683, %v2721
  %v2760 = vmul.f32 %v2684, %v2721
  %v2761 = vmul.f32 %v2685, %v2721
  %v2762 = vmul.f32 %v2686, %v2721
  %v2763 = vmul.f32 %v2687, %v2721
  %v2764 = vmul.f32 %v2688, %v2721
  %v2765 = vmul.f32 %v2689, %v2721
  %v2766 = vmul.f32 %v2690, %v2721
  %v2767 = vmul.f32 %v2691, %v2721
  %v2768 = vmul.f32 %v2692, %v2721
  %v2769 = vmul.f32 %v2693, %v2721
  %v2770 = vmul.f32 %v2694, %v2721
  %v2771 = vmul.f32 %v2695, %v2721
  %v2772 = vmul.f32 %v2696, %v2721
  %v2773 = vmul.f32 %v2697, %v2721
  %v2774 = vmul.f32 %v2698, %v2721
  %v2775 = vmul.f32 %v2699, %v2721
  %v2776 = vmul.f32 %v2700, %v2721
  %v2777 = vmul.f32 %v2701, %v2721
  %v2778 = vmul.f32 %v2702, %v2721
  %v2779 = vmul.f32 %v2703, %v2721
  %v2780 = vmul.f32 %v2704, %v2721
  %v2781 = vmul.f32 %v2705, %v2721
  %v2782 = vmul.f32 %v2706, %v2721
  %v2783 = vmul.f32 %v2707, %v2721
  %v2784 = vmul.f32 %v2708, %v2721
  %v2785 = vmul.f32 %v2709, %v2721
  %v2786 = vmul.f32 %v2710, %v2721
  %v2787 = vmul.f32 %v2711, %v2721
  %v2788 = vmul.f32 %v2712, %v2721
  %v2789 = vmul.f32 %v2713, %v2721
  %v2790 = vmul.f32 %v2714, %v2721
  %v2791 = vmul.f32 %v2715, %v2721
  %v2792 = vmul.f32 %v2716, %v2721
  %v2793 = vmul.f32 %v2717, %v2721
  %v2794 = vmul.f32 %v2718, %v2721
  %v2795 = vld [vmem:[%s6] sm:$0x1]
  %v2797 = vperm.slane %v2795, 0
  %v2799 = vadd.f32 %v2723, %v2797
  %v2800 = vadd.f32 %v2724, %v2797
  %v2801 = vadd.f32 %v2725, %v2797
  %v2802 = vadd.f32 %v2726, %v2797
  %v2803 = vadd.f32 %v2727, %v2797
  %v2804 = vadd.f32 %v2728, %v2797
  %v2805 = vadd.f32 %v2729, %v2797
  %v2806 = vadd.f32 %v2730, %v2797
  %v2807 = vadd.f32 %v2731, %v2797
  %v2808 = vadd.f32 %v2732, %v2797
  %v2809 = vadd.f32 %v2733, %v2797
  %v2810 = vadd.f32 %v2734, %v2797
  %v2811 = vadd.f32 %v2735, %v2797
  %v2812 = vadd.f32 %v2736, %v2797
  %v2813 = vadd.f32 %v2737, %v2797
  %v2814 = vadd.f32 %v2738, %v2797
  %v2815 = vadd.f32 %v2739, %v2797
  %v2816 = vadd.f32 %v2740, %v2797
  %v2817 = vadd.f32 %v2741, %v2797
  %v2818 = vadd.f32 %v2742, %v2797
  %v2819 = vadd.f32 %v2743, %v2797
  %v2820 = vadd.f32 %v2744, %v2797
  %v2821 = vadd.f32 %v2745, %v2797
  %v2822 = vadd.f32 %v2746, %v2797
  %v2823 = vadd.f32 %v2747, %v2797
  %v2824 = vadd.f32 %v2748, %v2797
  %v2825 = vadd.f32 %v2749, %v2797
  %v2826 = vadd.f32 %v2750, %v2797
  %v2827 = vadd.f32 %v2751, %v2797
  %v2828 = vadd.f32 %v2752, %v2797
  %v2829 = vadd.f32 %v2753, %v2797
  %v2830 = vadd.f32 %v2754, %v2797
  %v2831 = vadd.f32 %v2755, %v2797
  %v2832 = vadd.f32 %v2756, %v2797
  %v2833 = vadd.f32 %v2757, %v2797
  %v2834 = vadd.f32 %v2758, %v2797
  %v2835 = vadd.f32 %v2759, %v2797
  %v2836 = vadd.f32 %v2760, %v2797
  %v2837 = vadd.f32 %v2761, %v2797
  %v2838 = vadd.f32 %v2762, %v2797
  %v2839 = vadd.f32 %v2763, %v2797
  %v2840 = vadd.f32 %v2764, %v2797
  %v2841 = vadd.f32 %v2765, %v2797
  %v2842 = vadd.f32 %v2766, %v2797
  %v2843 = vadd.f32 %v2767, %v2797
  %v2844 = vadd.f32 %v2768, %v2797
  %v2845 = vadd.f32 %v2769, %v2797
  %v2846 = vadd.f32 %v2770, %v2797
  %v2847 = vadd.f32 %v2771, %v2797
  %v2848 = vadd.f32 %v2772, %v2797
  %v2849 = vadd.f32 %v2773, %v2797
  %v2850 = vadd.f32 %v2774, %v2797
  %v2851 = vadd.f32 %v2775, %v2797
  %v2852 = vadd.f32 %v2776, %v2797
  %v2853 = vadd.f32 %v2777, %v2797
  %v2854 = vadd.f32 %v2778, %v2797
  %v2855 = vadd.f32 %v2779, %v2797
  %v2856 = vadd.f32 %v2780, %v2797
  %v2857 = vadd.f32 %v2781, %v2797
  %v2858 = vadd.f32 %v2782, %v2797
  %v2859 = vadd.f32 %v2783, %v2797
  %v2860 = vadd.f32 %v2784, %v2797
  %v2861 = vadd.f32 %v2785, %v2797
  %v2862 = vadd.f32 %v2786, %v2797
  %v2863 = vadd.f32 %v2787, %v2797
  %v2864 = vadd.f32 %v2788, %v2797
  %v2865 = vadd.f32 %v2789, %v2797
  %v2866 = vadd.f32 %v2790, %v2797
  %v2867 = vadd.f32 %v2791, %v2797
  %v2868 = vadd.f32 %v2792, %v2797
  %v2869 = vadd.f32 %v2793, %v2797
  %v2870 = vadd.f32 %v2794, %v2797
  %v2871 = vmax.f32 %v2799, 0.0
  %v2872 = vmax.f32 %v2800, 0.0
  %v2873 = vmax.f32 %v2801, 0.0
  %v2874 = vmax.f32 %v2802, 0.0
  %v2875 = vmax.f32 %v2803, 0.0
  %v2876 = vmax.f32 %v2804, 0.0
  %v2877 = vmax.f32 %v2805, 0.0
  %v2878 = vmax.f32 %v2806, 0.0
  %v2879 = vmax.f32 %v2807, 0.0
  %v2880 = vmax.f32 %v2808, 0.0
  %v2881 = vmax.f32 %v2809, 0.0
  %v2882 = vmax.f32 %v2810, 0.0
  %v2883 = vmax.f32 %v2811, 0.0
  %v2884 = vmax.f32 %v2812, 0.0
  %v2885 = vmax.f32 %v2813, 0.0
  %v2886 = vmax.f32 %v2814, 0.0
  %v2887 = vmax.f32 %v2815, 0.0
  %v2888 = vmax.f32 %v2816, 0.0
  %v2889 = vmax.f32 %v2817, 0.0
  %v2890 = vmax.f32 %v2818, 0.0
  %v2891 = vmax.f32 %v2819, 0.0
  %v2892 = vmax.f32 %v2820, 0.0
  %v2893 = vmax.f32 %v2821, 0.0
  %v2894 = vmax.f32 %v2822, 0.0
  %v2895 = vmax.f32 %v2823, 0.0
  %v2896 = vmax.f32 %v2824, 0.0
  %v2897 = vmax.f32 %v2825, 0.0
  %v2898 = vmax.f32 %v2826, 0.0
  %v2899 = vmax.f32 %v2827, 0.0
  %v2900 = vmax.f32 %v2828, 0.0
  %v2901 = vmax.f32 %v2829, 0.0
  %v2902 = vmax.f32 %v2830, 0.0
  %v2903 = vmax.f32 %v2831, 0.0
  %v2904 = vmax.f32 %v2832, 0.0
  %v2905 = vmax.f32 %v2833, 0.0
  %v2906 = vmax.f32 %v2834, 0.0
  %v2907 = vmax.f32 %v2835, 0.0
  %v2908 = vmax.f32 %v2836, 0.0
  %v2909 = vmax.f32 %v2837, 0.0
  %v2910 = vmax.f32 %v2838, 0.0
  %v2911 = vmax.f32 %v2839, 0.0
  %v2912 = vmax.f32 %v2840, 0.0
  %v2913 = vmax.f32 %v2841, 0.0
  %v2914 = vmax.f32 %v2842, 0.0
  %v2915 = vmax.f32 %v2843, 0.0
  %v2916 = vmax.f32 %v2844, 0.0
  %v2917 = vmax.f32 %v2845, 0.0
  %v2918 = vmax.f32 %v2846, 0.0
  %v2919 = vmax.f32 %v2847, 0.0
  %v2920 = vmax.f32 %v2848, 0.0
  %v2921 = vmax.f32 %v2849, 0.0
  %v2922 = vmax.f32 %v2850, 0.0
  %v2923 = vmax.f32 %v2851, 0.0
  %v2924 = vmax.f32 %v2852, 0.0
  %v2925 = vmax.f32 %v2853, 0.0
  %v2926 = vmax.f32 %v2854, 0.0
  %v2927 = vmax.f32 %v2855, 0.0
  %v2928 = vmax.f32 %v2856, 0.0
  %v2929 = vmax.f32 %v2857, 0.0
  %v2930 = vmax.f32 %v2858, 0.0
  %v2931 = vmax.f32 %v2859, 0.0
  %v2932 = vmax.f32 %v2860, 0.0
  %v2933 = vmax.f32 %v2861, 0.0
  %v2934 = vmax.f32 %v2862, 0.0
  %v2935 = vmax.f32 %v2863, 0.0
  %v2936 = vmax.f32 %v2864, 0.0
  %v2937 = vmax.f32 %v2865, 0.0
  %v2938 = vmax.f32 %v2866, 0.0
  %v2939 = vmax.f32 %v2867, 0.0
  %v2940 = vmax.f32 %v2868, 0.0
  %v2941 = vmax.f32 %v2869, 0.0
  %v2942 = vmax.f32 %v2870, 0.0
  %v2943 = vpack.c.bf16 %v2871, %v2871
  %v2944 = vpack.c.bf16 %v2872, %v2872
  %v2945 = vpack.c.bf16 %v2873, %v2873
  %v2946 = vpack.c.bf16 %v2874, %v2874
  %v2947 = vpack.c.bf16 %v2875, %v2875
  %v2948 = vpack.c.bf16 %v2876, %v2876
  %v2949 = vpack.c.bf16 %v2877, %v2877
  %v2950 = vpack.c.bf16 %v2878, %v2878
  %v2951 = vpack.c.bf16 %v2879, %v2879
  %v2952 = vpack.c.bf16 %v2880, %v2880
  %v2953 = vpack.c.bf16 %v2881, %v2881
  %v2954 = vpack.c.bf16 %v2882, %v2882
  %v2955 = vpack.c.bf16 %v2883, %v2883
  %v2956 = vpack.c.bf16 %v2884, %v2884
  %v2957 = vpack.c.bf16 %v2885, %v2885
  %v2958 = vpack.c.bf16 %v2886, %v2886
  %v2959 = vpack.c.bf16 %v2887, %v2887
  %v2960 = vpack.c.bf16 %v2888, %v2888
  %v2961 = vpack.c.bf16 %v2889, %v2889
  %v2962 = vpack.c.bf16 %v2890, %v2890
  %v2963 = vpack.c.bf16 %v2891, %v2891
  %v2964 = vpack.c.bf16 %v2892, %v2892
  %v2965 = vpack.c.bf16 %v2893, %v2893
  %v2966 = vpack.c.bf16 %v2894, %v2894
  %v2967 = vpack.c.bf16 %v2895, %v2895
  %v2968 = vpack.c.bf16 %v2896, %v2896
  %v2969 = vpack.c.bf16 %v2897, %v2897
  %v2970 = vpack.c.bf16 %v2898, %v2898
  %v2971 = vpack.c.bf16 %v2899, %v2899
  %v2972 = vpack.c.bf16 %v2900, %v2900
  %v2973 = vpack.c.bf16 %v2901, %v2901
  %v2974 = vpack.c.bf16 %v2902, %v2902
  %v2975 = vpack.c.bf16 %v2903, %v2903
  %v2976 = vpack.c.bf16 %v2904, %v2904
  %v2977 = vpack.c.bf16 %v2905, %v2905
  %v2978 = vpack.c.bf16 %v2906, %v2906
  %v2979 = vpack.c.bf16 %v2907, %v2907
  %v2980 = vpack.c.bf16 %v2908, %v2908
  %v2981 = vpack.c.bf16 %v2909, %v2909
  %v2982 = vpack.c.bf16 %v2910, %v2910
  %v2983 = vpack.c.bf16 %v2911, %v2911
  %v2984 = vpack.c.bf16 %v2912, %v2912
  %v2985 = vpack.c.bf16 %v2913, %v2913
  %v2986 = vpack.c.bf16 %v2914, %v2914
  %v2987 = vpack.c.bf16 %v2915, %v2915
  %v2988 = vpack.c.bf16 %v2916, %v2916
  %v2989 = vpack.c.bf16 %v2917, %v2917
  %v2990 = vpack.c.bf16 %v2918, %v2918
  %v2991 = vpack.c.bf16 %v2919, %v2919
  %v2992 = vpack.c.bf16 %v2920, %v2920
  %v2993 = vpack.c.bf16 %v2921, %v2921
  %v2994 = vpack.c.bf16 %v2922, %v2922
  %v2995 = vpack.c.bf16 %v2923, %v2923
  %v2996 = vpack.c.bf16 %v2924, %v2924
  %v2997 = vpack.c.bf16 %v2925, %v2925
  %v2998 = vpack.c.bf16 %v2926, %v2926
  %v2999 = vpack.c.bf16 %v2927, %v2927
  %v3000 = vpack.c.bf16 %v2928, %v2928
  %v3001 = vpack.c.bf16 %v2929, %v2929
  %v3002 = vpack.c.bf16 %v2930, %v2930
  %v3003 = vpack.c.bf16 %v2931, %v2931
  %v3004 = vpack.c.bf16 %v2932, %v2932
  %v3005 = vpack.c.bf16 %v2933, %v2933
  %v3006 = vpack.c.bf16 %v2934, %v2934
  %v3007 = vpack.c.bf16 %v2935, %v2935
  %v3008 = vpack.c.bf16 %v2936, %v2936
  %v3009 = vpack.c.bf16 %v2937, %v2937
  %v3010 = vpack.c.bf16 %v2938, %v2938
  %v3011 = vpack.c.bf16 %v2939, %v2939
  %v3012 = vpack.c.bf16 %v2940, %v2940
  %v3013 = vpack.c.bf16 %v2941, %v2941
  %v3014 = vpack.c.bf16 %v2942, %v2942
  %v3015 = vld [vmem:[%s7] sm:$0xff]
  %v3016 = vld [vmem:[%s7 + $0x8] sm:$0xff]
  %v3017 = vld [vmem:[%s7 + $0x10] sm:$0xff]
  %v3018 = vld [vmem:[%s7 + $0x18] sm:$0xff]
  %v3019 = vld [vmem:[%s7 + $0x20] sm:$0xff]
  %v3020 = vld [vmem:[%s7 + $0x28] sm:$0xff]
  %v3021 = vld [vmem:[%s7 + $0x30] sm:$0xff]
  %v3022 = vld [vmem:[%s7 + $0x38] sm:$0xff]
  %v3023 = vld [vmem:[%s7 + $0x40] sm:$0xff]
  %v3024 = vld [vmem:[%s7 + $0x48] sm:$0xff]
  %v3025 = vld [vmem:[%s7 + $0x50] sm:$0xff]
  %v3026 = vld [vmem:[%s7 + $0x58] sm:$0xff]
  %v3027 = vld [vmem:[%s7 + $0x60] sm:$0xff]
  %v3028 = vld [vmem:[%s7 + $0x68] sm:$0xff]
  %v3029 = vld [vmem:[%s7 + $0x70] sm:$0xff]
  %v3030 = vld [vmem:[%s7 + $0x78] sm:$0xff]
  %s3031 = scalar_lea.vmem %s7, 128
  %v3032 = vld [vmem:[%s3031] sm:$0xff]
  %v3033 = vld [vmem:[%s3031 + $0x8] sm:$0xff]
  %v3034 = vld [vmem:[%s3031 + $0x10] sm:$0xff]
  %v3035 = vld [vmem:[%s3031 + $0x18] sm:$0xff]
  %v3036 = vld [vmem:[%s3031 + $0x20] sm:$0xff]
  %v3037 = vld [vmem:[%s3031 + $0x28] sm:$0xff]
  %v3038 = vld [vmem:[%s3031 + $0x30] sm:$0xff]
  %v3039 = vld [vmem:[%s3031 + $0x38] sm:$0xff]
  %v3040 = vld [vmem:[%s3031 + $0x40] sm:$0xff]
  %v3041 = vld [vmem:[%s3031 + $0x48] sm:$0xff]
  %v3042 = vld [vmem:[%s3031 + $0x50] sm:$0xff]
  %v3043 = vld [vmem:[%s3031 + $0x58] sm:$0xff]
  %v3044 = vld [vmem:[%s3031 + $0x60] sm:$0xff]
  %v3045 = vld [vmem:[%s3031 + $0x68] sm:$0xff]
  %v3046 = vld [vmem:[%s3031 + $0x70] sm:$0xff]
  %v3047 = vld [vmem:[%s3031 + $0x78] sm:$0xff]
  %v3072 = vunpack.c.l.b16 %v2967
  %v3073 = vunpack.c.l.b16 %v2968
  %v3074 = vunpack.c.l.b16 %v2969
  %v3075 = vunpack.c.l.b16 %v2970
  %v3076 = vunpack.c.l.b16 %v2971
  %v3077 = vunpack.c.l.b16 %v2972
  %v3078 = vunpack.c.l.b16 %v2973
  %v3079 = vunpack.c.l.b16 %v2974
  %v3080 = vunpack.c.l.b16 %v2975
  %v3081 = vunpack.c.l.b16 %v2976
  %v3082 = vunpack.c.l.b16 %v2977
  %v3083 = vunpack.c.l.b16 %v2978
  %v3084 = vunpack.c.l.b16 %v2979
  %v3085 = vunpack.c.l.b16 %v2980
  %v3086 = vunpack.c.l.b16 %v2981
  %v3087 = vunpack.c.l.b16 %v2982
  %v3088 = vunpack.c.l.b16 %v2983
  %v3089 = vunpack.c.l.b16 %v2984
  %v3090 = vunpack.c.l.b16 %v2985
  %v3091 = vunpack.c.l.b16 %v2986
  %v3092 = vunpack.c.l.b16 %v2987
  %v3093 = vunpack.c.l.b16 %v2988
  %v3094 = vunpack.c.l.b16 %v2989
  %v3095 = vunpack.c.l.b16 %v2990
  %v3096 = vpack.c.b16 %v3073, %v3072
  %v3097 = vpack.c.b16 %v3075, %v3074
  %v3098 = vpack.c.b16 %v3077, %v3076
  %v3099 = vpack.c.b16 %v3079, %v3078
  %v3100 = vpack.c.b16 %v3081, %v3080
  %v3101 = vpack.c.b16 %v3083, %v3082
  %v3102 = vpack.c.b16 %v3085, %v3084
  %v3103 = vpack.c.b16 %v3087, %v3086
  %v3104 = vpack.c.b16 %v3089, %v3088
  %v3105 = vpack.c.b16 %v3091, %v3090
  %v3106 = vpack.c.b16 %v3093, %v3092
  %v3107 = vpack.c.b16 %v3095, %v3094
  %v3136 = vunpack.c.l.b16 %v3032
  %v3137 = vunpack.c.h.b16 %v3032
  %v3138 = vunpack.c.l.b16 %v3033
  %v3139 = vunpack.c.h.b16 %v3033
  %v3140 = vunpack.c.l.b16 %v3034
  %v3141 = vunpack.c.h.b16 %v3034
  %v3142 = vunpack.c.l.b16 %v3035
  %v3143 = vunpack.c.h.b16 %v3035
  %v3144 = vunpack.c.l.b16 %v3036
  %v3145 = vunpack.c.h.b16 %v3036
  %v3146 = vunpack.c.l.b16 %v3037
  %v3147 = vunpack.c.h.b16 %v3037
  %v3148 = vunpack.c.l.b16 %v3038
  %v3149 = vunpack.c.h.b16 %v3038
  %v3150 = vunpack.c.l.b16 %v3039
  %v3151 = vunpack.c.h.b16 %v3039
  %v3152 = vunpack.c.l.b16 %v3040
  %v3153 = vunpack.c.h.b16 %v3040
  %v3154 = vunpack.c.l.b16 %v3041
  %v3155 = vunpack.c.h.b16 %v3041
  %v3156 = vunpack.c.l.b16 %v3042
  %v3157 = vunpack.c.h.b16 %v3042
  %v3158 = vunpack.c.l.b16 %v3043
  %v3159 = vunpack.c.h.b16 %v3043
  %v3160 = vunpack.c.l.b16 %v3044
  %v3161 = vunpack.c.h.b16 %v3044
  %v3162 = vunpack.c.l.b16 %v3045
  %v3163 = vunpack.c.h.b16 %v3045
  %v3164 = vunpack.c.l.b16 %v3046
  %v3165 = vunpack.c.h.b16 %v3046
  %v3166 = vunpack.c.l.b16 %v3047
  %v3167 = vunpack.c.h.b16 %v3047
  %v3168 = vpack.c.b16 %v3138, %v3136
  %v3169 = vpack.c.b16 %v3139, %v3137
  %v3170 = vpack.c.b16 %v3142, %v3140
  %v3171 = vpack.c.b16 %v3143, %v3141
  %v3172 = vpack.c.b16 %v3146, %v3144
  %v3173 = vpack.c.b16 %v3147, %v3145
  %v3174 = vpack.c.b16 %v3150, %v3148
  %v3175 = vpack.c.b16 %v3151, %v3149
  %v3176 = vpack.c.b16 %v3154, %v3152
  %v3177 = vpack.c.b16 %v3155, %v3153
  %v3178 = vpack.c.b16 %v3158, %v3156
  %v3179 = vpack.c.b16 %v3159, %v3157
  %v3180 = vpack.c.b16 %v3162, %v3160
  %v3181 = vpack.c.b16 %v3163, %v3161
  %v3182 = vpack.c.b16 %v3166, %v3164
  %v3183 = vpack.c.b16 %v3167, %v3165
  %3200 = vmatpush.bf16.msra.mxu0 %v3182
  %3201 = vmatpush.bf16.msra.mxu0 %v3180
  %3202 = vmatpush.bf16.msra.mxu0 %v3178
  %3203 = vmatpush.bf16.msra.mxu0 %v3176
  %3204 = vmatpush.bf16.msra.mxu0 %v3174
  %3205 = vmatpush.bf16.msra.mxu0 %v3172
  %3206 = vmatpush.bf16.msra.mxu0 %v3170
  %3207 = vmatpush.bf16.msra.mxu0 %v3168
  %3208 = vmatmul.bf16.gmra.mxu0 %v3096
  %v3209 = vpop.f32.mrf.mxu0
  %v3210 = vadd.f32 0.0, %v3209
  %v3211 = vpop.f32.mrf.mxu0
  %v3212 = vadd.f32 0.0, %v3211
  %3213 = vmatmul.bf16.gmra.mxu0 %v3097
  %v3214 = vpop.f32.mrf.mxu0
  %v3215 = vadd.f32 0.0, %v3214
  %v3216 = vpop.f32.mrf.mxu0
  %v3217 = vadd.f32 0.0, %v3216
  %3218 = vmatmul.bf16.gmra.mxu0 %v3098
  %v3219 = vpop.f32.mrf.mxu0
  %v3220 = vadd.f32 0.0, %v3219
  %v3221 = vpop.f32.mrf.mxu0
  %v3222 = vadd.f32 0.0, %v3221
  %3223 = vmatmul.bf16.gmra.mxu0 %v3099
  %v3224 = vpop.f32.mrf.mxu0
  %v3225 = vadd.f32 0.0, %v3224
  %v3226 = vpop.f32.mrf.mxu0
  %v3227 = vadd.f32 0.0, %v3226
  %3228 = vmatmul.bf16.gmra.mxu0 %v3100
  %v3229 = vpop.f32.mrf.mxu0
  %v3230 = vadd.f32 0.0, %v3229
  %v3231 = vpop.f32.mrf.mxu0
  %v3232 = vadd.f32 0.0, %v3231
  %3233 = vmatmul.bf16.gmra.mxu0 %v3101
  %v3234 = vpop.f32.mrf.mxu0
  %v3235 = vadd.f32 0.0, %v3234
  %v3236 = vpop.f32.mrf.mxu0
  %v3237 = vadd.f32 0.0, %v3236
  %3238 = vmatmul.bf16.gmra.mxu0 %v3102
  %v3239 = vpop.f32.mrf.mxu0
  %v3240 = vadd.f32 0.0, %v3239
  %v3241 = vpop.f32.mrf.mxu0
  %v3242 = vadd.f32 0.0, %v3241
  %3243 = vmatmul.bf16.gmra.mxu0 %v3103
  %v3244 = vpop.f32.mrf.mxu0
  %v3245 = vadd.f32 0.0, %v3244
  %v3246 = vpop.f32.mrf.mxu0
  %v3247 = vadd.f32 0.0, %v3246
  %3248 = vmatmul.bf16.gmra.mxu0 %v3104
  %v3249 = vpop.f32.mrf.mxu0
  %v3250 = vadd.f32 0.0, %v3249
  %v3251 = vpop.f32.mrf.mxu0
  %v3252 = vadd.f32 0.0, %v3251
  %3253 = vmatmul.bf16.gmra.mxu0 %v3105
  %v3254 = vpop.f32.mrf.mxu0
  %v3255 = vadd.f32 0.0, %v3254
  %v3256 = vpop.f32.mrf.mxu0
  %v3257 = vadd.f32 0.0, %v3256
  %3258 = vmatmul.bf16.gmra.mxu0 %v3106
  %v3259 = vpop.f32.mrf.mxu0
  %v3260 = vadd.f32 0.0, %v3259
  %v3261 = vpop.f32.mrf.mxu0
  %v3262 = vadd.f32 0.0, %v3261
  %3263 = vmatmul.bf16.gmra.mxu0 %v3107
  %v3264 = vpop.f32.mrf.mxu0
  %v3265 = vadd.f32 0.0, %v3264
  %v3266 = vpop.f32.mrf.mxu0
  %v3267 = vadd.f32 0.0, %v3266
  %3268 = vdwg.mxu0
  %3269 = vmatpush.bf16.msra.mxu0 %v3183
  %3270 = vmatpush.bf16.msra.mxu0 %v3181
  %3271 = vmatpush.bf16.msra.mxu0 %v3179
  %3272 = vmatpush.bf16.msra.mxu0 %v3177
  %3273 = vmatpush.bf16.msra.mxu0 %v3175
  %3274 = vmatpush.bf16.msra.mxu0 %v3173
  %3275 = vmatpush.bf16.msra.mxu0 %v3171
  %3276 = vmatpush.bf16.msra.mxu0 %v3169
  %3277 = vmatmul.bf16.gmra.mxu0 %v3096
  %v3278 = vpop.f32.mrf.mxu0
  %v3279 = vadd.f32 0.0, %v3278
  %v3280 = vpop.f32.mrf.mxu0
  %v3281 = vadd.f32 0.0, %v3280
  %3282 = vmatmul.bf16.gmra.mxu0 %v3097
  %v3283 = vpop.f32.mrf.mxu0
  %v3284 = vadd.f32 0.0, %v3283
  %v3285 = vpop.f32.mrf.mxu0
  %v3286 = vadd.f32 0.0, %v3285
  %3287 = vmatmul.bf16.gmra.mxu0 %v3098
  %v3288 = vpop.f32.mrf.mxu0
  %v3289 = vadd.f32 0.0, %v3288
  %v3290 = vpop.f32.mrf.mxu0
  %v3291 = vadd.f32 0.0, %v3290
  %3292 = vmatmul.bf16.gmra.mxu0 %v3099
  %v3293 = vpop.f32.mrf.mxu0
  %v3294 = vadd.f32 0.0, %v3293
  %v3295 = vpop.f32.mrf.mxu0
  %v3296 = vadd.f32 0.0, %v3295
  %3297 = vmatmul.bf16.gmra.mxu0 %v3100
  %v3298 = vpop.f32.mrf.mxu0
  %v3299 = vadd.f32 0.0, %v3298
  %v3300 = vpop.f32.mrf.mxu0
  %v3301 = vadd.f32 0.0, %v3300
  %3302 = vmatmul.bf16.gmra.mxu0 %v3101
  %v3303 = vpop.f32.mrf.mxu0
  %v3304 = vadd.f32 0.0, %v3303
  %v3305 = vpop.f32.mrf.mxu0
  %v3306 = vadd.f32 0.0, %v3305
  %3307 = vmatmul.bf16.gmra.mxu0 %v3102
  %v3308 = vpop.f32.mrf.mxu0
  %v3309 = vadd.f32 0.0, %v3308
  %v3310 = vpop.f32.mrf.mxu0
  %v3311 = vadd.f32 0.0, %v3310
  %3312 = vmatmul.bf16.gmra.mxu0 %v3103
  %v3313 = vpop.f32.mrf.mxu0
  %v3314 = vadd.f32 0.0, %v3313
  %v3315 = vpop.f32.mrf.mxu0
  %v3316 = vadd.f32 0.0, %v3315
  %3317 = vmatmul.bf16.gmra.mxu0 %v3104
  %v3318 = vpop.f32.mrf.mxu0
  %v3319 = vadd.f32 0.0, %v3318
  %v3320 = vpop.f32.mrf.mxu0
  %v3321 = vadd.f32 0.0, %v3320
  %3322 = vmatmul.bf16.gmra.mxu0 %v3105
  %v3323 = vpop.f32.mrf.mxu0
  %v3324 = vadd.f32 0.0, %v3323
  %v3325 = vpop.f32.mrf.mxu0
  %v3326 = vadd.f32 0.0, %v3325
  %3327 = vmatmul.bf16.gmra.mxu0 %v3106
  %v3328 = vpop.f32.mrf.mxu0
  %v3329 = vadd.f32 0.0, %v3328
  %v3330 = vpop.f32.mrf.mxu0
  %v3331 = vadd.f32 0.0, %v3330
  %3332 = vmatmul.bf16.gmra.mxu0 %v3107
  %v3333 = vpop.f32.mrf.mxu0
  %v3334 = vadd.f32 0.0, %v3333
  %v3335 = vpop.f32.mrf.mxu0
  %v3336 = vadd.f32 0.0, %v3335
  %3337 = vdwg.mxu0
  %v3362 = vunpack.c.l.b16 %v2943
  %v3363 = vunpack.c.l.b16 %v2944
  %v3364 = vunpack.c.l.b16 %v2945
  %v3365 = vunpack.c.l.b16 %v2946
  %v3366 = vunpack.c.l.b16 %v2947
  %v3367 = vunpack.c.l.b16 %v2948
  %v3368 = vunpack.c.l.b16 %v2949
  %v3369 = vunpack.c.l.b16 %v2950
  %v3370 = vunpack.c.l.b16 %v2951
  %v3371 = vunpack.c.l.b16 %v2952
  %v3372 = vunpack.c.l.b16 %v2953
  %v3373 = vunpack.c.l.b16 %v2954
  %v3374 = vunpack.c.l.b16 %v2955
  %v3375 = vunpack.c.l.b16 %v2956
  %v3376 = vunpack.c.l.b16 %v2957
  %v3377 = vunpack.c.l.b16 %v2958
  %v3378 = vunpack.c.l.b16 %v2959
  %v3379 = vunpack.c.l.b16 %v2960
  %v3380 = vunpack.c.l.b16 %v2961
  %v3381 = vunpack.c.l.b16 %v2962
  %v3382 = vunpack.c.l.b16 %v2963
  %v3383 = vunpack.c.l.b16 %v2964
  %v3384 = vunpack.c.l.b16 %v2965
  %v3385 = vunpack.c.l.b16 %v2966
  %v3386 = vpack.c.b16 %v3363, %v3362
  %v3387 = vpack.c.b16 %v3365, %v3364
  %v3388 = vpack.c.b16 %v3367, %v3366
  %v3389 = vpack.c.b16 %v3369, %v3368
  %v3390 = vpack.c.b16 %v3371, %v3370
  %v3391 = vpack.c.b16 %v3373, %v3372
  %v3392 = vpack.c.b16 %v3375, %v3374
  %v3393 = vpack.c.b16 %v3377, %v3376
  %v3394 = vpack.c.b16 %v3379, %v3378
  %v3395 = vpack.c.b16 %v3381, %v3380
  %v3396 = vpack.c.b16 %v3383, %v3382
  %v3397 = vpack.c.b16 %v3385, %v3384
  %v3426 = vunpack.c.l.b16 %v3015
  %v3427 = vunpack.c.h.b16 %v3015
  %v3428 = vunpack.c.l.b16 %v3016
  %v3429 = vunpack.c.h.b16 %v3016
  %v3430 = vunpack.c.l.b16 %v3017
  %v3431 = vunpack.c.h.b16 %v3017
  %v3432 = vunpack.c.l.b16 %v3018
  %v3433 = vunpack.c.h.b16 %v3018
  %v3434 = vunpack.c.l.b16 %v3019
  %v3435 = vunpack.c.h.b16 %v3019
  %v3436 = vunpack.c.l.b16 %v3020
  %v3437 = vunpack.c.h.b16 %v3020
  %v3438 = vunpack.c.l.b16 %v3021
  %v3439 = vunpack.c.h.b16 %v3021
  %v3440 = vunpack.c.l.b16 %v3022
  %v3441 = vunpack.c.h.b16 %v3022
  %v3442 = vunpack.c.l.b16 %v3023
  %v3443 = vunpack.c.h.b16 %v3023
  %v3444 = vunpack.c.l.b16 %v3024
  %v3445 = vunpack.c.h.b16 %v3024
  %v3446 = vunpack.c.l.b16 %v3025
  %v3447 = vunpack.c.h.b16 %v3025
  %v3448 = vunpack.c.l.b16 %v3026
  %v3449 = vunpack.c.h.b16 %v3026
  %v3450 = vunpack.c.l.b16 %v3027
  %v3451 = vunpack.c.h.b16 %v3027
  %v3452 = vunpack.c.l.b16 %v3028
  %v3453 = vunpack.c.h.b16 %v3028
  %v3454 = vunpack.c.l.b16 %v3029
  %v3455 = vunpack.c.h.b16 %v3029
  %v3456 = vunpack.c.l.b16 %v3030
  %v3457 = vunpack.c.h.b16 %v3030
  %v3458 = vpack.c.b16 %v3428, %v3426
  %v3459 = vpack.c.b16 %v3429, %v3427
  %v3460 = vpack.c.b16 %v3432, %v3430
  %v3461 = vpack.c.b16 %v3433, %v3431
  %v3462 = vpack.c.b16 %v3436, %v3434
  %v3463 = vpack.c.b16 %v3437, %v3435
  %v3464 = vpack.c.b16 %v3440, %v3438
  %v3465 = vpack.c.b16 %v3441, %v3439
  %v3466 = vpack.c.b16 %v3444, %v3442
  %v3467 = vpack.c.b16 %v3445, %v3443
  %v3468 = vpack.c.b16 %v3448, %v3446
  %v3469 = vpack.c.b16 %v3449, %v3447
  %v3470 = vpack.c.b16 %v3452, %v3450
  %v3471 = vpack.c.b16 %v3453, %v3451
  %v3472 = vpack.c.b16 %v3456, %v3454
  %v3473 = vpack.c.b16 %v3457, %v3455
  %3490 = vmatpush.bf16.msra.mxu0 %v3472
  %3491 = vmatpush.bf16.msra.mxu0 %v3470
  %3492 = vmatpush.bf16.msra.mxu0 %v3468
  %3493 = vmatpush.bf16.msra.mxu0 %v3466
  %3494 = vmatpush.bf16.msra.mxu0 %v3464
  %3495 = vmatpush.bf16.msra.mxu0 %v3462
  %3496 = vmatpush.bf16.msra.mxu0 %v3460
  %3497 = vmatpush.bf16.msra.mxu0 %v3458
  %3498 = vmatmul.bf16.gmra.mxu0 %v3386
  %v3499 = vpop.f32.mrf.mxu0
  %v3500 = vadd.f32 %v3210, %v3499
  %v3501 = vpop.f32.mrf.mxu0
  %v3502 = vadd.f32 %v3212, %v3501
  %3503 = vmatmul.bf16.gmra.mxu0 %v3387
  %v3504 = vpop.f32.mrf.mxu0
  %v3505 = vadd.f32 %v3215, %v3504
  %v3506 = vpop.f32.mrf.mxu0
  %v3507 = vadd.f32 %v3217, %v3506
  %3508 = vmatmul.bf16.gmra.mxu0 %v3388
  %v3509 = vpop.f32.mrf.mxu0
  %v3510 = vadd.f32 %v3220, %v3509
  %v3511 = vpop.f32.mrf.mxu0
  %v3512 = vadd.f32 %v3222, %v3511
  %3513 = vmatmul.bf16.gmra.mxu0 %v3389
  %v3514 = vpop.f32.mrf.mxu0
  %v3515 = vadd.f32 %v3225, %v3514
  %v3516 = vpop.f32.mrf.mxu0
  %v3517 = vadd.f32 %v3227, %v3516
  %3518 = vmatmul.bf16.gmra.mxu0 %v3390
  %v3519 = vpop.f32.mrf.mxu0
  %v3520 = vadd.f32 %v3230, %v3519
  %v3521 = vpop.f32.mrf.mxu0
  %v3522 = vadd.f32 %v3232, %v3521
  %3523 = vmatmul.bf16.gmra.mxu0 %v3391
  %v3524 = vpop.f32.mrf.mxu0
  %v3525 = vadd.f32 %v3235, %v3524
  %v3526 = vpop.f32.mrf.mxu0
  %v3527 = vadd.f32 %v3237, %v3526
  %3528 = vmatmul.bf16.gmra.mxu0 %v3392
  %v3529 = vpop.f32.mrf.mxu0
  %v3530 = vadd.f32 %v3240, %v3529
  %v3531 = vpop.f32.mrf.mxu0
  %v3532 = vadd.f32 %v3242, %v3531
  %3533 = vmatmul.bf16.gmra.mxu0 %v3393
  %v3534 = vpop.f32.mrf.mxu0
  %v3535 = vadd.f32 %v3245, %v3534
  %v3536 = vpop.f32.mrf.mxu0
  %v3537 = vadd.f32 %v3247, %v3536
  %3538 = vmatmul.bf16.gmra.mxu0 %v3394
  %v3539 = vpop.f32.mrf.mxu0
  %v3540 = vadd.f32 %v3250, %v3539
  %v3541 = vpop.f32.mrf.mxu0
  %v3542 = vadd.f32 %v3252, %v3541
  %3543 = vmatmul.bf16.gmra.mxu0 %v3395
  %v3544 = vpop.f32.mrf.mxu0
  %v3545 = vadd.f32 %v3255, %v3544
  %v3546 = vpop.f32.mrf.mxu0
  %v3547 = vadd.f32 %v3257, %v3546
  %3548 = vmatmul.bf16.gmra.mxu0 %v3396
  %v3549 = vpop.f32.mrf.mxu0
  %v3550 = vadd.f32 %v3260, %v3549
  %v3551 = vpop.f32.mrf.mxu0
  %v3552 = vadd.f32 %v3262, %v3551
  %3553 = vmatmul.bf16.gmra.mxu0 %v3397
  %v3554 = vpop.f32.mrf.mxu0
  %v3555 = vadd.f32 %v3265, %v3554
  %v3556 = vpop.f32.mrf.mxu0
  %v3557 = vadd.f32 %v3267, %v3556
  %3558 = vdwg.mxu0
  %3559 = vmatpush.bf16.msra.mxu0 %v3473
  %3560 = vmatpush.bf16.msra.mxu0 %v3471
  %3561 = vmatpush.bf16.msra.mxu0 %v3469
  %3562 = vmatpush.bf16.msra.mxu0 %v3467
  %3563 = vmatpush.bf16.msra.mxu0 %v3465
  %3564 = vmatpush.bf16.msra.mxu0 %v3463
  %3565 = vmatpush.bf16.msra.mxu0 %v3461
  %3566 = vmatpush.bf16.msra.mxu0 %v3459
  %3567 = vmatmul.bf16.gmra.mxu0 %v3386
  %v3568 = vpop.f32.mrf.mxu0
  %v3569 = vadd.f32 %v3279, %v3568
  %v3570 = vpop.f32.mrf.mxu0
  %v3571 = vadd.f32 %v3281, %v3570
  %3572 = vmatmul.bf16.gmra.mxu0 %v3387
  %v3573 = vpop.f32.mrf.mxu0
  %v3574 = vadd.f32 %v3284, %v3573
  %v3575 = vpop.f32.mrf.mxu0
  %v3576 = vadd.f32 %v3286, %v3575
  %3577 = vmatmul.bf16.gmra.mxu0 %v3388
  %v3578 = vpop.f32.mrf.mxu0
  %v3579 = vadd.f32 %v3289, %v3578
  %v3580 = vpop.f32.mrf.mxu0
  %v3581 = vadd.f32 %v3291, %v3580
  %3582 = vmatmul.bf16.gmra.mxu0 %v3389
  %v3583 = vpop.f32.mrf.mxu0
  %v3584 = vadd.f32 %v3294, %v3583
  %v3585 = vpop.f32.mrf.mxu0
  %v3586 = vadd.f32 %v3296, %v3585
  %3587 = vmatmul.bf16.gmra.mxu0 %v3390
  %v3588 = vpop.f32.mrf.mxu0
  %v3589 = vadd.f32 %v3299, %v3588
  %v3590 = vpop.f32.mrf.mxu0
  %v3591 = vadd.f32 %v3301, %v3590
  %3592 = vmatmul.bf16.gmra.mxu0 %v3391
  %v3593 = vpop.f32.mrf.mxu0
  %v3594 = vadd.f32 %v3304, %v3593
  %v3595 = vpop.f32.mrf.mxu0
  %v3596 = vadd.f32 %v3306, %v3595
  %3597 = vmatmul.bf16.gmra.mxu0 %v3392
  %v3598 = vpop.f32.mrf.mxu0
  %v3599 = vadd.f32 %v3309, %v3598
  %v3600 = vpop.f32.mrf.mxu0
  %v3601 = vadd.f32 %v3311, %v3600
  %3602 = vmatmul.bf16.gmra.mxu0 %v3393
  %v3603 = vpop.f32.mrf.mxu0
  %v3604 = vadd.f32 %v3314, %v3603
  %v3605 = vpop.f32.mrf.mxu0
  %v3606 = vadd.f32 %v3316, %v3605
  %3607 = vmatmul.bf16.gmra.mxu0 %v3394
  %v3608 = vpop.f32.mrf.mxu0
  %v3609 = vadd.f32 %v3319, %v3608
  %v3610 = vpop.f32.mrf.mxu0
  %v3611 = vadd.f32 %v3321, %v3610
  %3612 = vmatmul.bf16.gmra.mxu0 %v3395
  %v3613 = vpop.f32.mrf.mxu0
  %v3614 = vadd.f32 %v3324, %v3613
  %v3615 = vpop.f32.mrf.mxu0
  %v3616 = vadd.f32 %v3326, %v3615
  %3617 = vmatmul.bf16.gmra.mxu0 %v3396
  %v3618 = vpop.f32.mrf.mxu0
  %v3619 = vadd.f32 %v3329, %v3618
  %v3620 = vpop.f32.mrf.mxu0
  %v3621 = vadd.f32 %v3331, %v3620
  %3622 = vmatmul.bf16.gmra.mxu0 %v3397
  %v3623 = vpop.f32.mrf.mxu0
  %v3624 = vadd.f32 %v3334, %v3623
  %v3625 = vpop.f32.mrf.mxu0
  %v3626 = vadd.f32 %v3336, %v3625
  %3627 = vdwg.mxu0
  %s3628 = scalar_lea.vmem %s7, 256
  %v3629 = vld [vmem:[%s3628] sm:$0xff]
  %v3630 = vld [vmem:[%s3628 + $0x8] sm:$0xff]
  %v3631 = vld [vmem:[%s3628 + $0x10] sm:$0xff]
  %v3632 = vld [vmem:[%s3628 + $0x18] sm:$0xff]
  %v3633 = vld [vmem:[%s3628 + $0x20] sm:$0xff]
  %v3634 = vld [vmem:[%s3628 + $0x28] sm:$0xff]
  %v3635 = vld [vmem:[%s3628 + $0x30] sm:$0xff]
  %v3636 = vld [vmem:[%s3628 + $0x38] sm:$0xff]
  %v3637 = vld [vmem:[%s3628 + $0x40] sm:$0xff]
  %v3638 = vld [vmem:[%s3628 + $0x48] sm:$0xff]
  %v3639 = vld [vmem:[%s3628 + $0x50] sm:$0xff]
  %v3640 = vld [vmem:[%s3628 + $0x58] sm:$0xff]
  %v3641 = vld [vmem:[%s3628 + $0x60] sm:$0xff]
  %v3642 = vld [vmem:[%s3628 + $0x68] sm:$0xff]
  %v3643 = vld [vmem:[%s3628 + $0x70] sm:$0xff]
  %v3644 = vld [vmem:[%s3628 + $0x78] sm:$0xff]
  %v3669 = vunpack.c.l.b16 %v2991
  %v3670 = vunpack.c.l.b16 %v2992
  %v3671 = vunpack.c.l.b16 %v2993
  %v3672 = vunpack.c.l.b16 %v2994
  %v3673 = vunpack.c.l.b16 %v2995
  %v3674 = vunpack.c.l.b16 %v2996
  %v3675 = vunpack.c.l.b16 %v2997
  %v3676 = vunpack.c.l.b16 %v2998
  %v3677 = vunpack.c.l.b16 %v2999
  %v3678 = vunpack.c.l.b16 %v3000
  %v3679 = vunpack.c.l.b16 %v3001
  %v3680 = vunpack.c.l.b16 %v3002
  %v3681 = vunpack.c.l.b16 %v3003
  %v3682 = vunpack.c.l.b16 %v3004
  %v3683 = vunpack.c.l.b16 %v3005
  %v3684 = vunpack.c.l.b16 %v3006
  %v3685 = vunpack.c.l.b16 %v3007
  %v3686 = vunpack.c.l.b16 %v3008
  %v3687 = vunpack.c.l.b16 %v3009
  %v3688 = vunpack.c.l.b16 %v3010
  %v3689 = vunpack.c.l.b16 %v3011
  %v3690 = vunpack.c.l.b16 %v3012
  %v3691 = vunpack.c.l.b16 %v3013
  %v3692 = vunpack.c.l.b16 %v3014
  %v3693 = vpack.c.b16 %v3670, %v3669
  %v3694 = vpack.c.b16 %v3672, %v3671
  %v3695 = vpack.c.b16 %v3674, %v3673
  %v3696 = vpack.c.b16 %v3676, %v3675
  %v3697 = vpack.c.b16 %v3678, %v3677
  %v3698 = vpack.c.b16 %v3680, %v3679
  %v3699 = vpack.c.b16 %v3682, %v3681
  %v3700 = vpack.c.b16 %v3684, %v3683
  %v3701 = vpack.c.b16 %v3686, %v3685
  %v3702 = vpack.c.b16 %v3688, %v3687
  %v3703 = vpack.c.b16 %v3690, %v3689
  %v3704 = vpack.c.b16 %v3692, %v3691
  %v3733 = vunpack.c.l.b16 %v3629
  %v3734 = vunpack.c.h.b16 %v3629
  %v3735 = vunpack.c.l.b16 %v3630
  %v3736 = vunpack.c.h.b16 %v3630
  %v3737 = vunpack.c.l.b16 %v3631
  %v3738 = vunpack.c.h.b16 %v3631
  %v3739 = vunpack.c.l.b16 %v3632
  %v3740 = vunpack.c.h.b16 %v3632
  %v3741 = vunpack.c.l.b16 %v3633
  %v3742 = vunpack.c.h.b16 %v3633
  %v3743 = vunpack.c.l.b16 %v3634
  %v3744 = vunpack.c.h.b16 %v3634
  %v3745 = vunpack.c.l.b16 %v3635
  %v3746 = vunpack.c.h.b16 %v3635
  %v3747 = vunpack.c.l.b16 %v3636
  %v3748 = vunpack.c.h.b16 %v3636
  %v3749 = vunpack.c.l.b16 %v3637
  %v3750 = vunpack.c.h.b16 %v3637
  %v3751 = vunpack.c.l.b16 %v3638
  %v3752 = vunpack.c.h.b16 %v3638
  %v3753 = vunpack.c.l.b16 %v3639
  %v3754 = vunpack.c.h.b16 %v3639
  %v3755 = vunpack.c.l.b16 %v3640
  %v3756 = vunpack.c.h.b16 %v3640
  %v3757 = vunpack.c.l.b16 %v3641
  %v3758 = vunpack.c.h.b16 %v3641
  %v3759 = vunpack.c.l.b16 %v3642
  %v3760 = vunpack.c.h.b16 %v3642
  %v3761 = vunpack.c.l.b16 %v3643
  %v3762 = vunpack.c.h.b16 %v3643
  %v3763 = vunpack.c.l.b16 %v3644
  %v3764 = vunpack.c.h.b16 %v3644
  %v3765 = vpack.c.b16 %v3735, %v3733
  %v3766 = vpack.c.b16 %v3736, %v3734
  %v3767 = vpack.c.b16 %v3739, %v3737
  %v3768 = vpack.c.b16 %v3740, %v3738
  %v3769 = vpack.c.b16 %v3743, %v3741
  %v3770 = vpack.c.b16 %v3744, %v3742
  %v3771 = vpack.c.b16 %v3747, %v3745
  %v3772 = vpack.c.b16 %v3748, %v3746
  %v3773 = vpack.c.b16 %v3751, %v3749
  %v3774 = vpack.c.b16 %v3752, %v3750
  %v3775 = vpack.c.b16 %v3755, %v3753
  %v3776 = vpack.c.b16 %v3756, %v3754
  %v3777 = vpack.c.b16 %v3759, %v3757
  %v3778 = vpack.c.b16 %v3760, %v3758
  %v3779 = vpack.c.b16 %v3763, %v3761
  %v3780 = vpack.c.b16 %v3764, %v3762
  %3797 = vmatpush.bf16.msra.mxu0 %v3779
  %3798 = vmatpush.bf16.msra.mxu0 %v3777
  %3799 = vmatpush.bf16.msra.mxu0 %v3775
  %3800 = vmatpush.bf16.msra.mxu0 %v3773
  %3801 = vmatpush.bf16.msra.mxu0 %v3771
  %3802 = vmatpush.bf16.msra.mxu0 %v3769
  %3803 = vmatpush.bf16.msra.mxu0 %v3767
  %3804 = vmatpush.bf16.msra.mxu0 %v3765
  %3805 = vmatmul.bf16.gmra.mxu0 %v3693
  %v3806 = vpop.f32.mrf.mxu0
  %v3807 = vadd.f32 0.0, %v3806
  %v3808 = vpop.f32.mrf.mxu0
  %v3809 = vadd.f32 0.0, %v3808
  %3810 = vmatmul.bf16.gmra.mxu0 %v3694
  %v3811 = vpop.f32.mrf.mxu0
  %v3812 = vadd.f32 0.0, %v3811
  %v3813 = vpop.f32.mrf.mxu0
  %v3814 = vadd.f32 0.0, %v3813
  %3815 = vmatmul.bf16.gmra.mxu0 %v3695
  %v3816 = vpop.f32.mrf.mxu0
  %v3817 = vadd.f32 0.0, %v3816
  %v3818 = vpop.f32.mrf.mxu0
  %v3819 = vadd.f32 0.0, %v3818
  %3820 = vmatmul.bf16.gmra.mxu0 %v3696
  %v3821 = vpop.f32.mrf.mxu0
  %v3822 = vadd.f32 0.0, %v3821
  %v3823 = vpop.f32.mrf.mxu0
  %v3824 = vadd.f32 0.0, %v3823
  %3825 = vmatmul.bf16.gmra.mxu0 %v3697
  %v3826 = vpop.f32.mrf.mxu0
  %v3827 = vadd.f32 0.0, %v3826
  %v3828 = vpop.f32.mrf.mxu0
  %v3829 = vadd.f32 0.0, %v3828
  %3830 = vmatmul.bf16.gmra.mxu0 %v3698
  %v3831 = vpop.f32.mrf.mxu0
  %v3832 = vadd.f32 0.0, %v3831
  %v3833 = vpop.f32.mrf.mxu0
  %v3834 = vadd.f32 0.0, %v3833
  %3835 = vmatmul.bf16.gmra.mxu0 %v3699
  %v3836 = vpop.f32.mrf.mxu0
  %v3837 = vadd.f32 0.0, %v3836
  %v3838 = vpop.f32.mrf.mxu0
  %v3839 = vadd.f32 0.0, %v3838
  %3840 = vmatmul.bf16.gmra.mxu0 %v3700
  %v3841 = vpop.f32.mrf.mxu0
  %v3842 = vadd.f32 0.0, %v3841
  %v3843 = vpop.f32.mrf.mxu0
  %v3844 = vadd.f32 0.0, %v3843
  %3845 = vmatmul.bf16.gmra.mxu0 %v3701
  %v3846 = vpop.f32.mrf.mxu0
  %v3847 = vadd.f32 0.0, %v3846
  %v3848 = vpop.f32.mrf.mxu0
  %v3849 = vadd.f32 0.0, %v3848
  %3850 = vmatmul.bf16.gmra.mxu0 %v3702
  %v3851 = vpop.f32.mrf.mxu0
  %v3852 = vadd.f32 0.0, %v3851
  %v3853 = vpop.f32.mrf.mxu0
  %v3854 = vadd.f32 0.0, %v3853
  %3855 = vmatmul.bf16.gmra.mxu0 %v3703
  %v3856 = vpop.f32.mrf.mxu0
  %v3857 = vadd.f32 0.0, %v3856
  %v3858 = vpop.f32.mrf.mxu0
  %v3859 = vadd.f32 0.0, %v3858
  %3860 = vmatmul.bf16.gmra.mxu0 %v3704
  %v3861 = vpop.f32.mrf.mxu0
  %v3862 = vadd.f32 0.0, %v3861
  %v3863 = vpop.f32.mrf.mxu0
  %v3864 = vadd.f32 0.0, %v3863
  %3865 = vdwg.mxu0
  %3866 = vmatpush.bf16.msra.mxu0 %v3780
  %3867 = vmatpush.bf16.msra.mxu0 %v3778
  %3868 = vmatpush.bf16.msra.mxu0 %v3776
  %3869 = vmatpush.bf16.msra.mxu0 %v3774
  %3870 = vmatpush.bf16.msra.mxu0 %v3772
  %3871 = vmatpush.bf16.msra.mxu0 %v3770
  %3872 = vmatpush.bf16.msra.mxu0 %v3768
  %3873 = vmatpush.bf16.msra.mxu0 %v3766
  %3874 = vmatmul.bf16.gmra.mxu0 %v3693
  %v3875 = vpop.f32.mrf.mxu0
  %v3876 = vadd.f32 0.0, %v3875
  %v3877 = vpop.f32.mrf.mxu0
  %v3878 = vadd.f32 0.0, %v3877
  %3879 = vmatmul.bf16.gmra.mxu0 %v3694
  %v3880 = vpop.f32.mrf.mxu0
  %v3881 = vadd.f32 0.0, %v3880
  %v3882 = vpop.f32.mrf.mxu0
  %v3883 = vadd.f32 0.0, %v3882
  %3884 = vmatmul.bf16.gmra.mxu0 %v3695
  %v3885 = vpop.f32.mrf.mxu0
  %v3886 = vadd.f32 0.0, %v3885
  %v3887 = vpop.f32.mrf.mxu0
  %v3888 = vadd.f32 0.0, %v3887
  %3889 = vmatmul.bf16.gmra.mxu0 %v3696
  %v3890 = vpop.f32.mrf.mxu0
  %v3891 = vadd.f32 0.0, %v3890
  %v3892 = vpop.f32.mrf.mxu0
  %v3893 = vadd.f32 0.0, %v3892
  %3894 = vmatmul.bf16.gmra.mxu0 %v3697
  %v3895 = vpop.f32.mrf.mxu0
  %v3896 = vadd.f32 0.0, %v3895
  %v3897 = vpop.f32.mrf.mxu0
  %v3898 = vadd.f32 0.0, %v3897
  %3899 = vmatmul.bf16.gmra.mxu0 %v3698
  %v3900 = vpop.f32.mrf.mxu0
  %v3901 = vadd.f32 0.0, %v3900
  %v3902 = vpop.f32.mrf.mxu0
  %v3903 = vadd.f32 0.0, %v3902
  %3904 = vmatmul.bf16.gmra.mxu0 %v3699
  %v3905 = vpop.f32.mrf.mxu0
  %v3906 = vadd.f32 0.0, %v3905
  %v3907 = vpop.f32.mrf.mxu0
  %v3908 = vadd.f32 0.0, %v3907
  %3909 = vmatmul.bf16.gmra.mxu0 %v3700
  %v3910 = vpop.f32.mrf.mxu0
  %v3911 = vadd.f32 0.0, %v3910
  %v3912 = vpop.f32.mrf.mxu0
  %v3913 = vadd.f32 0.0, %v3912
  %3914 = vmatmul.bf16.gmra.mxu0 %v3701
  %v3915 = vpop.f32.mrf.mxu0
  %v3916 = vadd.f32 0.0, %v3915
  %v3917 = vpop.f32.mrf.mxu0
  %v3918 = vadd.f32 0.0, %v3917
  %3919 = vmatmul.bf16.gmra.mxu0 %v3702
  %v3920 = vpop.f32.mrf.mxu0
  %v3921 = vadd.f32 0.0, %v3920
  %v3922 = vpop.f32.mrf.mxu0
  %v3923 = vadd.f32 0.0, %v3922
  %3924 = vmatmul.bf16.gmra.mxu0 %v3703
  %v3925 = vpop.f32.mrf.mxu0
  %v3926 = vadd.f32 0.0, %v3925
  %v3927 = vpop.f32.mrf.mxu0
  %v3928 = vadd.f32 0.0, %v3927
  %3929 = vmatmul.bf16.gmra.mxu0 %v3704
  %v3930 = vpop.f32.mrf.mxu0
  %v3931 = vadd.f32 0.0, %v3930
  %v3932 = vpop.f32.mrf.mxu0
  %v3933 = vadd.f32 0.0, %v3932
  %3934 = vdwg.mxu0
  %v3935 = vadd.f32 %v3500, %v3807
  %v3936 = vadd.f32 %v3569, %v3876
  %v3937 = vadd.f32 %v3502, %v3809
  %v3938 = vadd.f32 %v3571, %v3878
  %v3939 = vadd.f32 %v3505, %v3812
  %v3940 = vadd.f32 %v3574, %v3881
  %v3941 = vadd.f32 %v3507, %v3814
  %v3942 = vadd.f32 %v3576, %v3883
  %v3943 = vadd.f32 %v3510, %v3817
  %v3944 = vadd.f32 %v3579, %v3886
  %v3945 = vadd.f32 %v3512, %v3819
  %v3946 = vadd.f32 %v3581, %v3888
  %v3947 = vadd.f32 %v3515, %v3822
  %v3948 = vadd.f32 %v3584, %v3891
  %v3949 = vadd.f32 %v3517, %v3824
  %v3950 = vadd.f32 %v3586, %v3893
  %v3951 = vadd.f32 %v3520, %v3827
  %v3952 = vadd.f32 %v3589, %v3896
  %v3953 = vadd.f32 %v3522, %v3829
  %v3954 = vadd.f32 %v3591, %v3898
  %v3955 = vadd.f32 %v3525, %v3832
  %v3956 = vadd.f32 %v3594, %v3901
  %v3957 = vadd.f32 %v3527, %v3834
  %v3958 = vadd.f32 %v3596, %v3903
  %v3959 = vadd.f32 %v3530, %v3837
  %v3960 = vadd.f32 %v3599, %v3906
  %v3961 = vadd.f32 %v3532, %v3839
  %v3962 = vadd.f32 %v3601, %v3908
  %v3963 = vadd.f32 %v3535, %v3842
  %v3964 = vadd.f32 %v3604, %v3911
  %v3965 = vadd.f32 %v3537, %v3844
  %v3966 = vadd.f32 %v3606, %v3913
  %v3967 = vadd.f32 %v3540, %v3847
  %v3968 = vadd.f32 %v3609, %v3916
  %v3969 = vadd.f32 %v3542, %v3849
  %v3970 = vadd.f32 %v3611, %v3918
  %v3971 = vadd.f32 %v3545, %v3852
  %v3972 = vadd.f32 %v3614, %v3921
  %v3973 = vadd.f32 %v3547, %v3854
  %v3974 = vadd.f32 %v3616, %v3923
  %v3975 = vadd.f32 %v3550, %v3857
  %v3976 = vadd.f32 %v3619, %v3926
  %v3977 = vadd.f32 %v3552, %v3859
  %v3978 = vadd.f32 %v3621, %v3928
  %v3979 = vadd.f32 %v3555, %v3862
  %v3980 = vadd.f32 %v3624, %v3931
  %v3981 = vadd.f32 %v3557, %v3864
  %v3982 = vadd.f32 %v3626, %v3933
  %v3983 = vld [vmem:[%s8] sm:$0x3]
  %v3985 = vperm.slane %v3983, 0
  %v3986 = vperm.slane %v3983, 1
  %v3989 = vmul.f32 %v3935, %v3985
  %v3990 = vmul.f32 %v3936, %v3986
  %v3991 = vmul.f32 %v3937, %v3985
  %v3992 = vmul.f32 %v3938, %v3986
  %v3993 = vmul.f32 %v3939, %v3985
  %v3994 = vmul.f32 %v3940, %v3986
  %v3995 = vmul.f32 %v3941, %v3985
  %v3996 = vmul.f32 %v3942, %v3986
  %v3997 = vmul.f32 %v3943, %v3985
  %v3998 = vmul.f32 %v3944, %v3986
  %v3999 = vmul.f32 %v3945, %v3985
  %v4000 = vmul.f32 %v3946, %v3986
  %v4001 = vmul.f32 %v3947, %v3985
  %v4002 = vmul.f32 %v3948, %v3986
  %v4003 = vmul.f32 %v3949, %v3985
  %v4004 = vmul.f32 %v3950, %v3986
  %v4005 = vmul.f32 %v3951, %v3985
  %v4006 = vmul.f32 %v3952, %v3986
  %v4007 = vmul.f32 %v3953, %v3985
  %v4008 = vmul.f32 %v3954, %v3986
  %v4009 = vmul.f32 %v3955, %v3985
  %v4010 = vmul.f32 %v3956, %v3986
  %v4011 = vmul.f32 %v3957, %v3985
  %v4012 = vmul.f32 %v3958, %v3986
  %v4013 = vmul.f32 %v3959, %v3985
  %v4014 = vmul.f32 %v3960, %v3986
  %v4015 = vmul.f32 %v3961, %v3985
  %v4016 = vmul.f32 %v3962, %v3986
  %v4017 = vmul.f32 %v3963, %v3985
  %v4018 = vmul.f32 %v3964, %v3986
  %v4019 = vmul.f32 %v3965, %v3985
  %v4020 = vmul.f32 %v3966, %v3986
  %v4021 = vmul.f32 %v3967, %v3985
  %v4022 = vmul.f32 %v3968, %v3986
  %v4023 = vmul.f32 %v3969, %v3985
  %v4024 = vmul.f32 %v3970, %v3986
  %v4025 = vmul.f32 %v3971, %v3985
  %v4026 = vmul.f32 %v3972, %v3986
  %v4027 = vmul.f32 %v3973, %v3985
  %v4028 = vmul.f32 %v3974, %v3986
  %v4029 = vmul.f32 %v3975, %v3985
  %v4030 = vmul.f32 %v3976, %v3986
  %v4031 = vmul.f32 %v3977, %v3985
  %v4032 = vmul.f32 %v3978, %v3986
  %v4033 = vmul.f32 %v3979, %v3985
  %v4034 = vmul.f32 %v3980, %v3986
  %v4035 = vmul.f32 %v3981, %v3985
  %v4036 = vmul.f32 %v3982, %v3986
  %v4037 = vld [vmem:[%s9] sm:$0x3]
  %v4039 = vperm.slane %v4037, 0
  %v4040 = vperm.slane %v4037, 1
  %v4043 = vadd.f32 %v3989, %v4039
  %v4044 = vadd.f32 %v3990, %v4040
  %v4045 = vadd.f32 %v3991, %v4039
  %v4046 = vadd.f32 %v3992, %v4040
  %v4047 = vadd.f32 %v3993, %v4039
  %v4048 = vadd.f32 %v3994, %v4040
  %v4049 = vadd.f32 %v3995, %v4039
  %v4050 = vadd.f32 %v3996, %v4040
  %v4051 = vadd.f32 %v3997, %v4039
  %v4052 = vadd.f32 %v3998, %v4040
  %v4053 = vadd.f32 %v3999, %v4039
  %v4054 = vadd.f32 %v4000, %v4040
  %v4055 = vadd.f32 %v4001, %v4039
  %v4056 = vadd.f32 %v4002, %v4040
  %v4057 = vadd.f32 %v4003, %v4039
  %v4058 = vadd.f32 %v4004, %v4040
  %v4059 = vadd.f32 %v4005, %v4039
  %v4060 = vadd.f32 %v4006, %v4040
  %v4061 = vadd.f32 %v4007, %v4039
  %v4062 = vadd.f32 %v4008, %v4040
  %v4063 = vadd.f32 %v4009, %v4039
  %v4064 = vadd.f32 %v4010, %v4040
  %v4065 = vadd.f32 %v4011, %v4039
  %v4066 = vadd.f32 %v4012, %v4040
  %v4067 = vadd.f32 %v4013, %v4039
  %v4068 = vadd.f32 %v4014, %v4040
  %v4069 = vadd.f32 %v4015, %v4039
  %v4070 = vadd.f32 %v4016, %v4040
  %v4071 = vadd.f32 %v4017, %v4039
  %v4072 = vadd.f32 %v4018, %v4040
  %v4073 = vadd.f32 %v4019, %v4039
  %v4074 = vadd.f32 %v4020, %v4040
  %v4075 = vadd.f32 %v4021, %v4039
  %v4076 = vadd.f32 %v4022, %v4040
  %v4077 = vadd.f32 %v4023, %v4039
  %v4078 = vadd.f32 %v4024, %v4040
  %v4079 = vadd.f32 %v4025, %v4039
  %v4080 = vadd.f32 %v4026, %v4040
  %v4081 = vadd.f32 %v4027, %v4039
  %v4082 = vadd.f32 %v4028, %v4040
  %v4083 = vadd.f32 %v4029, %v4039
  %v4084 = vadd.f32 %v4030, %v4040
  %v4085 = vadd.f32 %v4031, %v4039
  %v4086 = vadd.f32 %v4032, %v4040
  %v4087 = vadd.f32 %v4033, %v4039
  %v4088 = vadd.f32 %v4034, %v4040
  %v4089 = vadd.f32 %v4035, %v4039
  %v4090 = vadd.f32 %v4036, %v4040
  %v4091 = vmax.f32 %v4043, 0.0
  %v4092 = vmax.f32 %v4044, 0.0
  %v4093 = vmax.f32 %v4045, 0.0
  %v4094 = vmax.f32 %v4046, 0.0
  %v4095 = vmax.f32 %v4047, 0.0
  %v4096 = vmax.f32 %v4048, 0.0
  %v4097 = vmax.f32 %v4049, 0.0
  %v4098 = vmax.f32 %v4050, 0.0
  %v4099 = vmax.f32 %v4051, 0.0
  %v4100 = vmax.f32 %v4052, 0.0
  %v4101 = vmax.f32 %v4053, 0.0
  %v4102 = vmax.f32 %v4054, 0.0
  %v4103 = vmax.f32 %v4055, 0.0
  %v4104 = vmax.f32 %v4056, 0.0
  %v4105 = vmax.f32 %v4057, 0.0
  %v4106 = vmax.f32 %v4058, 0.0
  %v4107 = vmax.f32 %v4059, 0.0
  %v4108 = vmax.f32 %v4060, 0.0
  %v4109 = vmax.f32 %v4061, 0.0
  %v4110 = vmax.f32 %v4062, 0.0
  %v4111 = vmax.f32 %v4063, 0.0
  %v4112 = vmax.f32 %v4064, 0.0
  %v4113 = vmax.f32 %v4065, 0.0
  %v4114 = vmax.f32 %v4066, 0.0
  %v4115 = vmax.f32 %v4067, 0.0
  %v4116 = vmax.f32 %v4068, 0.0
  %v4117 = vmax.f32 %v4069, 0.0
  %v4118 = vmax.f32 %v4070, 0.0
  %v4119 = vmax.f32 %v4071, 0.0
  %v4120 = vmax.f32 %v4072, 0.0
  %v4121 = vmax.f32 %v4073, 0.0
  %v4122 = vmax.f32 %v4074, 0.0
  %v4123 = vmax.f32 %v4075, 0.0
  %v4124 = vmax.f32 %v4076, 0.0
  %v4125 = vmax.f32 %v4077, 0.0
  %v4126 = vmax.f32 %v4078, 0.0
  %v4127 = vmax.f32 %v4079, 0.0
  %v4128 = vmax.f32 %v4080, 0.0
  %v4129 = vmax.f32 %v4081, 0.0
  %v4130 = vmax.f32 %v4082, 0.0
  %v4131 = vmax.f32 %v4083, 0.0
  %v4132 = vmax.f32 %v4084, 0.0
  %v4133 = vmax.f32 %v4085, 0.0
  %v4134 = vmax.f32 %v4086, 0.0
  %v4135 = vmax.f32 %v4087, 0.0
  %v4136 = vmax.f32 %v4088, 0.0
  %v4137 = vmax.f32 %v4089, 0.0
  %v4138 = vmax.f32 %v4090, 0.0
  %4139 = vst [vmem:[%s12] sm:$0xff] %v4091
  %4140 = vst [vmem:[%s12 + $0x8] sm:$0xff] %v4092
  %4141 = vst [vmem:[%s12 + $0x10] sm:$0xff] %v4093
  %4142 = vst [vmem:[%s12 + $0x18] sm:$0xff] %v4094
  %4143 = vst [vmem:[%s12 + $0x20] sm:$0xff] %v4095
  %4144 = vst [vmem:[%s12 + $0x28] sm:$0xff] %v4096
  %4145 = vst [vmem:[%s12 + $0x30] sm:$0xff] %v4097
  %4146 = vst [vmem:[%s12 + $0x38] sm:$0xff] %v4098
  %4147 = vst [vmem:[%s12 + $0x40] sm:$0xff] %v4099
  %4148 = vst [vmem:[%s12 + $0x48] sm:$0xff] %v4100
  %4149 = vst [vmem:[%s12 + $0x50] sm:$0xff] %v4101
  %4150 = vst [vmem:[%s12 + $0x58] sm:$0xff] %v4102
  %4151 = vst [vmem:[%s12 + $0x60] sm:$0xff] %v4103
  %4152 = vst [vmem:[%s12 + $0x68] sm:$0xff] %v4104
  %4153 = vst [vmem:[%s12 + $0x70] sm:$0xff] %v4105
  %4154 = vst [vmem:[%s12 + $0x78] sm:$0xff] %v4106
  %4155 = vst [vmem:[%s12 + $0x80] sm:$0xff] %v4107
  %4156 = vst [vmem:[%s12 + $0x88] sm:$0xff] %v4108
  %4157 = vst [vmem:[%s12 + $0x90] sm:$0xff] %v4109
  %4158 = vst [vmem:[%s12 + $0x98] sm:$0xff] %v4110
  %4159 = vst [vmem:[%s12 + $0xa0] sm:$0xff] %v4111
  %4160 = vst [vmem:[%s12 + $0xa8] sm:$0xff] %v4112
  %4161 = vst [vmem:[%s12 + $0xb0] sm:$0xff] %v4113
  %4162 = vst [vmem:[%s12 + $0xb8] sm:$0xff] %v4114
  %4163 = vst [vmem:[%s12 + $0xc0] sm:$0xff] %v4115
  %4164 = vst [vmem:[%s12 + $0xc8] sm:$0xff] %v4116
  %4165 = vst [vmem:[%s12 + $0xd0] sm:$0xff] %v4117
  %4166 = vst [vmem:[%s12 + $0xd8] sm:$0xff] %v4118
  %4167 = vst [vmem:[%s12 + $0xe0] sm:$0xff] %v4119
  %4168 = vst [vmem:[%s12 + $0xe8] sm:$0xff] %v4120
  %4169 = vst [vmem:[%s12 + $0xf0] sm:$0xff] %v4121
  %4170 = vst [vmem:[%s12 + $0xf8] sm:$0xff] %v4122
  %4171 = vst [vmem:[%s12 + $0x100] sm:$0xff] %v4123
  %4172 = vst [vmem:[%s12 + $0x108] sm:$0xff] %v4124
  %4173 = vst [vmem:[%s12 + $0x110] sm:$0xff] %v4125
  %4174 = vst [vmem:[%s12 + $0x118] sm:$0xff] %v4126
  %4175 = vst [vmem:[%s12 + $0x120] sm:$0xff] %v4127
  %4176 = vst [vmem:[%s12 + $0x128] sm:$0xff] %v4128
  %4177 = vst [vmem:[%s12 + $0x130] sm:$0xff] %v4129
  %4178 = vst [vmem:[%s12 + $0x138] sm:$0xff] %v4130
  %4179 = vst [vmem:[%s12 + $0x140] sm:$0xff] %v4131
  %4180 = vst [vmem:[%s12 + $0x148] sm:$0xff] %v4132
  %4181 = vst [vmem:[%s12 + $0x150] sm:$0xff] %v4133
  %4182 = vst [vmem:[%s12 + $0x158] sm:$0xff] %v4134
  %4183 = vst [vmem:[%s12 + $0x160] sm:$0xff] %v4135
  %4184 = vst [vmem:[%s12 + $0x168] sm:$0xff] %v4136
  %4185 = vst [vmem:[%s12 + $0x170] sm:$0xff] %v4137
  %4186 = vst [vmem:[%s12 + $0x178] sm:$0xff] %v4138
  %v4187 = vpack.c.bf16 %v4092, %v4091
  %v4188 = vpack.c.bf16 %v4094, %v4093
  %v4189 = vpack.c.bf16 %v4096, %v4095
  %v4190 = vpack.c.bf16 %v4098, %v4097
  %v4191 = vpack.c.bf16 %v4100, %v4099
  %v4192 = vpack.c.bf16 %v4102, %v4101
  %v4193 = vpack.c.bf16 %v4104, %v4103
  %v4194 = vpack.c.bf16 %v4106, %v4105
  %v4195 = vpack.c.bf16 %v4108, %v4107
  %v4196 = vpack.c.bf16 %v4110, %v4109
  %v4197 = vpack.c.bf16 %v4112, %v4111
  %v4198 = vpack.c.bf16 %v4114, %v4113
  %v4199 = vpack.c.bf16 %v4116, %v4115
  %v4200 = vpack.c.bf16 %v4118, %v4117
  %v4201 = vpack.c.bf16 %v4120, %v4119
  %v4202 = vpack.c.bf16 %v4122, %v4121
  %v4203 = vpack.c.bf16 %v4124, %v4123
  %v4204 = vpack.c.bf16 %v4126, %v4125
  %v4205 = vpack.c.bf16 %v4128, %v4127
  %v4206 = vpack.c.bf16 %v4130, %v4129
  %v4207 = vpack.c.bf16 %v4132, %v4131
  %v4208 = vpack.c.bf16 %v4134, %v4133
  %v4209 = vpack.c.bf16 %v4136, %v4135
  %v4210 = vpack.c.bf16 %v4138, %v4137
  %v4211 = vld [vmem:[%s10] sm:$0xf]
  %v4212 = vld [vmem:[%s10 + $0x4] sm:$0xf]
  %v4213 = vld [vmem:[%s10 + $0x8] sm:$0xf]
  %v4214 = vld [vmem:[%s10 + $0xc] sm:$0xf]
  %v4215 = vld [vmem:[%s10 + $0x10] sm:$0xf]
  %v4216 = vld [vmem:[%s10 + $0x14] sm:$0xf]
  %v4217 = vld [vmem:[%s10 + $0x18] sm:$0xf]
  %v4218 = vld [vmem:[%s10 + $0x1c] sm:$0xf]
  %v4219 = vld [vmem:[%s10 + $0x20] sm:$0xf]
  %v4220 = vld [vmem:[%s10 + $0x24] sm:$0xf]
  %v4221 = vld [vmem:[%s10 + $0x28] sm:$0xf]
  %v4222 = vld [vmem:[%s10 + $0x2c] sm:$0xf]
  %v4223 = vld [vmem:[%s10 + $0x30] sm:$0xf]
  %v4224 = vld [vmem:[%s10 + $0x34] sm:$0xf]
  %v4225 = vld [vmem:[%s10 + $0x38] sm:$0xf]
  %v4226 = vld [vmem:[%s10 + $0x3c] sm:$0xf]
  %v4227 = vld [vmem:[%s10 + $0x40] sm:$0xf]
  %v4228 = vld [vmem:[%s10 + $0x44] sm:$0xf]
  %v4229 = vld [vmem:[%s10 + $0x48] sm:$0xf]
  %v4230 = vld [vmem:[%s10 + $0x4c] sm:$0xf]
  %v4231 = vld [vmem:[%s10 + $0x50] sm:$0xf]
  %v4232 = vld [vmem:[%s10 + $0x54] sm:$0xf]
  %v4233 = vld [vmem:[%s10 + $0x58] sm:$0xf]
  %v4234 = vld [vmem:[%s10 + $0x5c] sm:$0xf]
  %v4235 = vld [vmem:[%s10 + $0x60] sm:$0xf]
  %v4236 = vld [vmem:[%s10 + $0x64] sm:$0xf]
  %v4237 = vld [vmem:[%s10 + $0x68] sm:$0xf]
  %v4238 = vld [vmem:[%s10 + $0x6c] sm:$0xf]
  %v4239 = vld [vmem:[%s10 + $0x70] sm:$0xf]
  %v4240 = vld [vmem:[%s10 + $0x74] sm:$0xf]
  %v4241 = vld [vmem:[%s10 + $0x78] sm:$0xf]
  %v4242 = vld [vmem:[%s10 + $0x7c] sm:$0xf]
  %v4243 = vld [vmem:[%s10 + $0x80] sm:$0xf]
  %v4244 = vld [vmem:[%s10 + $0x84] sm:$0xf]
  %v4245 = vld [vmem:[%s10 + $0x88] sm:$0xf]
  %v4246 = vld [vmem:[%s10 + $0x8c] sm:$0xf]
  %v4247 = vld [vmem:[%s10 + $0x90] sm:$0xf]
  %v4248 = vld [vmem:[%s10 + $0x94] sm:$0xf]
  %v4249 = vld [vmem:[%s10 + $0x98] sm:$0xf]
  %v4250 = vld [vmem:[%s10 + $0x9c] sm:$0xf]
  %v4251 = vld [vmem:[%s10 + $0xa0] sm:$0xf]
  %v4252 = vld [vmem:[%s10 + $0xa4] sm:$0xf]
  %v4253 = vld [vmem:[%s10 + $0xa8] sm:$0xf]
  %v4254 = vld [vmem:[%s10 + $0xac] sm:$0xf]
  %v4255 = vld [vmem:[%s10 + $0xb0] sm:$0xf]
  %v4256 = vld [vmem:[%s10 + $0xb4] sm:$0xf]
  %v4257 = vld [vmem:[%s10 + $0xb8] sm:$0xf]
  %v4258 = vld [vmem:[%s10 + $0xbc] sm:$0xf]
  %v4259 = vld [vmem:[%s10 + $0xc0] sm:$0xf]
  %v4260 = vld [vmem:[%s10 + $0xc4] sm:$0xf]
  %v4261 = vld [vmem:[%s10 + $0xc8] sm:$0xf]
  %v4262 = vld [vmem:[%s10 + $0xcc] sm:$0xf]
  %v4263 = vld [vmem:[%s10 + $0xd0] sm:$0xf]
  %v4264 = vld [vmem:[%s10 + $0xd4] sm:$0xf]
  %v4265 = vld [vmem:[%s10 + $0xd8] sm:$0xf]
  %v4266 = vld [vmem:[%s10 + $0xdc] sm:$0xf]
  %v4267 = vld [vmem:[%s10 + $0xe0] sm:$0xf]
  %v4268 = vld [vmem:[%s10 + $0xe4] sm:$0xf]
  %v4269 = vld [vmem:[%s10 + $0xe8] sm:$0xf]
  %v4270 = vld [vmem:[%s10 + $0xec] sm:$0xf]
  %v4271 = vld [vmem:[%s10 + $0xf0] sm:$0xf]
  %v4272 = vld [vmem:[%s10 + $0xf4] sm:$0xf]
  %v4273 = vld [vmem:[%s10 + $0xf8] sm:$0xf]
  %v4274 = vld [vmem:[%s10 + $0xfc] sm:$0xf]
  %v4275 = vld [vmem:[%s10 + $0x100] sm:$0xf]
  %v4276 = vld [vmem:[%s10 + $0x104] sm:$0xf]
  %v4277 = vld [vmem:[%s10 + $0x108] sm:$0xf]
  %v4278 = vld [vmem:[%s10 + $0x10c] sm:$0xf]
  %v4279 = vld [vmem:[%s10 + $0x110] sm:$0xf]
  %v4280 = vld [vmem:[%s10 + $0x114] sm:$0xf]
  %v4281 = vld [vmem:[%s10 + $0x118] sm:$0xf]
  %v4282 = vld [vmem:[%s10 + $0x11c] sm:$0xf]
  %v4283 = vld [vmem:[%s10 + $0x120] sm:$0xf]
  %v4284 = vld [vmem:[%s10 + $0x124] sm:$0xf]
  %v4285 = vld [vmem:[%s10 + $0x128] sm:$0xf]
  %v4286 = vld [vmem:[%s10 + $0x12c] sm:$0xf]
  %v4287 = vld [vmem:[%s10 + $0x130] sm:$0xf]
  %v4288 = vld [vmem:[%s10 + $0x134] sm:$0xf]
  %v4289 = vld [vmem:[%s10 + $0x138] sm:$0xf]
  %v4290 = vld [vmem:[%s10 + $0x13c] sm:$0xf]
  %v4291 = vld [vmem:[%s10 + $0x140] sm:$0xf]
  %v4292 = vld [vmem:[%s10 + $0x144] sm:$0xf]
  %v4293 = vld [vmem:[%s10 + $0x148] sm:$0xf]
  %v4294 = vld [vmem:[%s10 + $0x14c] sm:$0xf]
  %v4295 = vld [vmem:[%s10 + $0x150] sm:$0xf]
  %v4296 = vld [vmem:[%s10 + $0x154] sm:$0xf]
  %v4297 = vld [vmem:[%s10 + $0x158] sm:$0xf]
  %v4298 = vld [vmem:[%s10 + $0x15c] sm:$0xf]
  %v4299 = vld [vmem:[%s10 + $0x160] sm:$0xf]
  %v4300 = vld [vmem:[%s10 + $0x164] sm:$0xf]
  %v4301 = vld [vmem:[%s10 + $0x168] sm:$0xf]
  %v4302 = vld [vmem:[%s10 + $0x16c] sm:$0xf]
  %v4303 = vld [vmem:[%s10 + $0x170] sm:$0xf]
  %v4304 = vld [vmem:[%s10 + $0x174] sm:$0xf]
  %v4305 = vld [vmem:[%s10 + $0x178] sm:$0xf]
  %v4306 = vld [vmem:[%s10 + $0x17c] sm:$0xf]
  %v4307 = vld [vmem:[%s10 + $0x180] sm:$0xf]
  %v4308 = vld [vmem:[%s10 + $0x184] sm:$0xf]
  %v4309 = vld [vmem:[%s10 + $0x188] sm:$0xf]
  %v4310 = vld [vmem:[%s10 + $0x18c] sm:$0xf]
  %v4311 = vld [vmem:[%s10 + $0x190] sm:$0xf]
  %v4312 = vld [vmem:[%s10 + $0x194] sm:$0xf]
  %v4313 = vld [vmem:[%s10 + $0x198] sm:$0xf]
  %v4314 = vld [vmem:[%s10 + $0x19c] sm:$0xf]
  %v4315 = vld [vmem:[%s10 + $0x1a0] sm:$0xf]
  %v4316 = vld [vmem:[%s10 + $0x1a4] sm:$0xf]
  %v4317 = vld [vmem:[%s10 + $0x1a8] sm:$0xf]
  %v4318 = vld [vmem:[%s10 + $0x1ac] sm:$0xf]
  %v4319 = vld [vmem:[%s10 + $0x1b0] sm:$0xf]
  %v4320 = vld [vmem:[%s10 + $0x1b4] sm:$0xf]
  %v4321 = vld [vmem:[%s10 + $0x1b8] sm:$0xf]
  %v4322 = vld [vmem:[%s10 + $0x1bc] sm:$0xf]
  %v4323 = vld [vmem:[%s10 + $0x1c0] sm:$0xf]
  %v4324 = vld [vmem:[%s10 + $0x1c4] sm:$0xf]
  %v4325 = vld [vmem:[%s10 + $0x1c8] sm:$0xf]
  %v4326 = vld [vmem:[%s10 + $0x1cc] sm:$0xf]
  %v4327 = vld [vmem:[%s10 + $0x1d0] sm:$0xf]
  %v4328 = vld [vmem:[%s10 + $0x1d4] sm:$0xf]
  %v4329 = vld [vmem:[%s10 + $0x1d8] sm:$0xf]
  %v4330 = vld [vmem:[%s10 + $0x1dc] sm:$0xf]
  %v4331 = vld [vmem:[%s10 + $0x1e0] sm:$0xf]
  %v4332 = vld [vmem:[%s10 + $0x1e4] sm:$0xf]
  %v4333 = vld [vmem:[%s10 + $0x1e8] sm:$0xf]
  %v4334 = vld [vmem:[%s10 + $0x1ec] sm:$0xf]
  %v4335 = vld [vmem:[%s10 + $0x1f0] sm:$0xf]
  %v4336 = vld [vmem:[%s10 + $0x1f4] sm:$0xf]
  %v4337 = vld [vmem:[%s10 + $0x1f8] sm:$0xf]
  %v4338 = vld [vmem:[%s10 + $0x1fc] sm:$0xf]
  %v4339 = vld [vmem:[%s10 + $0x200] sm:$0xf]
  %v4340 = vld [vmem:[%s10 + $0x204] sm:$0xf]
  %v4341 = vld [vmem:[%s10 + $0x208] sm:$0xf]
  %v4342 = vld [vmem:[%s10 + $0x20c] sm:$0xf]
  %v4343 = vld [vmem:[%s10 + $0x210] sm:$0xf]
  %v4344 = vld [vmem:[%s10 + $0x214] sm:$0xf]
  %v4345 = vld [vmem:[%s10 + $0x218] sm:$0xf]
  %v4346 = vld [vmem:[%s10 + $0x21c] sm:$0xf]
  %v4347 = vld [vmem:[%s10 + $0x220] sm:$0xf]
  %v4348 = vld [vmem:[%s10 + $0x224] sm:$0xf]
  %v4349 = vld [vmem:[%s10 + $0x228] sm:$0xf]
  %v4350 = vld [vmem:[%s10 + $0x22c] sm:$0xf]
  %v4351 = vld [vmem:[%s10 + $0x230] sm:$0xf]
  %v4352 = vld [vmem:[%s10 + $0x234] sm:$0xf]
  %v4353 = vld [vmem:[%s10 + $0x238] sm:$0xf]
  %v4354 = vld [vmem:[%s10 + $0x23c] sm:$0xf]
  %v4355 = vld [vmem:[%s10 + $0x240] sm:$0xf]
  %v4356 = vld [vmem:[%s10 + $0x244] sm:$0xf]
  %v4357 = vld [vmem:[%s10 + $0x248] sm:$0xf]
  %v4358 = vld [vmem:[%s10 + $0x24c] sm:$0xf]
  %v4359 = vld [vmem:[%s10 + $0x250] sm:$0xf]
  %v4360 = vld [vmem:[%s10 + $0x254] sm:$0xf]
  %v4361 = vld [vmem:[%s10 + $0x258] sm:$0xf]
  %v4362 = vld [vmem:[%s10 + $0x25c] sm:$0xf]
  %v4363 = vld [vmem:[%s10 + $0x260] sm:$0xf]
  %v4364 = vld [vmem:[%s10 + $0x264] sm:$0xf]
  %v4365 = vld [vmem:[%s10 + $0x268] sm:$0xf]
  %v4366 = vld [vmem:[%s10 + $0x26c] sm:$0xf]
  %v4367 = vld [vmem:[%s10 + $0x270] sm:$0xf]
  %v4368 = vld [vmem:[%s10 + $0x274] sm:$0xf]
  %v4369 = vld [vmem:[%s10 + $0x278] sm:$0xf]
  %v4370 = vld [vmem:[%s10 + $0x27c] sm:$0xf]
  %v4371 = vld [vmem:[%s10 + $0x280] sm:$0xf]
  %v4372 = vld [vmem:[%s10 + $0x284] sm:$0xf]
  %v4373 = vld [vmem:[%s10 + $0x288] sm:$0xf]
  %v4374 = vld [vmem:[%s10 + $0x28c] sm:$0xf]
  %v4375 = vld [vmem:[%s10 + $0x290] sm:$0xf]
  %v4376 = vld [vmem:[%s10 + $0x294] sm:$0xf]
  %v4377 = vld [vmem:[%s10 + $0x298] sm:$0xf]
  %v4378 = vld [vmem:[%s10 + $0x29c] sm:$0xf]
  %v4379 = vld [vmem:[%s10 + $0x2a0] sm:$0xf]
  %v4380 = vld [vmem:[%s10 + $0x2a4] sm:$0xf]
  %v4381 = vld [vmem:[%s10 + $0x2a8] sm:$0xf]
  %v4382 = vld [vmem:[%s10 + $0x2ac] sm:$0xf]
  %v4383 = vld [vmem:[%s10 + $0x2b0] sm:$0xf]
  %v4384 = vld [vmem:[%s10 + $0x2b4] sm:$0xf]
  %v4385 = vld [vmem:[%s10 + $0x2b8] sm:$0xf]
  %v4386 = vld [vmem:[%s10 + $0x2bc] sm:$0xf]
  %v4387 = vld [vmem:[%s10 + $0x2c0] sm:$0xf]
  %v4388 = vld [vmem:[%s10 + $0x2c4] sm:$0xf]
  %v4389 = vld [vmem:[%s10 + $0x2c8] sm:$0xf]
  %v4390 = vld [vmem:[%s10 + $0x2cc] sm:$0xf]
  %v4391 = vld [vmem:[%s10 + $0x2d0] sm:$0xf]
  %v4392 = vld [vmem:[%s10 + $0x2d4] sm:$0xf]
  %v4393 = vld [vmem:[%s10 + $0x2d8] sm:$0xf]
  %v4394 = vld [vmem:[%s10 + $0x2dc] sm:$0xf]
  %v4395 = vld [vmem:[%s10 + $0x2e0] sm:$0xf]
  %v4396 = vld [vmem:[%s10 + $0x2e4] sm:$0xf]
  %v4397 = vld [vmem:[%s10 + $0x2e8] sm:$0xf]
  %v4398 = vld [vmem:[%s10 + $0x2ec] sm:$0xf]
  %v4399 = vld [vmem:[%s10 + $0x2f0] sm:$0xf]
  %v4400 = vld [vmem:[%s10 + $0x2f4] sm:$0xf]
  %v4401 = vld [vmem:[%s10 + $0x2f8] sm:$0xf]
  %v4402 = vld [vmem:[%s10 + $0x2fc] sm:$0xf]
  %v4403 = vld [vmem:[%s10 + $0x300] sm:$0xf]
  %v4404 = vld [vmem:[%s10 + $0x304] sm:$0xf]
  %v4405 = vld [vmem:[%s10 + $0x308] sm:$0xf]
  %v4406 = vld [vmem:[%s10 + $0x30c] sm:$0xf]
  %v4407 = vld [vmem:[%s10 + $0x310] sm:$0xf]
  %v4408 = vld [vmem:[%s10 + $0x314] sm:$0xf]
  %v4409 = vld [vmem:[%s10 + $0x318] sm:$0xf]
  %v4410 = vld [vmem:[%s10 + $0x31c] sm:$0xf]
  %v4411 = vld [vmem:[%s10 + $0x320] sm:$0xf]
  %v4412 = vld [vmem:[%s10 + $0x324] sm:$0xf]
  %v4413 = vld [vmem:[%s10 + $0x328] sm:$0xf]
  %v4414 = vld [vmem:[%s10 + $0x32c] sm:$0xf]
  %v4415 = vld [vmem:[%s10 + $0x330] sm:$0xf]
  %v4416 = vld [vmem:[%s10 + $0x334] sm:$0xf]
  %v4417 = vld [vmem:[%s10 + $0x338] sm:$0xf]
  %v4418 = vld [vmem:[%s10 + $0x33c] sm:$0xf]
  %v4419 = vld [vmem:[%s10 + $0x340] sm:$0xf]
  %v4420 = vld [vmem:[%s10 + $0x344] sm:$0xf]
  %v4421 = vld [vmem:[%s10 + $0x348] sm:$0xf]
  %v4422 = vld [vmem:[%s10 + $0x34c] sm:$0xf]
  %v4423 = vld [vmem:[%s10 + $0x350] sm:$0xf]
  %v4424 = vld [vmem:[%s10 + $0x354] sm:$0xf]
  %v4425 = vld [vmem:[%s10 + $0x358] sm:$0xf]
  %v4426 = vld [vmem:[%s10 + $0x35c] sm:$0xf]
  %v4427 = vld [vmem:[%s10 + $0x360] sm:$0xf]
  %v4428 = vld [vmem:[%s10 + $0x364] sm:$0xf]
  %v4429 = vld [vmem:[%s10 + $0x368] sm:$0xf]
  %v4430 = vld [vmem:[%s10 + $0x36c] sm:$0xf]
  %v4431 = vld [vmem:[%s10 + $0x370] sm:$0xf]
  %v4432 = vld [vmem:[%s10 + $0x374] sm:$0xf]
  %v4433 = vld [vmem:[%s10 + $0x378] sm:$0xf]
  %v4434 = vld [vmem:[%s10 + $0x37c] sm:$0xf]
  %v4435 = vld [vmem:[%s10 + $0x380] sm:$0xf]
  %v4436 = vld [vmem:[%s10 + $0x384] sm:$0xf]
  %v4437 = vld [vmem:[%s10 + $0x388] sm:$0xf]
  %v4438 = vld [vmem:[%s10 + $0x38c] sm:$0xf]
  %v4439 = vld [vmem:[%s10 + $0x390] sm:$0xf]
  %v4440 = vld [vmem:[%s10 + $0x394] sm:$0xf]
  %v4441 = vld [vmem:[%s10 + $0x398] sm:$0xf]
  %v4442 = vld [vmem:[%s10 + $0x39c] sm:$0xf]
  %v4443 = vld [vmem:[%s10 + $0x3a0] sm:$0xf]
  %v4444 = vld [vmem:[%s10 + $0x3a4] sm:$0xf]
  %v4445 = vld [vmem:[%s10 + $0x3a8] sm:$0xf]
  %v4446 = vld [vmem:[%s10 + $0x3ac] sm:$0xf]
  %v4447 = vld [vmem:[%s10 + $0x3b0] sm:$0xf]
  %v4448 = vld [vmem:[%s10 + $0x3b4] sm:$0xf]
  %v4449 = vld [vmem:[%s10 + $0x3b8] sm:$0xf]
  %v4450 = vld [vmem:[%s10 + $0x3bc] sm:$0xf]
  %v4451 = vld [vmem:[%s10 + $0x3c0] sm:$0xf]
  %v4452 = vld [vmem:[%s10 + $0x3c4] sm:$0xf]
  %v4453 = vld [vmem:[%s10 + $0x3c8] sm:$0xf]
  %v4454 = vld [vmem:[%s10 + $0x3cc] sm:$0xf]
  %v4455 = vld [vmem:[%s10 + $0x3d0] sm:$0xf]
  %v4456 = vld [vmem:[%s10 + $0x3d4] sm:$0xf]
  %v4457 = vld [vmem:[%s10 + $0x3d8] sm:$0xf]
  %v4458 = vld [vmem:[%s10 + $0x3dc] sm:$0xf]
  %v4459 = vld [vmem:[%s10 + $0x3e0] sm:$0xf]
  %v4460 = vld [vmem:[%s10 + $0x3e4] sm:$0xf]
  %v4461 = vld [vmem:[%s10 + $0x3e8] sm:$0xf]
  %v4462 = vld [vmem:[%s10 + $0x3ec] sm:$0xf]
  %v4463 = vld [vmem:[%s10 + $0x3f0] sm:$0xf]
  %v4464 = vld [vmem:[%s10 + $0x3f4] sm:$0xf]
  %v4465 = vld [vmem:[%s10 + $0x3f8] sm:$0xf]
  %v4466 = vld [vmem:[%s10 + $0x3fc] sm:$0xf]
  %v4467 = vld [vmem:[%s10 + $0x400] sm:$0xf]
  %v4468 = vld [vmem:[%s10 + $0x404] sm:$0xf]
  %v4469 = vld [vmem:[%s10 + $0x408] sm:$0xf]
  %v4470 = vld [vmem:[%s10 + $0x40c] sm:$0xf]
  %v4471 = vld [vmem:[%s10 + $0x410] sm:$0xf]
  %v4472 = vld [vmem:[%s10 + $0x414] sm:$0xf]
  %v4473 = vld [vmem:[%s10 + $0x418] sm:$0xf]
  %v4474 = vld [vmem:[%s10 + $0x41c] sm:$0xf]
  %v4475 = vld [vmem:[%s10 + $0x420] sm:$0xf]
  %v4476 = vld [vmem:[%s10 + $0x424] sm:$0xf]
  %v4477 = vld [vmem:[%s10 + $0x428] sm:$0xf]
  %v4478 = vld [vmem:[%s10 + $0x42c] sm:$0xf]
  %v4479 = vld [vmem:[%s10 + $0x430] sm:$0xf]
  %v4480 = vld [vmem:[%s10 + $0x434] sm:$0xf]
  %v4481 = vld [vmem:[%s10 + $0x438] sm:$0xf]
  %v4482 = vld [vmem:[%s10 + $0x43c] sm:$0xf]
  %v4483 = vld [vmem:[%s10 + $0x440] sm:$0xf]
  %v4484 = vld [vmem:[%s10 + $0x444] sm:$0xf]
  %v4485 = vld [vmem:[%s10 + $0x448] sm:$0xf]
  %v4486 = vld [vmem:[%s10 + $0x44c] sm:$0xf]
  %v4487 = vld [vmem:[%s10 + $0x450] sm:$0xf]
  %v4488 = vld [vmem:[%s10 + $0x454] sm:$0xf]
  %v4489 = vld [vmem:[%s10 + $0x458] sm:$0xf]
  %v4490 = vld [vmem:[%s10 + $0x45c] sm:$0xf]
  %v4491 = vld [vmem:[%s10 + $0x460] sm:$0xf]
  %v4492 = vld [vmem:[%s10 + $0x464] sm:$0xf]
  %v4493 = vld [vmem:[%s10 + $0x468] sm:$0xf]
  %v4494 = vld [vmem:[%s10 + $0x46c] sm:$0xf]
  %v4495 = vld [vmem:[%s10 + $0x470] sm:$0xf]
  %v4496 = vld [vmem:[%s10 + $0x474] sm:$0xf]
  %v4497 = vld [vmem:[%s10 + $0x478] sm:$0xf]
  %v4498 = vld [vmem:[%s10 + $0x47c] sm:$0xf]
  %v4499 = vld [vmem:[%s10 + $0x480] sm:$0xf]
  %v4500 = vld [vmem:[%s10 + $0x484] sm:$0xf]
  %v4501 = vld [vmem:[%s10 + $0x488] sm:$0xf]
  %v4502 = vld [vmem:[%s10 + $0x48c] sm:$0xf]
  %v4503 = vld [vmem:[%s10 + $0x490] sm:$0xf]
  %v4504 = vld [vmem:[%s10 + $0x494] sm:$0xf]
  %v4505 = vld [vmem:[%s10 + $0x498] sm:$0xf]
  %v4506 = vld [vmem:[%s10 + $0x49c] sm:$0xf]
  %v4507 = vld [vmem:[%s10 + $0x4a0] sm:$0xf]
  %v4508 = vld [vmem:[%s10 + $0x4a4] sm:$0xf]
  %v4509 = vld [vmem:[%s10 + $0x4a8] sm:$0xf]
  %v4510 = vld [vmem:[%s10 + $0x4ac] sm:$0xf]
  %v4511 = vld [vmem:[%s10 + $0x4b0] sm:$0xf]
  %v4512 = vld [vmem:[%s10 + $0x4b4] sm:$0xf]
  %v4513 = vld [vmem:[%s10 + $0x4b8] sm:$0xf]
  %v4514 = vld [vmem:[%s10 + $0x4bc] sm:$0xf]
  %v4515 = vld [vmem:[%s10 + $0x4c0] sm:$0xf]
  %v4516 = vld [vmem:[%s10 + $0x4c4] sm:$0xf]
  %v4517 = vld [vmem:[%s10 + $0x4c8] sm:$0xf]
  %v4518 = vld [vmem:[%s10 + $0x4cc] sm:$0xf]
  %v4519 = vld [vmem:[%s10 + $0x4d0] sm:$0xf]
  %v4520 = vld [vmem:[%s10 + $0x4d4] sm:$0xf]
  %v4521 = vld [vmem:[%s10 + $0x4d8] sm:$0xf]
  %v4522 = vld [vmem:[%s10 + $0x4dc] sm:$0xf]
  %v4523 = vld [vmem:[%s10 + $0x4e0] sm:$0xf]
  %v4524 = vld [vmem:[%s10 + $0x4e4] sm:$0xf]
  %v4525 = vld [vmem:[%s10 + $0x4e8] sm:$0xf]
  %v4526 = vld [vmem:[%s10 + $0x4ec] sm:$0xf]
  %v4527 = vld [vmem:[%s10 + $0x4f0] sm:$0xf]
  %v4528 = vld [vmem:[%s10 + $0x4f4] sm:$0xf]
  %v4529 = vld [vmem:[%s10 + $0x4f8] sm:$0xf]
  %v4530 = vld [vmem:[%s10 + $0x4fc] sm:$0xf]
  %v4531 = vld [vmem:[%s10 + $0x500] sm:$0xf]
  %v4532 = vld [vmem:[%s10 + $0x504] sm:$0xf]
  %v4533 = vld [vmem:[%s10 + $0x508] sm:$0xf]
  %v4534 = vld [vmem:[%s10 + $0x50c] sm:$0xf]
  %v4535 = vld [vmem:[%s10 + $0x510] sm:$0xf]
  %v4536 = vld [vmem:[%s10 + $0x514] sm:$0xf]
  %v4537 = vld [vmem:[%s10 + $0x518] sm:$0xf]
  %v4538 = vld [vmem:[%s10 + $0x51c] sm:$0xf]
  %v4539 = vld [vmem:[%s10 + $0x520] sm:$0xf]
  %v4540 = vld [vmem:[%s10 + $0x524] sm:$0xf]
  %v4541 = vld [vmem:[%s10 + $0x528] sm:$0xf]
  %v4542 = vld [vmem:[%s10 + $0x52c] sm:$0xf]
  %v4543 = vld [vmem:[%s10 + $0x530] sm:$0xf]
  %v4544 = vld [vmem:[%s10 + $0x534] sm:$0xf]
  %v4545 = vld [vmem:[%s10 + $0x538] sm:$0xf]
  %v4546 = vld [vmem:[%s10 + $0x53c] sm:$0xf]
  %v4547 = vld [vmem:[%s10 + $0x540] sm:$0xf]
  %v4548 = vld [vmem:[%s10 + $0x544] sm:$0xf]
  %v4549 = vld [vmem:[%s10 + $0x548] sm:$0xf]
  %v4550 = vld [vmem:[%s10 + $0x54c] sm:$0xf]
  %v4551 = vld [vmem:[%s10 + $0x550] sm:$0xf]
  %v4552 = vld [vmem:[%s10 + $0x554] sm:$0xf]
  %v4553 = vld [vmem:[%s10 + $0x558] sm:$0xf]
  %v4554 = vld [vmem:[%s10 + $0x55c] sm:$0xf]
  %v4555 = vld [vmem:[%s10 + $0x560] sm:$0xf]
  %v4556 = vld [vmem:[%s10 + $0x564] sm:$0xf]
  %v4557 = vld [vmem:[%s10 + $0x568] sm:$0xf]
  %v4558 = vld [vmem:[%s10 + $0x56c] sm:$0xf]
  %v4559 = vld [vmem:[%s10 + $0x570] sm:$0xf]
  %v4560 = vld [vmem:[%s10 + $0x574] sm:$0xf]
  %v4561 = vld [vmem:[%s10 + $0x578] sm:$0xf]
  %v4562 = vld [vmem:[%s10 + $0x57c] sm:$0xf]
  %v4563 = vld [vmem:[%s10 + $0x580] sm:$0xf]
  %v4564 = vld [vmem:[%s10 + $0x584] sm:$0xf]
  %v4565 = vld [vmem:[%s10 + $0x588] sm:$0xf]
  %v4566 = vld [vmem:[%s10 + $0x58c] sm:$0xf]
  %v4567 = vld [vmem:[%s10 + $0x590] sm:$0xf]
  %v4568 = vld [vmem:[%s10 + $0x594] sm:$0xf]
  %v4569 = vld [vmem:[%s10 + $0x598] sm:$0xf]
  %v4570 = vld [vmem:[%s10 + $0x59c] sm:$0xf]
  %v4571 = vld [vmem:[%s10 + $0x5a0] sm:$0xf]
  %v4572 = vld [vmem:[%s10 + $0x5a4] sm:$0xf]
  %v4573 = vld [vmem:[%s10 + $0x5a8] sm:$0xf]
  %v4574 = vld [vmem:[%s10 + $0x5ac] sm:$0xf]
  %v4575 = vld [vmem:[%s10 + $0x5b0] sm:$0xf]
  %v4576 = vld [vmem:[%s10 + $0x5b4] sm:$0xf]
  %v4577 = vld [vmem:[%s10 + $0x5b8] sm:$0xf]
  %v4578 = vld [vmem:[%s10 + $0x5bc] sm:$0xf]
  %v4579 = vld [vmem:[%s10 + $0x5c0] sm:$0xf]
  %v4580 = vld [vmem:[%s10 + $0x5c4] sm:$0xf]
  %v4581 = vld [vmem:[%s10 + $0x5c8] sm:$0xf]
  %v4582 = vld [vmem:[%s10 + $0x5cc] sm:$0xf]
  %v4583 = vld [vmem:[%s10 + $0x5d0] sm:$0xf]
  %v4584 = vld [vmem:[%s10 + $0x5d4] sm:$0xf]
  %v4585 = vld [vmem:[%s10 + $0x5d8] sm:$0xf]
  %v4586 = vld [vmem:[%s10 + $0x5dc] sm:$0xf]
  %v4587 = vld [vmem:[%s10 + $0x5e0] sm:$0xf]
  %v4588 = vld [vmem:[%s10 + $0x5e4] sm:$0xf]
  %v4589 = vld [vmem:[%s10 + $0x5e8] sm:$0xf]
  %v4590 = vld [vmem:[%s10 + $0x5ec] sm:$0xf]
  %v4591 = vld [vmem:[%s10 + $0x5f0] sm:$0xf]
  %v4592 = vld [vmem:[%s10 + $0x5f4] sm:$0xf]
  %v4593 = vld [vmem:[%s10 + $0x5f8] sm:$0xf]
  %v4594 = vld [vmem:[%s10 + $0x5fc] sm:$0xf]
  %v4595 = vld [vmem:[%s10 + $0x600] sm:$0xf]
  %v4596 = vld [vmem:[%s10 + $0x604] sm:$0xf]
  %v4597 = vld [vmem:[%s10 + $0x608] sm:$0xf]
  %v4598 = vld [vmem:[%s10 + $0x60c] sm:$0xf]
  %v4599 = vld [vmem:[%s10 + $0x610] sm:$0xf]
  %v4600 = vld [vmem:[%s10 + $0x614] sm:$0xf]
  %v4601 = vld [vmem:[%s10 + $0x618] sm:$0xf]
  %v4602 = vld [vmem:[%s10 + $0x61c] sm:$0xf]
  %v4603 = vld [vmem:[%s10 + $0x620] sm:$0xf]
  %v4604 = vld [vmem:[%s10 + $0x624] sm:$0xf]
  %v4605 = vld [vmem:[%s10 + $0x628] sm:$0xf]
  %v4606 = vld [vmem:[%s10 + $0x62c] sm:$0xf]
  %v4607 = vld [vmem:[%s10 + $0x630] sm:$0xf]
  %v4608 = vld [vmem:[%s10 + $0x634] sm:$0xf]
  %v4609 = vld [vmem:[%s10 + $0x638] sm:$0xf]
  %v4610 = vld [vmem:[%s10 + $0x63c] sm:$0xf]
  %v4611 = vld [vmem:[%s10 + $0x640] sm:$0xf]
  %v4612 = vld [vmem:[%s10 + $0x644] sm:$0xf]
  %v4613 = vld [vmem:[%s10 + $0x648] sm:$0xf]
  %v4614 = vld [vmem:[%s10 + $0x64c] sm:$0xf]
  %v4615 = vld [vmem:[%s10 + $0x650] sm:$0xf]
  %v4616 = vld [vmem:[%s10 + $0x654] sm:$0xf]
  %v4617 = vld [vmem:[%s10 + $0x658] sm:$0xf]
  %v4618 = vld [vmem:[%s10 + $0x65c] sm:$0xf]
  %v4619 = vld [vmem:[%s10 + $0x660] sm:$0xf]
  %v4620 = vld [vmem:[%s10 + $0x664] sm:$0xf]
  %v4621 = vld [vmem:[%s10 + $0x668] sm:$0xf]
  %v4622 = vld [vmem:[%s10 + $0x66c] sm:$0xf]
  %v4623 = vld [vmem:[%s10 + $0x670] sm:$0xf]
  %v4624 = vld [vmem:[%s10 + $0x674] sm:$0xf]
  %v4625 = vld [vmem:[%s10 + $0x678] sm:$0xf]
  %v4626 = vld [vmem:[%s10 + $0x67c] sm:$0xf]
  %v4627 = vld [vmem:[%s10 + $0x680] sm:$0xf]
  %v4628 = vld [vmem:[%s10 + $0x684] sm:$0xf]
  %v4629 = vld [vmem:[%s10 + $0x688] sm:$0xf]
  %v4630 = vld [vmem:[%s10 + $0x68c] sm:$0xf]
  %v4631 = vld [vmem:[%s10 + $0x690] sm:$0xf]
  %v4632 = vld [vmem:[%s10 + $0x694] sm:$0xf]
  %v4633 = vld [vmem:[%s10 + $0x698] sm:$0xf]
  %v4634 = vld [vmem:[%s10 + $0x69c] sm:$0xf]
  %v4635 = vld [vmem:[%s10 + $0x6a0] sm:$0xf]
  %v4636 = vld [vmem:[%s10 + $0x6a4] sm:$0xf]
  %v4637 = vld [vmem:[%s10 + $0x6a8] sm:$0xf]
  %v4638 = vld [vmem:[%s10 + $0x6ac] sm:$0xf]
  %v4639 = vld [vmem:[%s10 + $0x6b0] sm:$0xf]
  %v4640 = vld [vmem:[%s10 + $0x6b4] sm:$0xf]
  %v4641 = vld [vmem:[%s10 + $0x6b8] sm:$0xf]
  %v4642 = vld [vmem:[%s10 + $0x6bc] sm:$0xf]
  %v4643 = vld [vmem:[%s10 + $0x6c0] sm:$0xf]
  %v4644 = vld [vmem:[%s10 + $0x6c4] sm:$0xf]
  %v4645 = vld [vmem:[%s10 + $0x6c8] sm:$0xf]
  %v4646 = vld [vmem:[%s10 + $0x6cc] sm:$0xf]
  %v4647 = vld [vmem:[%s10 + $0x6d0] sm:$0xf]
  %v4648 = vld [vmem:[%s10 + $0x6d4] sm:$0xf]
  %v4649 = vld [vmem:[%s10 + $0x6d8] sm:$0xf]
  %v4650 = vld [vmem:[%s10 + $0x6dc] sm:$0xf]
  %v4651 = vld [vmem:[%s10 + $0x6e0] sm:$0xf]
  %v4652 = vld [vmem:[%s10 + $0x6e4] sm:$0xf]
  %v4653 = vld [vmem:[%s10 + $0x6e8] sm:$0xf]
  %v4654 = vld [vmem:[%s10 + $0x6ec] sm:$0xf]
  %v4655 = vld [vmem:[%s10 + $0x6f0] sm:$0xf]
  %v4656 = vld [vmem:[%s10 + $0x6f4] sm:$0xf]
  %v4657 = vld [vmem:[%s10 + $0x6f8] sm:$0xf]
  %v4658 = vld [vmem:[%s10 + $0x6fc] sm:$0xf]
  %v4659 = vld [vmem:[%s10 + $0x700] sm:$0xf]
  %v4660 = vld [vmem:[%s10 + $0x704] sm:$0xf]
  %v4661 = vld [vmem:[%s10 + $0x708] sm:$0xf]
  %v4662 = vld [vmem:[%s10 + $0x70c] sm:$0xf]
  %v4663 = vld [vmem:[%s10 + $0x710] sm:$0xf]
  %v4664 = vld [vmem:[%s10 + $0x714] sm:$0xf]
  %v4665 = vld [vmem:[%s10 + $0x718] sm:$0xf]
  %v4666 = vld [vmem:[%s10 + $0x71c] sm:$0xf]
  %v4667 = vld [vmem:[%s10 + $0x720] sm:$0xf]
  %v4668 = vld [vmem:[%s10 + $0x724] sm:$0xf]
  %v4669 = vld [vmem:[%s10 + $0x728] sm:$0xf]
  %v4670 = vld [vmem:[%s10 + $0x72c] sm:$0xf]
  %v4671 = vld [vmem:[%s10 + $0x730] sm:$0xf]
  %v4672 = vld [vmem:[%s10 + $0x734] sm:$0xf]
  %v4673 = vld [vmem:[%s10 + $0x738] sm:$0xf]
  %v4674 = vld [vmem:[%s10 + $0x73c] sm:$0xf]
  %v4675 = vld [vmem:[%s10 + $0x740] sm:$0xf]
  %v4676 = vld [vmem:[%s10 + $0x744] sm:$0xf]
  %v4677 = vld [vmem:[%s10 + $0x748] sm:$0xf]
  %v4678 = vld [vmem:[%s10 + $0x74c] sm:$0xf]
  %v4679 = vld [vmem:[%s10 + $0x750] sm:$0xf]
  %v4680 = vld [vmem:[%s10 + $0x754] sm:$0xf]
  %v4681 = vld [vmem:[%s10 + $0x758] sm:$0xf]
  %v4682 = vld [vmem:[%s10 + $0x75c] sm:$0xf]
  %v4683 = vld [vmem:[%s10 + $0x760] sm:$0xf]
  %v4684 = vld [vmem:[%s10 + $0x764] sm:$0xf]
  %v4685 = vld [vmem:[%s10 + $0x768] sm:$0xf]
  %v4686 = vld [vmem:[%s10 + $0x76c] sm:$0xf]
  %v4687 = vld [vmem:[%s10 + $0x770] sm:$0xf]
  %v4688 = vld [vmem:[%s10 + $0x774] sm:$0xf]
  %v4689 = vld [vmem:[%s10 + $0x778] sm:$0xf]
  %v4690 = vld [vmem:[%s10 + $0x77c] sm:$0xf]
  %v4691 = vld [vmem:[%s10 + $0x780] sm:$0xf]
  %v4692 = vld [vmem:[%s10 + $0x784] sm:$0xf]
  %v4693 = vld [vmem:[%s10 + $0x788] sm:$0xf]
  %v4694 = vld [vmem:[%s10 + $0x78c] sm:$0xf]
  %v4695 = vld [vmem:[%s10 + $0x790] sm:$0xf]
  %v4696 = vld [vmem:[%s10 + $0x794] sm:$0xf]
  %v4697 = vld [vmem:[%s10 + $0x798] sm:$0xf]
  %v4698 = vld [vmem:[%s10 + $0x79c] sm:$0xf]
  %v4699 = vld [vmem:[%s10 + $0x7a0] sm:$0xf]
  %v4700 = vld [vmem:[%s10 + $0x7a4] sm:$0xf]
  %v4701 = vld [vmem:[%s10 + $0x7a8] sm:$0xf]
  %v4702 = vld [vmem:[%s10 + $0x7ac] sm:$0xf]
  %v4703 = vld [vmem:[%s10 + $0x7b0] sm:$0xf]
  %v4704 = vld [vmem:[%s10 + $0x7b4] sm:$0xf]
  %v4705 = vld [vmem:[%s10 + $0x7b8] sm:$0xf]
  %v4706 = vld [vmem:[%s10 + $0x7bc] sm:$0xf]
  %v4707 = vld [vmem:[%s10 + $0x7c0] sm:$0xf]
  %v4708 = vld [vmem:[%s10 + $0x7c4] sm:$0xf]
  %v4709 = vld [vmem:[%s10 + $0x7c8] sm:$0xf]
  %v4710 = vld [vmem:[%s10 + $0x7cc] sm:$0xf]
  %v4711 = vld [vmem:[%s10 + $0x7d0] sm:$0xf]
  %v4712 = vld [vmem:[%s10 + $0x7d4] sm:$0xf]
  %v4713 = vld [vmem:[%s10 + $0x7d8] sm:$0xf]
  %v4714 = vld [vmem:[%s10 + $0x7dc] sm:$0xf]
  %v4715 = vld [vmem:[%s10 + $0x7e0] sm:$0xf]
  %v4716 = vld [vmem:[%s10 + $0x7e4] sm:$0xf]
  %v4717 = vld [vmem:[%s10 + $0x7e8] sm:$0xf]
  %v4718 = vld [vmem:[%s10 + $0x7ec] sm:$0xf]
  %v4719 = vld [vmem:[%s10 + $0x7f0] sm:$0xf]
  %v4720 = vld [vmem:[%s10 + $0x7f4] sm:$0xf]
  %v4721 = vld [vmem:[%s10 + $0x7f8] sm:$0xf]
  %v4722 = vld [vmem:[%s10 + $0x7fc] sm:$0xf]
  %v4723 = vld [vmem:[%s10 + $0x800] sm:$0xf]
  %v4724 = vld [vmem:[%s10 + $0x804] sm:$0xf]
  %v4725 = vld [vmem:[%s10 + $0x808] sm:$0xf]
  %v4726 = vld [vmem:[%s10 + $0x80c] sm:$0xf]
  %v4727 = vld [vmem:[%s10 + $0x810] sm:$0xf]
  %v4728 = vld [vmem:[%s10 + $0x814] sm:$0xf]
  %v4729 = vld [vmem:[%s10 + $0x818] sm:$0xf]
  %v4730 = vld [vmem:[%s10 + $0x81c] sm:$0xf]
  %v4731 = vld [vmem:[%s10 + $0x820] sm:$0xf]
  %v4732 = vld [vmem:[%s10 + $0x824] sm:$0xf]
  %v4733 = vld [vmem:[%s10 + $0x828] sm:$0xf]
  %v4734 = vld [vmem:[%s10 + $0x82c] sm:$0xf]
  %v4735 = vld [vmem:[%s10 + $0x830] sm:$0xf]
  %v4736 = vld [vmem:[%s10 + $0x834] sm:$0xf]
  %v4737 = vld [vmem:[%s10 + $0x838] sm:$0xf]
  %v4738 = vld [vmem:[%s10 + $0x83c] sm:$0xf]
  %v4739 = vld [vmem:[%s10 + $0x840] sm:$0xf]
  %v4740 = vld [vmem:[%s10 + $0x844] sm:$0xf]
  %v4741 = vld [vmem:[%s10 + $0x848] sm:$0xf]
  %v4742 = vld [vmem:[%s10 + $0x84c] sm:$0xf]
  %v4743 = vld [vmem:[%s10 + $0x850] sm:$0xf]
  %v4744 = vld [vmem:[%s10 + $0x854] sm:$0xf]
  %v4745 = vld [vmem:[%s10 + $0x858] sm:$0xf]
  %v4746 = vld [vmem:[%s10 + $0x85c] sm:$0xf]
  %v4747 = vld [vmem:[%s10 + $0x860] sm:$0xf]
  %v4748 = vld [vmem:[%s10 + $0x864] sm:$0xf]
  %v4749 = vld [vmem:[%s10 + $0x868] sm:$0xf]
  %v4750 = vld [vmem:[%s10 + $0x86c] sm:$0xf]
  %v4751 = vld [vmem:[%s10 + $0x870] sm:$0xf]
  %v4752 = vld [vmem:[%s10 + $0x874] sm:$0xf]
  %v4753 = vld [vmem:[%s10 + $0x878] sm:$0xf]
  %v4754 = vld [vmem:[%s10 + $0x87c] sm:$0xf]
  %v4755 = vld [vmem:[%s10 + $0x880] sm:$0xf]
  %v4756 = vld [vmem:[%s10 + $0x884] sm:$0xf]
  %v4757 = vld [vmem:[%s10 + $0x888] sm:$0xf]
  %v4758 = vld [vmem:[%s10 + $0x88c] sm:$0xf]
  %v4759 = vld [vmem:[%s10 + $0x890] sm:$0xf]
  %v4760 = vld [vmem:[%s10 + $0x894] sm:$0xf]
  %v4761 = vld [vmem:[%s10 + $0x898] sm:$0xf]
  %v4762 = vld [vmem:[%s10 + $0x89c] sm:$0xf]
  %v4763 = vld [vmem:[%s10 + $0x8a0] sm:$0xf]
  %v4764 = vld [vmem:[%s10 + $0x8a4] sm:$0xf]
  %v4765 = vld [vmem:[%s10 + $0x8a8] sm:$0xf]
  %v4766 = vld [vmem:[%s10 + $0x8ac] sm:$0xf]
  %v4767 = vld [vmem:[%s10 + $0x8b0] sm:$0xf]
  %v4768 = vld [vmem:[%s10 + $0x8b4] sm:$0xf]
  %v4769 = vld [vmem:[%s10 + $0x8b8] sm:$0xf]
  %v4770 = vld [vmem:[%s10 + $0x8bc] sm:$0xf]
  %v4771 = vld [vmem:[%s10 + $0x8c0] sm:$0xf]
  %v4772 = vld [vmem:[%s10 + $0x8c4] sm:$0xf]
  %v4773 = vld [vmem:[%s10 + $0x8c8] sm:$0xf]
  %v4774 = vld [vmem:[%s10 + $0x8cc] sm:$0xf]
  %v4775 = vld [vmem:[%s10 + $0x8d0] sm:$0xf]
  %v4776 = vld [vmem:[%s10 + $0x8d4] sm:$0xf]
  %v4777 = vld [vmem:[%s10 + $0x8d8] sm:$0xf]
  %v4778 = vld [vmem:[%s10 + $0x8dc] sm:$0xf]
  %v4779 = vld [vmem:[%s10 + $0x8e0] sm:$0xf]
  %v4780 = vld [vmem:[%s10 + $0x8e4] sm:$0xf]
  %v4781 = vld [vmem:[%s10 + $0x8e8] sm:$0xf]
  %v4782 = vld [vmem:[%s10 + $0x8ec] sm:$0xf]
  %v4783 = vld [vmem:[%s10 + $0x8f0] sm:$0xf]
  %v4784 = vld [vmem:[%s10 + $0x8f4] sm:$0xf]
  %v4785 = vld [vmem:[%s10 + $0x8f8] sm:$0xf]
  %v4786 = vld [vmem:[%s10 + $0x8fc] sm:$0xf]
  %v4787 = vld [vmem:[%s10 + $0x900] sm:$0xf]
  %v4788 = vld [vmem:[%s10 + $0x904] sm:$0xf]
  %v4789 = vld [vmem:[%s10 + $0x908] sm:$0xf]
  %v4790 = vld [vmem:[%s10 + $0x90c] sm:$0xf]
  %v4791 = vld [vmem:[%s10 + $0x910] sm:$0xf]
  %v4792 = vld [vmem:[%s10 + $0x914] sm:$0xf]
  %v4793 = vld [vmem:[%s10 + $0x918] sm:$0xf]
  %v4794 = vld [vmem:[%s10 + $0x91c] sm:$0xf]
  %v4795 = vld [vmem:[%s10 + $0x920] sm:$0xf]
  %v4796 = vld [vmem:[%s10 + $0x924] sm:$0xf]
  %v4797 = vld [vmem:[%s10 + $0x928] sm:$0xf]
  %v4798 = vld [vmem:[%s10 + $0x92c] sm:$0xf]
  %v4799 = vld [vmem:[%s10 + $0x930] sm:$0xf]
  %v4800 = vld [vmem:[%s10 + $0x934] sm:$0xf]
  %v4801 = vld [vmem:[%s10 + $0x938] sm:$0xf]
  %v4802 = vld [vmem:[%s10 + $0x93c] sm:$0xf]
  %v4803 = vld [vmem:[%s10 + $0x940] sm:$0xf]
  %v4804 = vld [vmem:[%s10 + $0x944] sm:$0xf]
  %v4805 = vld [vmem:[%s10 + $0x948] sm:$0xf]
  %v4806 = vld [vmem:[%s10 + $0x94c] sm:$0xf]
  %v4807 = vld [vmem:[%s10 + $0x950] sm:$0xf]
  %v4808 = vld [vmem:[%s10 + $0x954] sm:$0xf]
  %v4809 = vld [vmem:[%s10 + $0x958] sm:$0xf]
  %v4810 = vld [vmem:[%s10 + $0x95c] sm:$0xf]
  %v4811 = vld [vmem:[%s10 + $0x960] sm:$0xf]
  %v4812 = vld [vmem:[%s10 + $0x964] sm:$0xf]
  %v4813 = vld [vmem:[%s10 + $0x968] sm:$0xf]
  %v4814 = vld [vmem:[%s10 + $0x96c] sm:$0xf]
  %v4815 = vld [vmem:[%s10 + $0x970] sm:$0xf]
  %v4816 = vld [vmem:[%s10 + $0x974] sm:$0xf]
  %v4817 = vld [vmem:[%s10 + $0x978] sm:$0xf]
  %v4818 = vld [vmem:[%s10 + $0x97c] sm:$0xf]
  %v4819 = vld [vmem:[%s10 + $0x980] sm:$0xf]
  %v4820 = vld [vmem:[%s10 + $0x984] sm:$0xf]
  %v4821 = vld [vmem:[%s10 + $0x988] sm:$0xf]
  %v4822 = vld [vmem:[%s10 + $0x98c] sm:$0xf]
  %v4823 = vld [vmem:[%s10 + $0x990] sm:$0xf]
  %v4824 = vld [vmem:[%s10 + $0x994] sm:$0xf]
  %v4825 = vld [vmem:[%s10 + $0x998] sm:$0xf]
  %v4826 = vld [vmem:[%s10 + $0x99c] sm:$0xf]
  %v4827 = vld [vmem:[%s10 + $0x9a0] sm:$0xf]
  %v4828 = vld [vmem:[%s10 + $0x9a4] sm:$0xf]
  %v4829 = vld [vmem:[%s10 + $0x9a8] sm:$0xf]
  %v4830 = vld [vmem:[%s10 + $0x9ac] sm:$0xf]
  %v4831 = vld [vmem:[%s10 + $0x9b0] sm:$0xf]
  %v4832 = vld [vmem:[%s10 + $0x9b4] sm:$0xf]
  %v4833 = vld [vmem:[%s10 + $0x9b8] sm:$0xf]
  %v4834 = vld [vmem:[%s10 + $0x9bc] sm:$0xf]
  %v4835 = vld [vmem:[%s10 + $0x9c0] sm:$0xf]
  %v4836 = vld [vmem:[%s10 + $0x9c4] sm:$0xf]
  %v4837 = vld [vmem:[%s10 + $0x9c8] sm:$0xf]
  %v4838 = vld [vmem:[%s10 + $0x9cc] sm:$0xf]
  %v4839 = vld [vmem:[%s10 + $0x9d0] sm:$0xf]
  %v4840 = vld [vmem:[%s10 + $0x9d4] sm:$0xf]
  %v4841 = vld [vmem:[%s10 + $0x9d8] sm:$0xf]
  %v4842 = vld [vmem:[%s10 + $0x9dc] sm:$0xf]
  %v4843 = vld [vmem:[%s10 + $0x9e0] sm:$0xf]
  %v4844 = vld [vmem:[%s10 + $0x9e4] sm:$0xf]
  %v4845 = vld [vmem:[%s10 + $0x9e8] sm:$0xf]
  %v4846 = vld [vmem:[%s10 + $0x9ec] sm:$0xf]
  %v4847 = vld [vmem:[%s10 + $0x9f0] sm:$0xf]
  %v4848 = vld [vmem:[%s10 + $0x9f4] sm:$0xf]
  %v4849 = vld [vmem:[%s10 + $0x9f8] sm:$0xf]
  %v4850 = vld [vmem:[%s10 + $0x9fc] sm:$0xf]
  %v4851 = vld [vmem:[%s10 + $0xa00] sm:$0xf]
  %v4852 = vld [vmem:[%s10 + $0xa04] sm:$0xf]
  %v4853 = vld [vmem:[%s10 + $0xa08] sm:$0xf]
  %v4854 = vld [vmem:[%s10 + $0xa0c] sm:$0xf]
  %v4855 = vld [vmem:[%s10 + $0xa10] sm:$0xf]
  %v4856 = vld [vmem:[%s10 + $0xa14] sm:$0xf]
  %v4857 = vld [vmem:[%s10 + $0xa18] sm:$0xf]
  %v4858 = vld [vmem:[%s10 + $0xa1c] sm:$0xf]
  %v4859 = vld [vmem:[%s10 + $0xa20] sm:$0xf]
  %v4860 = vld [vmem:[%s10 + $0xa24] sm:$0xf]
  %v4861 = vld [vmem:[%s10 + $0xa28] sm:$0xf]
  %v4862 = vld [vmem:[%s10 + $0xa2c] sm:$0xf]
  %v4863 = vld [vmem:[%s10 + $0xa30] sm:$0xf]
  %v4864 = vld [vmem:[%s10 + $0xa34] sm:$0xf]
  %v4865 = vld [vmem:[%s10 + $0xa38] sm:$0xf]
  %v4866 = vld [vmem:[%s10 + $0xa3c] sm:$0xf]
  %v4867 = vld [vmem:[%s10 + $0xa40] sm:$0xf]
  %v4868 = vld [vmem:[%s10 + $0xa44] sm:$0xf]
  %v4869 = vld [vmem:[%s10 + $0xa48] sm:$0xf]
  %v4870 = vld [vmem:[%s10 + $0xa4c] sm:$0xf]
  %v4871 = vld [vmem:[%s10 + $0xa50] sm:$0xf]
  %v4872 = vld [vmem:[%s10 + $0xa54] sm:$0xf]
  %v4873 = vld [vmem:[%s10 + $0xa58] sm:$0xf]
  %v4874 = vld [vmem:[%s10 + $0xa5c] sm:$0xf]
  %v4875 = vld [vmem:[%s10 + $0xa60] sm:$0xf]
  %v4876 = vld [vmem:[%s10 + $0xa64] sm:$0xf]
  %v4877 = vld [vmem:[%s10 + $0xa68] sm:$0xf]
  %v4878 = vld [vmem:[%s10 + $0xa6c] sm:$0xf]
  %v4879 = vld [vmem:[%s10 + $0xa70] sm:$0xf]
  %v4880 = vld [vmem:[%s10 + $0xa74] sm:$0xf]
  %v4881 = vld [vmem:[%s10 + $0xa78] sm:$0xf]
  %v4882 = vld [vmem:[%s10 + $0xa7c] sm:$0xf]
  %v4883 = vld [vmem:[%s10 + $0xa80] sm:$0xf]
  %v4884 = vld [vmem:[%s10 + $0xa84] sm:$0xf]
  %v4885 = vld [vmem:[%s10 + $0xa88] sm:$0xf]
  %v4886 = vld [vmem:[%s10 + $0xa8c] sm:$0xf]
  %v4887 = vld [vmem:[%s10 + $0xa90] sm:$0xf]
  %v4888 = vld [vmem:[%s10 + $0xa94] sm:$0xf]
  %v4889 = vld [vmem:[%s10 + $0xa98] sm:$0xf]
  %v4890 = vld [vmem:[%s10 + $0xa9c] sm:$0xf]
  %v4891 = vld [vmem:[%s10 + $0xaa0] sm:$0xf]
  %v4892 = vld [vmem:[%s10 + $0xaa4] sm:$0xf]
  %v4893 = vld [vmem:[%s10 + $0xaa8] sm:$0xf]
  %v4894 = vld [vmem:[%s10 + $0xaac] sm:$0xf]
  %v4895 = vld [vmem:[%s10 + $0xab0] sm:$0xf]
  %v4896 = vld [vmem:[%s10 + $0xab4] sm:$0xf]
  %v4897 = vld [vmem:[%s10 + $0xab8] sm:$0xf]
  %v4898 = vld [vmem:[%s10 + $0xabc] sm:$0xf]
  %v4899 = vld [vmem:[%s10 + $0xac0] sm:$0xf]
  %v4900 = vld [vmem:[%s10 + $0xac4] sm:$0xf]
  %v4901 = vld [vmem:[%s10 + $0xac8] sm:$0xf]
  %v4902 = vld [vmem:[%s10 + $0xacc] sm:$0xf]
  %v4903 = vld [vmem:[%s10 + $0xad0] sm:$0xf]
  %v4904 = vld [vmem:[%s10 + $0xad4] sm:$0xf]
  %v4905 = vld [vmem:[%s10 + $0xad8] sm:$0xf]
  %v4906 = vld [vmem:[%s10 + $0xadc] sm:$0xf]
  %v4907 = vld [vmem:[%s10 + $0xae0] sm:$0xf]
  %v4908 = vld [vmem:[%s10 + $0xae4] sm:$0xf]
  %v4909 = vld [vmem:[%s10 + $0xae8] sm:$0xf]
  %v4910 = vld [vmem:[%s10 + $0xaec] sm:$0xf]
  %v4911 = vld [vmem:[%s10 + $0xaf0] sm:$0xf]
  %v4912 = vld [vmem:[%s10 + $0xaf4] sm:$0xf]
  %v4913 = vld [vmem:[%s10 + $0xaf8] sm:$0xf]
  %v4914 = vld [vmem:[%s10 + $0xafc] sm:$0xf]
  %v4915 = vld [vmem:[%s10 + $0xb00] sm:$0xf]
  %v4916 = vld [vmem:[%s10 + $0xb04] sm:$0xf]
  %v4917 = vld [vmem:[%s10 + $0xb08] sm:$0xf]
  %v4918 = vld [vmem:[%s10 + $0xb0c] sm:$0xf]
  %v4919 = vld [vmem:[%s10 + $0xb10] sm:$0xf]
  %v4920 = vld [vmem:[%s10 + $0xb14] sm:$0xf]
  %v4921 = vld [vmem:[%s10 + $0xb18] sm:$0xf]
  %v4922 = vld [vmem:[%s10 + $0xb1c] sm:$0xf]
  %v4923 = vld [vmem:[%s10 + $0xb20] sm:$0xf]
  %v4924 = vld [vmem:[%s10 + $0xb24] sm:$0xf]
  %v4925 = vld [vmem:[%s10 + $0xb28] sm:$0xf]
  %v4926 = vld [vmem:[%s10 + $0xb2c] sm:$0xf]
  %v4927 = vld [vmem:[%s10 + $0xb30] sm:$0xf]
  %v4928 = vld [vmem:[%s10 + $0xb34] sm:$0xf]
  %v4929 = vld [vmem:[%s10 + $0xb38] sm:$0xf]
  %v4930 = vld [vmem:[%s10 + $0xb3c] sm:$0xf]
  %v4931 = vld [vmem:[%s10 + $0xb40] sm:$0xf]
  %v4932 = vld [vmem:[%s10 + $0xb44] sm:$0xf]
  %v4933 = vld [vmem:[%s10 + $0xb48] sm:$0xf]
  %v4934 = vld [vmem:[%s10 + $0xb4c] sm:$0xf]
  %v4935 = vld [vmem:[%s10 + $0xb50] sm:$0xf]
  %v4936 = vld [vmem:[%s10 + $0xb54] sm:$0xf]
  %v4937 = vld [vmem:[%s10 + $0xb58] sm:$0xf]
  %v4938 = vld [vmem:[%s10 + $0xb5c] sm:$0xf]
  %v4939 = vld [vmem:[%s10 + $0xb60] sm:$0xf]
  %v4940 = vld [vmem:[%s10 + $0xb64] sm:$0xf]
  %v4941 = vld [vmem:[%s10 + $0xb68] sm:$0xf]
  %v4942 = vld [vmem:[%s10 + $0xb6c] sm:$0xf]
  %v4943 = vld [vmem:[%s10 + $0xb70] sm:$0xf]
  %v4944 = vld [vmem:[%s10 + $0xb74] sm:$0xf]
  %v4945 = vld [vmem:[%s10 + $0xb78] sm:$0xf]
  %v4946 = vld [vmem:[%s10 + $0xb7c] sm:$0xf]
  %v4947 = vld [vmem:[%s10 + $0xb80] sm:$0xf]
  %v4948 = vld [vmem:[%s10 + $0xb84] sm:$0xf]
  %v4949 = vld [vmem:[%s10 + $0xb88] sm:$0xf]
  %v4950 = vld [vmem:[%s10 + $0xb8c] sm:$0xf]
  %v4951 = vld [vmem:[%s10 + $0xb90] sm:$0xf]
  %v4952 = vld [vmem:[%s10 + $0xb94] sm:$0xf]
  %v4953 = vld [vmem:[%s10 + $0xb98] sm:$0xf]
  %v4954 = vld [vmem:[%s10 + $0xb9c] sm:$0xf]
  %v4955 = vld [vmem:[%s10 + $0xba0] sm:$0xf]
  %v4956 = vld [vmem:[%s10 + $0xba4] sm:$0xf]
  %v4957 = vld [vmem:[%s10 + $0xba8] sm:$0xf]
  %v4958 = vld [vmem:[%s10 + $0xbac] sm:$0xf]
  %v4959 = vld [vmem:[%s10 + $0xbb0] sm:$0xf]
  %v4960 = vld [vmem:[%s10 + $0xbb4] sm:$0xf]
  %v4961 = vld [vmem:[%s10 + $0xbb8] sm:$0xf]
  %v4962 = vld [vmem:[%s10 + $0xbbc] sm:$0xf]
  %v4963 = vld [vmem:[%s10 + $0xbc0] sm:$0xf]
  %v4964 = vld [vmem:[%s10 + $0xbc4] sm:$0xf]
  %v4965 = vld [vmem:[%s10 + $0xbc8] sm:$0xf]
  %v4966 = vld [vmem:[%s10 + $0xbcc] sm:$0xf]
  %v4967 = vld [vmem:[%s10 + $0xbd0] sm:$0xf]
  %v4968 = vld [vmem:[%s10 + $0xbd4] sm:$0xf]
  %v4969 = vld [vmem:[%s10 + $0xbd8] sm:$0xf]
  %v4970 = vld [vmem:[%s10 + $0xbdc] sm:$0xf]
  %v4971 = vld [vmem:[%s10 + $0xbe0] sm:$0xf]
  %v4972 = vld [vmem:[%s10 + $0xbe4] sm:$0xf]
  %v4973 = vld [vmem:[%s10 + $0xbe8] sm:$0xf]
  %v4974 = vld [vmem:[%s10 + $0xbec] sm:$0xf]
  %v4975 = vld [vmem:[%s10 + $0xbf0] sm:$0xf]
  %v4976 = vld [vmem:[%s10 + $0xbf4] sm:$0xf]
  %v4977 = vld [vmem:[%s10 + $0xbf8] sm:$0xf]
  %v4978 = vld [vmem:[%s10 + $0xbfc] sm:$0xf]
  %v4980 = vunpack.c.l.b16 %v4187
  %v4981 = vunpack.c.h.b16 %v4187
  %v4982 = vpack.c.b16 %v4980, %v4980
  %v4983 = vpack.c.b16 %v4981, %v4981
  %v5018 = vunpack.c.l.b16 %v4211
  %v5019 = vunpack.c.l.b16 %v4212
  %v5020 = vunpack.c.l.b16 %v4213
  %v5021 = vunpack.c.l.b16 %v4214
  %v5022 = vunpack.c.l.b16 %v4215
  %v5023 = vunpack.c.l.b16 %v4216
  %v5024 = vunpack.c.l.b16 %v4217
  %v5025 = vunpack.c.l.b16 %v4218
  %v5026 = vunpack.c.l.b16 %v4219
  %v5027 = vunpack.c.l.b16 %v4220
  %v5028 = vunpack.c.l.b16 %v4221
  %v5029 = vunpack.c.l.b16 %v4222
  %v5030 = vunpack.c.l.b16 %v4223
  %v5031 = vunpack.c.l.b16 %v4224
  %v5032 = vunpack.c.l.b16 %v4225
  %v5033 = vunpack.c.l.b16 %v4226
  %v5034 = vunpack.c.l.b16 %v4227
  %v5035 = vunpack.c.l.b16 %v4228
  %v5036 = vunpack.c.l.b16 %v4229
  %v5037 = vunpack.c.l.b16 %v4230
  %v5038 = vunpack.c.l.b16 %v4231
  %v5039 = vunpack.c.l.b16 %v4232
  %v5040 = vunpack.c.l.b16 %v4233
  %v5041 = vunpack.c.l.b16 %v4234
  %v5042 = vunpack.c.l.b16 %v4235
  %v5043 = vunpack.c.l.b16 %v4236
  %v5044 = vunpack.c.l.b16 %v4237
  %v5045 = vunpack.c.l.b16 %v4238
  %v5046 = vunpack.c.l.b16 %v4239
  %v5047 = vunpack.c.l.b16 %v4240
  %v5048 = vunpack.c.l.b16 %v4241
  %v5049 = vunpack.c.l.b16 %v4242
  %v5050 = vpack.c.b16 %v5019, %v5018
  %v5051 = vpack.c.b16 %v5021, %v5020
  %v5052 = vpack.c.b16 %v5023, %v5022
  %v5053 = vpack.c.b16 %v5025, %v5024
  %v5054 = vpack.c.b16 %v5027, %v5026
  %v5055 = vpack.c.b16 %v5029, %v5028
  %v5056 = vpack.c.b16 %v5031, %v5030
  %v5057 = vpack.c.b16 %v5033, %v5032
  %v5058 = vpack.c.b16 %v5035, %v5034
  %v5059 = vpack.c.b16 %v5037, %v5036
  %v5060 = vpack.c.b16 %v5039, %v5038
  %v5061 = vpack.c.b16 %v5041, %v5040
  %v5062 = vpack.c.b16 %v5043, %v5042
  %v5063 = vpack.c.b16 %v5045, %v5044
  %v5064 = vpack.c.b16 %v5047, %v5046
  %v5065 = vpack.c.b16 %v5049, %v5048
  %5082 = vmatpush.bf16.msra.mxu0 %v5057
  %5083 = vmatpush.bf16.msra.mxu0 %v5056
  %5084 = vmatpush.bf16.msra.mxu0 %v5055
  %5085 = vmatpush.bf16.msra.mxu0 %v5054
  %5086 = vmatpush.bf16.msra.mxu0 %v5053
  %5087 = vmatpush.bf16.msra.mxu0 %v5052
  %5088 = vmatpush.bf16.msra.mxu0 %v5051
  %5089 = vmatpush.bf16.msra.mxu0 %v5050
  %5090 = vmatmul.bf16.gmra.mxu0 %v4982
  %v5091 = vpop.f32.mrf.mxu0
  %v5092 = vadd.f32 0.0, %v5091
  %v5093 = vpop.f32.mrf.mxu0
  %5094 = vdwg.mxu0
  %5095 = vmatpush.bf16.msra.mxu0 %v5065
  %5096 = vmatpush.bf16.msra.mxu0 %v5064
  %5097 = vmatpush.bf16.msra.mxu0 %v5063
  %5098 = vmatpush.bf16.msra.mxu0 %v5062
  %5099 = vmatpush.bf16.msra.mxu0 %v5061
  %5100 = vmatpush.bf16.msra.mxu0 %v5060
  %5101 = vmatpush.bf16.msra.mxu0 %v5059
  %5102 = vmatpush.bf16.msra.mxu0 %v5058
  %5103 = vmatmul.bf16.gmra.mxu0 %v4983
  %v5104 = vpop.f32.mrf.mxu0
  %v5105 = vadd.f32 %v5092, %v5104
  %v5106 = vpop.f32.mrf.mxu0
  %5107 = vdwg.mxu0
  %v5109 = vunpack.c.l.b16 %v4188
  %v5110 = vunpack.c.h.b16 %v4188
  %v5111 = vpack.c.b16 %v5109, %v5109
  %v5112 = vpack.c.b16 %v5110, %v5110
  %v5147 = vunpack.c.l.b16 %v4243
  %v5148 = vunpack.c.l.b16 %v4244
  %v5149 = vunpack.c.l.b16 %v4245
  %v5150 = vunpack.c.l.b16 %v4246
  %v5151 = vunpack.c.l.b16 %v4247
  %v5152 = vunpack.c.l.b16 %v4248
  %v5153 = vunpack.c.l.b16 %v4249
  %v5154 = vunpack.c.l.b16 %v4250
  %v5155 = vunpack.c.l.b16 %v4251
  %v5156 = vunpack.c.l.b16 %v4252
  %v5157 = vunpack.c.l.b16 %v4253
  %v5158 = vunpack.c.l.b16 %v4254
  %v5159 = vunpack.c.l.b16 %v4255
  %v5160 = vunpack.c.l.b16 %v4256
  %v5161 = vunpack.c.l.b16 %v4257
  %v5162 = vunpack.c.l.b16 %v4258
  %v5163 = vunpack.c.l.b16 %v4259
  %v5164 = vunpack.c.l.b16 %v4260
  %v5165 = vunpack.c.l.b16 %v4261
  %v5166 = vunpack.c.l.b16 %v4262
  %v5167 = vunpack.c.l.b16 %v4263
  %v5168 = vunpack.c.l.b16 %v4264
  %v5169 = vunpack.c.l.b16 %v4265
  %v5170 = vunpack.c.l.b16 %v4266
  %v5171 = vunpack.c.l.b16 %v4267
  %v5172 = vunpack.c.l.b16 %v4268
  %v5173 = vunpack.c.l.b16 %v4269
  %v5174 = vunpack.c.l.b16 %v4270
  %v5175 = vunpack.c.l.b16 %v4271
  %v5176 = vunpack.c.l.b16 %v4272
  %v5177 = vunpack.c.l.b16 %v4273
  %v5178 = vunpack.c.l.b16 %v4274
  %v5179 = vpack.c.b16 %v5148, %v5147
  %v5180 = vpack.c.b16 %v5150, %v5149
  %v5181 = vpack.c.b16 %v5152, %v5151
  %v5182 = vpack.c.b16 %v5154, %v5153
  %v5183 = vpack.c.b16 %v5156, %v5155
  %v5184 = vpack.c.b16 %v5158, %v5157
  %v5185 = vpack.c.b16 %v5160, %v5159
  %v5186 = vpack.c.b16 %v5162, %v5161
  %v5187 = vpack.c.b16 %v5164, %v5163
  %v5188 = vpack.c.b16 %v5166, %v5165
  %v5189 = vpack.c.b16 %v5168, %v5167
  %v5190 = vpack.c.b16 %v5170, %v5169
  %v5191 = vpack.c.b16 %v5172, %v5171
  %v5192 = vpack.c.b16 %v5174, %v5173
  %v5193 = vpack.c.b16 %v5176, %v5175
  %v5194 = vpack.c.b16 %v5178, %v5177
  %5211 = vmatpush.bf16.msra.mxu0 %v5186
  %5212 = vmatpush.bf16.msra.mxu0 %v5185
  %5213 = vmatpush.bf16.msra.mxu0 %v5184
  %5214 = vmatpush.bf16.msra.mxu0 %v5183
  %5215 = vmatpush.bf16.msra.mxu0 %v5182
  %5216 = vmatpush.bf16.msra.mxu0 %v5181
  %5217 = vmatpush.bf16.msra.mxu0 %v5180
  %5218 = vmatpush.bf16.msra.mxu0 %v5179
  %5219 = vmatmul.bf16.gmra.mxu0 %v5111
  %v5220 = vpop.f32.mrf.mxu0
  %v5221 = vadd.f32 0.0, %v5220
  %v5222 = vpop.f32.mrf.mxu0
  %5223 = vdwg.mxu0
  %5224 = vmatpush.bf16.msra.mxu0 %v5194
  %5225 = vmatpush.bf16.msra.mxu0 %v5193
  %5226 = vmatpush.bf16.msra.mxu0 %v5192
  %5227 = vmatpush.bf16.msra.mxu0 %v5191
  %5228 = vmatpush.bf16.msra.mxu0 %v5190
  %5229 = vmatpush.bf16.msra.mxu0 %v5189
  %5230 = vmatpush.bf16.msra.mxu0 %v5188
  %5231 = vmatpush.bf16.msra.mxu0 %v5187
  %5232 = vmatmul.bf16.gmra.mxu0 %v5112
  %v5233 = vpop.f32.mrf.mxu0
  %v5234 = vadd.f32 %v5221, %v5233
  %v5235 = vpop.f32.mrf.mxu0
  %5236 = vdwg.mxu0
  %v5238 = vunpack.c.l.b16 %v4189
  %v5239 = vunpack.c.h.b16 %v4189
  %v5240 = vpack.c.b16 %v5238, %v5238
  %v5241 = vpack.c.b16 %v5239, %v5239
  %v5276 = vunpack.c.l.b16 %v4275
  %v5277 = vunpack.c.l.b16 %v4276
  %v5278 = vunpack.c.l.b16 %v4277
  %v5279 = vunpack.c.l.b16 %v4278
  %v5280 = vunpack.c.l.b16 %v4279
  %v5281 = vunpack.c.l.b16 %v4280
  %v5282 = vunpack.c.l.b16 %v4281
  %v5283 = vunpack.c.l.b16 %v4282
  %v5284 = vunpack.c.l.b16 %v4283
  %v5285 = vunpack.c.l.b16 %v4284
  %v5286 = vunpack.c.l.b16 %v4285
  %v5287 = vunpack.c.l.b16 %v4286
  %v5288 = vunpack.c.l.b16 %v4287
  %v5289 = vunpack.c.l.b16 %v4288
  %v5290 = vunpack.c.l.b16 %v4289
  %v5291 = vunpack.c.l.b16 %v4290
  %v5292 = vunpack.c.l.b16 %v4291
  %v5293 = vunpack.c.l.b16 %v4292
  %v5294 = vunpack.c.l.b16 %v4293
  %v5295 = vunpack.c.l.b16 %v4294
  %v5296 = vunpack.c.l.b16 %v4295
  %v5297 = vunpack.c.l.b16 %v4296
  %v5298 = vunpack.c.l.b16 %v4297
  %v5299 = vunpack.c.l.b16 %v4298
  %v5300 = vunpack.c.l.b16 %v4299
  %v5301 = vunpack.c.l.b16 %v4300
  %v5302 = vunpack.c.l.b16 %v4301
  %v5303 = vunpack.c.l.b16 %v4302
  %v5304 = vunpack.c.l.b16 %v4303
  %v5305 = vunpack.c.l.b16 %v4304
  %v5306 = vunpack.c.l.b16 %v4305
  %v5307 = vunpack.c.l.b16 %v4306
  %v5308 = vpack.c.b16 %v5277, %v5276
  %v5309 = vpack.c.b16 %v5279, %v5278
  %v5310 = vpack.c.b16 %v5281, %v5280
  %v5311 = vpack.c.b16 %v5283, %v5282
  %v5312 = vpack.c.b16 %v5285, %v5284
  %v5313 = vpack.c.b16 %v5287, %v5286
  %v5314 = vpack.c.b16 %v5289, %v5288
  %v5315 = vpack.c.b16 %v5291, %v5290
  %v5316 = vpack.c.b16 %v5293, %v5292
  %v5317 = vpack.c.b16 %v5295, %v5294
  %v5318 = vpack.c.b16 %v5297, %v5296
  %v5319 = vpack.c.b16 %v5299, %v5298
  %v5320 = vpack.c.b16 %v5301, %v5300
  %v5321 = vpack.c.b16 %v5303, %v5302
  %v5322 = vpack.c.b16 %v5305, %v5304
  %v5323 = vpack.c.b16 %v5307, %v5306
  %5340 = vmatpush.bf16.msra.mxu0 %v5315
  %5341 = vmatpush.bf16.msra.mxu0 %v5314
  %5342 = vmatpush.bf16.msra.mxu0 %v5313
  %5343 = vmatpush.bf16.msra.mxu0 %v5312
  %5344 = vmatpush.bf16.msra.mxu0 %v5311
  %5345 = vmatpush.bf16.msra.mxu0 %v5310
  %5346 = vmatpush.bf16.msra.mxu0 %v5309
  %5347 = vmatpush.bf16.msra.mxu0 %v5308
  %5348 = vmatmul.bf16.gmra.mxu0 %v5240
  %v5349 = vpop.f32.mrf.mxu0
  %v5350 = vadd.f32 0.0, %v5349
  %v5351 = vpop.f32.mrf.mxu0
  %5352 = vdwg.mxu0
  %5353 = vmatpush.bf16.msra.mxu0 %v5323
  %5354 = vmatpush.bf16.msra.mxu0 %v5322
  %5355 = vmatpush.bf16.msra.mxu0 %v5321
  %5356 = vmatpush.bf16.msra.mxu0 %v5320
  %5357 = vmatpush.bf16.msra.mxu0 %v5319
  %5358 = vmatpush.bf16.msra.mxu0 %v5318
  %5359 = vmatpush.bf16.msra.mxu0 %v5317
  %5360 = vmatpush.bf16.msra.mxu0 %v5316
  %5361 = vmatmul.bf16.gmra.mxu0 %v5241
  %v5362 = vpop.f32.mrf.mxu0
  %v5363 = vadd.f32 %v5350, %v5362
  %v5364 = vpop.f32.mrf.mxu0
  %5365 = vdwg.mxu0
  %v5367 = vunpack.c.l.b16 %v4190
  %v5368 = vunpack.c.h.b16 %v4190
  %v5369 = vpack.c.b16 %v5367, %v5367
  %v5370 = vpack.c.b16 %v5368, %v5368
  %v5405 = vunpack.c.l.b16 %v4307
  %v5406 = vunpack.c.l.b16 %v4308
  %v5407 = vunpack.c.l.b16 %v4309
  %v5408 = vunpack.c.l.b16 %v4310
  %v5409 = vunpack.c.l.b16 %v4311
  %v5410 = vunpack.c.l.b16 %v4312
  %v5411 = vunpack.c.l.b16 %v4313
  %v5412 = vunpack.c.l.b16 %v4314
  %v5413 = vunpack.c.l.b16 %v4315
  %v5414 = vunpack.c.l.b16 %v4316
  %v5415 = vunpack.c.l.b16 %v4317
  %v5416 = vunpack.c.l.b16 %v4318
  %v5417 = vunpack.c.l.b16 %v4319
  %v5418 = vunpack.c.l.b16 %v4320
  %v5419 = vunpack.c.l.b16 %v4321
  %v5420 = vunpack.c.l.b16 %v4322
  %v5421 = vunpack.c.l.b16 %v4323
  %v5422 = vunpack.c.l.b16 %v4324
  %v5423 = vunpack.c.l.b16 %v4325
  %v5424 = vunpack.c.l.b16 %v4326
  %v5425 = vunpack.c.l.b16 %v4327
  %v5426 = vunpack.c.l.b16 %v4328
  %v5427 = vunpack.c.l.b16 %v4329
  %v5428 = vunpack.c.l.b16 %v4330
  %v5429 = vunpack.c.l.b16 %v4331
  %v5430 = vunpack.c.l.b16 %v4332
  %v5431 = vunpack.c.l.b16 %v4333
  %v5432 = vunpack.c.l.b16 %v4334
  %v5433 = vunpack.c.l.b16 %v4335
  %v5434 = vunpack.c.l.b16 %v4336
  %v5435 = vunpack.c.l.b16 %v4337
  %v5436 = vunpack.c.l.b16 %v4338
  %v5437 = vpack.c.b16 %v5406, %v5405
  %v5438 = vpack.c.b16 %v5408, %v5407
  %v5439 = vpack.c.b16 %v5410, %v5409
  %v5440 = vpack.c.b16 %v5412, %v5411
  %v5441 = vpack.c.b16 %v5414, %v5413
  %v5442 = vpack.c.b16 %v5416, %v5415
  %v5443 = vpack.c.b16 %v5418, %v5417
  %v5444 = vpack.c.b16 %v5420, %v5419
  %v5445 = vpack.c.b16 %v5422, %v5421
  %v5446 = vpack.c.b16 %v5424, %v5423
  %v5447 = vpack.c.b16 %v5426, %v5425
  %v5448 = vpack.c.b16 %v5428, %v5427
  %v5449 = vpack.c.b16 %v5430, %v5429
  %v5450 = vpack.c.b16 %v5432, %v5431
  %v5451 = vpack.c.b16 %v5434, %v5433
  %v5452 = vpack.c.b16 %v5436, %v5435
  %5469 = vmatpush.bf16.msra.mxu0 %v5444
  %5470 = vmatpush.bf16.msra.mxu0 %v5443
  %5471 = vmatpush.bf16.msra.mxu0 %v5442
  %5472 = vmatpush.bf16.msra.mxu0 %v5441
  %5473 = vmatpush.bf16.msra.mxu0 %v5440
  %5474 = vmatpush.bf16.msra.mxu0 %v5439
  %5475 = vmatpush.bf16.msra.mxu0 %v5438
  %5476 = vmatpush.bf16.msra.mxu0 %v5437
  %5477 = vmatmul.bf16.gmra.mxu0 %v5369
  %v5478 = vpop.f32.mrf.mxu0
  %v5479 = vadd.f32 0.0, %v5478
  %v5480 = vpop.f32.mrf.mxu0
  %5481 = vdwg.mxu0
  %5482 = vmatpush.bf16.msra.mxu0 %v5452
  %5483 = vmatpush.bf16.msra.mxu0 %v5451
  %5484 = vmatpush.bf16.msra.mxu0 %v5450
  %5485 = vmatpush.bf16.msra.mxu0 %v5449
  %5486 = vmatpush.bf16.msra.mxu0 %v5448
  %5487 = vmatpush.bf16.msra.mxu0 %v5447
  %5488 = vmatpush.bf16.msra.mxu0 %v5446
  %5489 = vmatpush.bf16.msra.mxu0 %v5445
  %5490 = vmatmul.bf16.gmra.mxu0 %v5370
  %v5491 = vpop.f32.mrf.mxu0
  %v5492 = vadd.f32 %v5479, %v5491
  %v5493 = vpop.f32.mrf.mxu0
  %5494 = vdwg.mxu0
  %v5496 = vunpack.c.l.b16 %v4191
  %v5497 = vunpack.c.h.b16 %v4191
  %v5498 = vpack.c.b16 %v5496, %v5496
  %v5499 = vpack.c.b16 %v5497, %v5497
  %v5534 = vunpack.c.l.b16 %v4339
  %v5535 = vunpack.c.l.b16 %v4340
  %v5536 = vunpack.c.l.b16 %v4341
  %v5537 = vunpack.c.l.b16 %v4342
  %v5538 = vunpack.c.l.b16 %v4343
  %v5539 = vunpack.c.l.b16 %v4344
  %v5540 = vunpack.c.l.b16 %v4345
  %v5541 = vunpack.c.l.b16 %v4346
  %v5542 = vunpack.c.l.b16 %v4347
  %v5543 = vunpack.c.l.b16 %v4348
  %v5544 = vunpack.c.l.b16 %v4349
  %v5545 = vunpack.c.l.b16 %v4350
  %v5546 = vunpack.c.l.b16 %v4351
  %v5547 = vunpack.c.l.b16 %v4352
  %v5548 = vunpack.c.l.b16 %v4353
  %v5549 = vunpack.c.l.b16 %v4354
  %v5550 = vunpack.c.l.b16 %v4355
  %v5551 = vunpack.c.l.b16 %v4356
  %v5552 = vunpack.c.l.b16 %v4357
  %v5553 = vunpack.c.l.b16 %v4358
  %v5554 = vunpack.c.l.b16 %v4359
  %v5555 = vunpack.c.l.b16 %v4360
  %v5556 = vunpack.c.l.b16 %v4361
  %v5557 = vunpack.c.l.b16 %v4362
  %v5558 = vunpack.c.l.b16 %v4363
  %v5559 = vunpack.c.l.b16 %v4364
  %v5560 = vunpack.c.l.b16 %v4365
  %v5561 = vunpack.c.l.b16 %v4366
  %v5562 = vunpack.c.l.b16 %v4367
  %v5563 = vunpack.c.l.b16 %v4368
  %v5564 = vunpack.c.l.b16 %v4369
  %v5565 = vunpack.c.l.b16 %v4370
  %v5566 = vpack.c.b16 %v5535, %v5534
  %v5567 = vpack.c.b16 %v5537, %v5536
  %v5568 = vpack.c.b16 %v5539, %v5538
  %v5569 = vpack.c.b16 %v5541, %v5540
  %v5570 = vpack.c.b16 %v5543, %v5542
  %v5571 = vpack.c.b16 %v5545, %v5544
  %v5572 = vpack.c.b16 %v5547, %v5546
  %v5573 = vpack.c.b16 %v5549, %v5548
  %v5574 = vpack.c.b16 %v5551, %v5550
  %v5575 = vpack.c.b16 %v5553, %v5552
  %v5576 = vpack.c.b16 %v5555, %v5554
  %v5577 = vpack.c.b16 %v5557, %v5556
  %v5578 = vpack.c.b16 %v5559, %v5558
  %v5579 = vpack.c.b16 %v5561, %v5560
  %v5580 = vpack.c.b16 %v5563, %v5562
  %v5581 = vpack.c.b16 %v5565, %v5564
  %5598 = vmatpush.bf16.msra.mxu0 %v5573
  %5599 = vmatpush.bf16.msra.mxu0 %v5572
  %5600 = vmatpush.bf16.msra.mxu0 %v5571
  %5601 = vmatpush.bf16.msra.mxu0 %v5570
  %5602 = vmatpush.bf16.msra.mxu0 %v5569
  %5603 = vmatpush.bf16.msra.mxu0 %v5568
  %5604 = vmatpush.bf16.msra.mxu0 %v5567
  %5605 = vmatpush.bf16.msra.mxu0 %v5566
  %5606 = vmatmul.bf16.gmra.mxu0 %v5498
  %v5607 = vpop.f32.mrf.mxu0
  %v5608 = vadd.f32 0.0, %v5607
  %v5609 = vpop.f32.mrf.mxu0
  %5610 = vdwg.mxu0
  %5611 = vmatpush.bf16.msra.mxu0 %v5581
  %5612 = vmatpush.bf16.msra.mxu0 %v5580
  %5613 = vmatpush.bf16.msra.mxu0 %v5579
  %5614 = vmatpush.bf16.msra.mxu0 %v5578
  %5615 = vmatpush.bf16.msra.mxu0 %v5577
  %5616 = vmatpush.bf16.msra.mxu0 %v5576
  %5617 = vmatpush.bf16.msra.mxu0 %v5575
  %5618 = vmatpush.bf16.msra.mxu0 %v5574
  %5619 = vmatmul.bf16.gmra.mxu0 %v5499
  %v5620 = vpop.f32.mrf.mxu0
  %v5621 = vadd.f32 %v5608, %v5620
  %v5622 = vpop.f32.mrf.mxu0
  %5623 = vdwg.mxu0
  %v5625 = vunpack.c.l.b16 %v4192
  %v5626 = vunpack.c.h.b16 %v4192
  %v5627 = vpack.c.b16 %v5625, %v5625
  %v5628 = vpack.c.b16 %v5626, %v5626
  %v5663 = vunpack.c.l.b16 %v4371
  %v5664 = vunpack.c.l.b16 %v4372
  %v5665 = vunpack.c.l.b16 %v4373
  %v5666 = vunpack.c.l.b16 %v4374
  %v5667 = vunpack.c.l.b16 %v4375
  %v5668 = vunpack.c.l.b16 %v4376
  %v5669 = vunpack.c.l.b16 %v4377
  %v5670 = vunpack.c.l.b16 %v4378
  %v5671 = vunpack.c.l.b16 %v4379
  %v5672 = vunpack.c.l.b16 %v4380
  %v5673 = vunpack.c.l.b16 %v4381
  %v5674 = vunpack.c.l.b16 %v4382
  %v5675 = vunpack.c.l.b16 %v4383
  %v5676 = vunpack.c.l.b16 %v4384
  %v5677 = vunpack.c.l.b16 %v4385
  %v5678 = vunpack.c.l.b16 %v4386
  %v5679 = vunpack.c.l.b16 %v4387
  %v5680 = vunpack.c.l.b16 %v4388
  %v5681 = vunpack.c.l.b16 %v4389
  %v5682 = vunpack.c.l.b16 %v4390
  %v5683 = vunpack.c.l.b16 %v4391
  %v5684 = vunpack.c.l.b16 %v4392
  %v5685 = vunpack.c.l.b16 %v4393
  %v5686 = vunpack.c.l.b16 %v4394
  %v5687 = vunpack.c.l.b16 %v4395
  %v5688 = vunpack.c.l.b16 %v4396
  %v5689 = vunpack.c.l.b16 %v4397
  %v5690 = vunpack.c.l.b16 %v4398
  %v5691 = vunpack.c.l.b16 %v4399
  %v5692 = vunpack.c.l.b16 %v4400
  %v5693 = vunpack.c.l.b16 %v4401
  %v5694 = vunpack.c.l.b16 %v4402
  %v5695 = vpack.c.b16 %v5664, %v5663
  %v5696 = vpack.c.b16 %v5666, %v5665
  %v5697 = vpack.c.b16 %v5668, %v5667
  %v5698 = vpack.c.b16 %v5670, %v5669
  %v5699 = vpack.c.b16 %v5672, %v5671
  %v5700 = vpack.c.b16 %v5674, %v5673
  %v5701 = vpack.c.b16 %v5676, %v5675
  %v5702 = vpack.c.b16 %v5678, %v5677
  %v5703 = vpack.c.b16 %v5680, %v5679
  %v5704 = vpack.c.b16 %v5682, %v5681
  %v5705 = vpack.c.b16 %v5684, %v5683
  %v5706 = vpack.c.b16 %v5686, %v5685
  %v5707 = vpack.c.b16 %v5688, %v5687
  %v5708 = vpack.c.b16 %v5690, %v5689
  %v5709 = vpack.c.b16 %v5692, %v5691
  %v5710 = vpack.c.b16 %v5694, %v5693
  %5727 = vmatpush.bf16.msra.mxu0 %v5702
  %5728 = vmatpush.bf16.msra.mxu0 %v5701
  %5729 = vmatpush.bf16.msra.mxu0 %v5700
  %5730 = vmatpush.bf16.msra.mxu0 %v5699
  %5731 = vmatpush.bf16.msra.mxu0 %v5698
  %5732 = vmatpush.bf16.msra.mxu0 %v5697
  %5733 = vmatpush.bf16.msra.mxu0 %v5696
  %5734 = vmatpush.bf16.msra.mxu0 %v5695
  %5735 = vmatmul.bf16.gmra.mxu0 %v5627
  %v5736 = vpop.f32.mrf.mxu0
  %v5737 = vadd.f32 0.0, %v5736
  %v5738 = vpop.f32.mrf.mxu0
  %5739 = vdwg.mxu0
  %5740 = vmatpush.bf16.msra.mxu0 %v5710
  %5741 = vmatpush.bf16.msra.mxu0 %v5709
  %5742 = vmatpush.bf16.msra.mxu0 %v5708
  %5743 = vmatpush.bf16.msra.mxu0 %v5707
  %5744 = vmatpush.bf16.msra.mxu0 %v5706
  %5745 = vmatpush.bf16.msra.mxu0 %v5705
  %5746 = vmatpush.bf16.msra.mxu0 %v5704
  %5747 = vmatpush.bf16.msra.mxu0 %v5703
  %5748 = vmatmul.bf16.gmra.mxu0 %v5628
  %v5749 = vpop.f32.mrf.mxu0
  %v5750 = vadd.f32 %v5737, %v5749
  %v5751 = vpop.f32.mrf.mxu0
  %5752 = vdwg.mxu0
  %v5754 = vunpack.c.l.b16 %v4193
  %v5755 = vunpack.c.h.b16 %v4193
  %v5756 = vpack.c.b16 %v5754, %v5754
  %v5757 = vpack.c.b16 %v5755, %v5755
  %v5792 = vunpack.c.l.b16 %v4403
  %v5793 = vunpack.c.l.b16 %v4404
  %v5794 = vunpack.c.l.b16 %v4405
  %v5795 = vunpack.c.l.b16 %v4406
  %v5796 = vunpack.c.l.b16 %v4407
  %v5797 = vunpack.c.l.b16 %v4408
  %v5798 = vunpack.c.l.b16 %v4409
  %v5799 = vunpack.c.l.b16 %v4410
  %v5800 = vunpack.c.l.b16 %v4411
  %v5801 = vunpack.c.l.b16 %v4412
  %v5802 = vunpack.c.l.b16 %v4413
  %v5803 = vunpack.c.l.b16 %v4414
  %v5804 = vunpack.c.l.b16 %v4415
  %v5805 = vunpack.c.l.b16 %v4416
  %v5806 = vunpack.c.l.b16 %v4417
  %v5807 = vunpack.c.l.b16 %v4418
  %v5808 = vunpack.c.l.b16 %v4419
  %v5809 = vunpack.c.l.b16 %v4420
  %v5810 = vunpack.c.l.b16 %v4421
  %v5811 = vunpack.c.l.b16 %v4422
  %v5812 = vunpack.c.l.b16 %v4423
  %v5813 = vunpack.c.l.b16 %v4424
  %v5814 = vunpack.c.l.b16 %v4425
  %v5815 = vunpack.c.l.b16 %v4426
  %v5816 = vunpack.c.l.b16 %v4427
  %v5817 = vunpack.c.l.b16 %v4428
  %v5818 = vunpack.c.l.b16 %v4429
  %v5819 = vunpack.c.l.b16 %v4430
  %v5820 = vunpack.c.l.b16 %v4431
  %v5821 = vunpack.c.l.b16 %v4432
  %v5822 = vunpack.c.l.b16 %v4433
  %v5823 = vunpack.c.l.b16 %v4434
  %v5824 = vpack.c.b16 %v5793, %v5792
  %v5825 = vpack.c.b16 %v5795, %v5794
  %v5826 = vpack.c.b16 %v5797, %v5796
  %v5827 = vpack.c.b16 %v5799, %v5798
  %v5828 = vpack.c.b16 %v5801, %v5800
  %v5829 = vpack.c.b16 %v5803, %v5802
  %v5830 = vpack.c.b16 %v5805, %v5804
  %v5831 = vpack.c.b16 %v5807, %v5806
  %v5832 = vpack.c.b16 %v5809, %v5808
  %v5833 = vpack.c.b16 %v5811, %v5810
  %v5834 = vpack.c.b16 %v5813, %v5812
  %v5835 = vpack.c.b16 %v5815, %v5814
  %v5836 = vpack.c.b16 %v5817, %v5816
  %v5837 = vpack.c.b16 %v5819, %v5818
  %v5838 = vpack.c.b16 %v5821, %v5820
  %v5839 = vpack.c.b16 %v5823, %v5822
  %5856 = vmatpush.bf16.msra.mxu0 %v5831
  %5857 = vmatpush.bf16.msra.mxu0 %v5830
  %5858 = vmatpush.bf16.msra.mxu0 %v5829
  %5859 = vmatpush.bf16.msra.mxu0 %v5828
  %5860 = vmatpush.bf16.msra.mxu0 %v5827
  %5861 = vmatpush.bf16.msra.mxu0 %v5826
  %5862 = vmatpush.bf16.msra.mxu0 %v5825
  %5863 = vmatpush.bf16.msra.mxu0 %v5824
  %5864 = vmatmul.bf16.gmra.mxu0 %v5756
  %v5865 = vpop.f32.mrf.mxu0
  %v5866 = vadd.f32 0.0, %v5865
  %v5867 = vpop.f32.mrf.mxu0
  %5868 = vdwg.mxu0
  %5869 = vmatpush.bf16.msra.mxu0 %v5839
  %5870 = vmatpush.bf16.msra.mxu0 %v5838
  %5871 = vmatpush.bf16.msra.mxu0 %v5837
  %5872 = vmatpush.bf16.msra.mxu0 %v5836
  %5873 = vmatpush.bf16.msra.mxu0 %v5835
  %5874 = vmatpush.bf16.msra.mxu0 %v5834
  %5875 = vmatpush.bf16.msra.mxu0 %v5833
  %5876 = vmatpush.bf16.msra.mxu0 %v5832
  %5877 = vmatmul.bf16.gmra.mxu0 %v5757
  %v5878 = vpop.f32.mrf.mxu0
  %v5879 = vadd.f32 %v5866, %v5878
  %v5880 = vpop.f32.mrf.mxu0
  %5881 = vdwg.mxu0
  %v5883 = vunpack.c.l.b16 %v4194
  %v5884 = vunpack.c.h.b16 %v4194
  %v5885 = vpack.c.b16 %v5883, %v5883
  %v5886 = vpack.c.b16 %v5884, %v5884
  %v5921 = vunpack.c.l.b16 %v4435
  %v5922 = vunpack.c.l.b16 %v4436
  %v5923 = vunpack.c.l.b16 %v4437
  %v5924 = vunpack.c.l.b16 %v4438
  %v5925 = vunpack.c.l.b16 %v4439
  %v5926 = vunpack.c.l.b16 %v4440
  %v5927 = vunpack.c.l.b16 %v4441
  %v5928 = vunpack.c.l.b16 %v4442
  %v5929 = vunpack.c.l.b16 %v4443
  %v5930 = vunpack.c.l.b16 %v4444
  %v5931 = vunpack.c.l.b16 %v4445
  %v5932 = vunpack.c.l.b16 %v4446
  %v5933 = vunpack.c.l.b16 %v4447
  %v5934 = vunpack.c.l.b16 %v4448
  %v5935 = vunpack.c.l.b16 %v4449
  %v5936 = vunpack.c.l.b16 %v4450
  %v5937 = vunpack.c.l.b16 %v4451
  %v5938 = vunpack.c.l.b16 %v4452
  %v5939 = vunpack.c.l.b16 %v4453
  %v5940 = vunpack.c.l.b16 %v4454
  %v5941 = vunpack.c.l.b16 %v4455
  %v5942 = vunpack.c.l.b16 %v4456
  %v5943 = vunpack.c.l.b16 %v4457
  %v5944 = vunpack.c.l.b16 %v4458
  %v5945 = vunpack.c.l.b16 %v4459
  %v5946 = vunpack.c.l.b16 %v4460
  %v5947 = vunpack.c.l.b16 %v4461
  %v5948 = vunpack.c.l.b16 %v4462
  %v5949 = vunpack.c.l.b16 %v4463
  %v5950 = vunpack.c.l.b16 %v4464
  %v5951 = vunpack.c.l.b16 %v4465
  %v5952 = vunpack.c.l.b16 %v4466
  %v5953 = vpack.c.b16 %v5922, %v5921
  %v5954 = vpack.c.b16 %v5924, %v5923
  %v5955 = vpack.c.b16 %v5926, %v5925
  %v5956 = vpack.c.b16 %v5928, %v5927
  %v5957 = vpack.c.b16 %v5930, %v5929
  %v5958 = vpack.c.b16 %v5932, %v5931
  %v5959 = vpack.c.b16 %v5934, %v5933
  %v5960 = vpack.c.b16 %v5936, %v5935
  %v5961 = vpack.c.b16 %v5938, %v5937
  %v5962 = vpack.c.b16 %v5940, %v5939
  %v5963 = vpack.c.b16 %v5942, %v5941
  %v5964 = vpack.c.b16 %v5944, %v5943
  %v5965 = vpack.c.b16 %v5946, %v5945
  %v5966 = vpack.c.b16 %v5948, %v5947
  %v5967 = vpack.c.b16 %v5950, %v5949
  %v5968 = vpack.c.b16 %v5952, %v5951
  %5985 = vmatpush.bf16.msra.mxu0 %v5960
  %5986 = vmatpush.bf16.msra.mxu0 %v5959
  %5987 = vmatpush.bf16.msra.mxu0 %v5958
  %5988 = vmatpush.bf16.msra.mxu0 %v5957
  %5989 = vmatpush.bf16.msra.mxu0 %v5956
  %5990 = vmatpush.bf16.msra.mxu0 %v5955
  %5991 = vmatpush.bf16.msra.mxu0 %v5954
  %5992 = vmatpush.bf16.msra.mxu0 %v5953
  %5993 = vmatmul.bf16.gmra.mxu0 %v5885
  %v5994 = vpop.f32.mrf.mxu0
  %v5995 = vadd.f32 0.0, %v5994
  %v5996 = vpop.f32.mrf.mxu0
  %5997 = vdwg.mxu0
  %5998 = vmatpush.bf16.msra.mxu0 %v5968
  %5999 = vmatpush.bf16.msra.mxu0 %v5967
  %6000 = vmatpush.bf16.msra.mxu0 %v5966
  %6001 = vmatpush.bf16.msra.mxu0 %v5965
  %6002 = vmatpush.bf16.msra.mxu0 %v5964
  %6003 = vmatpush.bf16.msra.mxu0 %v5963
  %6004 = vmatpush.bf16.msra.mxu0 %v5962
  %6005 = vmatpush.bf16.msra.mxu0 %v5961
  %6006 = vmatmul.bf16.gmra.mxu0 %v5886
  %v6007 = vpop.f32.mrf.mxu0
  %v6008 = vadd.f32 %v5995, %v6007
  %v6009 = vpop.f32.mrf.mxu0
  %6010 = vdwg.mxu0
  %v6012 = vunpack.c.l.b16 %v4195
  %v6013 = vunpack.c.h.b16 %v4195
  %v6014 = vpack.c.b16 %v6012, %v6012
  %v6015 = vpack.c.b16 %v6013, %v6013
  %v6050 = vunpack.c.l.b16 %v4467
  %v6051 = vunpack.c.l.b16 %v4468
  %v6052 = vunpack.c.l.b16 %v4469
  %v6053 = vunpack.c.l.b16 %v4470
  %v6054 = vunpack.c.l.b16 %v4471
  %v6055 = vunpack.c.l.b16 %v4472
  %v6056 = vunpack.c.l.b16 %v4473
  %v6057 = vunpack.c.l.b16 %v4474
  %v6058 = vunpack.c.l.b16 %v4475
  %v6059 = vunpack.c.l.b16 %v4476
  %v6060 = vunpack.c.l.b16 %v4477
  %v6061 = vunpack.c.l.b16 %v4478
  %v6062 = vunpack.c.l.b16 %v4479
  %v6063 = vunpack.c.l.b16 %v4480
  %v6064 = vunpack.c.l.b16 %v4481
  %v6065 = vunpack.c.l.b16 %v4482
  %v6066 = vunpack.c.l.b16 %v4483
  %v6067 = vunpack.c.l.b16 %v4484
  %v6068 = vunpack.c.l.b16 %v4485
  %v6069 = vunpack.c.l.b16 %v4486
  %v6070 = vunpack.c.l.b16 %v4487
  %v6071 = vunpack.c.l.b16 %v4488
  %v6072 = vunpack.c.l.b16 %v4489
  %v6073 = vunpack.c.l.b16 %v4490
  %v6074 = vunpack.c.l.b16 %v4491
  %v6075 = vunpack.c.l.b16 %v4492
  %v6076 = vunpack.c.l.b16 %v4493
  %v6077 = vunpack.c.l.b16 %v4494
  %v6078 = vunpack.c.l.b16 %v4495
  %v6079 = vunpack.c.l.b16 %v4496
  %v6080 = vunpack.c.l.b16 %v4497
  %v6081 = vunpack.c.l.b16 %v4498
  %v6082 = vpack.c.b16 %v6051, %v6050
  %v6083 = vpack.c.b16 %v6053, %v6052
  %v6084 = vpack.c.b16 %v6055, %v6054
  %v6085 = vpack.c.b16 %v6057, %v6056
  %v6086 = vpack.c.b16 %v6059, %v6058
  %v6087 = vpack.c.b16 %v6061, %v6060
  %v6088 = vpack.c.b16 %v6063, %v6062
  %v6089 = vpack.c.b16 %v6065, %v6064
  %v6090 = vpack.c.b16 %v6067, %v6066
  %v6091 = vpack.c.b16 %v6069, %v6068
  %v6092 = vpack.c.b16 %v6071, %v6070
  %v6093 = vpack.c.b16 %v6073, %v6072
  %v6094 = vpack.c.b16 %v6075, %v6074
  %v6095 = vpack.c.b16 %v6077, %v6076
  %v6096 = vpack.c.b16 %v6079, %v6078
  %v6097 = vpack.c.b16 %v6081, %v6080
  %6114 = vmatpush.bf16.msra.mxu0 %v6089
  %6115 = vmatpush.bf16.msra.mxu0 %v6088
  %6116 = vmatpush.bf16.msra.mxu0 %v6087
  %6117 = vmatpush.bf16.msra.mxu0 %v6086
  %6118 = vmatpush.bf16.msra.mxu0 %v6085
  %6119 = vmatpush.bf16.msra.mxu0 %v6084
  %6120 = vmatpush.bf16.msra.mxu0 %v6083
  %6121 = vmatpush.bf16.msra.mxu0 %v6082
  %6122 = vmatmul.bf16.gmra.mxu0 %v6014
  %v6123 = vpop.f32.mrf.mxu0
  %v6124 = vadd.f32 0.0, %v6123
  %v6125 = vpop.f32.mrf.mxu0
  %6126 = vdwg.mxu0
  %6127 = vmatpush.bf16.msra.mxu0 %v6097
  %6128 = vmatpush.bf16.msra.mxu0 %v6096
  %6129 = vmatpush.bf16.msra.mxu0 %v6095
  %6130 = vmatpush.bf16.msra.mxu0 %v6094
  %6131 = vmatpush.bf16.msra.mxu0 %v6093
  %6132 = vmatpush.bf16.msra.mxu0 %v6092
  %6133 = vmatpush.bf16.msra.mxu0 %v6091
  %6134 = vmatpush.bf16.msra.mxu0 %v6090
  %6135 = vmatmul.bf16.gmra.mxu0 %v6015
  %v6136 = vpop.f32.mrf.mxu0
  %v6137 = vadd.f32 %v6124, %v6136
  %v6138 = vpop.f32.mrf.mxu0
  %6139 = vdwg.mxu0
  %v6141 = vunpack.c.l.b16 %v4196
  %v6142 = vunpack.c.h.b16 %v4196
  %v6143 = vpack.c.b16 %v6141, %v6141
  %v6144 = vpack.c.b16 %v6142, %v6142
  %v6179 = vunpack.c.l.b16 %v4499
  %v6180 = vunpack.c.l.b16 %v4500
  %v6181 = vunpack.c.l.b16 %v4501
  %v6182 = vunpack.c.l.b16 %v4502
  %v6183 = vunpack.c.l.b16 %v4503
  %v6184 = vunpack.c.l.b16 %v4504
  %v6185 = vunpack.c.l.b16 %v4505
  %v6186 = vunpack.c.l.b16 %v4506
  %v6187 = vunpack.c.l.b16 %v4507
  %v6188 = vunpack.c.l.b16 %v4508
  %v6189 = vunpack.c.l.b16 %v4509
  %v6190 = vunpack.c.l.b16 %v4510
  %v6191 = vunpack.c.l.b16 %v4511
  %v6192 = vunpack.c.l.b16 %v4512
  %v6193 = vunpack.c.l.b16 %v4513
  %v6194 = vunpack.c.l.b16 %v4514
  %v6195 = vunpack.c.l.b16 %v4515
  %v6196 = vunpack.c.l.b16 %v4516
  %v6197 = vunpack.c.l.b16 %v4517
  %v6198 = vunpack.c.l.b16 %v4518
  %v6199 = vunpack.c.l.b16 %v4519
  %v6200 = vunpack.c.l.b16 %v4520
  %v6201 = vunpack.c.l.b16 %v4521
  %v6202 = vunpack.c.l.b16 %v4522
  %v6203 = vunpack.c.l.b16 %v4523
  %v6204 = vunpack.c.l.b16 %v4524
  %v6205 = vunpack.c.l.b16 %v4525
  %v6206 = vunpack.c.l.b16 %v4526
  %v6207 = vunpack.c.l.b16 %v4527
  %v6208 = vunpack.c.l.b16 %v4528
  %v6209 = vunpack.c.l.b16 %v4529
  %v6210 = vunpack.c.l.b16 %v4530
  %v6211 = vpack.c.b16 %v6180, %v6179
  %v6212 = vpack.c.b16 %v6182, %v6181
  %v6213 = vpack.c.b16 %v6184, %v6183
  %v6214 = vpack.c.b16 %v6186, %v6185
  %v6215 = vpack.c.b16 %v6188, %v6187
  %v6216 = vpack.c.b16 %v6190, %v6189
  %v6217 = vpack.c.b16 %v6192, %v6191
  %v6218 = vpack.c.b16 %v6194, %v6193
  %v6219 = vpack.c.b16 %v6196, %v6195
  %v6220 = vpack.c.b16 %v6198, %v6197
  %v6221 = vpack.c.b16 %v6200, %v6199
  %v6222 = vpack.c.b16 %v6202, %v6201
  %v6223 = vpack.c.b16 %v6204, %v6203
  %v6224 = vpack.c.b16 %v6206, %v6205
  %v6225 = vpack.c.b16 %v6208, %v6207
  %v6226 = vpack.c.b16 %v6210, %v6209
  %6243 = vmatpush.bf16.msra.mxu0 %v6218
  %6244 = vmatpush.bf16.msra.mxu0 %v6217
  %6245 = vmatpush.bf16.msra.mxu0 %v6216
  %6246 = vmatpush.bf16.msra.mxu0 %v6215
  %6247 = vmatpush.bf16.msra.mxu0 %v6214
  %6248 = vmatpush.bf16.msra.mxu0 %v6213
  %6249 = vmatpush.bf16.msra.mxu0 %v6212
  %6250 = vmatpush.bf16.msra.mxu0 %v6211
  %6251 = vmatmul.bf16.gmra.mxu0 %v6143
  %v6252 = vpop.f32.mrf.mxu0
  %v6253 = vadd.f32 0.0, %v6252
  %v6254 = vpop.f32.mrf.mxu0
  %6255 = vdwg.mxu0
  %6256 = vmatpush.bf16.msra.mxu0 %v6226
  %6257 = vmatpush.bf16.msra.mxu0 %v6225
  %6258 = vmatpush.bf16.msra.mxu0 %v6224
  %6259 = vmatpush.bf16.msra.mxu0 %v6223
  %6260 = vmatpush.bf16.msra.mxu0 %v6222
  %6261 = vmatpush.bf16.msra.mxu0 %v6221
  %6262 = vmatpush.bf16.msra.mxu0 %v6220
  %6263 = vmatpush.bf16.msra.mxu0 %v6219
  %6264 = vmatmul.bf16.gmra.mxu0 %v6144
  %v6265 = vpop.f32.mrf.mxu0
  %v6266 = vadd.f32 %v6253, %v6265
  %v6267 = vpop.f32.mrf.mxu0
  %6268 = vdwg.mxu0
  %v6270 = vunpack.c.l.b16 %v4197
  %v6271 = vunpack.c.h.b16 %v4197
  %v6272 = vpack.c.b16 %v6270, %v6270
  %v6273 = vpack.c.b16 %v6271, %v6271
  %v6308 = vunpack.c.l.b16 %v4531
  %v6309 = vunpack.c.l.b16 %v4532
  %v6310 = vunpack.c.l.b16 %v4533
  %v6311 = vunpack.c.l.b16 %v4534
  %v6312 = vunpack.c.l.b16 %v4535
  %v6313 = vunpack.c.l.b16 %v4536
  %v6314 = vunpack.c.l.b16 %v4537
  %v6315 = vunpack.c.l.b16 %v4538
  %v6316 = vunpack.c.l.b16 %v4539
  %v6317 = vunpack.c.l.b16 %v4540
  %v6318 = vunpack.c.l.b16 %v4541
  %v6319 = vunpack.c.l.b16 %v4542
  %v6320 = vunpack.c.l.b16 %v4543
  %v6321 = vunpack.c.l.b16 %v4544
  %v6322 = vunpack.c.l.b16 %v4545
  %v6323 = vunpack.c.l.b16 %v4546
  %v6324 = vunpack.c.l.b16 %v4547
  %v6325 = vunpack.c.l.b16 %v4548
  %v6326 = vunpack.c.l.b16 %v4549
  %v6327 = vunpack.c.l.b16 %v4550
  %v6328 = vunpack.c.l.b16 %v4551
  %v6329 = vunpack.c.l.b16 %v4552
  %v6330 = vunpack.c.l.b16 %v4553
  %v6331 = vunpack.c.l.b16 %v4554
  %v6332 = vunpack.c.l.b16 %v4555
  %v6333 = vunpack.c.l.b16 %v4556
  %v6334 = vunpack.c.l.b16 %v4557
  %v6335 = vunpack.c.l.b16 %v4558
  %v6336 = vunpack.c.l.b16 %v4559
  %v6337 = vunpack.c.l.b16 %v4560
  %v6338 = vunpack.c.l.b16 %v4561
  %v6339 = vunpack.c.l.b16 %v4562
  %v6340 = vpack.c.b16 %v6309, %v6308
  %v6341 = vpack.c.b16 %v6311, %v6310
  %v6342 = vpack.c.b16 %v6313, %v6312
  %v6343 = vpack.c.b16 %v6315, %v6314
  %v6344 = vpack.c.b16 %v6317, %v6316
  %v6345 = vpack.c.b16 %v6319, %v6318
  %v6346 = vpack.c.b16 %v6321, %v6320
  %v6347 = vpack.c.b16 %v6323, %v6322
  %v6348 = vpack.c.b16 %v6325, %v6324
  %v6349 = vpack.c.b16 %v6327, %v6326
  %v6350 = vpack.c.b16 %v6329, %v6328
  %v6351 = vpack.c.b16 %v6331, %v6330
  %v6352 = vpack.c.b16 %v6333, %v6332
  %v6353 = vpack.c.b16 %v6335, %v6334
  %v6354 = vpack.c.b16 %v6337, %v6336
  %v6355 = vpack.c.b16 %v6339, %v6338
  %6372 = vmatpush.bf16.msra.mxu0 %v6347
  %6373 = vmatpush.bf16.msra.mxu0 %v6346
  %6374 = vmatpush.bf16.msra.mxu0 %v6345
  %6375 = vmatpush.bf16.msra.mxu0 %v6344
  %6376 = vmatpush.bf16.msra.mxu0 %v6343
  %6377 = vmatpush.bf16.msra.mxu0 %v6342
  %6378 = vmatpush.bf16.msra.mxu0 %v6341
  %6379 = vmatpush.bf16.msra.mxu0 %v6340
  %6380 = vmatmul.bf16.gmra.mxu0 %v6272
  %v6381 = vpop.f32.mrf.mxu0
  %v6382 = vadd.f32 0.0, %v6381
  %v6383 = vpop.f32.mrf.mxu0
  %6384 = vdwg.mxu0
  %6385 = vmatpush.bf16.msra.mxu0 %v6355
  %6386 = vmatpush.bf16.msra.mxu0 %v6354
  %6387 = vmatpush.bf16.msra.mxu0 %v6353
  %6388 = vmatpush.bf16.msra.mxu0 %v6352
  %6389 = vmatpush.bf16.msra.mxu0 %v6351
  %6390 = vmatpush.bf16.msra.mxu0 %v6350
  %6391 = vmatpush.bf16.msra.mxu0 %v6349
  %6392 = vmatpush.bf16.msra.mxu0 %v6348
  %6393 = vmatmul.bf16.gmra.mxu0 %v6273
  %v6394 = vpop.f32.mrf.mxu0
  %v6395 = vadd.f32 %v6382, %v6394
  %v6396 = vpop.f32.mrf.mxu0
  %6397 = vdwg.mxu0
  %v6399 = vunpack.c.l.b16 %v4198
  %v6400 = vunpack.c.h.b16 %v4198
  %v6401 = vpack.c.b16 %v6399, %v6399
  %v6402 = vpack.c.b16 %v6400, %v6400
  %v6437 = vunpack.c.l.b16 %v4563
  %v6438 = vunpack.c.l.b16 %v4564
  %v6439 = vunpack.c.l.b16 %v4565
  %v6440 = vunpack.c.l.b16 %v4566
  %v6441 = vunpack.c.l.b16 %v4567
  %v6442 = vunpack.c.l.b16 %v4568
  %v6443 = vunpack.c.l.b16 %v4569
  %v6444 = vunpack.c.l.b16 %v4570
  %v6445 = vunpack.c.l.b16 %v4571
  %v6446 = vunpack.c.l.b16 %v4572
  %v6447 = vunpack.c.l.b16 %v4573
  %v6448 = vunpack.c.l.b16 %v4574
  %v6449 = vunpack.c.l.b16 %v4575
  %v6450 = vunpack.c.l.b16 %v4576
  %v6451 = vunpack.c.l.b16 %v4577
  %v6452 = vunpack.c.l.b16 %v4578
  %v6453 = vunpack.c.l.b16 %v4579
  %v6454 = vunpack.c.l.b16 %v4580
  %v6455 = vunpack.c.l.b16 %v4581
  %v6456 = vunpack.c.l.b16 %v4582
  %v6457 = vunpack.c.l.b16 %v4583
  %v6458 = vunpack.c.l.b16 %v4584
  %v6459 = vunpack.c.l.b16 %v4585
  %v6460 = vunpack.c.l.b16 %v4586
  %v6461 = vunpack.c.l.b16 %v4587
  %v6462 = vunpack.c.l.b16 %v4588
  %v6463 = vunpack.c.l.b16 %v4589
  %v6464 = vunpack.c.l.b16 %v4590
  %v6465 = vunpack.c.l.b16 %v4591
  %v6466 = vunpack.c.l.b16 %v4592
  %v6467 = vunpack.c.l.b16 %v4593
  %v6468 = vunpack.c.l.b16 %v4594
  %v6469 = vpack.c.b16 %v6438, %v6437
  %v6470 = vpack.c.b16 %v6440, %v6439
  %v6471 = vpack.c.b16 %v6442, %v6441
  %v6472 = vpack.c.b16 %v6444, %v6443
  %v6473 = vpack.c.b16 %v6446, %v6445
  %v6474 = vpack.c.b16 %v6448, %v6447
  %v6475 = vpack.c.b16 %v6450, %v6449
  %v6476 = vpack.c.b16 %v6452, %v6451
  %v6477 = vpack.c.b16 %v6454, %v6453
  %v6478 = vpack.c.b16 %v6456, %v6455
  %v6479 = vpack.c.b16 %v6458, %v6457
  %v6480 = vpack.c.b16 %v6460, %v6459
  %v6481 = vpack.c.b16 %v6462, %v6461
  %v6482 = vpack.c.b16 %v6464, %v6463
  %v6483 = vpack.c.b16 %v6466, %v6465
  %v6484 = vpack.c.b16 %v6468, %v6467
  %6501 = vmatpush.bf16.msra.mxu0 %v6476
  %6502 = vmatpush.bf16.msra.mxu0 %v6475
  %6503 = vmatpush.bf16.msra.mxu0 %v6474
  %6504 = vmatpush.bf16.msra.mxu0 %v6473
  %6505 = vmatpush.bf16.msra.mxu0 %v6472
  %6506 = vmatpush.bf16.msra.mxu0 %v6471
  %6507 = vmatpush.bf16.msra.mxu0 %v6470
  %6508 = vmatpush.bf16.msra.mxu0 %v6469
  %6509 = vmatmul.bf16.gmra.mxu0 %v6401
  %v6510 = vpop.f32.mrf.mxu0
  %v6511 = vadd.f32 0.0, %v6510
  %v6512 = vpop.f32.mrf.mxu0
  %6513 = vdwg.mxu0
  %6514 = vmatpush.bf16.msra.mxu0 %v6484
  %6515 = vmatpush.bf16.msra.mxu0 %v6483
  %6516 = vmatpush.bf16.msra.mxu0 %v6482
  %6517 = vmatpush.bf16.msra.mxu0 %v6481
  %6518 = vmatpush.bf16.msra.mxu0 %v6480
  %6519 = vmatpush.bf16.msra.mxu0 %v6479
  %6520 = vmatpush.bf16.msra.mxu0 %v6478
  %6521 = vmatpush.bf16.msra.mxu0 %v6477
  %6522 = vmatmul.bf16.gmra.mxu0 %v6402
  %v6523 = vpop.f32.mrf.mxu0
  %v6524 = vadd.f32 %v6511, %v6523
  %v6525 = vpop.f32.mrf.mxu0
  %6526 = vdwg.mxu0
  %v6528 = vunpack.c.l.b16 %v4199
  %v6529 = vunpack.c.h.b16 %v4199
  %v6530 = vpack.c.b16 %v6528, %v6528
  %v6531 = vpack.c.b16 %v6529, %v6529
  %v6566 = vunpack.c.l.b16 %v4595
  %v6567 = vunpack.c.l.b16 %v4596
  %v6568 = vunpack.c.l.b16 %v4597
  %v6569 = vunpack.c.l.b16 %v4598
  %v6570 = vunpack.c.l.b16 %v4599
  %v6571 = vunpack.c.l.b16 %v4600
  %v6572 = vunpack.c.l.b16 %v4601
  %v6573 = vunpack.c.l.b16 %v4602
  %v6574 = vunpack.c.l.b16 %v4603
  %v6575 = vunpack.c.l.b16 %v4604
  %v6576 = vunpack.c.l.b16 %v4605
  %v6577 = vunpack.c.l.b16 %v4606
  %v6578 = vunpack.c.l.b16 %v4607
  %v6579 = vunpack.c.l.b16 %v4608
  %v6580 = vunpack.c.l.b16 %v4609
  %v6581 = vunpack.c.l.b16 %v4610
  %v6582 = vunpack.c.l.b16 %v4611
  %v6583 = vunpack.c.l.b16 %v4612
  %v6584 = vunpack.c.l.b16 %v4613
  %v6585 = vunpack.c.l.b16 %v4614
  %v6586 = vunpack.c.l.b16 %v4615
  %v6587 = vunpack.c.l.b16 %v4616
  %v6588 = vunpack.c.l.b16 %v4617
  %v6589 = vunpack.c.l.b16 %v4618
  %v6590 = vunpack.c.l.b16 %v4619
  %v6591 = vunpack.c.l.b16 %v4620
  %v6592 = vunpack.c.l.b16 %v4621
  %v6593 = vunpack.c.l.b16 %v4622
  %v6594 = vunpack.c.l.b16 %v4623
  %v6595 = vunpack.c.l.b16 %v4624
  %v6596 = vunpack.c.l.b16 %v4625
  %v6597 = vunpack.c.l.b16 %v4626
  %v6598 = vpack.c.b16 %v6567, %v6566
  %v6599 = vpack.c.b16 %v6569, %v6568
  %v6600 = vpack.c.b16 %v6571, %v6570
  %v6601 = vpack.c.b16 %v6573, %v6572
  %v6602 = vpack.c.b16 %v6575, %v6574
  %v6603 = vpack.c.b16 %v6577, %v6576
  %v6604 = vpack.c.b16 %v6579, %v6578
  %v6605 = vpack.c.b16 %v6581, %v6580
  %v6606 = vpack.c.b16 %v6583, %v6582
  %v6607 = vpack.c.b16 %v6585, %v6584
  %v6608 = vpack.c.b16 %v6587, %v6586
  %v6609 = vpack.c.b16 %v6589, %v6588
  %v6610 = vpack.c.b16 %v6591, %v6590
  %v6611 = vpack.c.b16 %v6593, %v6592
  %v6612 = vpack.c.b16 %v6595, %v6594
  %v6613 = vpack.c.b16 %v6597, %v6596
  %6630 = vmatpush.bf16.msra.mxu0 %v6605
  %6631 = vmatpush.bf16.msra.mxu0 %v6604
  %6632 = vmatpush.bf16.msra.mxu0 %v6603
  %6633 = vmatpush.bf16.msra.mxu0 %v6602
  %6634 = vmatpush.bf16.msra.mxu0 %v6601
  %6635 = vmatpush.bf16.msra.mxu0 %v6600
  %6636 = vmatpush.bf16.msra.mxu0 %v6599
  %6637 = vmatpush.bf16.msra.mxu0 %v6598
  %6638 = vmatmul.bf16.gmra.mxu0 %v6530
  %v6639 = vpop.f32.mrf.mxu0
  %v6640 = vadd.f32 0.0, %v6639
  %v6641 = vpop.f32.mrf.mxu0
  %6642 = vdwg.mxu0
  %6643 = vmatpush.bf16.msra.mxu0 %v6613
  %6644 = vmatpush.bf16.msra.mxu0 %v6612
  %6645 = vmatpush.bf16.msra.mxu0 %v6611
  %6646 = vmatpush.bf16.msra.mxu0 %v6610
  %6647 = vmatpush.bf16.msra.mxu0 %v6609
  %6648 = vmatpush.bf16.msra.mxu0 %v6608
  %6649 = vmatpush.bf16.msra.mxu0 %v6607
  %6650 = vmatpush.bf16.msra.mxu0 %v6606
  %6651 = vmatmul.bf16.gmra.mxu0 %v6531
  %v6652 = vpop.f32.mrf.mxu0
  %v6653 = vadd.f32 %v6640, %v6652
  %v6654 = vpop.f32.mrf.mxu0
  %6655 = vdwg.mxu0
  %v6657 = vunpack.c.l.b16 %v4200
  %v6658 = vunpack.c.h.b16 %v4200
  %v6659 = vpack.c.b16 %v6657, %v6657
  %v6660 = vpack.c.b16 %v6658, %v6658
  %v6695 = vunpack.c.l.b16 %v4627
  %v6696 = vunpack.c.l.b16 %v4628
  %v6697 = vunpack.c.l.b16 %v4629
  %v6698 = vunpack.c.l.b16 %v4630
  %v6699 = vunpack.c.l.b16 %v4631
  %v6700 = vunpack.c.l.b16 %v4632
  %v6701 = vunpack.c.l.b16 %v4633
  %v6702 = vunpack.c.l.b16 %v4634
  %v6703 = vunpack.c.l.b16 %v4635
  %v6704 = vunpack.c.l.b16 %v4636
  %v6705 = vunpack.c.l.b16 %v4637
  %v6706 = vunpack.c.l.b16 %v4638
  %v6707 = vunpack.c.l.b16 %v4639
  %v6708 = vunpack.c.l.b16 %v4640
  %v6709 = vunpack.c.l.b16 %v4641
  %v6710 = vunpack.c.l.b16 %v4642
  %v6711 = vunpack.c.l.b16 %v4643
  %v6712 = vunpack.c.l.b16 %v4644
  %v6713 = vunpack.c.l.b16 %v4645
  %v6714 = vunpack.c.l.b16 %v4646
  %v6715 = vunpack.c.l.b16 %v4647
  %v6716 = vunpack.c.l.b16 %v4648
  %v6717 = vunpack.c.l.b16 %v4649
  %v6718 = vunpack.c.l.b16 %v4650
  %v6719 = vunpack.c.l.b16 %v4651
  %v6720 = vunpack.c.l.b16 %v4652
  %v6721 = vunpack.c.l.b16 %v4653
  %v6722 = vunpack.c.l.b16 %v4654
  %v6723 = vunpack.c.l.b16 %v4655
  %v6724 = vunpack.c.l.b16 %v4656
  %v6725 = vunpack.c.l.b16 %v4657
  %v6726 = vunpack.c.l.b16 %v4658
  %v6727 = vpack.c.b16 %v6696, %v6695
  %v6728 = vpack.c.b16 %v6698, %v6697
  %v6729 = vpack.c.b16 %v6700, %v6699
  %v6730 = vpack.c.b16 %v6702, %v6701
  %v6731 = vpack.c.b16 %v6704, %v6703
  %v6732 = vpack.c.b16 %v6706, %v6705
  %v6733 = vpack.c.b16 %v6708, %v6707
  %v6734 = vpack.c.b16 %v6710, %v6709
  %v6735 = vpack.c.b16 %v6712, %v6711
  %v6736 = vpack.c.b16 %v6714, %v6713
  %v6737 = vpack.c.b16 %v6716, %v6715
  %v6738 = vpack.c.b16 %v6718, %v6717
  %v6739 = vpack.c.b16 %v6720, %v6719
  %v6740 = vpack.c.b16 %v6722, %v6721
  %v6741 = vpack.c.b16 %v6724, %v6723
  %v6742 = vpack.c.b16 %v6726, %v6725
  %6759 = vmatpush.bf16.msra.mxu0 %v6734
  %6760 = vmatpush.bf16.msra.mxu0 %v6733
  %6761 = vmatpush.bf16.msra.mxu0 %v6732
  %6762 = vmatpush.bf16.msra.mxu0 %v6731
  %6763 = vmatpush.bf16.msra.mxu0 %v6730
  %6764 = vmatpush.bf16.msra.mxu0 %v6729
  %6765 = vmatpush.bf16.msra.mxu0 %v6728
  %6766 = vmatpush.bf16.msra.mxu0 %v6727
  %6767 = vmatmul.bf16.gmra.mxu0 %v6659
  %v6768 = vpop.f32.mrf.mxu0
  %v6769 = vadd.f32 0.0, %v6768
  %v6770 = vpop.f32.mrf.mxu0
  %6771 = vdwg.mxu0
  %6772 = vmatpush.bf16.msra.mxu0 %v6742
  %6773 = vmatpush.bf16.msra.mxu0 %v6741
  %6774 = vmatpush.bf16.msra.mxu0 %v6740
  %6775 = vmatpush.bf16.msra.mxu0 %v6739
  %6776 = vmatpush.bf16.msra.mxu0 %v6738
  %6777 = vmatpush.bf16.msra.mxu0 %v6737
  %6778 = vmatpush.bf16.msra.mxu0 %v6736
  %6779 = vmatpush.bf16.msra.mxu0 %v6735
  %6780 = vmatmul.bf16.gmra.mxu0 %v6660
  %v6781 = vpop.f32.mrf.mxu0
  %v6782 = vadd.f32 %v6769, %v6781
  %v6783 = vpop.f32.mrf.mxu0
  %6784 = vdwg.mxu0
  %v6786 = vunpack.c.l.b16 %v4201
  %v6787 = vunpack.c.h.b16 %v4201
  %v6788 = vpack.c.b16 %v6786, %v6786
  %v6789 = vpack.c.b16 %v6787, %v6787
  %v6824 = vunpack.c.l.b16 %v4659
  %v6825 = vunpack.c.l.b16 %v4660
  %v6826 = vunpack.c.l.b16 %v4661
  %v6827 = vunpack.c.l.b16 %v4662
  %v6828 = vunpack.c.l.b16 %v4663
  %v6829 = vunpack.c.l.b16 %v4664
  %v6830 = vunpack.c.l.b16 %v4665
  %v6831 = vunpack.c.l.b16 %v4666
  %v6832 = vunpack.c.l.b16 %v4667
  %v6833 = vunpack.c.l.b16 %v4668
  %v6834 = vunpack.c.l.b16 %v4669
  %v6835 = vunpack.c.l.b16 %v4670
  %v6836 = vunpack.c.l.b16 %v4671
  %v6837 = vunpack.c.l.b16 %v4672
  %v6838 = vunpack.c.l.b16 %v4673
  %v6839 = vunpack.c.l.b16 %v4674
  %v6840 = vunpack.c.l.b16 %v4675
  %v6841 = vunpack.c.l.b16 %v4676
  %v6842 = vunpack.c.l.b16 %v4677
  %v6843 = vunpack.c.l.b16 %v4678
  %v6844 = vunpack.c.l.b16 %v4679
  %v6845 = vunpack.c.l.b16 %v4680
  %v6846 = vunpack.c.l.b16 %v4681
  %v6847 = vunpack.c.l.b16 %v4682
  %v6848 = vunpack.c.l.b16 %v4683
  %v6849 = vunpack.c.l.b16 %v4684
  %v6850 = vunpack.c.l.b16 %v4685
  %v6851 = vunpack.c.l.b16 %v4686
  %v6852 = vunpack.c.l.b16 %v4687
  %v6853 = vunpack.c.l.b16 %v4688
  %v6854 = vunpack.c.l.b16 %v4689
  %v6855 = vunpack.c.l.b16 %v4690
  %v6856 = vpack.c.b16 %v6825, %v6824
  %v6857 = vpack.c.b16 %v6827, %v6826
  %v6858 = vpack.c.b16 %v6829, %v6828
  %v6859 = vpack.c.b16 %v6831, %v6830
  %v6860 = vpack.c.b16 %v6833, %v6832
  %v6861 = vpack.c.b16 %v6835, %v6834
  %v6862 = vpack.c.b16 %v6837, %v6836
  %v6863 = vpack.c.b16 %v6839, %v6838
  %v6864 = vpack.c.b16 %v6841, %v6840
  %v6865 = vpack.c.b16 %v6843, %v6842
  %v6866 = vpack.c.b16 %v6845, %v6844
  %v6867 = vpack.c.b16 %v6847, %v6846
  %v6868 = vpack.c.b16 %v6849, %v6848
  %v6869 = vpack.c.b16 %v6851, %v6850
  %v6870 = vpack.c.b16 %v6853, %v6852
  %v6871 = vpack.c.b16 %v6855, %v6854
  %6888 = vmatpush.bf16.msra.mxu0 %v6863
  %6889 = vmatpush.bf16.msra.mxu0 %v6862
  %6890 = vmatpush.bf16.msra.mxu0 %v6861
  %6891 = vmatpush.bf16.msra.mxu0 %v6860
  %6892 = vmatpush.bf16.msra.mxu0 %v6859
  %6893 = vmatpush.bf16.msra.mxu0 %v6858
  %6894 = vmatpush.bf16.msra.mxu0 %v6857
  %6895 = vmatpush.bf16.msra.mxu0 %v6856
  %6896 = vmatmul.bf16.gmra.mxu0 %v6788
  %v6897 = vpop.f32.mrf.mxu0
  %v6898 = vadd.f32 0.0, %v6897
  %v6899 = vpop.f32.mrf.mxu0
  %6900 = vdwg.mxu0
  %6901 = vmatpush.bf16.msra.mxu0 %v6871
  %6902 = vmatpush.bf16.msra.mxu0 %v6870
  %6903 = vmatpush.bf16.msra.mxu0 %v6869
  %6904 = vmatpush.bf16.msra.mxu0 %v6868
  %6905 = vmatpush.bf16.msra.mxu0 %v6867
  %6906 = vmatpush.bf16.msra.mxu0 %v6866
  %6907 = vmatpush.bf16.msra.mxu0 %v6865
  %6908 = vmatpush.bf16.msra.mxu0 %v6864
  %6909 = vmatmul.bf16.gmra.mxu0 %v6789
  %v6910 = vpop.f32.mrf.mxu0
  %v6911 = vadd.f32 %v6898, %v6910
  %v6912 = vpop.f32.mrf.mxu0
  %6913 = vdwg.mxu0
  %v6915 = vunpack.c.l.b16 %v4202
  %v6916 = vunpack.c.h.b16 %v4202
  %v6917 = vpack.c.b16 %v6915, %v6915
  %v6918 = vpack.c.b16 %v6916, %v6916
  %v6953 = vunpack.c.l.b16 %v4691
  %v6954 = vunpack.c.l.b16 %v4692
  %v6955 = vunpack.c.l.b16 %v4693
  %v6956 = vunpack.c.l.b16 %v4694
  %v6957 = vunpack.c.l.b16 %v4695
  %v6958 = vunpack.c.l.b16 %v4696
  %v6959 = vunpack.c.l.b16 %v4697
  %v6960 = vunpack.c.l.b16 %v4698
  %v6961 = vunpack.c.l.b16 %v4699
  %v6962 = vunpack.c.l.b16 %v4700
  %v6963 = vunpack.c.l.b16 %v4701
  %v6964 = vunpack.c.l.b16 %v4702
  %v6965 = vunpack.c.l.b16 %v4703
  %v6966 = vunpack.c.l.b16 %v4704
  %v6967 = vunpack.c.l.b16 %v4705
  %v6968 = vunpack.c.l.b16 %v4706
  %v6969 = vunpack.c.l.b16 %v4707
  %v6970 = vunpack.c.l.b16 %v4708
  %v6971 = vunpack.c.l.b16 %v4709
  %v6972 = vunpack.c.l.b16 %v4710
  %v6973 = vunpack.c.l.b16 %v4711
  %v6974 = vunpack.c.l.b16 %v4712
  %v6975 = vunpack.c.l.b16 %v4713
  %v6976 = vunpack.c.l.b16 %v4714
  %v6977 = vunpack.c.l.b16 %v4715
  %v6978 = vunpack.c.l.b16 %v4716
  %v6979 = vunpack.c.l.b16 %v4717
  %v6980 = vunpack.c.l.b16 %v4718
  %v6981 = vunpack.c.l.b16 %v4719
  %v6982 = vunpack.c.l.b16 %v4720
  %v6983 = vunpack.c.l.b16 %v4721
  %v6984 = vunpack.c.l.b16 %v4722
  %v6985 = vpack.c.b16 %v6954, %v6953
  %v6986 = vpack.c.b16 %v6956, %v6955
  %v6987 = vpack.c.b16 %v6958, %v6957
  %v6988 = vpack.c.b16 %v6960, %v6959
  %v6989 = vpack.c.b16 %v6962, %v6961
  %v6990 = vpack.c.b16 %v6964, %v6963
  %v6991 = vpack.c.b16 %v6966, %v6965
  %v6992 = vpack.c.b16 %v6968, %v6967
  %v6993 = vpack.c.b16 %v6970, %v6969
  %v6994 = vpack.c.b16 %v6972, %v6971
  %v6995 = vpack.c.b16 %v6974, %v6973
  %v6996 = vpack.c.b16 %v6976, %v6975
  %v6997 = vpack.c.b16 %v6978, %v6977
  %v6998 = vpack.c.b16 %v6980, %v6979
  %v6999 = vpack.c.b16 %v6982, %v6981
  %v7000 = vpack.c.b16 %v6984, %v6983
  %7017 = vmatpush.bf16.msra.mxu0 %v6992
  %7018 = vmatpush.bf16.msra.mxu0 %v6991
  %7019 = vmatpush.bf16.msra.mxu0 %v6990
  %7020 = vmatpush.bf16.msra.mxu0 %v6989
  %7021 = vmatpush.bf16.msra.mxu0 %v6988
  %7022 = vmatpush.bf16.msra.mxu0 %v6987
  %7023 = vmatpush.bf16.msra.mxu0 %v6986
  %7024 = vmatpush.bf16.msra.mxu0 %v6985
  %7025 = vmatmul.bf16.gmra.mxu0 %v6917
  %v7026 = vpop.f32.mrf.mxu0
  %v7027 = vadd.f32 0.0, %v7026
  %v7028 = vpop.f32.mrf.mxu0
  %7029 = vdwg.mxu0
  %7030 = vmatpush.bf16.msra.mxu0 %v7000
  %7031 = vmatpush.bf16.msra.mxu0 %v6999
  %7032 = vmatpush.bf16.msra.mxu0 %v6998
  %7033 = vmatpush.bf16.msra.mxu0 %v6997
  %7034 = vmatpush.bf16.msra.mxu0 %v6996
  %7035 = vmatpush.bf16.msra.mxu0 %v6995
  %7036 = vmatpush.bf16.msra.mxu0 %v6994
  %7037 = vmatpush.bf16.msra.mxu0 %v6993
  %7038 = vmatmul.bf16.gmra.mxu0 %v6918
  %v7039 = vpop.f32.mrf.mxu0
  %v7040 = vadd.f32 %v7027, %v7039
  %v7041 = vpop.f32.mrf.mxu0
  %7042 = vdwg.mxu0
  %v7044 = vunpack.c.l.b16 %v4203
  %v7045 = vunpack.c.h.b16 %v4203
  %v7046 = vpack.c.b16 %v7044, %v7044
  %v7047 = vpack.c.b16 %v7045, %v7045
  %v7082 = vunpack.c.l.b16 %v4723
  %v7083 = vunpack.c.l.b16 %v4724
  %v7084 = vunpack.c.l.b16 %v4725
  %v7085 = vunpack.c.l.b16 %v4726
  %v7086 = vunpack.c.l.b16 %v4727
  %v7087 = vunpack.c.l.b16 %v4728
  %v7088 = vunpack.c.l.b16 %v4729
  %v7089 = vunpack.c.l.b16 %v4730
  %v7090 = vunpack.c.l.b16 %v4731
  %v7091 = vunpack.c.l.b16 %v4732
  %v7092 = vunpack.c.l.b16 %v4733
  %v7093 = vunpack.c.l.b16 %v4734
  %v7094 = vunpack.c.l.b16 %v4735
  %v7095 = vunpack.c.l.b16 %v4736
  %v7096 = vunpack.c.l.b16 %v4737
  %v7097 = vunpack.c.l.b16 %v4738
  %v7098 = vunpack.c.l.b16 %v4739
  %v7099 = vunpack.c.l.b16 %v4740
  %v7100 = vunpack.c.l.b16 %v4741
  %v7101 = vunpack.c.l.b16 %v4742
  %v7102 = vunpack.c.l.b16 %v4743
  %v7103 = vunpack.c.l.b16 %v4744
  %v7104 = vunpack.c.l.b16 %v4745
  %v7105 = vunpack.c.l.b16 %v4746
  %v7106 = vunpack.c.l.b16 %v4747
  %v7107 = vunpack.c.l.b16 %v4748
  %v7108 = vunpack.c.l.b16 %v4749
  %v7109 = vunpack.c.l.b16 %v4750
  %v7110 = vunpack.c.l.b16 %v4751
  %v7111 = vunpack.c.l.b16 %v4752
  %v7112 = vunpack.c.l.b16 %v4753
  %v7113 = vunpack.c.l.b16 %v4754
  %v7114 = vpack.c.b16 %v7083, %v7082
  %v7115 = vpack.c.b16 %v7085, %v7084
  %v7116 = vpack.c.b16 %v7087, %v7086
  %v7117 = vpack.c.b16 %v7089, %v7088
  %v7118 = vpack.c.b16 %v7091, %v7090
  %v7119 = vpack.c.b16 %v7093, %v7092
  %v7120 = vpack.c.b16 %v7095, %v7094
  %v7121 = vpack.c.b16 %v7097, %v7096
  %v7122 = vpack.c.b16 %v7099, %v7098
  %v7123 = vpack.c.b16 %v7101, %v7100
  %v7124 = vpack.c.b16 %v7103, %v7102
  %v7125 = vpack.c.b16 %v7105, %v7104
  %v7126 = vpack.c.b16 %v7107, %v7106
  %v7127 = vpack.c.b16 %v7109, %v7108
  %v7128 = vpack.c.b16 %v7111, %v7110
  %v7129 = vpack.c.b16 %v7113, %v7112
  %7146 = vmatpush.bf16.msra.mxu0 %v7121
  %7147 = vmatpush.bf16.msra.mxu0 %v7120
  %7148 = vmatpush.bf16.msra.mxu0 %v7119
  %7149 = vmatpush.bf16.msra.mxu0 %v7118
  %7150 = vmatpush.bf16.msra.mxu0 %v7117
  %7151 = vmatpush.bf16.msra.mxu0 %v7116
  %7152 = vmatpush.bf16.msra.mxu0 %v7115
  %7153 = vmatpush.bf16.msra.mxu0 %v7114
  %7154 = vmatmul.bf16.gmra.mxu0 %v7046
  %v7155 = vpop.f32.mrf.mxu0
  %v7156 = vadd.f32 0.0, %v7155
  %v7157 = vpop.f32.mrf.mxu0
  %7158 = vdwg.mxu0
  %7159 = vmatpush.bf16.msra.mxu0 %v7129
  %7160 = vmatpush.bf16.msra.mxu0 %v7128
  %7161 = vmatpush.bf16.msra.mxu0 %v7127
  %7162 = vmatpush.bf16.msra.mxu0 %v7126
  %7163 = vmatpush.bf16.msra.mxu0 %v7125
  %7164 = vmatpush.bf16.msra.mxu0 %v7124
  %7165 = vmatpush.bf16.msra.mxu0 %v7123
  %7166 = vmatpush.bf16.msra.mxu0 %v7122
  %7167 = vmatmul.bf16.gmra.mxu0 %v7047
  %v7168 = vpop.f32.mrf.mxu0
  %v7169 = vadd.f32 %v7156, %v7168
  %v7170 = vpop.f32.mrf.mxu0
  %7171 = vdwg.mxu0
  %v7173 = vunpack.c.l.b16 %v4204
  %v7174 = vunpack.c.h.b16 %v4204
  %v7175 = vpack.c.b16 %v7173, %v7173
  %v7176 = vpack.c.b16 %v7174, %v7174
  %v7211 = vunpack.c.l.b16 %v4755
  %v7212 = vunpack.c.l.b16 %v4756
  %v7213 = vunpack.c.l.b16 %v4757
  %v7214 = vunpack.c.l.b16 %v4758
  %v7215 = vunpack.c.l.b16 %v4759
  %v7216 = vunpack.c.l.b16 %v4760
  %v7217 = vunpack.c.l.b16 %v4761
  %v7218 = vunpack.c.l.b16 %v4762
  %v7219 = vunpack.c.l.b16 %v4763
  %v7220 = vunpack.c.l.b16 %v4764
  %v7221 = vunpack.c.l.b16 %v4765
  %v7222 = vunpack.c.l.b16 %v4766
  %v7223 = vunpack.c.l.b16 %v4767
  %v7224 = vunpack.c.l.b16 %v4768
  %v7225 = vunpack.c.l.b16 %v4769
  %v7226 = vunpack.c.l.b16 %v4770
  %v7227 = vunpack.c.l.b16 %v4771
  %v7228 = vunpack.c.l.b16 %v4772
  %v7229 = vunpack.c.l.b16 %v4773
  %v7230 = vunpack.c.l.b16 %v4774
  %v7231 = vunpack.c.l.b16 %v4775
  %v7232 = vunpack.c.l.b16 %v4776
  %v7233 = vunpack.c.l.b16 %v4777
  %v7234 = vunpack.c.l.b16 %v4778
  %v7235 = vunpack.c.l.b16 %v4779
  %v7236 = vunpack.c.l.b16 %v4780
  %v7237 = vunpack.c.l.b16 %v4781
  %v7238 = vunpack.c.l.b16 %v4782
  %v7239 = vunpack.c.l.b16 %v4783
  %v7240 = vunpack.c.l.b16 %v4784
  %v7241 = vunpack.c.l.b16 %v4785
  %v7242 = vunpack.c.l.b16 %v4786
  %v7243 = vpack.c.b16 %v7212, %v7211
  %v7244 = vpack.c.b16 %v7214, %v7213
  %v7245 = vpack.c.b16 %v7216, %v7215
  %v7246 = vpack.c.b16 %v7218, %v7217
  %v7247 = vpack.c.b16 %v7220, %v7219
  %v7248 = vpack.c.b16 %v7222, %v7221
  %v7249 = vpack.c.b16 %v7224, %v7223
  %v7250 = vpack.c.b16 %v7226, %v7225
  %v7251 = vpack.c.b16 %v7228, %v7227
  %v7252 = vpack.c.b16 %v7230, %v7229
  %v7253 = vpack.c.b16 %v7232, %v7231
  %v7254 = vpack.c.b16 %v7234, %v7233
  %v7255 = vpack.c.b16 %v7236, %v7235
  %v7256 = vpack.c.b16 %v7238, %v7237
  %v7257 = vpack.c.b16 %v7240, %v7239
  %v7258 = vpack.c.b16 %v7242, %v7241
  %7275 = vmatpush.bf16.msra.mxu0 %v7250
  %7276 = vmatpush.bf16.msra.mxu0 %v7249
  %7277 = vmatpush.bf16.msra.mxu0 %v7248
  %7278 = vmatpush.bf16.msra.mxu0 %v7247
  %7279 = vmatpush.bf16.msra.mxu0 %v7246
  %7280 = vmatpush.bf16.msra.mxu0 %v7245
  %7281 = vmatpush.bf16.msra.mxu0 %v7244
  %7282 = vmatpush.bf16.msra.mxu0 %v7243
  %7283 = vmatmul.bf16.gmra.mxu0 %v7175
  %v7284 = vpop.f32.mrf.mxu0
  %v7285 = vadd.f32 0.0, %v7284
  %v7286 = vpop.f32.mrf.mxu0
  %7287 = vdwg.mxu0
  %7288 = vmatpush.bf16.msra.mxu0 %v7258
  %7289 = vmatpush.bf16.msra.mxu0 %v7257
  %7290 = vmatpush.bf16.msra.mxu0 %v7256
  %7291 = vmatpush.bf16.msra.mxu0 %v7255
  %7292 = vmatpush.bf16.msra.mxu0 %v7254
  %7293 = vmatpush.bf16.msra.mxu0 %v7253
  %7294 = vmatpush.bf16.msra.mxu0 %v7252
  %7295 = vmatpush.bf16.msra.mxu0 %v7251
  %7296 = vmatmul.bf16.gmra.mxu0 %v7176
  %v7297 = vpop.f32.mrf.mxu0
  %v7298 = vadd.f32 %v7285, %v7297
  %v7299 = vpop.f32.mrf.mxu0
  %7300 = vdwg.mxu0
  %v7302 = vunpack.c.l.b16 %v4205
  %v7303 = vunpack.c.h.b16 %v4205
  %v7304 = vpack.c.b16 %v7302, %v7302
  %v7305 = vpack.c.b16 %v7303, %v7303
  %v7340 = vunpack.c.l.b16 %v4787
  %v7341 = vunpack.c.l.b16 %v4788
  %v7342 = vunpack.c.l.b16 %v4789
  %v7343 = vunpack.c.l.b16 %v4790
  %v7344 = vunpack.c.l.b16 %v4791
  %v7345 = vunpack.c.l.b16 %v4792
  %v7346 = vunpack.c.l.b16 %v4793
  %v7347 = vunpack.c.l.b16 %v4794
  %v7348 = vunpack.c.l.b16 %v4795
  %v7349 = vunpack.c.l.b16 %v4796
  %v7350 = vunpack.c.l.b16 %v4797
  %v7351 = vunpack.c.l.b16 %v4798
  %v7352 = vunpack.c.l.b16 %v4799
  %v7353 = vunpack.c.l.b16 %v4800
  %v7354 = vunpack.c.l.b16 %v4801
  %v7355 = vunpack.c.l.b16 %v4802
  %v7356 = vunpack.c.l.b16 %v4803
  %v7357 = vunpack.c.l.b16 %v4804
  %v7358 = vunpack.c.l.b16 %v4805
  %v7359 = vunpack.c.l.b16 %v4806
  %v7360 = vunpack.c.l.b16 %v4807
  %v7361 = vunpack.c.l.b16 %v4808
  %v7362 = vunpack.c.l.b16 %v4809
  %v7363 = vunpack.c.l.b16 %v4810
  %v7364 = vunpack.c.l.b16 %v4811
  %v7365 = vunpack.c.l.b16 %v4812
  %v7366 = vunpack.c.l.b16 %v4813
  %v7367 = vunpack.c.l.b16 %v4814
  %v7368 = vunpack.c.l.b16 %v4815
  %v7369 = vunpack.c.l.b16 %v4816
  %v7370 = vunpack.c.l.b16 %v4817
  %v7371 = vunpack.c.l.b16 %v4818
  %v7372 = vpack.c.b16 %v7341, %v7340
  %v7373 = vpack.c.b16 %v7343, %v7342
  %v7374 = vpack.c.b16 %v7345, %v7344
  %v7375 = vpack.c.b16 %v7347, %v7346
  %v7376 = vpack.c.b16 %v7349, %v7348
  %v7377 = vpack.c.b16 %v7351, %v7350
  %v7378 = vpack.c.b16 %v7353, %v7352
  %v7379 = vpack.c.b16 %v7355, %v7354
  %v7380 = vpack.c.b16 %v7357, %v7356
  %v7381 = vpack.c.b16 %v7359, %v7358
  %v7382 = vpack.c.b16 %v7361, %v7360
  %v7383 = vpack.c.b16 %v7363, %v7362
  %v7384 = vpack.c.b16 %v7365, %v7364
  %v7385 = vpack.c.b16 %v7367, %v7366
  %v7386 = vpack.c.b16 %v7369, %v7368
  %v7387 = vpack.c.b16 %v7371, %v7370
  %7404 = vmatpush.bf16.msra.mxu0 %v7379
  %7405 = vmatpush.bf16.msra.mxu0 %v7378
  %7406 = vmatpush.bf16.msra.mxu0 %v7377
  %7407 = vmatpush.bf16.msra.mxu0 %v7376
  %7408 = vmatpush.bf16.msra.mxu0 %v7375
  %7409 = vmatpush.bf16.msra.mxu0 %v7374
  %7410 = vmatpush.bf16.msra.mxu0 %v7373
  %7411 = vmatpush.bf16.msra.mxu0 %v7372
  %7412 = vmatmul.bf16.gmra.mxu0 %v7304
  %v7413 = vpop.f32.mrf.mxu0
  %v7414 = vadd.f32 0.0, %v7413
  %v7415 = vpop.f32.mrf.mxu0
  %7416 = vdwg.mxu0
  %7417 = vmatpush.bf16.msra.mxu0 %v7387
  %7418 = vmatpush.bf16.msra.mxu0 %v7386
  %7419 = vmatpush.bf16.msra.mxu0 %v7385
  %7420 = vmatpush.bf16.msra.mxu0 %v7384
  %7421 = vmatpush.bf16.msra.mxu0 %v7383
  %7422 = vmatpush.bf16.msra.mxu0 %v7382
  %7423 = vmatpush.bf16.msra.mxu0 %v7381
  %7424 = vmatpush.bf16.msra.mxu0 %v7380
  %7425 = vmatmul.bf16.gmra.mxu0 %v7305
  %v7426 = vpop.f32.mrf.mxu0
  %v7427 = vadd.f32 %v7414, %v7426
  %v7428 = vpop.f32.mrf.mxu0
  %7429 = vdwg.mxu0
  %v7431 = vunpack.c.l.b16 %v4206
  %v7432 = vunpack.c.h.b16 %v4206
  %v7433 = vpack.c.b16 %v7431, %v7431
  %v7434 = vpack.c.b16 %v7432, %v7432
  %v7469 = vunpack.c.l.b16 %v4819
  %v7470 = vunpack.c.l.b16 %v4820
  %v7471 = vunpack.c.l.b16 %v4821
  %v7472 = vunpack.c.l.b16 %v4822
  %v7473 = vunpack.c.l.b16 %v4823
  %v7474 = vunpack.c.l.b16 %v4824
  %v7475 = vunpack.c.l.b16 %v4825
  %v7476 = vunpack.c.l.b16 %v4826
  %v7477 = vunpack.c.l.b16 %v4827
  %v7478 = vunpack.c.l.b16 %v4828
  %v7479 = vunpack.c.l.b16 %v4829
  %v7480 = vunpack.c.l.b16 %v4830
  %v7481 = vunpack.c.l.b16 %v4831
  %v7482 = vunpack.c.l.b16 %v4832
  %v7483 = vunpack.c.l.b16 %v4833
  %v7484 = vunpack.c.l.b16 %v4834
  %v7485 = vunpack.c.l.b16 %v4835
  %v7486 = vunpack.c.l.b16 %v4836
  %v7487 = vunpack.c.l.b16 %v4837
  %v7488 = vunpack.c.l.b16 %v4838
  %v7489 = vunpack.c.l.b16 %v4839
  %v7490 = vunpack.c.l.b16 %v4840
  %v7491 = vunpack.c.l.b16 %v4841
  %v7492 = vunpack.c.l.b16 %v4842
  %v7493 = vunpack.c.l.b16 %v4843
  %v7494 = vunpack.c.l.b16 %v4844
  %v7495 = vunpack.c.l.b16 %v4845
  %v7496 = vunpack.c.l.b16 %v4846
  %v7497 = vunpack.c.l.b16 %v4847
  %v7498 = vunpack.c.l.b16 %v4848
  %v7499 = vunpack.c.l.b16 %v4849
  %v7500 = vunpack.c.l.b16 %v4850
  %v7501 = vpack.c.b16 %v7470, %v7469
  %v7502 = vpack.c.b16 %v7472, %v7471
  %v7503 = vpack.c.b16 %v7474, %v7473
  %v7504 = vpack.c.b16 %v7476, %v7475
  %v7505 = vpack.c.b16 %v7478, %v7477
  %v7506 = vpack.c.b16 %v7480, %v7479
  %v7507 = vpack.c.b16 %v7482, %v7481
  %v7508 = vpack.c.b16 %v7484, %v7483
  %v7509 = vpack.c.b16 %v7486, %v7485
  %v7510 = vpack.c.b16 %v7488, %v7487
  %v7511 = vpack.c.b16 %v7490, %v7489
  %v7512 = vpack.c.b16 %v7492, %v7491
  %v7513 = vpack.c.b16 %v7494, %v7493
  %v7514 = vpack.c.b16 %v7496, %v7495
  %v7515 = vpack.c.b16 %v7498, %v7497
  %v7516 = vpack.c.b16 %v7500, %v7499
  %7533 = vmatpush.bf16.msra.mxu0 %v7508
  %7534 = vmatpush.bf16.msra.mxu0 %v7507
  %7535 = vmatpush.bf16.msra.mxu0 %v7506
  %7536 = vmatpush.bf16.msra.mxu0 %v7505
  %7537 = vmatpush.bf16.msra.mxu0 %v7504
  %7538 = vmatpush.bf16.msra.mxu0 %v7503
  %7539 = vmatpush.bf16.msra.mxu0 %v7502
  %7540 = vmatpush.bf16.msra.mxu0 %v7501
  %7541 = vmatmul.bf16.gmra.mxu0 %v7433
  %v7542 = vpop.f32.mrf.mxu0
  %v7543 = vadd.f32 0.0, %v7542
  %v7544 = vpop.f32.mrf.mxu0
  %7545 = vdwg.mxu0
  %7546 = vmatpush.bf16.msra.mxu0 %v7516
  %7547 = vmatpush.bf16.msra.mxu0 %v7515
  %7548 = vmatpush.bf16.msra.mxu0 %v7514
  %7549 = vmatpush.bf16.msra.mxu0 %v7513
  %7550 = vmatpush.bf16.msra.mxu0 %v7512
  %7551 = vmatpush.bf16.msra.mxu0 %v7511
  %7552 = vmatpush.bf16.msra.mxu0 %v7510
  %7553 = vmatpush.bf16.msra.mxu0 %v7509
  %7554 = vmatmul.bf16.gmra.mxu0 %v7434
  %v7555 = vpop.f32.mrf.mxu0
  %v7556 = vadd.f32 %v7543, %v7555
  %v7557 = vpop.f32.mrf.mxu0
  %7558 = vdwg.mxu0
  %v7560 = vunpack.c.l.b16 %v4207
  %v7561 = vunpack.c.h.b16 %v4207
  %v7562 = vpack.c.b16 %v7560, %v7560
  %v7563 = vpack.c.b16 %v7561, %v7561
  %v7598 = vunpack.c.l.b16 %v4851
  %v7599 = vunpack.c.l.b16 %v4852
  %v7600 = vunpack.c.l.b16 %v4853
  %v7601 = vunpack.c.l.b16 %v4854
  %v7602 = vunpack.c.l.b16 %v4855
  %v7603 = vunpack.c.l.b16 %v4856
  %v7604 = vunpack.c.l.b16 %v4857
  %v7605 = vunpack.c.l.b16 %v4858
  %v7606 = vunpack.c.l.b16 %v4859
  %v7607 = vunpack.c.l.b16 %v4860
  %v7608 = vunpack.c.l.b16 %v4861
  %v7609 = vunpack.c.l.b16 %v4862
  %v7610 = vunpack.c.l.b16 %v4863
  %v7611 = vunpack.c.l.b16 %v4864
  %v7612 = vunpack.c.l.b16 %v4865
  %v7613 = vunpack.c.l.b16 %v4866
  %v7614 = vunpack.c.l.b16 %v4867
  %v7615 = vunpack.c.l.b16 %v4868
  %v7616 = vunpack.c.l.b16 %v4869
  %v7617 = vunpack.c.l.b16 %v4870
  %v7618 = vunpack.c.l.b16 %v4871
  %v7619 = vunpack.c.l.b16 %v4872
  %v7620 = vunpack.c.l.b16 %v4873
  %v7621 = vunpack.c.l.b16 %v4874
  %v7622 = vunpack.c.l.b16 %v4875
  %v7623 = vunpack.c.l.b16 %v4876
  %v7624 = vunpack.c.l.b16 %v4877
  %v7625 = vunpack.c.l.b16 %v4878
  %v7626 = vunpack.c.l.b16 %v4879
  %v7627 = vunpack.c.l.b16 %v4880
  %v7628 = vunpack.c.l.b16 %v4881
  %v7629 = vunpack.c.l.b16 %v4882
  %v7630 = vpack.c.b16 %v7599, %v7598
  %v7631 = vpack.c.b16 %v7601, %v7600
  %v7632 = vpack.c.b16 %v7603, %v7602
  %v7633 = vpack.c.b16 %v7605, %v7604
  %v7634 = vpack.c.b16 %v7607, %v7606
  %v7635 = vpack.c.b16 %v7609, %v7608
  %v7636 = vpack.c.b16 %v7611, %v7610
  %v7637 = vpack.c.b16 %v7613, %v7612
  %v7638 = vpack.c.b16 %v7615, %v7614
  %v7639 = vpack.c.b16 %v7617, %v7616
  %v7640 = vpack.c.b16 %v7619, %v7618
  %v7641 = vpack.c.b16 %v7621, %v7620
  %v7642 = vpack.c.b16 %v7623, %v7622
  %v7643 = vpack.c.b16 %v7625, %v7624
  %v7644 = vpack.c.b16 %v7627, %v7626
  %v7645 = vpack.c.b16 %v7629, %v7628
  %7662 = vmatpush.bf16.msra.mxu0 %v7637
  %7663 = vmatpush.bf16.msra.mxu0 %v7636
  %7664 = vmatpush.bf16.msra.mxu0 %v7635
  %7665 = vmatpush.bf16.msra.mxu0 %v7634
  %7666 = vmatpush.bf16.msra.mxu0 %v7633
  %7667 = vmatpush.bf16.msra.mxu0 %v7632
  %7668 = vmatpush.bf16.msra.mxu0 %v7631
  %7669 = vmatpush.bf16.msra.mxu0 %v7630
  %7670 = vmatmul.bf16.gmra.mxu0 %v7562
  %v7671 = vpop.f32.mrf.mxu0
  %v7672 = vadd.f32 0.0, %v7671
  %v7673 = vpop.f32.mrf.mxu0
  %7674 = vdwg.mxu0
  %7675 = vmatpush.bf16.msra.mxu0 %v7645
  %7676 = vmatpush.bf16.msra.mxu0 %v7644
  %7677 = vmatpush.bf16.msra.mxu0 %v7643
  %7678 = vmatpush.bf16.msra.mxu0 %v7642
  %7679 = vmatpush.bf16.msra.mxu0 %v7641
  %7680 = vmatpush.bf16.msra.mxu0 %v7640
  %7681 = vmatpush.bf16.msra.mxu0 %v7639
  %7682 = vmatpush.bf16.msra.mxu0 %v7638
  %7683 = vmatmul.bf16.gmra.mxu0 %v7563
  %v7684 = vpop.f32.mrf.mxu0
  %v7685 = vadd.f32 %v7672, %v7684
  %v7686 = vpop.f32.mrf.mxu0
  %7687 = vdwg.mxu0
  %v7689 = vunpack.c.l.b16 %v4208
  %v7690 = vunpack.c.h.b16 %v4208
  %v7691 = vpack.c.b16 %v7689, %v7689
  %v7692 = vpack.c.b16 %v7690, %v7690
  %v7727 = vunpack.c.l.b16 %v4883
  %v7728 = vunpack.c.l.b16 %v4884
  %v7729 = vunpack.c.l.b16 %v4885
  %v7730 = vunpack.c.l.b16 %v4886
  %v7731 = vunpack.c.l.b16 %v4887
  %v7732 = vunpack.c.l.b16 %v4888
  %v7733 = vunpack.c.l.b16 %v4889
  %v7734 = vunpack.c.l.b16 %v4890
  %v7735 = vunpack.c.l.b16 %v4891
  %v7736 = vunpack.c.l.b16 %v4892
  %v7737 = vunpack.c.l.b16 %v4893
  %v7738 = vunpack.c.l.b16 %v4894
  %v7739 = vunpack.c.l.b16 %v4895
  %v7740 = vunpack.c.l.b16 %v4896
  %v7741 = vunpack.c.l.b16 %v4897
  %v7742 = vunpack.c.l.b16 %v4898
  %v7743 = vunpack.c.l.b16 %v4899
  %v7744 = vunpack.c.l.b16 %v4900
  %v7745 = vunpack.c.l.b16 %v4901
  %v7746 = vunpack.c.l.b16 %v4902
  %v7747 = vunpack.c.l.b16 %v4903
  %v7748 = vunpack.c.l.b16 %v4904
  %v7749 = vunpack.c.l.b16 %v4905
  %v7750 = vunpack.c.l.b16 %v4906
  %v7751 = vunpack.c.l.b16 %v4907
  %v7752 = vunpack.c.l.b16 %v4908
  %v7753 = vunpack.c.l.b16 %v4909
  %v7754 = vunpack.c.l.b16 %v4910
  %v7755 = vunpack.c.l.b16 %v4911
  %v7756 = vunpack.c.l.b16 %v4912
  %v7757 = vunpack.c.l.b16 %v4913
  %v7758 = vunpack.c.l.b16 %v4914
  %v7759 = vpack.c.b16 %v7728, %v7727
  %v7760 = vpack.c.b16 %v7730, %v7729
  %v7761 = vpack.c.b16 %v7732, %v7731
  %v7762 = vpack.c.b16 %v7734, %v7733
  %v7763 = vpack.c.b16 %v7736, %v7735
  %v7764 = vpack.c.b16 %v7738, %v7737
  %v7765 = vpack.c.b16 %v7740, %v7739
  %v7766 = vpack.c.b16 %v7742, %v7741
  %v7767 = vpack.c.b16 %v7744, %v7743
  %v7768 = vpack.c.b16 %v7746, %v7745
  %v7769 = vpack.c.b16 %v7748, %v7747
  %v7770 = vpack.c.b16 %v7750, %v7749
  %v7771 = vpack.c.b16 %v7752, %v7751
  %v7772 = vpack.c.b16 %v7754, %v7753
  %v7773 = vpack.c.b16 %v7756, %v7755
  %v7774 = vpack.c.b16 %v7758, %v7757
  %7791 = vmatpush.bf16.msra.mxu0 %v7766
  %7792 = vmatpush.bf16.msra.mxu0 %v7765
  %7793 = vmatpush.bf16.msra.mxu0 %v7764
  %7794 = vmatpush.bf16.msra.mxu0 %v7763
  %7795 = vmatpush.bf16.msra.mxu0 %v7762
  %7796 = vmatpush.bf16.msra.mxu0 %v7761
  %7797 = vmatpush.bf16.msra.mxu0 %v7760
  %7798 = vmatpush.bf16.msra.mxu0 %v7759
  %7799 = vmatmul.bf16.gmra.mxu0 %v7691
  %v7800 = vpop.f32.mrf.mxu0
  %v7801 = vadd.f32 0.0, %v7800
  %v7802 = vpop.f32.mrf.mxu0
  %7803 = vdwg.mxu0
  %7804 = vmatpush.bf16.msra.mxu0 %v7774
  %7805 = vmatpush.bf16.msra.mxu0 %v7773
  %7806 = vmatpush.bf16.msra.mxu0 %v7772
  %7807 = vmatpush.bf16.msra.mxu0 %v7771
  %7808 = vmatpush.bf16.msra.mxu0 %v7770
  %7809 = vmatpush.bf16.msra.mxu0 %v7769
  %7810 = vmatpush.bf16.msra.mxu0 %v7768
  %7811 = vmatpush.bf16.msra.mxu0 %v7767
  %7812 = vmatmul.bf16.gmra.mxu0 %v7692
  %v7813 = vpop.f32.mrf.mxu0
  %v7814 = vadd.f32 %v7801, %v7813
  %v7815 = vpop.f32.mrf.mxu0
  %7816 = vdwg.mxu0
  %v7818 = vunpack.c.l.b16 %v4209
  %v7819 = vunpack.c.h.b16 %v4209
  %v7820 = vpack.c.b16 %v7818, %v7818
  %v7821 = vpack.c.b16 %v7819, %v7819
  %v7856 = vunpack.c.l.b16 %v4915
  %v7857 = vunpack.c.l.b16 %v4916
  %v7858 = vunpack.c.l.b16 %v4917
  %v7859 = vunpack.c.l.b16 %v4918
  %v7860 = vunpack.c.l.b16 %v4919
  %v7861 = vunpack.c.l.b16 %v4920
  %v7862 = vunpack.c.l.b16 %v4921
  %v7863 = vunpack.c.l.b16 %v4922
  %v7864 = vunpack.c.l.b16 %v4923
  %v7865 = vunpack.c.l.b16 %v4924
  %v7866 = vunpack.c.l.b16 %v4925
  %v7867 = vunpack.c.l.b16 %v4926
  %v7868 = vunpack.c.l.b16 %v4927
  %v7869 = vunpack.c.l.b16 %v4928
  %v7870 = vunpack.c.l.b16 %v4929
  %v7871 = vunpack.c.l.b16 %v4930
  %v7872 = vunpack.c.l.b16 %v4931
  %v7873 = vunpack.c.l.b16 %v4932
  %v7874 = vunpack.c.l.b16 %v4933
  %v7875 = vunpack.c.l.b16 %v4934
  %v7876 = vunpack.c.l.b16 %v4935
  %v7877 = vunpack.c.l.b16 %v4936
  %v7878 = vunpack.c.l.b16 %v4937
  %v7879 = vunpack.c.l.b16 %v4938
  %v7880 = vunpack.c.l.b16 %v4939
  %v7881 = vunpack.c.l.b16 %v4940
  %v7882 = vunpack.c.l.b16 %v4941
  %v7883 = vunpack.c.l.b16 %v4942
  %v7884 = vunpack.c.l.b16 %v4943
  %v7885 = vunpack.c.l.b16 %v4944
  %v7886 = vunpack.c.l.b16 %v4945
  %v7887 = vunpack.c.l.b16 %v4946
  %v7888 = vpack.c.b16 %v7857, %v7856
  %v7889 = vpack.c.b16 %v7859, %v7858
  %v7890 = vpack.c.b16 %v7861, %v7860
  %v7891 = vpack.c.b16 %v7863, %v7862
  %v7892 = vpack.c.b16 %v7865, %v7864
  %v7893 = vpack.c.b16 %v7867, %v7866
  %v7894 = vpack.c.b16 %v7869, %v7868
  %v7895 = vpack.c.b16 %v7871, %v7870
  %v7896 = vpack.c.b16 %v7873, %v7872
  %v7897 = vpack.c.b16 %v7875, %v7874
  %v7898 = vpack.c.b16 %v7877, %v7876
  %v7899 = vpack.c.b16 %v7879, %v7878
  %v7900 = vpack.c.b16 %v7881, %v7880
  %v7901 = vpack.c.b16 %v7883, %v7882
  %v7902 = vpack.c.b16 %v7885, %v7884
  %v7903 = vpack.c.b16 %v7887, %v7886
  %7920 = vmatpush.bf16.msra.mxu0 %v7895
  %7921 = vmatpush.bf16.msra.mxu0 %v7894
  %7922 = vmatpush.bf16.msra.mxu0 %v7893
  %7923 = vmatpush.bf16.msra.mxu0 %v7892
  %7924 = vmatpush.bf16.msra.mxu0 %v7891
  %7925 = vmatpush.bf16.msra.mxu0 %v7890
  %7926 = vmatpush.bf16.msra.mxu0 %v7889
  %7927 = vmatpush.bf16.msra.mxu0 %v7888
  %7928 = vmatmul.bf16.gmra.mxu0 %v7820
  %v7929 = vpop.f32.mrf.mxu0
  %v7930 = vadd.f32 0.0, %v7929
  %v7931 = vpop.f32.mrf.mxu0
  %7932 = vdwg.mxu0
  %7933 = vmatpush.bf16.msra.mxu0 %v7903
  %7934 = vmatpush.bf16.msra.mxu0 %v7902
  %7935 = vmatpush.bf16.msra.mxu0 %v7901
  %7936 = vmatpush.bf16.msra.mxu0 %v7900
  %7937 = vmatpush.bf16.msra.mxu0 %v7899
  %7938 = vmatpush.bf16.msra.mxu0 %v7898
  %7939 = vmatpush.bf16.msra.mxu0 %v7897
  %7940 = vmatpush.bf16.msra.mxu0 %v7896
  %7941 = vmatmul.bf16.gmra.mxu0 %v7821
  %v7942 = vpop.f32.mrf.mxu0
  %v7943 = vadd.f32 %v7930, %v7942
  %v7944 = vpop.f32.mrf.mxu0
  %7945 = vdwg.mxu0
  %v7947 = vunpack.c.l.b16 %v4210
  %v7948 = vunpack.c.h.b16 %v4210
  %v7949 = vpack.c.b16 %v7947, %v7947
  %v7950 = vpack.c.b16 %v7948, %v7948
  %v7985 = vunpack.c.l.b16 %v4947
  %v7986 = vunpack.c.l.b16 %v4948
  %v7987 = vunpack.c.l.b16 %v4949
  %v7988 = vunpack.c.l.b16 %v4950
  %v7989 = vunpack.c.l.b16 %v4951
  %v7990 = vunpack.c.l.b16 %v4952
  %v7991 = vunpack.c.l.b16 %v4953
  %v7992 = vunpack.c.l.b16 %v4954
  %v7993 = vunpack.c.l.b16 %v4955
  %v7994 = vunpack.c.l.b16 %v4956
  %v7995 = vunpack.c.l.b16 %v4957
  %v7996 = vunpack.c.l.b16 %v4958
  %v7997 = vunpack.c.l.b16 %v4959
  %v7998 = vunpack.c.l.b16 %v4960
  %v7999 = vunpack.c.l.b16 %v4961
  %v8000 = vunpack.c.l.b16 %v4962
  %v8001 = vunpack.c.l.b16 %v4963
  %v8002 = vunpack.c.l.b16 %v4964
  %v8003 = vunpack.c.l.b16 %v4965
  %v8004 = vunpack.c.l.b16 %v4966
  %v8005 = vunpack.c.l.b16 %v4967
  %v8006 = vunpack.c.l.b16 %v4968
  %v8007 = vunpack.c.l.b16 %v4969
  %v8008 = vunpack.c.l.b16 %v4970
  %v8009 = vunpack.c.l.b16 %v4971
  %v8010 = vunpack.c.l.b16 %v4972
  %v8011 = vunpack.c.l.b16 %v4973
  %v8012 = vunpack.c.l.b16 %v4974
  %v8013 = vunpack.c.l.b16 %v4975
  %v8014 = vunpack.c.l.b16 %v4976
  %v8015 = vunpack.c.l.b16 %v4977
  %v8016 = vunpack.c.l.b16 %v4978
  %v8017 = vpack.c.b16 %v7986, %v7985
  %v8018 = vpack.c.b16 %v7988, %v7987
  %v8019 = vpack.c.b16 %v7990, %v7989
  %v8020 = vpack.c.b16 %v7992, %v7991
  %v8021 = vpack.c.b16 %v7994, %v7993
  %v8022 = vpack.c.b16 %v7996, %v7995
  %v8023 = vpack.c.b16 %v7998, %v7997
  %v8024 = vpack.c.b16 %v8000, %v7999
  %v8025 = vpack.c.b16 %v8002, %v8001
  %v8026 = vpack.c.b16 %v8004, %v8003
  %v8027 = vpack.c.b16 %v8006, %v8005
  %v8028 = vpack.c.b16 %v8008, %v8007
  %v8029 = vpack.c.b16 %v8010, %v8009
  %v8030 = vpack.c.b16 %v8012, %v8011
  %v8031 = vpack.c.b16 %v8014, %v8013
  %v8032 = vpack.c.b16 %v8016, %v8015
  %8049 = vmatpush.bf16.msra.mxu0 %v8024
  %8050 = vmatpush.bf16.msra.mxu0 %v8023
  %8051 = vmatpush.bf16.msra.mxu0 %v8022
  %8052 = vmatpush.bf16.msra.mxu0 %v8021
  %8053 = vmatpush.bf16.msra.mxu0 %v8020
  %8054 = vmatpush.bf16.msra.mxu0 %v8019
  %8055 = vmatpush.bf16.msra.mxu0 %v8018
  %8056 = vmatpush.bf16.msra.mxu0 %v8017
  %8057 = vmatmul.bf16.gmra.mxu0 %v7949
  %v8058 = vpop.f32.mrf.mxu0
  %v8059 = vadd.f32 0.0, %v8058
  %v8060 = vpop.f32.mrf.mxu0
  %8061 = vdwg.mxu0
  %8062 = vmatpush.bf16.msra.mxu0 %v8032
  %8063 = vmatpush.bf16.msra.mxu0 %v8031
  %8064 = vmatpush.bf16.msra.mxu0 %v8030
  %8065 = vmatpush.bf16.msra.mxu0 %v8029
  %8066 = vmatpush.bf16.msra.mxu0 %v8028
  %8067 = vmatpush.bf16.msra.mxu0 %v8027
  %8068 = vmatpush.bf16.msra.mxu0 %v8026
  %8069 = vmatpush.bf16.msra.mxu0 %v8025
  %8070 = vmatmul.bf16.gmra.mxu0 %v7950
  %v8071 = vpop.f32.mrf.mxu0
  %v8072 = vadd.f32 %v8059, %v8071
  %v8073 = vpop.f32.mrf.mxu0
  %8074 = vdwg.mxu0
  %v8075 = vld [vmem:[%s11] sm:$0x1]
  %vm8076 = vcmask 64512
  %v8077 = vsel %vm8076, %v5105, 0.0
  %v8078 = vsel %vm8076, %v5234, 0.0
  %v8079 = vadd.f32 %v8077, %v8078
  %v8080 = vsel %vm8076, %v5363, 0.0
  %v8081 = vadd.f32 %v8079, %v8080
  %v8082 = vsel %vm8076, %v5492, 0.0
  %v8083 = vadd.f32 %v8081, %v8082
  %v8084 = vsel %vm8076, %v5621, 0.0
  %v8085 = vadd.f32 %v8083, %v8084
  %v8086 = vsel %vm8076, %v5750, 0.0
  %v8087 = vadd.f32 %v8085, %v8086
  %v8088 = vsel %vm8076, %v5879, 0.0
  %v8089 = vadd.f32 %v8087, %v8088
  %v8090 = vsel %vm8076, %v6008, 0.0
  %v8091 = vadd.f32 %v8089, %v8090
  %v8092 = vsel %vm8076, %v6137, 0.0
  %v8093 = vadd.f32 %v8091, %v8092
  %v8094 = vsel %vm8076, %v6266, 0.0
  %v8095 = vadd.f32 %v8093, %v8094
  %v8096 = vsel %vm8076, %v6395, 0.0
  %v8097 = vadd.f32 %v8095, %v8096
  %v8098 = vsel %vm8076, %v6524, 0.0
  %v8099 = vadd.f32 %v8097, %v8098
  %v8100 = vsel %vm8076, %v6653, 0.0
  %v8101 = vadd.f32 %v8099, %v8100
  %v8102 = vsel %vm8076, %v6782, 0.0
  %v8103 = vadd.f32 %v8101, %v8102
  %v8104 = vsel %vm8076, %v6911, 0.0
  %v8105 = vadd.f32 %v8103, %v8104
  %v8106 = vsel %vm8076, %v7040, 0.0
  %v8107 = vadd.f32 %v8105, %v8106
  %v8108 = vsel %vm8076, %v7169, 0.0
  %v8109 = vadd.f32 %v8107, %v8108
  %v8110 = vsel %vm8076, %v7298, 0.0
  %v8111 = vadd.f32 %v8109, %v8110
  %v8112 = vsel %vm8076, %v7427, 0.0
  %v8113 = vadd.f32 %v8111, %v8112
  %v8114 = vsel %vm8076, %v7556, 0.0
  %v8115 = vadd.f32 %v8113, %v8114
  %v8116 = vsel %vm8076, %v7685, 0.0
  %v8117 = vadd.f32 %v8115, %v8116
  %v8118 = vsel %vm8076, %v7814, 0.0
  %v8119 = vadd.f32 %v8117, %v8118
  %v8120 = vsel %vm8076, %v7943, 0.0
  %v8121 = vadd.f32 %v8119, %v8120
  %v8122 = vsel %vm8076, %v8072, 0.0
  %v8123 = vadd.f32 %v8121, %v8122
  %v8125 = vperm.slane %v8075, 0
  %v8127 = vadd.f32 %v8125, %v8123
  %8128 = vst.msk [vmem:[%s13] sm:$0xff] %vm8076, %v8127
  // Predicated region
  $region50: #{cnn_forward.1} parent=0 // pred_check
    _
  $region51: #{cnn_forward.1} parent=0 // pred_check_branch
    %8130 = sbr.rel (0) target = $region53
  $region52: #{cnn_forward.1} parent=0 // pred_region
    _
  $region53: #{cnn_forward.1} parent=0 // pred_fallthru
    _
  // Predicated region
  $region54: #{cnn_forward.1} parent=0 // pred_check
    _
  $region55: #{cnn_forward.1} parent=0 // pred_check_branch
    %8132 = sbr.rel (0) target = $region57
  $region56: #{cnn_forward.1} parent=0 // pred_region
    _
  $region57: #{cnn_forward.1} parent=0 // pred_fallthru
    _
  // Predicated region
  $region58: #{cnn_forward.1} parent=0 // pred_check
    _
  $region59: #{cnn_forward.1} parent=0 // pred_check_branch
    %8134 = sbr.rel (0) target = $region61
  $region60: #{cnn_forward.1} parent=0 // pred_region
    _
  $region61: #{cnn_forward.1} parent=0 // pred_fallthru
    _
  // Predicated region
  $region62: #{cnn_forward.1} parent=0 // pred_check
    _
  $region63: #{cnn_forward.1} parent=0 // pred_check_branch
    %8136 = sbr.rel (0) target = $region65
  $region64: #{cnn_forward.1} parent=0 // pred_region
    _
  $region65: #{cnn_forward.1} parent=0 // pred_fallthru
    _

</llo_original>
